<compile_context>
chip_gen: v7x
topology: tpu7x:2x2x1
jax: 0.10.0
libtpu: 0.0.40
codegen_flags: <defaults>
</compile_context>

<pallas_src>
import jax
import jax.numpy as jnp
from jax.experimental import pallas as pl
from jax.experimental.pallas import tpu as pltpu

IN_FEATURES = 4410          # module spec: nn.Linear(4410, 400)
HIDDEN = 400

H_PAD = 512                 # 4 * 128 (lane-padded hidden dim)
OUT_PAD = 2 * H_PAD         # fused [mean | variance] output slab


def _round_up(x, m):
    return (x + m - 1) // m * m


def _pad_to(a, shape):
    return jnp.pad(a, [(0, s - d) for d, s in zip(a.shape, shape)])


def pack_variational_encoder_params(w1, b1, wm, bm, wv, bv):
    """Pad / cast / fuse the parameters ONCE (at init time, not per forward).

    Doing this per call would read ~9 MB f32 and write ~5.6 MB bf16 of weight
    traffic -- more HBM movement than the kernel itself at small batch.
    Weight-only int8 (v5e/v6e) or fp8-e4m3 (v7x) with per-column scales would
    roughly halve the dominant w1 read for the HBM-bound small-batch case;
    kept out of this version for simplicity/accuracy.
    """
    # dense1: keep K = 4410 unpadded (matches x; block dim == full array dim),
    # pad only the output dim to 512 lanes.  Padded columns are zero, so the
    # padded hidden units stay exactly 0 after bias + ReLU.
    w1_p = _pad_to(w1, (IN_FEATURES, H_PAD)).astype(jnp.bfloat16)
    b1_p = _pad_to(jnp.reshape(b1, (1, -1)), (1, H_PAD)).astype(jnp.float32)
    # Fused head: columns [0, H_PAD) = mean head, [H_PAD, 2*H_PAD) = variance.
    wc_p = jnp.concatenate([_pad_to(wm, (H_PAD, H_PAD)),
                            _pad_to(wv, (H_PAD, H_PAD))],
                           axis=1).astype(jnp.bfloat16)
    bc_p = jnp.concatenate([_pad_to(jnp.reshape(bm, (1, -1)), (1, H_PAD)),
                            _pad_to(jnp.reshape(bv, (1, -1)), (1, H_PAD))],
                           axis=1).astype(jnp.float32)
    return w1_p, b1_p, wc_p, bc_p


def variational_encoder_kernel(x_ref, w1_ref, b1_ref, wc_ref, bc_ref, out_ref):
    """Grid = (batch_tiles,).  Weight blocks have grid-invariant index_maps so
    they are DMA'd once and stay VMEM-resident; each step is two MXU matmuls
    plus a bias+ReLU epilogue and one unmasked, lane-dense 1024-wide store."""
    # x stays f32 in HBM (no separate pad/cast XLA pass); cast per tile here.
    x = x_ref[...].astype(jnp.bfloat16)
    h = jnp.dot(x, w1_ref[...], preferred_element_type=jnp.float32)
    h = jnp.maximum(h + b1_ref[...], 0.0)
    # NOTE: variance head has no positivity transform -- mirrors PyTorch.
    out_ref[...] = (jnp.dot(h.astype(wc_ref.dtype), wc_ref[...],
                            preferred_element_type=jnp.float32)
                    + bc_ref[...]).astype(out_ref.dtype)


def _pick_batch_tile(B):
    # Small batches: one tile, rounded to 16 rows (bf16 sublane pack).
    if B < 32:
        return _round_up(max(B, 1), 16)
    # B >= 32: ensure at least two batch tiles so the "parallel" batch axis
    # can shard across v7x's two TensorCores; cap at 256 rows (~22 MiB VMEM).
    return min(256, _round_up((B + 1) // 2, 16))


def variational_encoder(x, packed_params, *, batch_tile=None):
    w1_p, b1_p, wc_p, bc_p = packed_params
    B, K = x.shape
    assert K == IN_FEATURES

    tb = batch_tile if batch_tile is not None else _pick_batch_tile(B)
    assert tb % 8 == 0
    B_pad = _round_up(B, tb)
    if B_pad != B:
        x = jnp.pad(x, ((0, B_pad - B), (0, 0)))   # batch pad only; no K pad
    x = x.astype(jnp.float32)

    grid = (B_pad // tb,)

    flops = 2 * B_pad * IN_FEATURES * H_PAD + 2 * B_pad * H_PAD * OUT_PAD
    bytes_accessed = int(B_pad * IN_FEATURES * 4            # x read (f32)
                         + w1_p.size * 2 + wc_p.size * 2    # weights, once
                         + b1_p.size * 4 + bc_p.size * 4
                         + B_pad * OUT_PAD * 4)              # output write

    # Actual resident VMEM: double-buffered x / out tiles + (constant-index)
    # weight blocks, plus headroom for compiler-internal scratch.
    vmem_bytes = int(2 * (tb * IN_FEATURES * 4 + tb * OUT_PAD * 4)
                     + 2 * (w1_p.size * 2 + wc_p.size * 2
                            + b1_p.size * 4 + bc_p.size * 4)
                     + (8 << 20))

    out = pl.pallas_call(
        variational_encoder_kernel,
        out_shape=jax.ShapeDtypeStruct((B_pad, OUT_PAD), jnp.float32),
        grid_spec=pltpu.PrefetchScalarGridSpec(
            num_scalar_prefetch=0,
            grid=grid,
            in_specs=[
                # x streams over batch; K block = full 4410 (== array dim,
                # so the non-128-multiple last dim is allowed).
                pl.BlockSpec((tb, IN_FEATURES), lambda i: (i, 0)),
                # Constant blocks: fetched once, VMEM-resident across the grid.
                pl.BlockSpec((IN_FEATURES, H_PAD), lambda i: (0, 0)),
                pl.BlockSpec((1, H_PAD), lambda i: (0, 0)),
                pl.BlockSpec((H_PAD, OUT_PAD), lambda i: (0, 0)),
                pl.BlockSpec((1, OUT_PAD), lambda i: (0, 0)),
            ],
            out_specs=pl.BlockSpec((tb, OUT_PAD), lambda i: (i, 0)),
        ),
        compiler_params=pltpu.CompilerParams(
            dimension_semantics=("parallel",),
            vmem_limit_bytes=vmem_bytes,
        ),
        cost_estimate=pl.CostEstimate(
            flops=flops, transcendentals=0, bytes_accessed=bytes_accessed),
    )(x, w1_p, b1_p, wc_p, bc_p)

    mean = out[:B, :HIDDEN]
    variance = out[:B, H_PAD:H_PAD + HIDDEN]
    return mean, variance


def init_linear_params(key, fan_in, fan_out):
    # Deterministic init mimicking PyTorch's default Linear init
    # (uniform in [-1/sqrt(fan_in), 1/sqrt(fan_in)]).  Stored as (in, out).
    kw, kb = jax.random.split(key)
    bound = 1.0 / jnp.sqrt(jnp.float32(fan_in))
    w = jax.random.uniform(kw, (fan_in, fan_out), jnp.float32, -bound, bound)
    b = jax.random.uniform(kb, (1, fan_out), jnp.float32, -bound, bound)
    return w, b


if __name__ == "__main__":
    key = jax.random.PRNGKey(0)
    kx, k1, k2, k3 = jax.random.split(key, 4)

    B = 8
    x = jax.random.normal(kx, (B, IN_FEATURES), jnp.float32)

    w1, b1 = init_linear_params(k1, IN_FEATURES, HIDDEN)   # dense1
    wm, bm = init_linear_params(k2, HIDDEN, HIDDEN)        # mean_dense
    wv, bv = init_linear_params(k3, HIDDEN, HIDDEN)        # variance_dense

    # Pack / pad / cast weights ONCE, outside the per-call hot path.
    packed = jax.block_until_ready(
        pack_variational_encoder_params(w1, b1, wm, bm, wv, bv))

    mean, var = variational_encoder(x, packed)
    jax.block_until_ready((mean, var))

    # Reference in plain f32 JAX (kernel feeds the MXU bf16 -> looser tol).
    h_ref = jnp.maximum(x @ w1 + b1, 0.0)
    mean_ref = h_ref @ wm + bm
    var_ref = h_ref @ wv + bv
    assert mean.shape == (B, HIDDEN) and var.shape == (B, HIDDEN)
    assert jnp.allclose(mean, mean_ref, atol=5e-2, rtol=5e-2), (
        float(jnp.max(jnp.abs(mean - mean_ref))))
    assert jnp.allclose(var, var_ref, atol=5e-2, rtol=5e-2), (
        float(jnp.max(jnp.abs(var - var_ref))))

    print("KERNEL_OK")
</pallas_src>

<mosaic_0001>
module attributes {stable_mosaic.version = 11 : i64} {
  func.func @variational_encoder_kernel(%arg0: i32, %arg1: memref<16x4410xf32, #tpu.memory_space<vmem>>, %arg2: memref<4410x512xbf16, #tpu.memory_space<vmem>>, %arg3: memref<1x512xf32, #tpu.memory_space<vmem>>, %arg4: memref<512x1024xbf16, #tpu.memory_space<vmem>>, %arg5: memref<1x1024xf32, #tpu.memory_space<vmem>>, %arg6: memref<16x1024xf32, #tpu.memory_space<vmem>>) attributes {dimension_semantics = [#tpu.dimension_semantics<parallel>], iteration_bounds = array<i64: 1>, scalar_prefetch = 0 : i64, scratch_operands = 0 : i64, tpu.core_type = #tpu.core_type<tc>, window_params = [{transform_indices = @transform_0, window_bounds = array<i64: 16, 4410>}, {pipeline_mode = #tpu.pipeline_mode<synchronous>, transform_indices = @transform_1, window_bounds = array<i64: 4410, 512>}, {pipeline_mode = #tpu.pipeline_mode<synchronous>, transform_indices = @transform_2, window_bounds = array<i64: 1, 512>}, {pipeline_mode = #tpu.pipeline_mode<synchronous>, transform_indices = @transform_3, window_bounds = array<i64: 512, 1024>}, {pipeline_mode = #tpu.pipeline_mode<synchronous>, transform_indices = @transform_4, window_bounds = array<i64: 1, 1024>}, {transform_indices = @transform_5, window_bounds = array<i64: 16, 1024>}]} {
    %c0 = arith.constant 0 : index
    %c0_0 = arith.constant 0 : index
    %0 = vector.load %arg1[%c0, %c0_0] : memref<16x4410xf32, #tpu.memory_space<vmem>>, vector<16x4410xf32>
    %1 = arith.truncf %0 : vector<16x4410xf32> to vector<16x4410xbf16>
    %c0_1 = arith.constant 0 : index
    %c0_2 = arith.constant 0 : index
    %2 = vector.load %arg2[%c0_1, %c0_2] : memref<4410x512xbf16, #tpu.memory_space<vmem>>, vector<4410x512xbf16>
    %cst = arith.constant dense<0.000000e+00> : vector<16x512xf32>
    %3 = tpu.matmul %1, %2, %cst {dimension_numbers = #tpu.dot_dimension_numbers<[1], [0], [0], [1], [0, 0, 1, 1], [], []>} : vector<16x4410xbf16>, vector<4410x512xbf16>, vector<16x512xf32> -> vector<16x512xf32>
    %c0_3 = arith.constant 0 : index
    %c0_4 = arith.constant 0 : index
    %4 = vector.load %arg3[%c0_3, %c0_4] : memref<1x512xf32, #tpu.memory_space<vmem>>, vector<1x512xf32>
    %5 = vector.broadcast %4 : vector<1x512xf32> to vector<16x512xf32>
    %6 = arith.addf %3, %5 : vector<16x512xf32>
    %cst_5 = arith.constant 0.000000e+00 : f32
    %7 = vector.broadcast %cst_5 : f32 to vector<16x512xf32>
    %8 = arith.maximumf %6, %7 : vector<16x512xf32>
    %9 = arith.truncf %8 : vector<16x512xf32> to vector<16x512xbf16>
    %c0_6 = arith.constant 0 : index
    %c0_7 = arith.constant 0 : index
    %10 = vector.load %arg4[%c0_6, %c0_7] : memref<512x1024xbf16, #tpu.memory_space<vmem>>, vector<512x1024xbf16>
    %cst_8 = arith.constant dense<0.000000e+00> : vector<16x1024xf32>
    %11 = tpu.matmul %9, %10, %cst_8 {dimension_numbers = #tpu.dot_dimension_numbers<[1], [0], [0], [1], [0, 0, 1, 1], [], []>} : vector<16x512xbf16>, vector<512x1024xbf16>, vector<16x1024xf32> -> vector<16x1024xf32>
    %c0_9 = arith.constant 0 : index
    %c0_10 = arith.constant 0 : index
    %12 = vector.load %arg5[%c0_9, %c0_10] : memref<1x1024xf32, #tpu.memory_space<vmem>>, vector<1x1024xf32>
    %13 = vector.broadcast %12 : vector<1x1024xf32> to vector<16x1024xf32>
    %14 = arith.addf %11, %13 : vector<16x1024xf32>
    %c0_11 = arith.constant 0 : index
    %c0_12 = arith.constant 0 : index
    %15 = vector.load %arg6[%c0_11, %c0_12] : memref<16x1024xf32, #tpu.memory_space<vmem>>, vector<16x1024xf32>
    tpu.vector_store %arg6[%c0_11, %c0_12], %14 {strides = array<i32>} : memref<16x1024xf32, #tpu.memory_space<vmem>>, vector<16x1024xf32>,
    return
  }
  func.func @transform_0(%arg0: i32) -> (i32, i32) {
    %c0_i32 = arith.constant 0 : i32
    %c0_i32_0 = arith.constant 0 : i32
    return %arg0, %c0_i32 : i32, i32
  }
  func.func @transform_1(%arg0: i32) -> (i32, i32) {
    %c0_i32 = arith.constant 0 : i32
    %c0_i32_0 = arith.constant 0 : i32
    %c0_i32_1 = arith.constant 0 : i32
    return %c0_i32, %c0_i32_0 : i32, i32
  }
  func.func @transform_2(%arg0: i32) -> (i32, i32) {
    %c0_i32 = arith.constant 0 : i32
    %c0_i32_0 = arith.constant 0 : i32
    %c0_i32_1 = arith.constant 0 : i32
    return %c0_i32, %c0_i32_0 : i32, i32
  }
  func.func @transform_3(%arg0: i32) -> (i32, i32) {
    %c0_i32 = arith.constant 0 : i32
    %c0_i32_0 = arith.constant 0 : i32
    %c0_i32_1 = arith.constant 0 : i32
    return %c0_i32, %c0_i32_0 : i32, i32
  }
  func.func @transform_4(%arg0: i32) -> (i32, i32) {
    %c0_i32 = arith.constant 0 : i32
    %c0_i32_0 = arith.constant 0 : i32
    %c0_i32_1 = arith.constant 0 : i32
    return %c0_i32, %c0_i32_0 : i32, i32
  }
  func.func @transform_5(%arg0: i32) -> (i32, i32) {
    %c0_i32 = arith.constant 0 : i32
    %c0_i32_0 = arith.constant 0 : i32
    return %arg0, %c0_i32 : i32, i32
  }
}

</mosaic_0001>

<llo_original>
// kernel: tpu_custom_call.1
$region0: #{tpu_custom_call.1}
  #allocation0 [shape = 'u32[]', space=smem, size = 0x4, offset = 0x4, fixed_abs, tag = 'smem constant byte address 0x4 - core index']
  #allocation1 [shape = 'u32[144,128]{1,0:T(1,128)}', space=vmem, size = 0x12000, scoped, tag = 'internal scratch']
  %s0 = inlined_call_operand.hbm [shape: f32[16,4410], index: 0, kind: input, shape index: {}]
  %s1 = inlined_call_operand.hbm [shape: bf16[4410,512], index: 1, kind: input, shape index: {}]
  %s2 = inlined_call_operand.hbm [shape: f32[1,512], index: 2, kind: input, shape index: {}]
  %s3 = inlined_call_operand.hbm [shape: bf16[512,1024], index: 3, kind: input, shape index: {}]
  %s4 = inlined_call_operand.hbm [shape: f32[1,1024], index: 4, kind: input, shape index: {}]
  %s5 = inlined_call_operand.hbm [shape: f32[16,1024], index: 5, kind: output, shape index: {}]
  %s6 = sld [smem:[#allocation0]]
  $region50: #{tpu_custom_call.1} parent=0
    _
  %s8 = ssub.s32 1, %s6
  %s9 = scalar_select 0, %s8, %s6
  $region1: #{tpu_custom_call.1} parent=0
    #allocation2 [shape = 'u8[286720]{0}', space=vmem, size = 0x46000, scoped, tag = 'input window, operand 0, single buffered']
    #allocation3 [shape = 's32[1]{0}', space=sflag, size = 0x4, scoped, tag = 'scoped memory for tpu_custom_call.1']
    #allocation4 [shape = 's32[1]{0}', space=sflag, size = 0x4, scoped, tag = 'scoped memory for tpu_custom_call.1']
    #allocation5 [shape = 'u8[4521984]{0}', space=vmem, size = 0x450000, scoped, tag = 'input window, operand 1, single buffered']
    #allocation6 [shape = 's32[1]{0}', space=sflag, size = 0x4, scoped, tag = 'scoped memory for tpu_custom_call.1']
    #allocation7 [shape = 'u8[2048]{0}', space=vmem, size = 0x800, scoped, tag = 'input window, operand 2, single buffered']
    #allocation8 [shape = 'u8[1048576]{0}', space=vmem, size = 0x100000, scoped, tag = 'input window, operand 3, single buffered']
    #allocation9 [shape = 's32[1]{0}', space=sflag, size = 0x4, scoped, tag = 'scoped memory for tpu_custom_call.1']
    #allocation10 [shape = 'u8[4096]{0}', space=vmem, size = 0x1000, scoped, tag = 'input window, operand 4, single buffered']
    #allocation11 [shape = 'u8[65536]{0}', space=vmem, size = 0x10000, scoped, tag = 'output window, operand 0, single buffered']
    %10 = vsyncpa [#allocation3], 0
    %11 = vsyncpa [#allocation6], 0
    %12 = vsyncpa [#allocation9], 0
    %13 = vsyncpa [#allocation4], 0
    // Predicated region
    $region2: #{tpu_custom_call.1} parent=1 // pred_check
      _
    $region3: #{tpu_custom_call.1} parent=1 // pred_check_branch
      %15 = sbr.rel (0) target = $region5
    $region4: #{tpu_custom_call.1} parent=1 // pred_region
      %s17 = ssub.s32 8960, 8960
      %18 = vsyncadd [#allocation3], %s17
      %s19 = sshll.u32 [#allocation2], 4
      %s20 = int_to_ptr.vmem [resolvable:$true] %s19
      %25 = dma.hbm_to_vmem [thread:$0]  %s0, 8960, %s20, [#allocation3], 4480, 4480, 280
    $region5: #{tpu_custom_call.1} parent=1 // pred_fallthru
      _
    // Predicated region
    $region6: #{tpu_custom_call.1} parent=1 // pred_check
      _
    $region7: #{tpu_custom_call.1} parent=1 // pred_check_branch
      %27 = sbr.rel (0) target = $region9
    $region8: #{tpu_custom_call.1} parent=1 // pred_region
      %s29 = ssub.s32 141312, 141312
      %30 = vsyncadd [#allocation6], %s29
      %s31 = sshll.u32 [#allocation5], 4
      %s32 = int_to_ptr.vmem [resolvable:$true] %s31
      %37 = dma.hbm_to_vmem [thread:$0]  %s1, 141312, %s32, [#allocation6], 256, 256, 16
    $region9: #{tpu_custom_call.1} parent=1 // pred_fallthru
      _
    // Predicated region
    $region10: #{tpu_custom_call.1} parent=1 // pred_check
      _
    $region11: #{tpu_custom_call.1} parent=1 // pred_check_branch
      %39 = sbr.rel (0) target = $region13
    $region12: #{tpu_custom_call.1} parent=1 // pred_region
      %s41 = ssub.s32 64, 64
      %42 = vsyncadd [#allocation6], %s41
      %s44 = sshll.u32 [#allocation7], 4
      %s45 = int_to_ptr.vmem [resolvable:$true] %s44
      %47 = dma.hbm_to_vmem [thread:$0]  %s2, 64, %s45, [#allocation6]
    $region13: #{tpu_custom_call.1} parent=1 // pred_fallthru
      _
    // Predicated region
    $region14: #{tpu_custom_call.1} parent=1 // pred_check
      _
    $region15: #{tpu_custom_call.1} parent=1 // pred_check_branch
      %49 = sbr.rel (0) target = $region17
    $region16: #{tpu_custom_call.1} parent=1 // pred_region
      %s51 = ssub.s32 32768, 32768
      %52 = vsyncadd [#allocation9], %s51
      %s53 = sshll.u32 [#allocation8], 4
      %s54 = int_to_ptr.vmem [resolvable:$true] %s53
      %59 = dma.hbm_to_vmem [thread:$0]  %s3, 32768, %s54, [#allocation9], 512, 512, 32
    $region17: #{tpu_custom_call.1} parent=1 // pred_fallthru
      _
    // Predicated region
    $region18: #{tpu_custom_call.1} parent=1 // pred_check
      _
    $region19: #{tpu_custom_call.1} parent=1 // pred_check_branch
      %61 = sbr.rel (0) target = $region21
    $region20: #{tpu_custom_call.1} parent=1 // pred_region
      %s63 = ssub.s32 128, 128
      %64 = vsyncadd [#allocation9], %s63
      %s66 = sshll.u32 [#allocation10], 4
      %s67 = int_to_ptr.vmem [resolvable:$true] %s66
      %69 = dma.hbm_to_vmem [thread:$0]  %s4, 128, %s67, [#allocation9]
    $region21: #{tpu_custom_call.1} parent=1 // pred_fallthru
      _
    // Predicated region
    $region22: #{tpu_custom_call.1} parent=1 // pred_check
      _
    $region23: #{tpu_custom_call.1} parent=1 // pred_check_branch
      %71 = sbr.rel (0) target = $region25
    $region24: #{tpu_custom_call.1} parent=1 // pred_region
      %72 = dma.done [#allocation3], 8960
    $region25: #{tpu_custom_call.1} parent=1 // pred_fallthru
      _
    // Predicated region
    $region26: #{tpu_custom_call.1} parent=1 // pred_check
      _
    $region27: #{tpu_custom_call.1} parent=1 // pred_check_branch
      %74 = sbr.rel (0) target = $region29
    $region28: #{tpu_custom_call.1} parent=1 // pred_region
      %75 = dma.done [#allocation6], 141312
    $region29: #{tpu_custom_call.1} parent=1 // pred_fallthru
      _
    // Predicated region
    $region30: #{tpu_custom_call.1} parent=1 // pred_check
      _
    $region31: #{tpu_custom_call.1} parent=1 // pred_check_branch
      %77 = sbr.rel (0) target = $region33
    $region32: #{tpu_custom_call.1} parent=1 // pred_region
      %78 = dma.done [#allocation6], 64
    $region33: #{tpu_custom_call.1} parent=1 // pred_fallthru
      _
    // Predicated region
    $region34: #{tpu_custom_call.1} parent=1 // pred_check
      _
    $region35: #{tpu_custom_call.1} parent=1 // pred_check_branch
      %80 = sbr.rel (0) target = $region37
    $region36: #{tpu_custom_call.1} parent=1 // pred_region
      %81 = dma.done [#allocation9], 32768
    $region37: #{tpu_custom_call.1} parent=1 // pred_fallthru
      _
    // Predicated region
    $region38: #{tpu_custom_call.1} parent=1 // pred_check
      _
    $region39: #{tpu_custom_call.1} parent=1 // pred_check_branch
      %83 = sbr.rel (0) target = $region41
    $region40: #{tpu_custom_call.1} parent=1 // pred_region
      %84 = dma.done [#allocation9], 128
    $region41: #{tpu_custom_call.1} parent=1 // pred_fallthru
      _
    %v86 = vld [vmem:[#allocation2] sm:$0xff]
    %v87 = vld [vmem:[#allocation2 + $0x8] sm:$0xff]
    %v88 = vld [vmem:[#allocation2 + $0x10] sm:$0xff]
    %v89 = vld [vmem:[#allocation2 + $0x18] sm:$0xff]
    %v90 = vld [vmem:[#allocation2 + $0x20] sm:$0xff]
    %v91 = vld [vmem:[#allocation2 + $0x28] sm:$0xff]
    %v92 = vld [vmem:[#allocation2 + $0x30] sm:$0xff]
    %v93 = vld [vmem:[#allocation2 + $0x38] sm:$0xff]
    %v94 = vld [vmem:[#allocation2 + $0x40] sm:$0xff]
    %v95 = vld [vmem:[#allocation2 + $0x48] sm:$0xff]
    %v96 = vld [vmem:[#allocation2 + $0x50] sm:$0xff]
    %v97 = vld [vmem:[#allocation2 + $0x58] sm:$0xff]
    %v98 = vld [vmem:[#allocation2 + $0x60] sm:$0xff]
    %v99 = vld [vmem:[#allocation2 + $0x68] sm:$0xff]
    %v100 = vld [vmem:[#allocation2 + $0x70] sm:$0xff]
    %v101 = vld [vmem:[#allocation2 + $0x78] sm:$0xff]
    %v102 = vld [vmem:[#allocation2 + $0x80] sm:$0xff]
    %v103 = vld [vmem:[#allocation2 + $0x88] sm:$0xff]
    %v104 = vld [vmem:[#allocation2 + $0x90] sm:$0xff]
    %v105 = vld [vmem:[#allocation2 + $0x98] sm:$0xff]
    %v106 = vld [vmem:[#allocation2 + $0xa0] sm:$0xff]
    %v107 = vld [vmem:[#allocation2 + $0xa8] sm:$0xff]
    %v108 = vld [vmem:[#allocation2 + $0xb0] sm:$0xff]
    %v109 = vld [vmem:[#allocation2 + $0xb8] sm:$0xff]
    %v110 = vld [vmem:[#allocation2 + $0xc0] sm:$0xff]
    %v111 = vld [vmem:[#allocation2 + $0xc8] sm:$0xff]
    %v112 = vld [vmem:[#allocation2 + $0xd0] sm:$0xff]
    %v113 = vld [vmem:[#allocation2 + $0xd8] sm:$0xff]
    %v114 = vld [vmem:[#allocation2 + $0xe0] sm:$0xff]
    %v115 = vld [vmem:[#allocation2 + $0xe8] sm:$0xff]
    %v116 = vld [vmem:[#allocation2 + $0xf0] sm:$0xff]
    %v117 = vld [vmem:[#allocation2 + $0xf8] sm:$0xff]
    %v118 = vld [vmem:[#allocation2 + $0x100] sm:$0xff]
    %v119 = vld [vmem:[#allocation2 + $0x108] sm:$0xff]
    %v120 = vld [vmem:[#allocation2 + $0x110] sm:$0xff]
    %v121 = vld [vmem:[#allocation2 + $0x118] sm:$0xff]
    %v122 = vld [vmem:[#allocation2 + $0x120] sm:$0xff]
    %v123 = vld [vmem:[#allocation2 + $0x128] sm:$0xff]
    %v124 = vld [vmem:[#allocation2 + $0x130] sm:$0xff]
    %v125 = vld [vmem:[#allocation2 + $0x138] sm:$0xff]
    %v126 = vld [vmem:[#allocation2 + $0x140] sm:$0xff]
    %v127 = vld [vmem:[#allocation2 + $0x148] sm:$0xff]
    %v128 = vld [vmem:[#allocation2 + $0x150] sm:$0xff]
    %v129 = vld [vmem:[#allocation2 + $0x158] sm:$0xff]
    %v130 = vld [vmem:[#allocation2 + $0x160] sm:$0xff]
    %v131 = vld [vmem:[#allocation2 + $0x168] sm:$0xff]
    %v132 = vld [vmem:[#allocation2 + $0x170] sm:$0xff]
    %v133 = vld [vmem:[#allocation2 + $0x178] sm:$0xff]
    %v134 = vld [vmem:[#allocation2 + $0x180] sm:$0xff]
    %v135 = vld [vmem:[#allocation2 + $0x188] sm:$0xff]
    %v136 = vld [vmem:[#allocation2 + $0x190] sm:$0xff]
    %v137 = vld [vmem:[#allocation2 + $0x198] sm:$0xff]
    %v138 = vld [vmem:[#allocation2 + $0x1a0] sm:$0xff]
    %v139 = vld [vmem:[#allocation2 + $0x1a8] sm:$0xff]
    %v140 = vld [vmem:[#allocation2 + $0x1b0] sm:$0xff]
    %v141 = vld [vmem:[#allocation2 + $0x1b8] sm:$0xff]
    %v142 = vld [vmem:[#allocation2 + $0x1c0] sm:$0xff]
    %v143 = vld [vmem:[#allocation2 + $0x1c8] sm:$0xff]
    %v144 = vld [vmem:[#allocation2 + $0x1d0] sm:$0xff]
    %v145 = vld [vmem:[#allocation2 + $0x1d8] sm:$0xff]
    %v146 = vld [vmem:[#allocation2 + $0x1e0] sm:$0xff]
    %v147 = vld [vmem:[#allocation2 + $0x1e8] sm:$0xff]
    %v148 = vld [vmem:[#allocation2 + $0x1f0] sm:$0xff]
    %v149 = vld [vmem:[#allocation2 + $0x1f8] sm:$0xff]
    %v150 = vld [vmem:[#allocation2 + $0x200] sm:$0xff]
    %v151 = vld [vmem:[#allocation2 + $0x208] sm:$0xff]
    %v152 = vld [vmem:[#allocation2 + $0x210] sm:$0xff]
    %v153 = vld [vmem:[#allocation2 + $0x218] sm:$0xff]
    %v154 = vld [vmem:[#allocation2 + $0x220] sm:$0xff]
    %v155 = vld [vmem:[#allocation2 + $0x228] sm:$0xff]
    %v156 = vpack.c.bf16 %v121, %v86
    %v157 = vpack.c.bf16 %v122, %v87
    %v158 = vpack.c.bf16 %v123, %v88
    %v159 = vpack.c.bf16 %v124, %v89
    %v160 = vpack.c.bf16 %v125, %v90
    %v161 = vpack.c.bf16 %v126, %v91
    %v162 = vpack.c.bf16 %v127, %v92
    %v163 = vpack.c.bf16 %v128, %v93
    %v164 = vpack.c.bf16 %v129, %v94
    %v165 = vpack.c.bf16 %v130, %v95
    %v166 = vpack.c.bf16 %v131, %v96
    %v167 = vpack.c.bf16 %v132, %v97
    %v168 = vpack.c.bf16 %v133, %v98
    %v169 = vpack.c.bf16 %v134, %v99
    %v170 = vpack.c.bf16 %v135, %v100
    %v171 = vpack.c.bf16 %v136, %v101
    %v172 = vpack.c.bf16 %v137, %v102
    %v173 = vpack.c.bf16 %v138, %v103
    %v174 = vpack.c.bf16 %v139, %v104
    %v175 = vpack.c.bf16 %v140, %v105
    %v176 = vpack.c.bf16 %v141, %v106
    %v177 = vpack.c.bf16 %v142, %v107
    %v178 = vpack.c.bf16 %v143, %v108
    %v179 = vpack.c.bf16 %v144, %v109
    %v180 = vpack.c.bf16 %v145, %v110
    %v181 = vpack.c.bf16 %v146, %v111
    %v182 = vpack.c.bf16 %v147, %v112
    %v183 = vpack.c.bf16 %v148, %v113
    %v184 = vpack.c.bf16 %v149, %v114
    %v185 = vpack.c.bf16 %v150, %v115
    %v186 = vpack.c.bf16 %v151, %v116
    %v187 = vpack.c.bf16 %v152, %v117
    %v188 = vpack.c.bf16 %v153, %v118
    %v189 = vpack.c.bf16 %v154, %v119
    %v190 = vpack.c.bf16 %v155, %v120
    %v191 = vld [vmem:[#allocation5] sm:$0xff]
    %v192 = vld [vmem:[#allocation5 + $0x8] sm:$0xff]
    %v193 = vld [vmem:[#allocation5 + $0x10] sm:$0xff]
    %v194 = vld [vmem:[#allocation5 + $0x18] sm:$0xff]
    %v195 = vld [vmem:[#allocation5 + $0x20] sm:$0xff]
    %v196 = vld [vmem:[#allocation5 + $0x28] sm:$0xff]
    %v197 = vld [vmem:[#allocation5 + $0x30] sm:$0xff]
    %v198 = vld [vmem:[#allocation5 + $0x38] sm:$0xff]
    %v199 = vld [vmem:[#allocation5 + $0x40] sm:$0xff]
    %v200 = vld [vmem:[#allocation5 + $0x48] sm:$0xff]
    %v201 = vld [vmem:[#allocation5 + $0x50] sm:$0xff]
    %v202 = vld [vmem:[#allocation5 + $0x58] sm:$0xff]
    %v203 = vld [vmem:[#allocation5 + $0x60] sm:$0xff]
    %v204 = vld [vmem:[#allocation5 + $0x68] sm:$0xff]
    %v205 = vld [vmem:[#allocation5 + $0x70] sm:$0xff]
    %v206 = vld [vmem:[#allocation5 + $0x78] sm:$0xff]
    %v207 = vld [vmem:[#allocation5 + $0x80] sm:$0xff]
    %v208 = vld [vmem:[#allocation5 + $0x88] sm:$0xff]
    %v209 = vld [vmem:[#allocation5 + $0x90] sm:$0xff]
    %v210 = vld [vmem:[#allocation5 + $0x98] sm:$0xff]
    %v211 = vld [vmem:[#allocation5 + $0xa0] sm:$0xff]
    %v212 = vld [vmem:[#allocation5 + $0xa8] sm:$0xff]
    %v213 = vld [vmem:[#allocation5 + $0xb0] sm:$0xff]
    %v214 = vld [vmem:[#allocation5 + $0xb8] sm:$0xff]
    %v215 = vld [vmem:[#allocation5 + $0xc0] sm:$0xff]
    %v216 = vld [vmem:[#allocation5 + $0xc8] sm:$0xff]
    %v217 = vld [vmem:[#allocation5 + $0xd0] sm:$0xff]
    %v218 = vld [vmem:[#allocation5 + $0xd8] sm:$0xff]
    %v219 = vld [vmem:[#allocation5 + $0xe0] sm:$0xff]
    %v220 = vld [vmem:[#allocation5 + $0xe8] sm:$0xff]
    %v221 = vld [vmem:[#allocation5 + $0xf0] sm:$0xff]
    %v222 = vld [vmem:[#allocation5 + $0xf8] sm:$0xff]
    %v223 = vld [vmem:[#allocation5 + $0x100] sm:$0xff]
    %v224 = vld [vmem:[#allocation5 + $0x108] sm:$0xff]
    %v225 = vld [vmem:[#allocation5 + $0x110] sm:$0xff]
    %v226 = vld [vmem:[#allocation5 + $0x118] sm:$0xff]
    %v227 = vld [vmem:[#allocation5 + $0x120] sm:$0xff]
    %v228 = vld [vmem:[#allocation5 + $0x128] sm:$0xff]
    %v229 = vld [vmem:[#allocation5 + $0x130] sm:$0xff]
    %v230 = vld [vmem:[#allocation5 + $0x138] sm:$0xff]
    %v231 = vld [vmem:[#allocation5 + $0x140] sm:$0xff]
    %v232 = vld [vmem:[#allocation5 + $0x148] sm:$0xff]
    %v233 = vld [vmem:[#allocation5 + $0x150] sm:$0xff]
    %v234 = vld [vmem:[#allocation5 + $0x158] sm:$0xff]
    %v235 = vld [vmem:[#allocation5 + $0x160] sm:$0xff]
    %v236 = vld [vmem:[#allocation5 + $0x168] sm:$0xff]
    %v237 = vld [vmem:[#allocation5 + $0x170] sm:$0xff]
    %v238 = vld [vmem:[#allocation5 + $0x178] sm:$0xff]
    %v239 = vld [vmem:[#allocation5 + $0x180] sm:$0xff]
    %v240 = vld [vmem:[#allocation5 + $0x188] sm:$0xff]
    %v241 = vld [vmem:[#allocation5 + $0x190] sm:$0xff]
    %v242 = vld [vmem:[#allocation5 + $0x198] sm:$0xff]
    %v243 = vld [vmem:[#allocation5 + $0x1a0] sm:$0xff]
    %v244 = vld [vmem:[#allocation5 + $0x1a8] sm:$0xff]
    %v245 = vld [vmem:[#allocation5 + $0x1b0] sm:$0xff]
    %v246 = vld [vmem:[#allocation5 + $0x1b8] sm:$0xff]
    %v247 = vld [vmem:[#allocation5 + $0x1c0] sm:$0xff]
    %v248 = vld [vmem:[#allocation5 + $0x1c8] sm:$0xff]
    %v249 = vld [vmem:[#allocation5 + $0x1d0] sm:$0xff]
    %v250 = vld [vmem:[#allocation5 + $0x1d8] sm:$0xff]
    %v251 = vld [vmem:[#allocation5 + $0x1e0] sm:$0xff]
    %v252 = vld [vmem:[#allocation5 + $0x1e8] sm:$0xff]
    %v253 = vld [vmem:[#allocation5 + $0x1f0] sm:$0xff]
    %v254 = vld [vmem:[#allocation5 + $0x1f8] sm:$0xff]
    %v255 = vld [vmem:[#allocation5 + $0x200] sm:$0xff]
    %v256 = vld [vmem:[#allocation5 + $0x208] sm:$0xff]
    %v257 = vld [vmem:[#allocation5 + $0x210] sm:$0xff]
    %v258 = vld [vmem:[#allocation5 + $0x218] sm:$0xff]
    %v259 = vld [vmem:[#allocation5 + $0x220] sm:$0xff]
    %v260 = vld [vmem:[#allocation5 + $0x228] sm:$0xff]
    %v261 = vld [vmem:[#allocation5 + $0x230] sm:$0xff]
    %v262 = vld [vmem:[#allocation5 + $0x238] sm:$0xff]
    %v263 = vld [vmem:[#allocation5 + $0x240] sm:$0xff]
    %v264 = vld [vmem:[#allocation5 + $0x248] sm:$0xff]
    %v265 = vld [vmem:[#allocation5 + $0x250] sm:$0xff]
    %v266 = vld [vmem:[#allocation5 + $0x258] sm:$0xff]
    %v267 = vld [vmem:[#allocation5 + $0x260] sm:$0xff]
    %v268 = vld [vmem:[#allocation5 + $0x268] sm:$0xff]
    %v269 = vld [vmem:[#allocation5 + $0x270] sm:$0xff]
    %v270 = vld [vmem:[#allocation5 + $0x278] sm:$0xff]
    %v271 = vld [vmem:[#allocation5 + $0x280] sm:$0xff]
    %v272 = vld [vmem:[#allocation5 + $0x288] sm:$0xff]
    %v273 = vld [vmem:[#allocation5 + $0x290] sm:$0xff]
    %v274 = vld [vmem:[#allocation5 + $0x298] sm:$0xff]
    %v275 = vld [vmem:[#allocation5 + $0x2a0] sm:$0xff]
    %v276 = vld [vmem:[#allocation5 + $0x2a8] sm:$0xff]
    %v277 = vld [vmem:[#allocation5 + $0x2b0] sm:$0xff]
    %v278 = vld [vmem:[#allocation5 + $0x2b8] sm:$0xff]
    %v279 = vld [vmem:[#allocation5 + $0x2c0] sm:$0xff]
    %v280 = vld [vmem:[#allocation5 + $0x2c8] sm:$0xff]
    %v281 = vld [vmem:[#allocation5 + $0x2d0] sm:$0xff]
    %v282 = vld [vmem:[#allocation5 + $0x2d8] sm:$0xff]
    %v283 = vld [vmem:[#allocation5 + $0x2e0] sm:$0xff]
    %v284 = vld [vmem:[#allocation5 + $0x2e8] sm:$0xff]
    %v285 = vld [vmem:[#allocation5 + $0x2f0] sm:$0xff]
    %v286 = vld [vmem:[#allocation5 + $0x2f8] sm:$0xff]
    %v287 = vld [vmem:[#allocation5 + $0x300] sm:$0xff]
    %v288 = vld [vmem:[#allocation5 + $0x308] sm:$0xff]
    %v289 = vld [vmem:[#allocation5 + $0x310] sm:$0xff]
    %v290 = vld [vmem:[#allocation5 + $0x318] sm:$0xff]
    %v291 = vld [vmem:[#allocation5 + $0x320] sm:$0xff]
    %v292 = vld [vmem:[#allocation5 + $0x328] sm:$0xff]
    %v293 = vld [vmem:[#allocation5 + $0x330] sm:$0xff]
    %v294 = vld [vmem:[#allocation5 + $0x338] sm:$0xff]
    %v295 = vld [vmem:[#allocation5 + $0x340] sm:$0xff]
    %v296 = vld [vmem:[#allocation5 + $0x348] sm:$0xff]
    %v297 = vld [vmem:[#allocation5 + $0x350] sm:$0xff]
    %v298 = vld [vmem:[#allocation5 + $0x358] sm:$0xff]
    %v299 = vld [vmem:[#allocation5 + $0x360] sm:$0xff]
    %v300 = vld [vmem:[#allocation5 + $0x368] sm:$0xff]
    %v301 = vld [vmem:[#allocation5 + $0x370] sm:$0xff]
    %v302 = vld [vmem:[#allocation5 + $0x378] sm:$0xff]
    %v303 = vld [vmem:[#allocation5 + $0x380] sm:$0xff]
    %v304 = vld [vmem:[#allocation5 + $0x388] sm:$0xff]
    %v305 = vld [vmem:[#allocation5 + $0x390] sm:$0xff]
    %v306 = vld [vmem:[#allocation5 + $0x398] sm:$0xff]
    %v307 = vld [vmem:[#allocation5 + $0x3a0] sm:$0xff]
    %v308 = vld [vmem:[#allocation5 + $0x3a8] sm:$0xff]
    %v309 = vld [vmem:[#allocation5 + $0x3b0] sm:$0xff]
    %v310 = vld [vmem:[#allocation5 + $0x3b8] sm:$0xff]
    %v311 = vld [vmem:[#allocation5 + $0x3c0] sm:$0xff]
    %v312 = vld [vmem:[#allocation5 + $0x3c8] sm:$0xff]
    %v313 = vld [vmem:[#allocation5 + $0x3d0] sm:$0xff]
    %v314 = vld [vmem:[#allocation5 + $0x3d8] sm:$0xff]
    %v315 = vld [vmem:[#allocation5 + $0x3e0] sm:$0xff]
    %v316 = vld [vmem:[#allocation5 + $0x3e8] sm:$0xff]
    %v317 = vld [vmem:[#allocation5 + $0x3f0] sm:$0xff]
    %v318 = vld [vmem:[#allocation5 + $0x3f8] sm:$0xff]
    %v319 = vld [vmem:[#allocation5 + $0x400] sm:$0xff]
    %v320 = vld [vmem:[#allocation5 + $0x408] sm:$0xff]
    %v321 = vld [vmem:[#allocation5 + $0x410] sm:$0xff]
    %v322 = vld [vmem:[#allocation5 + $0x418] sm:$0xff]
    %v323 = vld [vmem:[#allocation5 + $0x420] sm:$0xff]
    %v324 = vld [vmem:[#allocation5 + $0x428] sm:$0xff]
    %v325 = vld [vmem:[#allocation5 + $0x430] sm:$0xff]
    %v326 = vld [vmem:[#allocation5 + $0x438] sm:$0xff]
    %v327 = vld [vmem:[#allocation5 + $0x440] sm:$0xff]
    %v328 = vld [vmem:[#allocation5 + $0x448] sm:$0xff]
    %v329 = vld [vmem:[#allocation5 + $0x450] sm:$0xff]
    %v330 = vld [vmem:[#allocation5 + $0x458] sm:$0xff]
    %v331 = vld [vmem:[#allocation5 + $0x460] sm:$0xff]
    %v332 = vld [vmem:[#allocation5 + $0x468] sm:$0xff]
    %v333 = vld [vmem:[#allocation5 + $0x470] sm:$0xff]
    %v334 = vld [vmem:[#allocation5 + $0x478] sm:$0xff]
    %v335 = vld [vmem:[#allocation5 + $0x480] sm:$0xff]
    %v336 = vld [vmem:[#allocation5 + $0x488] sm:$0xff]
    %v337 = vld [vmem:[#allocation5 + $0x490] sm:$0xff]
    %v338 = vld [vmem:[#allocation5 + $0x498] sm:$0xff]
    %v339 = vld [vmem:[#allocation5 + $0x4a0] sm:$0xff]
    %v340 = vld [vmem:[#allocation5 + $0x4a8] sm:$0xff]
    %v341 = vld [vmem:[#allocation5 + $0x4b0] sm:$0xff]
    %v342 = vld [vmem:[#allocation5 + $0x4b8] sm:$0xff]
    %v343 = vld [vmem:[#allocation5 + $0x4c0] sm:$0xff]
    %v344 = vld [vmem:[#allocation5 + $0x4c8] sm:$0xff]
    %v345 = vld [vmem:[#allocation5 + $0x4d0] sm:$0xff]
    %v346 = vld [vmem:[#allocation5 + $0x4d8] sm:$0xff]
    %v347 = vld [vmem:[#allocation5 + $0x4e0] sm:$0xff]
    %v348 = vld [vmem:[#allocation5 + $0x4e8] sm:$0xff]
    %v349 = vld [vmem:[#allocation5 + $0x4f0] sm:$0xff]
    %v350 = vld [vmem:[#allocation5 + $0x4f8] sm:$0xff]
    %v351 = vld [vmem:[#allocation5 + $0x500] sm:$0xff]
    %v352 = vld [vmem:[#allocation5 + $0x508] sm:$0xff]
    %v353 = vld [vmem:[#allocation5 + $0x510] sm:$0xff]
    %v354 = vld [vmem:[#allocation5 + $0x518] sm:$0xff]
    %v355 = vld [vmem:[#allocation5 + $0x520] sm:$0xff]
    %v356 = vld [vmem:[#allocation5 + $0x528] sm:$0xff]
    %v357 = vld [vmem:[#allocation5 + $0x530] sm:$0xff]
    %v358 = vld [vmem:[#allocation5 + $0x538] sm:$0xff]
    %v359 = vld [vmem:[#allocation5 + $0x540] sm:$0xff]
    %v360 = vld [vmem:[#allocation5 + $0x548] sm:$0xff]
    %v361 = vld [vmem:[#allocation5 + $0x550] sm:$0xff]
    %v362 = vld [vmem:[#allocation5 + $0x558] sm:$0xff]
    %v363 = vld [vmem:[#allocation5 + $0x560] sm:$0xff]
    %v364 = vld [vmem:[#allocation5 + $0x568] sm:$0xff]
    %v365 = vld [vmem:[#allocation5 + $0x570] sm:$0xff]
    %v366 = vld [vmem:[#allocation5 + $0x578] sm:$0xff]
    %v367 = vld [vmem:[#allocation5 + $0x580] sm:$0xff]
    %v368 = vld [vmem:[#allocation5 + $0x588] sm:$0xff]
    %v369 = vld [vmem:[#allocation5 + $0x590] sm:$0xff]
    %v370 = vld [vmem:[#allocation5 + $0x598] sm:$0xff]
    %v371 = vld [vmem:[#allocation5 + $0x5a0] sm:$0xff]
    %v372 = vld [vmem:[#allocation5 + $0x5a8] sm:$0xff]
    %v373 = vld [vmem:[#allocation5 + $0x5b0] sm:$0xff]
    %v374 = vld [vmem:[#allocation5 + $0x5b8] sm:$0xff]
    %v375 = vld [vmem:[#allocation5 + $0x5c0] sm:$0xff]
    %v376 = vld [vmem:[#allocation5 + $0x5c8] sm:$0xff]
    %v377 = vld [vmem:[#allocation5 + $0x5d0] sm:$0xff]
    %v378 = vld [vmem:[#allocation5 + $0x5d8] sm:$0xff]
    %v379 = vld [vmem:[#allocation5 + $0x5e0] sm:$0xff]
    %v380 = vld [vmem:[#allocation5 + $0x5e8] sm:$0xff]
    %v381 = vld [vmem:[#allocation5 + $0x5f0] sm:$0xff]
    %v382 = vld [vmem:[#allocation5 + $0x5f8] sm:$0xff]
    %v383 = vld [vmem:[#allocation5 + $0x600] sm:$0xff]
    %v384 = vld [vmem:[#allocation5 + $0x608] sm:$0xff]
    %v385 = vld [vmem:[#allocation5 + $0x610] sm:$0xff]
    %v386 = vld [vmem:[#allocation5 + $0x618] sm:$0xff]
    %v387 = vld [vmem:[#allocation5 + $0x620] sm:$0xff]
    %v388 = vld [vmem:[#allocation5 + $0x628] sm:$0xff]
    %v389 = vld [vmem:[#allocation5 + $0x630] sm:$0xff]
    %v390 = vld [vmem:[#allocation5 + $0x638] sm:$0xff]
    %v391 = vld [vmem:[#allocation5 + $0x640] sm:$0xff]
    %v392 = vld [vmem:[#allocation5 + $0x648] sm:$0xff]
    %v393 = vld [vmem:[#allocation5 + $0x650] sm:$0xff]
    %v394 = vld [vmem:[#allocation5 + $0x658] sm:$0xff]
    %v395 = vld [vmem:[#allocation5 + $0x660] sm:$0xff]
    %v396 = vld [vmem:[#allocation5 + $0x668] sm:$0xff]
    %v397 = vld [vmem:[#allocation5 + $0x670] sm:$0xff]
    %v398 = vld [vmem:[#allocation5 + $0x678] sm:$0xff]
    %v399 = vld [vmem:[#allocation5 + $0x680] sm:$0xff]
    %v400 = vld [vmem:[#allocation5 + $0x688] sm:$0xff]
    %v401 = vld [vmem:[#allocation5 + $0x690] sm:$0xff]
    %v402 = vld [vmem:[#allocation5 + $0x698] sm:$0xff]
    %v403 = vld [vmem:[#allocation5 + $0x6a0] sm:$0xff]
    %v404 = vld [vmem:[#allocation5 + $0x6a8] sm:$0xff]
    %v405 = vld [vmem:[#allocation5 + $0x6b0] sm:$0xff]
    %v406 = vld [vmem:[#allocation5 + $0x6b8] sm:$0xff]
    %v407 = vld [vmem:[#allocation5 + $0x6c0] sm:$0xff]
    %v408 = vld [vmem:[#allocation5 + $0x6c8] sm:$0xff]
    %v409 = vld [vmem:[#allocation5 + $0x6d0] sm:$0xff]
    %v410 = vld [vmem:[#allocation5 + $0x6d8] sm:$0xff]
    %v411 = vld [vmem:[#allocation5 + $0x6e0] sm:$0xff]
    %v412 = vld [vmem:[#allocation5 + $0x6e8] sm:$0xff]
    %v413 = vld [vmem:[#allocation5 + $0x6f0] sm:$0xff]
    %v414 = vld [vmem:[#allocation5 + $0x6f8] sm:$0xff]
    %v415 = vld [vmem:[#allocation5 + $0x700] sm:$0xff]
    %v416 = vld [vmem:[#allocation5 + $0x708] sm:$0xff]
    %v417 = vld [vmem:[#allocation5 + $0x710] sm:$0xff]
    %v418 = vld [vmem:[#allocation5 + $0x718] sm:$0xff]
    %v419 = vld [vmem:[#allocation5 + $0x720] sm:$0xff]
    %v420 = vld [vmem:[#allocation5 + $0x728] sm:$0xff]
    %v421 = vld [vmem:[#allocation5 + $0x730] sm:$0xff]
    %v422 = vld [vmem:[#allocation5 + $0x738] sm:$0xff]
    %v423 = vld [vmem:[#allocation5 + $0x740] sm:$0xff]
    %v424 = vld [vmem:[#allocation5 + $0x748] sm:$0xff]
    %v425 = vld [vmem:[#allocation5 + $0x750] sm:$0xff]
    %v426 = vld [vmem:[#allocation5 + $0x758] sm:$0xff]
    %v427 = vld [vmem:[#allocation5 + $0x760] sm:$0xff]
    %v428 = vld [vmem:[#allocation5 + $0x768] sm:$0xff]
    %v429 = vld [vmem:[#allocation5 + $0x770] sm:$0xff]
    %v430 = vld [vmem:[#allocation5 + $0x778] sm:$0xff]
    %v431 = vld [vmem:[#allocation5 + $0x780] sm:$0xff]
    %v432 = vld [vmem:[#allocation5 + $0x788] sm:$0xff]
    %v433 = vld [vmem:[#allocation5 + $0x790] sm:$0xff]
    %v434 = vld [vmem:[#allocation5 + $0x798] sm:$0xff]
    %v435 = vld [vmem:[#allocation5 + $0x7a0] sm:$0xff]
    %v436 = vld [vmem:[#allocation5 + $0x7a8] sm:$0xff]
    %v437 = vld [vmem:[#allocation5 + $0x7b0] sm:$0xff]
    %v438 = vld [vmem:[#allocation5 + $0x7b8] sm:$0xff]
    %v439 = vld [vmem:[#allocation5 + $0x7c0] sm:$0xff]
    %v440 = vld [vmem:[#allocation5 + $0x7c8] sm:$0xff]
    %v441 = vld [vmem:[#allocation5 + $0x7d0] sm:$0xff]
    %v442 = vld [vmem:[#allocation5 + $0x7d8] sm:$0xff]
    %v443 = vld [vmem:[#allocation5 + $0x7e0] sm:$0xff]
    %v444 = vld [vmem:[#allocation5 + $0x7e8] sm:$0xff]
    %v445 = vld [vmem:[#allocation5 + $0x7f0] sm:$0xff]
    %v446 = vld [vmem:[#allocation5 + $0x7f8] sm:$0xff]
    %v447 = vld [vmem:[#allocation5 + $0x800] sm:$0xff]
    %v448 = vld [vmem:[#allocation5 + $0x808] sm:$0xff]
    %v449 = vld [vmem:[#allocation5 + $0x810] sm:$0xff]
    %v450 = vld [vmem:[#allocation5 + $0x818] sm:$0xff]
    %v451 = vld [vmem:[#allocation5 + $0x820] sm:$0xff]
    %v452 = vld [vmem:[#allocation5 + $0x828] sm:$0xff]
    %v453 = vld [vmem:[#allocation5 + $0x830] sm:$0xff]
    %v454 = vld [vmem:[#allocation5 + $0x838] sm:$0xff]
    %v455 = vld [vmem:[#allocation5 + $0x840] sm:$0xff]
    %v456 = vld [vmem:[#allocation5 + $0x848] sm:$0xff]
    %v457 = vld [vmem:[#allocation5 + $0x850] sm:$0xff]
    %v458 = vld [vmem:[#allocation5 + $0x858] sm:$0xff]
    %v459 = vld [vmem:[#allocation5 + $0x860] sm:$0xff]
    %v460 = vld [vmem:[#allocation5 + $0x868] sm:$0xff]
    %v461 = vld [vmem:[#allocation5 + $0x870] sm:$0xff]
    %v462 = vld [vmem:[#allocation5 + $0x878] sm:$0xff]
    %v463 = vld [vmem:[#allocation5 + $0x880] sm:$0xff]
    %v464 = vld [vmem:[#allocation5 + $0x888] sm:$0xff]
    %v465 = vld [vmem:[#allocation5 + $0x890] sm:$0xff]
    %v466 = vld [vmem:[#allocation5 + $0x898] sm:$0xff]
    %v467 = vld [vmem:[#allocation5 + $0x8a0] sm:$0xff]
    %v468 = vld [vmem:[#allocation5 + $0x8a8] sm:$0xff]
    %v469 = vld [vmem:[#allocation5 + $0x8b0] sm:$0xff]
    %v470 = vld [vmem:[#allocation5 + $0x8b8] sm:$0xff]
    %v471 = vld [vmem:[#allocation5 + $0x8c0] sm:$0xff]
    %v472 = vld [vmem:[#allocation5 + $0x8c8] sm:$0xff]
    %v473 = vld [vmem:[#allocation5 + $0x8d0] sm:$0xff]
    %v474 = vld [vmem:[#allocation5 + $0x8d8] sm:$0xff]
    %v475 = vld [vmem:[#allocation5 + $0x8e0] sm:$0xff]
    %v476 = vld [vmem:[#allocation5 + $0x8e8] sm:$0xff]
    %v477 = vld [vmem:[#allocation5 + $0x8f0] sm:$0xff]
    %v478 = vld [vmem:[#allocation5 + $0x8f8] sm:$0xff]
    %v479 = vld [vmem:[#allocation5 + $0x900] sm:$0xff]
    %v480 = vld [vmem:[#allocation5 + $0x908] sm:$0xff]
    %v481 = vld [vmem:[#allocation5 + $0x910] sm:$0xff]
    %v482 = vld [vmem:[#allocation5 + $0x918] sm:$0xff]
    %v483 = vld [vmem:[#allocation5 + $0x920] sm:$0xff]
    %v484 = vld [vmem:[#allocation5 + $0x928] sm:$0xff]
    %v485 = vld [vmem:[#allocation5 + $0x930] sm:$0xff]
    %v486 = vld [vmem:[#allocation5 + $0x938] sm:$0xff]
    %v487 = vld [vmem:[#allocation5 + $0x940] sm:$0xff]
    %v488 = vld [vmem:[#allocation5 + $0x948] sm:$0xff]
    %v489 = vld [vmem:[#allocation5 + $0x950] sm:$0xff]
    %v490 = vld [vmem:[#allocation5 + $0x958] sm:$0xff]
    %v491 = vld [vmem:[#allocation5 + $0x960] sm:$0xff]
    %v492 = vld [vmem:[#allocation5 + $0x968] sm:$0xff]
    %v493 = vld [vmem:[#allocation5 + $0x970] sm:$0xff]
    %v494 = vld [vmem:[#allocation5 + $0x978] sm:$0xff]
    %v495 = vld [vmem:[#allocation5 + $0x980] sm:$0xff]
    %v496 = vld [vmem:[#allocation5 + $0x988] sm:$0xff]
    %v497 = vld [vmem:[#allocation5 + $0x990] sm:$0xff]
    %v498 = vld [vmem:[#allocation5 + $0x998] sm:$0xff]
    %v499 = vld [vmem:[#allocation5 + $0x9a0] sm:$0xff]
    %v500 = vld [vmem:[#allocation5 + $0x9a8] sm:$0xff]
    %v501 = vld [vmem:[#allocation5 + $0x9b0] sm:$0xff]
    %v502 = vld [vmem:[#allocation5 + $0x9b8] sm:$0xff]
    %v503 = vld [vmem:[#allocation5 + $0x9c0] sm:$0xff]
    %v504 = vld [vmem:[#allocation5 + $0x9c8] sm:$0xff]
    %v505 = vld [vmem:[#allocation5 + $0x9d0] sm:$0xff]
    %v506 = vld [vmem:[#allocation5 + $0x9d8] sm:$0xff]
    %v507 = vld [vmem:[#allocation5 + $0x9e0] sm:$0xff]
    %v508 = vld [vmem:[#allocation5 + $0x9e8] sm:$0xff]
    %v509 = vld [vmem:[#allocation5 + $0x9f0] sm:$0xff]
    %v510 = vld [vmem:[#allocation5 + $0x9f8] sm:$0xff]
    %v511 = vld [vmem:[#allocation5 + $0xa00] sm:$0xff]
    %v512 = vld [vmem:[#allocation5 + $0xa08] sm:$0xff]
    %v513 = vld [vmem:[#allocation5 + $0xa10] sm:$0xff]
    %v514 = vld [vmem:[#allocation5 + $0xa18] sm:$0xff]
    %v515 = vld [vmem:[#allocation5 + $0xa20] sm:$0xff]
    %v516 = vld [vmem:[#allocation5 + $0xa28] sm:$0xff]
    %v517 = vld [vmem:[#allocation5 + $0xa30] sm:$0xff]
    %v518 = vld [vmem:[#allocation5 + $0xa38] sm:$0xff]
    %v519 = vld [vmem:[#allocation5 + $0xa40] sm:$0xff]
    %v520 = vld [vmem:[#allocation5 + $0xa48] sm:$0xff]
    %v521 = vld [vmem:[#allocation5 + $0xa50] sm:$0xff]
    %v522 = vld [vmem:[#allocation5 + $0xa58] sm:$0xff]
    %v523 = vld [vmem:[#allocation5 + $0xa60] sm:$0xff]
    %v524 = vld [vmem:[#allocation5 + $0xa68] sm:$0xff]
    %v525 = vld [vmem:[#allocation5 + $0xa70] sm:$0xff]
    %v526 = vld [vmem:[#allocation5 + $0xa78] sm:$0xff]
    %v527 = vld [vmem:[#allocation5 + $0xa80] sm:$0xff]
    %v528 = vld [vmem:[#allocation5 + $0xa88] sm:$0xff]
    %v529 = vld [vmem:[#allocation5 + $0xa90] sm:$0xff]
    %v530 = vld [vmem:[#allocation5 + $0xa98] sm:$0xff]
    %v531 = vld [vmem:[#allocation5 + $0xaa0] sm:$0xff]
    %v532 = vld [vmem:[#allocation5 + $0xaa8] sm:$0xff]
    %v533 = vld [vmem:[#allocation5 + $0xab0] sm:$0xff]
    %v534 = vld [vmem:[#allocation5 + $0xab8] sm:$0xff]
    %v535 = vld [vmem:[#allocation5 + $0xac0] sm:$0xff]
    %v536 = vld [vmem:[#allocation5 + $0xac8] sm:$0xff]
    %v537 = vld [vmem:[#allocation5 + $0xad0] sm:$0xff]
    %v538 = vld [vmem:[#allocation5 + $0xad8] sm:$0xff]
    %v539 = vld [vmem:[#allocation5 + $0xae0] sm:$0xff]
    %v540 = vld [vmem:[#allocation5 + $0xae8] sm:$0xff]
    %v541 = vld [vmem:[#allocation5 + $0xaf0] sm:$0xff]
    %v542 = vld [vmem:[#allocation5 + $0xaf8] sm:$0xff]
    %v543 = vld [vmem:[#allocation5 + $0xb00] sm:$0xff]
    %v544 = vld [vmem:[#allocation5 + $0xb08] sm:$0xff]
    %v545 = vld [vmem:[#allocation5 + $0xb10] sm:$0xff]
    %v546 = vld [vmem:[#allocation5 + $0xb18] sm:$0xff]
    %v547 = vld [vmem:[#allocation5 + $0xb20] sm:$0xff]
    %v548 = vld [vmem:[#allocation5 + $0xb28] sm:$0xff]
    %v549 = vld [vmem:[#allocation5 + $0xb30] sm:$0xff]
    %v550 = vld [vmem:[#allocation5 + $0xb38] sm:$0xff]
    %v551 = vld [vmem:[#allocation5 + $0xb40] sm:$0xff]
    %v552 = vld [vmem:[#allocation5 + $0xb48] sm:$0xff]
    %v553 = vld [vmem:[#allocation5 + $0xb50] sm:$0xff]
    %v554 = vld [vmem:[#allocation5 + $0xb58] sm:$0xff]
    %v555 = vld [vmem:[#allocation5 + $0xb60] sm:$0xff]
    %v556 = vld [vmem:[#allocation5 + $0xb68] sm:$0xff]
    %v557 = vld [vmem:[#allocation5 + $0xb70] sm:$0xff]
    %v558 = vld [vmem:[#allocation5 + $0xb78] sm:$0xff]
    %v559 = vld [vmem:[#allocation5 + $0xb80] sm:$0xff]
    %v560 = vld [vmem:[#allocation5 + $0xb88] sm:$0xff]
    %v561 = vld [vmem:[#allocation5 + $0xb90] sm:$0xff]
    %v562 = vld [vmem:[#allocation5 + $0xb98] sm:$0xff]
    %v563 = vld [vmem:[#allocation5 + $0xba0] sm:$0xff]
    %v564 = vld [vmem:[#allocation5 + $0xba8] sm:$0xff]
    %v565 = vld [vmem:[#allocation5 + $0xbb0] sm:$0xff]
    %v566 = vld [vmem:[#allocation5 + $0xbb8] sm:$0xff]
    %v567 = vld [vmem:[#allocation5 + $0xbc0] sm:$0xff]
    %v568 = vld [vmem:[#allocation5 + $0xbc8] sm:$0xff]
    %v569 = vld [vmem:[#allocation5 + $0xbd0] sm:$0xff]
    %v570 = vld [vmem:[#allocation5 + $0xbd8] sm:$0xff]
    %v571 = vld [vmem:[#allocation5 + $0xbe0] sm:$0xff]
    %v572 = vld [vmem:[#allocation5 + $0xbe8] sm:$0xff]
    %v573 = vld [vmem:[#allocation5 + $0xbf0] sm:$0xff]
    %v574 = vld [vmem:[#allocation5 + $0xbf8] sm:$0xff]
    %v575 = vld [vmem:[#allocation5 + $0xc00] sm:$0xff]
    %v576 = vld [vmem:[#allocation5 + $0xc08] sm:$0xff]
    %v577 = vld [vmem:[#allocation5 + $0xc10] sm:$0xff]
    %v578 = vld [vmem:[#allocation5 + $0xc18] sm:$0xff]
    %v579 = vld [vmem:[#allocation5 + $0xc20] sm:$0xff]
    %v580 = vld [vmem:[#allocation5 + $0xc28] sm:$0xff]
    %v581 = vld [vmem:[#allocation5 + $0xc30] sm:$0xff]
    %v582 = vld [vmem:[#allocation5 + $0xc38] sm:$0xff]
    %v583 = vld [vmem:[#allocation5 + $0xc40] sm:$0xff]
    %v584 = vld [vmem:[#allocation5 + $0xc48] sm:$0xff]
    %v585 = vld [vmem:[#allocation5 + $0xc50] sm:$0xff]
    %v586 = vld [vmem:[#allocation5 + $0xc58] sm:$0xff]
    %v587 = vld [vmem:[#allocation5 + $0xc60] sm:$0xff]
    %v588 = vld [vmem:[#allocation5 + $0xc68] sm:$0xff]
    %v589 = vld [vmem:[#allocation5 + $0xc70] sm:$0xff]
    %v590 = vld [vmem:[#allocation5 + $0xc78] sm:$0xff]
    %v591 = vld [vmem:[#allocation5 + $0xc80] sm:$0xff]
    %v592 = vld [vmem:[#allocation5 + $0xc88] sm:$0xff]
    %v593 = vld [vmem:[#allocation5 + $0xc90] sm:$0xff]
    %v594 = vld [vmem:[#allocation5 + $0xc98] sm:$0xff]
    %v595 = vld [vmem:[#allocation5 + $0xca0] sm:$0xff]
    %v596 = vld [vmem:[#allocation5 + $0xca8] sm:$0xff]
    %v597 = vld [vmem:[#allocation5 + $0xcb0] sm:$0xff]
    %v598 = vld [vmem:[#allocation5 + $0xcb8] sm:$0xff]
    %v599 = vld [vmem:[#allocation5 + $0xcc0] sm:$0xff]
    %v600 = vld [vmem:[#allocation5 + $0xcc8] sm:$0xff]
    %v601 = vld [vmem:[#allocation5 + $0xcd0] sm:$0xff]
    %v602 = vld [vmem:[#allocation5 + $0xcd8] sm:$0xff]
    %v603 = vld [vmem:[#allocation5 + $0xce0] sm:$0xff]
    %v604 = vld [vmem:[#allocation5 + $0xce8] sm:$0xff]
    %v605 = vld [vmem:[#allocation5 + $0xcf0] sm:$0xff]
    %v606 = vld [vmem:[#allocation5 + $0xcf8] sm:$0xff]
    %v607 = vld [vmem:[#allocation5 + $0xd00] sm:$0xff]
    %v608 = vld [vmem:[#allocation5 + $0xd08] sm:$0xff]
    %v609 = vld [vmem:[#allocation5 + $0xd10] sm:$0xff]
    %v610 = vld [vmem:[#allocation5 + $0xd18] sm:$0xff]
    %v611 = vld [vmem:[#allocation5 + $0xd20] sm:$0xff]
    %v612 = vld [vmem:[#allocation5 + $0xd28] sm:$0xff]
    %v613 = vld [vmem:[#allocation5 + $0xd30] sm:$0xff]
    %v614 = vld [vmem:[#allocation5 + $0xd38] sm:$0xff]
    %v615 = vld [vmem:[#allocation5 + $0xd40] sm:$0xff]
    %v616 = vld [vmem:[#allocation5 + $0xd48] sm:$0xff]
    %v617 = vld [vmem:[#allocation5 + $0xd50] sm:$0xff]
    %v618 = vld [vmem:[#allocation5 + $0xd58] sm:$0xff]
    %v619 = vld [vmem:[#allocation5 + $0xd60] sm:$0xff]
    %v620 = vld [vmem:[#allocation5 + $0xd68] sm:$0xff]
    %v621 = vld [vmem:[#allocation5 + $0xd70] sm:$0xff]
    %v622 = vld [vmem:[#allocation5 + $0xd78] sm:$0xff]
    %v623 = vld [vmem:[#allocation5 + $0xd80] sm:$0xff]
    %v624 = vld [vmem:[#allocation5 + $0xd88] sm:$0xff]
    %v625 = vld [vmem:[#allocation5 + $0xd90] sm:$0xff]
    %v626 = vld [vmem:[#allocation5 + $0xd98] sm:$0xff]
    %v627 = vld [vmem:[#allocation5 + $0xda0] sm:$0xff]
    %v628 = vld [vmem:[#allocation5 + $0xda8] sm:$0xff]
    %v629 = vld [vmem:[#allocation5 + $0xdb0] sm:$0xff]
    %v630 = vld [vmem:[#allocation5 + $0xdb8] sm:$0xff]
    %v631 = vld [vmem:[#allocation5 + $0xdc0] sm:$0xff]
    %v632 = vld [vmem:[#allocation5 + $0xdc8] sm:$0xff]
    %v633 = vld [vmem:[#allocation5 + $0xdd0] sm:$0xff]
    %v634 = vld [vmem:[#allocation5 + $0xdd8] sm:$0xff]
    %v635 = vld [vmem:[#allocation5 + $0xde0] sm:$0xff]
    %v636 = vld [vmem:[#allocation5 + $0xde8] sm:$0xff]
    %v637 = vld [vmem:[#allocation5 + $0xdf0] sm:$0xff]
    %v638 = vld [vmem:[#allocation5 + $0xdf8] sm:$0xff]
    %v639 = vld [vmem:[#allocation5 + $0xe00] sm:$0xff]
    %v640 = vld [vmem:[#allocation5 + $0xe08] sm:$0xff]
    %v641 = vld [vmem:[#allocation5 + $0xe10] sm:$0xff]
    %v642 = vld [vmem:[#allocation5 + $0xe18] sm:$0xff]
    %v643 = vld [vmem:[#allocation5 + $0xe20] sm:$0xff]
    %v644 = vld [vmem:[#allocation5 + $0xe28] sm:$0xff]
    %v645 = vld [vmem:[#allocation5 + $0xe30] sm:$0xff]
    %v646 = vld [vmem:[#allocation5 + $0xe38] sm:$0xff]
    %v647 = vld [vmem:[#allocation5 + $0xe40] sm:$0xff]
    %v648 = vld [vmem:[#allocation5 + $0xe48] sm:$0xff]
    %v649 = vld [vmem:[#allocation5 + $0xe50] sm:$0xff]
    %v650 = vld [vmem:[#allocation5 + $0xe58] sm:$0xff]
    %v651 = vld [vmem:[#allocation5 + $0xe60] sm:$0xff]
    %v652 = vld [vmem:[#allocation5 + $0xe68] sm:$0xff]
    %v653 = vld [vmem:[#allocation5 + $0xe70] sm:$0xff]
    %v654 = vld [vmem:[#allocation5 + $0xe78] sm:$0xff]
    %v655 = vld [vmem:[#allocation5 + $0xe80] sm:$0xff]
    %v656 = vld [vmem:[#allocation5 + $0xe88] sm:$0xff]
    %v657 = vld [vmem:[#allocation5 + $0xe90] sm:$0xff]
    %v658 = vld [vmem:[#allocation5 + $0xe98] sm:$0xff]
    %v659 = vld [vmem:[#allocation5 + $0xea0] sm:$0xff]
    %v660 = vld [vmem:[#allocation5 + $0xea8] sm:$0xff]
    %v661 = vld [vmem:[#allocation5 + $0xeb0] sm:$0xff]
    %v662 = vld [vmem:[#allocation5 + $0xeb8] sm:$0xff]
    %v663 = vld [vmem:[#allocation5 + $0xec0] sm:$0xff]
    %v664 = vld [vmem:[#allocation5 + $0xec8] sm:$0xff]
    %v665 = vld [vmem:[#allocation5 + $0xed0] sm:$0xff]
    %v666 = vld [vmem:[#allocation5 + $0xed8] sm:$0xff]
    %v667 = vld [vmem:[#allocation5 + $0xee0] sm:$0xff]
    %v668 = vld [vmem:[#allocation5 + $0xee8] sm:$0xff]
    %v669 = vld [vmem:[#allocation5 + $0xef0] sm:$0xff]
    %v670 = vld [vmem:[#allocation5 + $0xef8] sm:$0xff]
    %v671 = vld [vmem:[#allocation5 + $0xf00] sm:$0xff]
    %v672 = vld [vmem:[#allocation5 + $0xf08] sm:$0xff]
    %v673 = vld [vmem:[#allocation5 + $0xf10] sm:$0xff]
    %v674 = vld [vmem:[#allocation5 + $0xf18] sm:$0xff]
    %v675 = vld [vmem:[#allocation5 + $0xf20] sm:$0xff]
    %v676 = vld [vmem:[#allocation5 + $0xf28] sm:$0xff]
    %v677 = vld [vmem:[#allocation5 + $0xf30] sm:$0xff]
    %v678 = vld [vmem:[#allocation5 + $0xf38] sm:$0xff]
    %v679 = vld [vmem:[#allocation5 + $0xf40] sm:$0xff]
    %v680 = vld [vmem:[#allocation5 + $0xf48] sm:$0xff]
    %v681 = vld [vmem:[#allocation5 + $0xf50] sm:$0xff]
    %v682 = vld [vmem:[#allocation5 + $0xf58] sm:$0xff]
    %v683 = vld [vmem:[#allocation5 + $0xf60] sm:$0xff]
    %v684 = vld [vmem:[#allocation5 + $0xf68] sm:$0xff]
    %v685 = vld [vmem:[#allocation5 + $0xf70] sm:$0xff]
    %v686 = vld [vmem:[#allocation5 + $0xf78] sm:$0xff]
    %v687 = vld [vmem:[#allocation5 + $0xf80] sm:$0xff]
    %v688 = vld [vmem:[#allocation5 + $0xf88] sm:$0xff]
    %v689 = vld [vmem:[#allocation5 + $0xf90] sm:$0xff]
    %v690 = vld [vmem:[#allocation5 + $0xf98] sm:$0xff]
    %v691 = vld [vmem:[#allocation5 + $0xfa0] sm:$0xff]
    %v692 = vld [vmem:[#allocation5 + $0xfa8] sm:$0xff]
    %v693 = vld [vmem:[#allocation5 + $0xfb0] sm:$0xff]
    %v694 = vld [vmem:[#allocation5 + $0xfb8] sm:$0xff]
    %v695 = vld [vmem:[#allocation5 + $0xfc0] sm:$0xff]
    %v696 = vld [vmem:[#allocation5 + $0xfc8] sm:$0xff]
    %v697 = vld [vmem:[#allocation5 + $0xfd0] sm:$0xff]
    %v698 = vld [vmem:[#allocation5 + $0xfd8] sm:$0xff]
    %v699 = vld [vmem:[#allocation5 + $0xfe0] sm:$0xff]
    %v700 = vld [vmem:[#allocation5 + $0xfe8] sm:$0xff]
    %v701 = vld [vmem:[#allocation5 + $0xff0] sm:$0xff]
    %v702 = vld [vmem:[#allocation5 + $0xff8] sm:$0xff]
    %v703 = vld [vmem:[#allocation5 + $0x1000] sm:$0xff]
    %v704 = vld [vmem:[#allocation5 + $0x1008] sm:$0xff]
    %v705 = vld [vmem:[#allocation5 + $0x1010] sm:$0xff]
    %v706 = vld [vmem:[#allocation5 + $0x1018] sm:$0xff]
    %v707 = vld [vmem:[#allocation5 + $0x1020] sm:$0xff]
    %v708 = vld [vmem:[#allocation5 + $0x1028] sm:$0xff]
    %v709 = vld [vmem:[#allocation5 + $0x1030] sm:$0xff]
    %v710 = vld [vmem:[#allocation5 + $0x1038] sm:$0xff]
    %v711 = vld [vmem:[#allocation5 + $0x1040] sm:$0xff]
    %v712 = vld [vmem:[#allocation5 + $0x1048] sm:$0xff]
    %v713 = vld [vmem:[#allocation5 + $0x1050] sm:$0xff]
    %v714 = vld [vmem:[#allocation5 + $0x1058] sm:$0xff]
    %v715 = vld [vmem:[#allocation5 + $0x1060] sm:$0xff]
    %v716 = vld [vmem:[#allocation5 + $0x1068] sm:$0xff]
    %v717 = vld [vmem:[#allocation5 + $0x1070] sm:$0xff]
    %v718 = vld [vmem:[#allocation5 + $0x1078] sm:$0xff]
    %v719 = vld [vmem:[#allocation5 + $0x1080] sm:$0xff]
    %v720 = vld [vmem:[#allocation5 + $0x1088] sm:$0xff]
    %v721 = vld [vmem:[#allocation5 + $0x1090] sm:$0xff]
    %v722 = vld [vmem:[#allocation5 + $0x1098] sm:$0xff]
    %v723 = vld [vmem:[#allocation5 + $0x10a0] sm:$0xff]
    %v724 = vld [vmem:[#allocation5 + $0x10a8] sm:$0xff]
    %v725 = vld [vmem:[#allocation5 + $0x10b0] sm:$0xff]
    %v726 = vld [vmem:[#allocation5 + $0x10b8] sm:$0xff]
    %v727 = vld [vmem:[#allocation5 + $0x10c0] sm:$0xff]
    %v728 = vld [vmem:[#allocation5 + $0x10c8] sm:$0xff]
    %v729 = vld [vmem:[#allocation5 + $0x10d0] sm:$0xff]
    %v730 = vld [vmem:[#allocation5 + $0x10d8] sm:$0xff]
    %v731 = vld [vmem:[#allocation5 + $0x10e0] sm:$0xff]
    %v732 = vld [vmem:[#allocation5 + $0x10e8] sm:$0xff]
    %v733 = vld [vmem:[#allocation5 + $0x10f0] sm:$0xff]
    %v734 = vld [vmem:[#allocation5 + $0x10f8] sm:$0xff]
    %v735 = vld [vmem:[#allocation5 + $0x1100] sm:$0xff]
    %v736 = vld [vmem:[#allocation5 + $0x1108] sm:$0xff]
    %v737 = vld [vmem:[#allocation5 + $0x1110] sm:$0xff]
    %v738 = vld [vmem:[#allocation5 + $0x1118] sm:$0xff]
    %v739 = vld [vmem:[#allocation5 + $0x1120] sm:$0xff]
    %v740 = vld [vmem:[#allocation5 + $0x1128] sm:$0xff]
    %v741 = vld [vmem:[#allocation5 + $0x1130] sm:$0xff]
    %v742 = vld [vmem:[#allocation5 + $0x1138] sm:$0xff]
    %v743 = vld [vmem:[#allocation5 + $0x1140] sm:$0xff]
    %v744 = vld [vmem:[#allocation5 + $0x1148] sm:$0xff]
    %v745 = vld [vmem:[#allocation5 + $0x1150] sm:$0xff]
    %v746 = vld [vmem:[#allocation5 + $0x1158] sm:$0xff]
    %v747 = vld [vmem:[#allocation5 + $0x1160] sm:$0xff]
    %v748 = vld [vmem:[#allocation5 + $0x1168] sm:$0xff]
    %v749 = vld [vmem:[#allocation5 + $0x1170] sm:$0xff]
    %v750 = vld [vmem:[#allocation5 + $0x1178] sm:$0xff]
    %v751 = vld [vmem:[#allocation5 + $0x1180] sm:$0xff]
    %v752 = vld [vmem:[#allocation5 + $0x1188] sm:$0xff]
    %v753 = vld [vmem:[#allocation5 + $0x1190] sm:$0xff]
    %v754 = vld [vmem:[#allocation5 + $0x1198] sm:$0xff]
    %v755 = vld [vmem:[#allocation5 + $0x11a0] sm:$0xff]
    %v756 = vld [vmem:[#allocation5 + $0x11a8] sm:$0xff]
    %v757 = vld [vmem:[#allocation5 + $0x11b0] sm:$0xff]
    %v758 = vld [vmem:[#allocation5 + $0x11b8] sm:$0xff]
    %v759 = vld [vmem:[#allocation5 + $0x11c0] sm:$0xff]
    %v760 = vld [vmem:[#allocation5 + $0x11c8] sm:$0xff]
    %v761 = vld [vmem:[#allocation5 + $0x11d0] sm:$0xff]
    %v762 = vld [vmem:[#allocation5 + $0x11d8] sm:$0xff]
    %v763 = vld [vmem:[#allocation5 + $0x11e0] sm:$0xff]
    %v764 = vld [vmem:[#allocation5 + $0x11e8] sm:$0xff]
    %v765 = vld [vmem:[#allocation5 + $0x11f0] sm:$0xff]
    %v766 = vld [vmem:[#allocation5 + $0x11f8] sm:$0xff]
    %v767 = vld [vmem:[#allocation5 + $0x1200] sm:$0xff]
    %v768 = vld [vmem:[#allocation5 + $0x1208] sm:$0xff]
    %v769 = vld [vmem:[#allocation5 + $0x1210] sm:$0xff]
    %v770 = vld [vmem:[#allocation5 + $0x1218] sm:$0xff]
    %v771 = vld [vmem:[#allocation5 + $0x1220] sm:$0xff]
    %v772 = vld [vmem:[#allocation5 + $0x1228] sm:$0xff]
    %v773 = vld [vmem:[#allocation5 + $0x1230] sm:$0xff]
    %v774 = vld [vmem:[#allocation5 + $0x1238] sm:$0xff]
    %v775 = vld [vmem:[#allocation5 + $0x1240] sm:$0xff]
    %v776 = vld [vmem:[#allocation5 + $0x1248] sm:$0xff]
    %v777 = vld [vmem:[#allocation5 + $0x1250] sm:$0xff]
    %v778 = vld [vmem:[#allocation5 + $0x1258] sm:$0xff]
    %v779 = vld [vmem:[#allocation5 + $0x1260] sm:$0xff]
    %v780 = vld [vmem:[#allocation5 + $0x1268] sm:$0xff]
    %v781 = vld [vmem:[#allocation5 + $0x1270] sm:$0xff]
    %v782 = vld [vmem:[#allocation5 + $0x1278] sm:$0xff]
    %v783 = vld [vmem:[#allocation5 + $0x1280] sm:$0xff]
    %v784 = vld [vmem:[#allocation5 + $0x1288] sm:$0xff]
    %v785 = vld [vmem:[#allocation5 + $0x1290] sm:$0xff]
    %v786 = vld [vmem:[#allocation5 + $0x1298] sm:$0xff]
    %v787 = vld [vmem:[#allocation5 + $0x12a0] sm:$0xff]
    %v788 = vld [vmem:[#allocation5 + $0x12a8] sm:$0xff]
    %v789 = vld [vmem:[#allocation5 + $0x12b0] sm:$0xff]
    %v790 = vld [vmem:[#allocation5 + $0x12b8] sm:$0xff]
    %v791 = vld [vmem:[#allocation5 + $0x12c0] sm:$0xff]
    %v792 = vld [vmem:[#allocation5 + $0x12c8] sm:$0xff]
    %v793 = vld [vmem:[#allocation5 + $0x12d0] sm:$0xff]
    %v794 = vld [vmem:[#allocation5 + $0x12d8] sm:$0xff]
    %v795 = vld [vmem:[#allocation5 + $0x12e0] sm:$0xff]
    %v796 = vld [vmem:[#allocation5 + $0x12e8] sm:$0xff]
    %v797 = vld [vmem:[#allocation5 + $0x12f0] sm:$0xff]
    %v798 = vld [vmem:[#allocation5 + $0x12f8] sm:$0xff]
    %v799 = vld [vmem:[#allocation5 + $0x1300] sm:$0xff]
    %v800 = vld [vmem:[#allocation5 + $0x1308] sm:$0xff]
    %v801 = vld [vmem:[#allocation5 + $0x1310] sm:$0xff]
    %v802 = vld [vmem:[#allocation5 + $0x1318] sm:$0xff]
    %v803 = vld [vmem:[#allocation5 + $0x1320] sm:$0xff]
    %v804 = vld [vmem:[#allocation5 + $0x1328] sm:$0xff]
    %v805 = vld [vmem:[#allocation5 + $0x1330] sm:$0xff]
    %v806 = vld [vmem:[#allocation5 + $0x1338] sm:$0xff]
    %v807 = vld [vmem:[#allocation5 + $0x1340] sm:$0xff]
    %v808 = vld [vmem:[#allocation5 + $0x1348] sm:$0xff]
    %v809 = vld [vmem:[#allocation5 + $0x1350] sm:$0xff]
    %v810 = vld [vmem:[#allocation5 + $0x1358] sm:$0xff]
    %v811 = vld [vmem:[#allocation5 + $0x1360] sm:$0xff]
    %v812 = vld [vmem:[#allocation5 + $0x1368] sm:$0xff]
    %v813 = vld [vmem:[#allocation5 + $0x1370] sm:$0xff]
    %v814 = vld [vmem:[#allocation5 + $0x1378] sm:$0xff]
    %v815 = vld [vmem:[#allocation5 + $0x1380] sm:$0xff]
    %v816 = vld [vmem:[#allocation5 + $0x1388] sm:$0xff]
    %v817 = vld [vmem:[#allocation5 + $0x1390] sm:$0xff]
    %v818 = vld [vmem:[#allocation5 + $0x1398] sm:$0xff]
    %v819 = vld [vmem:[#allocation5 + $0x13a0] sm:$0xff]
    %v820 = vld [vmem:[#allocation5 + $0x13a8] sm:$0xff]
    %v821 = vld [vmem:[#allocation5 + $0x13b0] sm:$0xff]
    %v822 = vld [vmem:[#allocation5 + $0x13b8] sm:$0xff]
    %v823 = vld [vmem:[#allocation5 + $0x13c0] sm:$0xff]
    %v824 = vld [vmem:[#allocation5 + $0x13c8] sm:$0xff]
    %v825 = vld [vmem:[#allocation5 + $0x13d0] sm:$0xff]
    %v826 = vld [vmem:[#allocation5 + $0x13d8] sm:$0xff]
    %v827 = vld [vmem:[#allocation5 + $0x13e0] sm:$0xff]
    %v828 = vld [vmem:[#allocation5 + $0x13e8] sm:$0xff]
    %v829 = vld [vmem:[#allocation5 + $0x13f0] sm:$0xff]
    %v830 = vld [vmem:[#allocation5 + $0x13f8] sm:$0xff]
    %v831 = vld [vmem:[#allocation5 + $0x1400] sm:$0xff]
    %v832 = vld [vmem:[#allocation5 + $0x1408] sm:$0xff]
    %v833 = vld [vmem:[#allocation5 + $0x1410] sm:$0xff]
    %v834 = vld [vmem:[#allocation5 + $0x1418] sm:$0xff]
    %v835 = vld [vmem:[#allocation5 + $0x1420] sm:$0xff]
    %v836 = vld [vmem:[#allocation5 + $0x1428] sm:$0xff]
    %v837 = vld [vmem:[#allocation5 + $0x1430] sm:$0xff]
    %v838 = vld [vmem:[#allocation5 + $0x1438] sm:$0xff]
    %v839 = vld [vmem:[#allocation5 + $0x1440] sm:$0xff]
    %v840 = vld [vmem:[#allocation5 + $0x1448] sm:$0xff]
    %v841 = vld [vmem:[#allocation5 + $0x1450] sm:$0xff]
    %v842 = vld [vmem:[#allocation5 + $0x1458] sm:$0xff]
    %v843 = vld [vmem:[#allocation5 + $0x1460] sm:$0xff]
    %v844 = vld [vmem:[#allocation5 + $0x1468] sm:$0xff]
    %v845 = vld [vmem:[#allocation5 + $0x1470] sm:$0xff]
    %v846 = vld [vmem:[#allocation5 + $0x1478] sm:$0xff]
    %v847 = vld [vmem:[#allocation5 + $0x1480] sm:$0xff]
    %v848 = vld [vmem:[#allocation5 + $0x1488] sm:$0xff]
    %v849 = vld [vmem:[#allocation5 + $0x1490] sm:$0xff]
    %v850 = vld [vmem:[#allocation5 + $0x1498] sm:$0xff]
    %v851 = vld [vmem:[#allocation5 + $0x14a0] sm:$0xff]
    %v852 = vld [vmem:[#allocation5 + $0x14a8] sm:$0xff]
    %v853 = vld [vmem:[#allocation5 + $0x14b0] sm:$0xff]
    %v854 = vld [vmem:[#allocation5 + $0x14b8] sm:$0xff]
    %v855 = vld [vmem:[#allocation5 + $0x14c0] sm:$0xff]
    %v856 = vld [vmem:[#allocation5 + $0x14c8] sm:$0xff]
    %v857 = vld [vmem:[#allocation5 + $0x14d0] sm:$0xff]
    %v858 = vld [vmem:[#allocation5 + $0x14d8] sm:$0xff]
    %v859 = vld [vmem:[#allocation5 + $0x14e0] sm:$0xff]
    %v860 = vld [vmem:[#allocation5 + $0x14e8] sm:$0xff]
    %v861 = vld [vmem:[#allocation5 + $0x14f0] sm:$0xff]
    %v862 = vld [vmem:[#allocation5 + $0x14f8] sm:$0xff]
    %v863 = vld [vmem:[#allocation5 + $0x1500] sm:$0xff]
    %v864 = vld [vmem:[#allocation5 + $0x1508] sm:$0xff]
    %v865 = vld [vmem:[#allocation5 + $0x1510] sm:$0xff]
    %v866 = vld [vmem:[#allocation5 + $0x1518] sm:$0xff]
    %v867 = vld [vmem:[#allocation5 + $0x1520] sm:$0xff]
    %v868 = vld [vmem:[#allocation5 + $0x1528] sm:$0xff]
    %v869 = vld [vmem:[#allocation5 + $0x1530] sm:$0xff]
    %v870 = vld [vmem:[#allocation5 + $0x1538] sm:$0xff]
    %v871 = vld [vmem:[#allocation5 + $0x1540] sm:$0xff]
    %v872 = vld [vmem:[#allocation5 + $0x1548] sm:$0xff]
    %v873 = vld [vmem:[#allocation5 + $0x1550] sm:$0xff]
    %v874 = vld [vmem:[#allocation5 + $0x1558] sm:$0xff]
    %v875 = vld [vmem:[#allocation5 + $0x1560] sm:$0xff]
    %v876 = vld [vmem:[#allocation5 + $0x1568] sm:$0xff]
    %v877 = vld [vmem:[#allocation5 + $0x1570] sm:$0xff]
    %v878 = vld [vmem:[#allocation5 + $0x1578] sm:$0xff]
    %v879 = vld [vmem:[#allocation5 + $0x1580] sm:$0xff]
    %v880 = vld [vmem:[#allocation5 + $0x1588] sm:$0xff]
    %v881 = vld [vmem:[#allocation5 + $0x1590] sm:$0xff]
    %v882 = vld [vmem:[#allocation5 + $0x1598] sm:$0xff]
    %v883 = vld [vmem:[#allocation5 + $0x15a0] sm:$0xff]
    %v884 = vld [vmem:[#allocation5 + $0x15a8] sm:$0xff]
    %v885 = vld [vmem:[#allocation5 + $0x15b0] sm:$0xff]
    %v886 = vld [vmem:[#allocation5 + $0x15b8] sm:$0xff]
    %v887 = vld [vmem:[#allocation5 + $0x15c0] sm:$0xff]
    %v888 = vld [vmem:[#allocation5 + $0x15c8] sm:$0xff]
    %v889 = vld [vmem:[#allocation5 + $0x15d0] sm:$0xff]
    %v890 = vld [vmem:[#allocation5 + $0x15d8] sm:$0xff]
    %v891 = vld [vmem:[#allocation5 + $0x15e0] sm:$0xff]
    %v892 = vld [vmem:[#allocation5 + $0x15e8] sm:$0xff]
    %v893 = vld [vmem:[#allocation5 + $0x15f0] sm:$0xff]
    %v894 = vld [vmem:[#allocation5 + $0x15f8] sm:$0xff]
    %v895 = vld [vmem:[#allocation5 + $0x1600] sm:$0xff]
    %v896 = vld [vmem:[#allocation5 + $0x1608] sm:$0xff]
    %v897 = vld [vmem:[#allocation5 + $0x1610] sm:$0xff]
    %v898 = vld [vmem:[#allocation5 + $0x1618] sm:$0xff]
    %v899 = vld [vmem:[#allocation5 + $0x1620] sm:$0xff]
    %v900 = vld [vmem:[#allocation5 + $0x1628] sm:$0xff]
    %v901 = vld [vmem:[#allocation5 + $0x1630] sm:$0xff]
    %v902 = vld [vmem:[#allocation5 + $0x1638] sm:$0xff]
    %v903 = vld [vmem:[#allocation5 + $0x1640] sm:$0xff]
    %v904 = vld [vmem:[#allocation5 + $0x1648] sm:$0xff]
    %v905 = vld [vmem:[#allocation5 + $0x1650] sm:$0xff]
    %v906 = vld [vmem:[#allocation5 + $0x1658] sm:$0xff]
    %v907 = vld [vmem:[#allocation5 + $0x1660] sm:$0xff]
    %v908 = vld [vmem:[#allocation5 + $0x1668] sm:$0xff]
    %v909 = vld [vmem:[#allocation5 + $0x1670] sm:$0xff]
    %v910 = vld [vmem:[#allocation5 + $0x1678] sm:$0xff]
    %v911 = vld [vmem:[#allocation5 + $0x1680] sm:$0xff]
    %v912 = vld [vmem:[#allocation5 + $0x1688] sm:$0xff]
    %v913 = vld [vmem:[#allocation5 + $0x1690] sm:$0xff]
    %v914 = vld [vmem:[#allocation5 + $0x1698] sm:$0xff]
    %v915 = vld [vmem:[#allocation5 + $0x16a0] sm:$0xff]
    %v916 = vld [vmem:[#allocation5 + $0x16a8] sm:$0xff]
    %v917 = vld [vmem:[#allocation5 + $0x16b0] sm:$0xff]
    %v918 = vld [vmem:[#allocation5 + $0x16b8] sm:$0xff]
    %v919 = vld [vmem:[#allocation5 + $0x16c0] sm:$0xff]
    %v920 = vld [vmem:[#allocation5 + $0x16c8] sm:$0xff]
    %v921 = vld [vmem:[#allocation5 + $0x16d0] sm:$0xff]
    %v922 = vld [vmem:[#allocation5 + $0x16d8] sm:$0xff]
    %v923 = vld [vmem:[#allocation5 + $0x16e0] sm:$0xff]
    %v924 = vld [vmem:[#allocation5 + $0x16e8] sm:$0xff]
    %v925 = vld [vmem:[#allocation5 + $0x16f0] sm:$0xff]
    %v926 = vld [vmem:[#allocation5 + $0x16f8] sm:$0xff]
    %v927 = vld [vmem:[#allocation5 + $0x1700] sm:$0xff]
    %v928 = vld [vmem:[#allocation5 + $0x1708] sm:$0xff]
    %v929 = vld [vmem:[#allocation5 + $0x1710] sm:$0xff]
    %v930 = vld [vmem:[#allocation5 + $0x1718] sm:$0xff]
    %v931 = vld [vmem:[#allocation5 + $0x1720] sm:$0xff]
    %v932 = vld [vmem:[#allocation5 + $0x1728] sm:$0xff]
    %v933 = vld [vmem:[#allocation5 + $0x1730] sm:$0xff]
    %v934 = vld [vmem:[#allocation5 + $0x1738] sm:$0xff]
    %v935 = vld [vmem:[#allocation5 + $0x1740] sm:$0xff]
    %v936 = vld [vmem:[#allocation5 + $0x1748] sm:$0xff]
    %v937 = vld [vmem:[#allocation5 + $0x1750] sm:$0xff]
    %v938 = vld [vmem:[#allocation5 + $0x1758] sm:$0xff]
    %v939 = vld [vmem:[#allocation5 + $0x1760] sm:$0xff]
    %v940 = vld [vmem:[#allocation5 + $0x1768] sm:$0xff]
    %v941 = vld [vmem:[#allocation5 + $0x1770] sm:$0xff]
    %v942 = vld [vmem:[#allocation5 + $0x1778] sm:$0xff]
    %v943 = vld [vmem:[#allocation5 + $0x1780] sm:$0xff]
    %v944 = vld [vmem:[#allocation5 + $0x1788] sm:$0xff]
    %v945 = vld [vmem:[#allocation5 + $0x1790] sm:$0xff]
    %v946 = vld [vmem:[#allocation5 + $0x1798] sm:$0xff]
    %v947 = vld [vmem:[#allocation5 + $0x17a0] sm:$0xff]
    %v948 = vld [vmem:[#allocation5 + $0x17a8] sm:$0xff]
    %v949 = vld [vmem:[#allocation5 + $0x17b0] sm:$0xff]
    %v950 = vld [vmem:[#allocation5 + $0x17b8] sm:$0xff]
    %v951 = vld [vmem:[#allocation5 + $0x17c0] sm:$0xff]
    %v952 = vld [vmem:[#allocation5 + $0x17c8] sm:$0xff]
    %v953 = vld [vmem:[#allocation5 + $0x17d0] sm:$0xff]
    %v954 = vld [vmem:[#allocation5 + $0x17d8] sm:$0xff]
    %v955 = vld [vmem:[#allocation5 + $0x17e0] sm:$0xff]
    %v956 = vld [vmem:[#allocation5 + $0x17e8] sm:$0xff]
    %v957 = vld [vmem:[#allocation5 + $0x17f0] sm:$0xff]
    %v958 = vld [vmem:[#allocation5 + $0x17f8] sm:$0xff]
    %v959 = vld [vmem:[#allocation5 + $0x1800] sm:$0xff]
    %v960 = vld [vmem:[#allocation5 + $0x1808] sm:$0xff]
    %v961 = vld [vmem:[#allocation5 + $0x1810] sm:$0xff]
    %v962 = vld [vmem:[#allocation5 + $0x1818] sm:$0xff]
    %v963 = vld [vmem:[#allocation5 + $0x1820] sm:$0xff]
    %v964 = vld [vmem:[#allocation5 + $0x1828] sm:$0xff]
    %v965 = vld [vmem:[#allocation5 + $0x1830] sm:$0xff]
    %v966 = vld [vmem:[#allocation5 + $0x1838] sm:$0xff]
    %v967 = vld [vmem:[#allocation5 + $0x1840] sm:$0xff]
    %v968 = vld [vmem:[#allocation5 + $0x1848] sm:$0xff]
    %v969 = vld [vmem:[#allocation5 + $0x1850] sm:$0xff]
    %v970 = vld [vmem:[#allocation5 + $0x1858] sm:$0xff]
    %v971 = vld [vmem:[#allocation5 + $0x1860] sm:$0xff]
    %v972 = vld [vmem:[#allocation5 + $0x1868] sm:$0xff]
    %v973 = vld [vmem:[#allocation5 + $0x1870] sm:$0xff]
    %v974 = vld [vmem:[#allocation5 + $0x1878] sm:$0xff]
    %v975 = vld [vmem:[#allocation5 + $0x1880] sm:$0xff]
    %v976 = vld [vmem:[#allocation5 + $0x1888] sm:$0xff]
    %v977 = vld [vmem:[#allocation5 + $0x1890] sm:$0xff]
    %v978 = vld [vmem:[#allocation5 + $0x1898] sm:$0xff]
    %v979 = vld [vmem:[#allocation5 + $0x18a0] sm:$0xff]
    %v980 = vld [vmem:[#allocation5 + $0x18a8] sm:$0xff]
    %v981 = vld [vmem:[#allocation5 + $0x18b0] sm:$0xff]
    %v982 = vld [vmem:[#allocation5 + $0x18b8] sm:$0xff]
    %v983 = vld [vmem:[#allocation5 + $0x18c0] sm:$0xff]
    %v984 = vld [vmem:[#allocation5 + $0x18c8] sm:$0xff]
    %v985 = vld [vmem:[#allocation5 + $0x18d0] sm:$0xff]
    %v986 = vld [vmem:[#allocation5 + $0x18d8] sm:$0xff]
    %v987 = vld [vmem:[#allocation5 + $0x18e0] sm:$0xff]
    %v988 = vld [vmem:[#allocation5 + $0x18e8] sm:$0xff]
    %v989 = vld [vmem:[#allocation5 + $0x18f0] sm:$0xff]
    %v990 = vld [vmem:[#allocation5 + $0x18f8] sm:$0xff]
    %v991 = vld [vmem:[#allocation5 + $0x1900] sm:$0xff]
    %v992 = vld [vmem:[#allocation5 + $0x1908] sm:$0xff]
    %v993 = vld [vmem:[#allocation5 + $0x1910] sm:$0xff]
    %v994 = vld [vmem:[#allocation5 + $0x1918] sm:$0xff]
    %v995 = vld [vmem:[#allocation5 + $0x1920] sm:$0xff]
    %v996 = vld [vmem:[#allocation5 + $0x1928] sm:$0xff]
    %v997 = vld [vmem:[#allocation5 + $0x1930] sm:$0xff]
    %v998 = vld [vmem:[#allocation5 + $0x1938] sm:$0xff]
    %v999 = vld [vmem:[#allocation5 + $0x1940] sm:$0xff]
    %v1000 = vld [vmem:[#allocation5 + $0x1948] sm:$0xff]
    %v1001 = vld [vmem:[#allocation5 + $0x1950] sm:$0xff]
    %v1002 = vld [vmem:[#allocation5 + $0x1958] sm:$0xff]
    %v1003 = vld [vmem:[#allocation5 + $0x1960] sm:$0xff]
    %v1004 = vld [vmem:[#allocation5 + $0x1968] sm:$0xff]
    %v1005 = vld [vmem:[#allocation5 + $0x1970] sm:$0xff]
    %v1006 = vld [vmem:[#allocation5 + $0x1978] sm:$0xff]
    %v1007 = vld [vmem:[#allocation5 + $0x1980] sm:$0xff]
    %v1008 = vld [vmem:[#allocation5 + $0x1988] sm:$0xff]
    %v1009 = vld [vmem:[#allocation5 + $0x1990] sm:$0xff]
    %v1010 = vld [vmem:[#allocation5 + $0x1998] sm:$0xff]
    %v1011 = vld [vmem:[#allocation5 + $0x19a0] sm:$0xff]
    %v1012 = vld [vmem:[#allocation5 + $0x19a8] sm:$0xff]
    %v1013 = vld [vmem:[#allocation5 + $0x19b0] sm:$0xff]
    %v1014 = vld [vmem:[#allocation5 + $0x19b8] sm:$0xff]
    %v1015 = vld [vmem:[#allocation5 + $0x19c0] sm:$0xff]
    %v1016 = vld [vmem:[#allocation5 + $0x19c8] sm:$0xff]
    %v1017 = vld [vmem:[#allocation5 + $0x19d0] sm:$0xff]
    %v1018 = vld [vmem:[#allocation5 + $0x19d8] sm:$0xff]
    %v1019 = vld [vmem:[#allocation5 + $0x19e0] sm:$0xff]
    %v1020 = vld [vmem:[#allocation5 + $0x19e8] sm:$0xff]
    %v1021 = vld [vmem:[#allocation5 + $0x19f0] sm:$0xff]
    %v1022 = vld [vmem:[#allocation5 + $0x19f8] sm:$0xff]
    %v1023 = vld [vmem:[#allocation5 + $0x1a00] sm:$0xff]
    %v1024 = vld [vmem:[#allocation5 + $0x1a08] sm:$0xff]
    %v1025 = vld [vmem:[#allocation5 + $0x1a10] sm:$0xff]
    %v1026 = vld [vmem:[#allocation5 + $0x1a18] sm:$0xff]
    %v1027 = vld [vmem:[#allocation5 + $0x1a20] sm:$0xff]
    %v1028 = vld [vmem:[#allocation5 + $0x1a28] sm:$0xff]
    %v1029 = vld [vmem:[#allocation5 + $0x1a30] sm:$0xff]
    %v1030 = vld [vmem:[#allocation5 + $0x1a38] sm:$0xff]
    %v1031 = vld [vmem:[#allocation5 + $0x1a40] sm:$0xff]
    %v1032 = vld [vmem:[#allocation5 + $0x1a48] sm:$0xff]
    %v1033 = vld [vmem:[#allocation5 + $0x1a50] sm:$0xff]
    %v1034 = vld [vmem:[#allocation5 + $0x1a58] sm:$0xff]
    %v1035 = vld [vmem:[#allocation5 + $0x1a60] sm:$0xff]
    %v1036 = vld [vmem:[#allocation5 + $0x1a68] sm:$0xff]
    %v1037 = vld [vmem:[#allocation5 + $0x1a70] sm:$0xff]
    %v1038 = vld [vmem:[#allocation5 + $0x1a78] sm:$0xff]
    %v1039 = vld [vmem:[#allocation5 + $0x1a80] sm:$0xff]
    %v1040 = vld [vmem:[#allocation5 + $0x1a88] sm:$0xff]
    %v1041 = vld [vmem:[#allocation5 + $0x1a90] sm:$0xff]
    %v1042 = vld [vmem:[#allocation5 + $0x1a98] sm:$0xff]
    %v1043 = vld [vmem:[#allocation5 + $0x1aa0] sm:$0xff]
    %v1044 = vld [vmem:[#allocation5 + $0x1aa8] sm:$0xff]
    %v1045 = vld [vmem:[#allocation5 + $0x1ab0] sm:$0xff]
    %v1046 = vld [vmem:[#allocation5 + $0x1ab8] sm:$0xff]
    %v1047 = vld [vmem:[#allocation5 + $0x1ac0] sm:$0xff]
    %v1048 = vld [vmem:[#allocation5 + $0x1ac8] sm:$0xff]
    %v1049 = vld [vmem:[#allocation5 + $0x1ad0] sm:$0xff]
    %v1050 = vld [vmem:[#allocation5 + $0x1ad8] sm:$0xff]
    %v1051 = vld [vmem:[#allocation5 + $0x1ae0] sm:$0xff]
    %v1052 = vld [vmem:[#allocation5 + $0x1ae8] sm:$0xff]
    %v1053 = vld [vmem:[#allocation5 + $0x1af0] sm:$0xff]
    %v1054 = vld [vmem:[#allocation5 + $0x1af8] sm:$0xff]
    %v1055 = vld [vmem:[#allocation5 + $0x1b00] sm:$0xff]
    %v1056 = vld [vmem:[#allocation5 + $0x1b08] sm:$0xff]
    %v1057 = vld [vmem:[#allocation5 + $0x1b10] sm:$0xff]
    %v1058 = vld [vmem:[#allocation5 + $0x1b18] sm:$0xff]
    %v1059 = vld [vmem:[#allocation5 + $0x1b20] sm:$0xff]
    %v1060 = vld [vmem:[#allocation5 + $0x1b28] sm:$0xff]
    %v1061 = vld [vmem:[#allocation5 + $0x1b30] sm:$0xff]
    %v1062 = vld [vmem:[#allocation5 + $0x1b38] sm:$0xff]
    %v1063 = vld [vmem:[#allocation5 + $0x1b40] sm:$0xff]
    %v1064 = vld [vmem:[#allocation5 + $0x1b48] sm:$0xff]
    %v1065 = vld [vmem:[#allocation5 + $0x1b50] sm:$0xff]
    %v1066 = vld [vmem:[#allocation5 + $0x1b58] sm:$0xff]
    %v1067 = vld [vmem:[#allocation5 + $0x1b60] sm:$0xff]
    %v1068 = vld [vmem:[#allocation5 + $0x1b68] sm:$0xff]
    %v1069 = vld [vmem:[#allocation5 + $0x1b70] sm:$0xff]
    %v1070 = vld [vmem:[#allocation5 + $0x1b78] sm:$0xff]
    %v1071 = vld [vmem:[#allocation5 + $0x1b80] sm:$0xff]
    %v1072 = vld [vmem:[#allocation5 + $0x1b88] sm:$0xff]
    %v1073 = vld [vmem:[#allocation5 + $0x1b90] sm:$0xff]
    %v1074 = vld [vmem:[#allocation5 + $0x1b98] sm:$0xff]
    %v1075 = vld [vmem:[#allocation5 + $0x1ba0] sm:$0xff]
    %v1076 = vld [vmem:[#allocation5 + $0x1ba8] sm:$0xff]
    %v1077 = vld [vmem:[#allocation5 + $0x1bb0] sm:$0xff]
    %v1078 = vld [vmem:[#allocation5 + $0x1bb8] sm:$0xff]
    %v1079 = vld [vmem:[#allocation5 + $0x1bc0] sm:$0xff]
    %v1080 = vld [vmem:[#allocation5 + $0x1bc8] sm:$0xff]
    %v1081 = vld [vmem:[#allocation5 + $0x1bd0] sm:$0xff]
    %v1082 = vld [vmem:[#allocation5 + $0x1bd8] sm:$0xff]
    %v1083 = vld [vmem:[#allocation5 + $0x1be0] sm:$0xff]
    %v1084 = vld [vmem:[#allocation5 + $0x1be8] sm:$0xff]
    %v1085 = vld [vmem:[#allocation5 + $0x1bf0] sm:$0xff]
    %v1086 = vld [vmem:[#allocation5 + $0x1bf8] sm:$0xff]
    %v1087 = vld [vmem:[#allocation5 + $0x1c00] sm:$0xff]
    %v1088 = vld [vmem:[#allocation5 + $0x1c08] sm:$0xff]
    %v1089 = vld [vmem:[#allocation5 + $0x1c10] sm:$0xff]
    %v1090 = vld [vmem:[#allocation5 + $0x1c18] sm:$0xff]
    %v1091 = vld [vmem:[#allocation5 + $0x1c20] sm:$0xff]
    %v1092 = vld [vmem:[#allocation5 + $0x1c28] sm:$0xff]
    %v1093 = vld [vmem:[#allocation5 + $0x1c30] sm:$0xff]
    %v1094 = vld [vmem:[#allocation5 + $0x1c38] sm:$0xff]
    %v1095 = vld [vmem:[#allocation5 + $0x1c40] sm:$0xff]
    %v1096 = vld [vmem:[#allocation5 + $0x1c48] sm:$0xff]
    %v1097 = vld [vmem:[#allocation5 + $0x1c50] sm:$0xff]
    %v1098 = vld [vmem:[#allocation5 + $0x1c58] sm:$0xff]
    %v1099 = vld [vmem:[#allocation5 + $0x1c60] sm:$0xff]
    %v1100 = vld [vmem:[#allocation5 + $0x1c68] sm:$0xff]
    %v1101 = vld [vmem:[#allocation5 + $0x1c70] sm:$0xff]
    %v1102 = vld [vmem:[#allocation5 + $0x1c78] sm:$0xff]
    %v1103 = vld [vmem:[#allocation5 + $0x1c80] sm:$0xff]
    %v1104 = vld [vmem:[#allocation5 + $0x1c88] sm:$0xff]
    %v1105 = vld [vmem:[#allocation5 + $0x1c90] sm:$0xff]
    %v1106 = vld [vmem:[#allocation5 + $0x1c98] sm:$0xff]
    %v1107 = vld [vmem:[#allocation5 + $0x1ca0] sm:$0xff]
    %v1108 = vld [vmem:[#allocation5 + $0x1ca8] sm:$0xff]
    %v1109 = vld [vmem:[#allocation5 + $0x1cb0] sm:$0xff]
    %v1110 = vld [vmem:[#allocation5 + $0x1cb8] sm:$0xff]
    %v1111 = vld [vmem:[#allocation5 + $0x1cc0] sm:$0xff]
    %v1112 = vld [vmem:[#allocation5 + $0x1cc8] sm:$0xff]
    %v1113 = vld [vmem:[#allocation5 + $0x1cd0] sm:$0xff]
    %v1114 = vld [vmem:[#allocation5 + $0x1cd8] sm:$0xff]
    %v1115 = vld [vmem:[#allocation5 + $0x1ce0] sm:$0xff]
    %v1116 = vld [vmem:[#allocation5 + $0x1ce8] sm:$0xff]
    %v1117 = vld [vmem:[#allocation5 + $0x1cf0] sm:$0xff]
    %v1118 = vld [vmem:[#allocation5 + $0x1cf8] sm:$0xff]
    %v1119 = vld [vmem:[#allocation5 + $0x1d00] sm:$0xff]
    %v1120 = vld [vmem:[#allocation5 + $0x1d08] sm:$0xff]
    %v1121 = vld [vmem:[#allocation5 + $0x1d10] sm:$0xff]
    %v1122 = vld [vmem:[#allocation5 + $0x1d18] sm:$0xff]
    %v1123 = vld [vmem:[#allocation5 + $0x1d20] sm:$0xff]
    %v1124 = vld [vmem:[#allocation5 + $0x1d28] sm:$0xff]
    %v1125 = vld [vmem:[#allocation5 + $0x1d30] sm:$0xff]
    %v1126 = vld [vmem:[#allocation5 + $0x1d38] sm:$0xff]
    %v1127 = vld [vmem:[#allocation5 + $0x1d40] sm:$0xff]
    %v1128 = vld [vmem:[#allocation5 + $0x1d48] sm:$0xff]
    %v1129 = vld [vmem:[#allocation5 + $0x1d50] sm:$0xff]
    %v1130 = vld [vmem:[#allocation5 + $0x1d58] sm:$0xff]
    %v1131 = vld [vmem:[#allocation5 + $0x1d60] sm:$0xff]
    %v1132 = vld [vmem:[#allocation5 + $0x1d68] sm:$0xff]
    %v1133 = vld [vmem:[#allocation5 + $0x1d70] sm:$0xff]
    %v1134 = vld [vmem:[#allocation5 + $0x1d78] sm:$0xff]
    %v1135 = vld [vmem:[#allocation5 + $0x1d80] sm:$0xff]
    %v1136 = vld [vmem:[#allocation5 + $0x1d88] sm:$0xff]
    %v1137 = vld [vmem:[#allocation5 + $0x1d90] sm:$0xff]
    %v1138 = vld [vmem:[#allocation5 + $0x1d98] sm:$0xff]
    %v1139 = vld [vmem:[#allocation5 + $0x1da0] sm:$0xff]
    %v1140 = vld [vmem:[#allocation5 + $0x1da8] sm:$0xff]
    %v1141 = vld [vmem:[#allocation5 + $0x1db0] sm:$0xff]
    %v1142 = vld [vmem:[#allocation5 + $0x1db8] sm:$0xff]
    %v1143 = vld [vmem:[#allocation5 + $0x1dc0] sm:$0xff]
    %v1144 = vld [vmem:[#allocation5 + $0x1dc8] sm:$0xff]
    %v1145 = vld [vmem:[#allocation5 + $0x1dd0] sm:$0xff]
    %v1146 = vld [vmem:[#allocation5 + $0x1dd8] sm:$0xff]
    %v1147 = vld [vmem:[#allocation5 + $0x1de0] sm:$0xff]
    %v1148 = vld [vmem:[#allocation5 + $0x1de8] sm:$0xff]
    %v1149 = vld [vmem:[#allocation5 + $0x1df0] sm:$0xff]
    %v1150 = vld [vmem:[#allocation5 + $0x1df8] sm:$0xff]
    %v1151 = vld [vmem:[#allocation5 + $0x1e00] sm:$0xff]
    %v1152 = vld [vmem:[#allocation5 + $0x1e08] sm:$0xff]
    %v1153 = vld [vmem:[#allocation5 + $0x1e10] sm:$0xff]
    %v1154 = vld [vmem:[#allocation5 + $0x1e18] sm:$0xff]
    %v1155 = vld [vmem:[#allocation5 + $0x1e20] sm:$0xff]
    %v1156 = vld [vmem:[#allocation5 + $0x1e28] sm:$0xff]
    %v1157 = vld [vmem:[#allocation5 + $0x1e30] sm:$0xff]
    %v1158 = vld [vmem:[#allocation5 + $0x1e38] sm:$0xff]
    %v1159 = vld [vmem:[#allocation5 + $0x1e40] sm:$0xff]
    %v1160 = vld [vmem:[#allocation5 + $0x1e48] sm:$0xff]
    %v1161 = vld [vmem:[#allocation5 + $0x1e50] sm:$0xff]
    %v1162 = vld [vmem:[#allocation5 + $0x1e58] sm:$0xff]
    %v1163 = vld [vmem:[#allocation5 + $0x1e60] sm:$0xff]
    %v1164 = vld [vmem:[#allocation5 + $0x1e68] sm:$0xff]
    %v1165 = vld [vmem:[#allocation5 + $0x1e70] sm:$0xff]
    %v1166 = vld [vmem:[#allocation5 + $0x1e78] sm:$0xff]
    %v1167 = vld [vmem:[#allocation5 + $0x1e80] sm:$0xff]
    %v1168 = vld [vmem:[#allocation5 + $0x1e88] sm:$0xff]
    %v1169 = vld [vmem:[#allocation5 + $0x1e90] sm:$0xff]
    %v1170 = vld [vmem:[#allocation5 + $0x1e98] sm:$0xff]
    %v1171 = vld [vmem:[#allocation5 + $0x1ea0] sm:$0xff]
    %v1172 = vld [vmem:[#allocation5 + $0x1ea8] sm:$0xff]
    %v1173 = vld [vmem:[#allocation5 + $0x1eb0] sm:$0xff]
    %v1174 = vld [vmem:[#allocation5 + $0x1eb8] sm:$0xff]
    %v1175 = vld [vmem:[#allocation5 + $0x1ec0] sm:$0xff]
    %v1176 = vld [vmem:[#allocation5 + $0x1ec8] sm:$0xff]
    %v1177 = vld [vmem:[#allocation5 + $0x1ed0] sm:$0xff]
    %v1178 = vld [vmem:[#allocation5 + $0x1ed8] sm:$0xff]
    %v1179 = vld [vmem:[#allocation5 + $0x1ee0] sm:$0xff]
    %v1180 = vld [vmem:[#allocation5 + $0x1ee8] sm:$0xff]
    %v1181 = vld [vmem:[#allocation5 + $0x1ef0] sm:$0xff]
    %v1182 = vld [vmem:[#allocation5 + $0x1ef8] sm:$0xff]
    %v1183 = vld [vmem:[#allocation5 + $0x1f00] sm:$0xff]
    %v1184 = vld [vmem:[#allocation5 + $0x1f08] sm:$0xff]
    %v1185 = vld [vmem:[#allocation5 + $0x1f10] sm:$0xff]
    %v1186 = vld [vmem:[#allocation5 + $0x1f18] sm:$0xff]
    %v1187 = vld [vmem:[#allocation5 + $0x1f20] sm:$0xff]
    %v1188 = vld [vmem:[#allocation5 + $0x1f28] sm:$0xff]
    %v1189 = vld [vmem:[#allocation5 + $0x1f30] sm:$0xff]
    %v1190 = vld [vmem:[#allocation5 + $0x1f38] sm:$0xff]
    %v1191 = vld [vmem:[#allocation5 + $0x1f40] sm:$0xff]
    %v1192 = vld [vmem:[#allocation5 + $0x1f48] sm:$0xff]
    %v1193 = vld [vmem:[#allocation5 + $0x1f50] sm:$0xff]
    %v1194 = vld [vmem:[#allocation5 + $0x1f58] sm:$0xff]
    %v1195 = vld [vmem:[#allocation5 + $0x1f60] sm:$0xff]
    %v1196 = vld [vmem:[#allocation5 + $0x1f68] sm:$0xff]
    %v1197 = vld [vmem:[#allocation5 + $0x1f70] sm:$0xff]
    %v1198 = vld [vmem:[#allocation5 + $0x1f78] sm:$0xff]
    %v1199 = vld [vmem:[#allocation5 + $0x1f80] sm:$0xff]
    %v1200 = vld [vmem:[#allocation5 + $0x1f88] sm:$0xff]
    %v1201 = vld [vmem:[#allocation5 + $0x1f90] sm:$0xff]
    %v1202 = vld [vmem:[#allocation5 + $0x1f98] sm:$0xff]
    %v1203 = vld [vmem:[#allocation5 + $0x1fa0] sm:$0xff]
    %v1204 = vld [vmem:[#allocation5 + $0x1fa8] sm:$0xff]
    %v1205 = vld [vmem:[#allocation5 + $0x1fb0] sm:$0xff]
    %v1206 = vld [vmem:[#allocation5 + $0x1fb8] sm:$0xff]
    %v1207 = vld [vmem:[#allocation5 + $0x1fc0] sm:$0xff]
    %v1208 = vld [vmem:[#allocation5 + $0x1fc8] sm:$0xff]
    %v1209 = vld [vmem:[#allocation5 + $0x1fd0] sm:$0xff]
    %v1210 = vld [vmem:[#allocation5 + $0x1fd8] sm:$0xff]
    %v1211 = vld [vmem:[#allocation5 + $0x1fe0] sm:$0xff]
    %v1212 = vld [vmem:[#allocation5 + $0x1fe8] sm:$0xff]
    %v1213 = vld [vmem:[#allocation5 + $0x1ff0] sm:$0xff]
    %v1214 = vld [vmem:[#allocation5 + $0x1ff8] sm:$0xff]
    %v1215 = vld [vmem:[#allocation5 + $0x2000] sm:$0xff]
    %v1216 = vld [vmem:[#allocation5 + $0x2008] sm:$0xff]
    %v1217 = vld [vmem:[#allocation5 + $0x2010] sm:$0xff]
    %v1218 = vld [vmem:[#allocation5 + $0x2018] sm:$0xff]
    %v1219 = vld [vmem:[#allocation5 + $0x2020] sm:$0xff]
    %v1220 = vld [vmem:[#allocation5 + $0x2028] sm:$0xff]
    %v1221 = vld [vmem:[#allocation5 + $0x2030] sm:$0xff]
    %v1222 = vld [vmem:[#allocation5 + $0x2038] sm:$0xff]
    %v1223 = vld [vmem:[#allocation5 + $0x2040] sm:$0xff]
    %v1224 = vld [vmem:[#allocation5 + $0x2048] sm:$0xff]
    %v1225 = vld [vmem:[#allocation5 + $0x2050] sm:$0xff]
    %v1226 = vld [vmem:[#allocation5 + $0x2058] sm:$0xff]
    %v1227 = vld [vmem:[#allocation5 + $0x2060] sm:$0xff]
    %v1228 = vld [vmem:[#allocation5 + $0x2068] sm:$0xff]
    %v1229 = vld [vmem:[#allocation5 + $0x2070] sm:$0xff]
    %v1230 = vld [vmem:[#allocation5 + $0x2078] sm:$0xff]
    %v1231 = vld [vmem:[#allocation5 + $0x2080] sm:$0xff]
    %v1232 = vld [vmem:[#allocation5 + $0x2088] sm:$0xff]
    %v1233 = vld [vmem:[#allocation5 + $0x2090] sm:$0xff]
    %v1234 = vld [vmem:[#allocation5 + $0x2098] sm:$0xff]
    %v1235 = vld [vmem:[#allocation5 + $0x20a0] sm:$0xff]
    %v1236 = vld [vmem:[#allocation5 + $0x20a8] sm:$0xff]
    %v1237 = vld [vmem:[#allocation5 + $0x20b0] sm:$0xff]
    %v1238 = vld [vmem:[#allocation5 + $0x20b8] sm:$0xff]
    %v1239 = vld [vmem:[#allocation5 + $0x20c0] sm:$0xff]
    %v1240 = vld [vmem:[#allocation5 + $0x20c8] sm:$0xff]
    %v1241 = vld [vmem:[#allocation5 + $0x20d0] sm:$0xff]
    %v1242 = vld [vmem:[#allocation5 + $0x20d8] sm:$0xff]
    %v1243 = vld [vmem:[#allocation5 + $0x20e0] sm:$0xff]
    %v1244 = vld [vmem:[#allocation5 + $0x20e8] sm:$0xff]
    %v1245 = vld [vmem:[#allocation5 + $0x20f0] sm:$0xff]
    %v1246 = vld [vmem:[#allocation5 + $0x20f8] sm:$0xff]
    %v1247 = vld [vmem:[#allocation5 + $0x2100] sm:$0xff]
    %v1248 = vld [vmem:[#allocation5 + $0x2108] sm:$0xff]
    %v1249 = vld [vmem:[#allocation5 + $0x2110] sm:$0xff]
    %v1250 = vld [vmem:[#allocation5 + $0x2118] sm:$0xff]
    %v1251 = vld [vmem:[#allocation5 + $0x2120] sm:$0xff]
    %v1252 = vld [vmem:[#allocation5 + $0x2128] sm:$0xff]
    %v1253 = vld [vmem:[#allocation5 + $0x2130] sm:$0xff]
    %v1254 = vld [vmem:[#allocation5 + $0x2138] sm:$0xff]
    %v1255 = vld [vmem:[#allocation5 + $0x2140] sm:$0xff]
    %v1256 = vld [vmem:[#allocation5 + $0x2148] sm:$0xff]
    %v1257 = vld [vmem:[#allocation5 + $0x2150] sm:$0xff]
    %v1258 = vld [vmem:[#allocation5 + $0x2158] sm:$0xff]
    %v1259 = vld [vmem:[#allocation5 + $0x2160] sm:$0xff]
    %v1260 = vld [vmem:[#allocation5 + $0x2168] sm:$0xff]
    %v1261 = vld [vmem:[#allocation5 + $0x2170] sm:$0xff]
    %v1262 = vld [vmem:[#allocation5 + $0x2178] sm:$0xff]
    %v1263 = vld [vmem:[#allocation5 + $0x2180] sm:$0xff]
    %v1264 = vld [vmem:[#allocation5 + $0x2188] sm:$0xff]
    %v1265 = vld [vmem:[#allocation5 + $0x2190] sm:$0xff]
    %v1266 = vld [vmem:[#allocation5 + $0x2198] sm:$0xff]
    %v1267 = vld [vmem:[#allocation5 + $0x21a0] sm:$0xff]
    %v1268 = vld [vmem:[#allocation5 + $0x21a8] sm:$0xff]
    %v1269 = vld [vmem:[#allocation5 + $0x21b0] sm:$0xff]
    %v1270 = vld [vmem:[#allocation5 + $0x21b8] sm:$0xff]
    %v1271 = vld [vmem:[#allocation5 + $0x21c0] sm:$0xff]
    %v1272 = vld [vmem:[#allocation5 + $0x21c8] sm:$0xff]
    %v1273 = vld [vmem:[#allocation5 + $0x21d0] sm:$0xff]
    %v1274 = vld [vmem:[#allocation5 + $0x21d8] sm:$0xff]
    %v1275 = vld [vmem:[#allocation5 + $0x21e0] sm:$0xff]
    %v1276 = vld [vmem:[#allocation5 + $0x21e8] sm:$0xff]
    %v1277 = vld [vmem:[#allocation5 + $0x21f0] sm:$0xff]
    %v1278 = vld [vmem:[#allocation5 + $0x21f8] sm:$0xff]
    %v1279 = vld [vmem:[#allocation5 + $0x2200] sm:$0xff]
    %v1280 = vld [vmem:[#allocation5 + $0x2208] sm:$0xff]
    %v1281 = vld [vmem:[#allocation5 + $0x2210] sm:$0xff]
    %v1282 = vld [vmem:[#allocation5 + $0x2218] sm:$0xff]
    %v1283 = vld [vmem:[#allocation5 + $0x2220] sm:$0xff]
    %v1284 = vld [vmem:[#allocation5 + $0x2228] sm:$0xff]
    %v1285 = vld [vmem:[#allocation5 + $0x2230] sm:$0xff]
    %v1286 = vld [vmem:[#allocation5 + $0x2238] sm:$0xff]
    %v1287 = vld [vmem:[#allocation5 + $0x2240] sm:$0xff]
    %v1288 = vld [vmem:[#allocation5 + $0x2248] sm:$0xff]
    %v1289 = vld [vmem:[#allocation5 + $0x2250] sm:$0xff]
    %v1290 = vld [vmem:[#allocation5 + $0x2258] sm:$0xff]
    %v1291 = vld [vmem:[#allocation5 + $0x2260] sm:$0xff]
    %v1292 = vld [vmem:[#allocation5 + $0x2268] sm:$0xff]
    %v1293 = vld [vmem:[#allocation5 + $0x2270] sm:$0x11]
    %v1294 = vld [vmem:[#allocation5 + $0x2278] sm:$0x11]
    %v1295 = vld [vmem:[#allocation7] sm:$0xf]
    %v1297 = vlaneseq
    %v1298 = vshrl.u32 %v1297, 7
    %v1299 = vsub.s32 0, %v1298
    %v1300 = vrot.slane %v1295, %v1299
    %v1301 = vlaneseq
    %v1302 = vshrl.u32 %v1301, 7
    %v1303 = vsub.s32 1, %v1302
    %v1304 = vrot.slane %v1295, %v1303
    %v1305 = vlaneseq
    %v1306 = vshrl.u32 %v1305, 7
    %v1307 = vsub.s32 2, %v1306
    %v1308 = vrot.slane %v1295, %v1307
    %v1309 = vlaneseq
    %v1310 = vshrl.u32 %v1309, 7
    %v1311 = vsub.s32 3, %v1310
    %v1312 = vrot.slane %v1295, %v1311
    %v2421 = vunpack.c.l.b16 %v191
    %v2422 = vunpack.c.h.b16 %v191
    %v2423 = vunpack.c.l.b16 %v192
    %v2424 = vunpack.c.h.b16 %v192
    %v2425 = vunpack.c.l.b16 %v193
    %v2426 = vunpack.c.h.b16 %v193
    %v2427 = vunpack.c.l.b16 %v194
    %v2428 = vunpack.c.h.b16 %v194
    %v2429 = vunpack.c.l.b16 %v195
    %v2430 = vunpack.c.h.b16 %v195
    %v2431 = vunpack.c.l.b16 %v196
    %v2432 = vunpack.c.h.b16 %v196
    %v2433 = vunpack.c.l.b16 %v197
    %v2434 = vunpack.c.h.b16 %v197
    %v2435 = vunpack.c.l.b16 %v198
    %v2436 = vunpack.c.h.b16 %v198
    %v2437 = vunpack.c.l.b16 %v199
    %v2438 = vunpack.c.h.b16 %v199
    %v2439 = vunpack.c.l.b16 %v200
    %v2440 = vunpack.c.h.b16 %v200
    %v2441 = vunpack.c.l.b16 %v201
    %v2442 = vunpack.c.h.b16 %v201
    %v2443 = vunpack.c.l.b16 %v202
    %v2444 = vunpack.c.h.b16 %v202
    %v2445 = vunpack.c.l.b16 %v203
    %v2446 = vunpack.c.h.b16 %v203
    %v2447 = vunpack.c.l.b16 %v204
    %v2448 = vunpack.c.h.b16 %v204
    %v2449 = vunpack.c.l.b16 %v205
    %v2450 = vunpack.c.h.b16 %v205
    %v2451 = vunpack.c.l.b16 %v206
    %v2452 = vunpack.c.h.b16 %v206
    %v2453 = vunpack.c.l.b16 %v207
    %v2454 = vunpack.c.h.b16 %v207
    %v2455 = vunpack.c.l.b16 %v208
    %v2456 = vunpack.c.h.b16 %v208
    %v2457 = vunpack.c.l.b16 %v209
    %v2458 = vunpack.c.h.b16 %v209
    %v2459 = vunpack.c.l.b16 %v210
    %v2460 = vunpack.c.h.b16 %v210
    %v2461 = vunpack.c.l.b16 %v211
    %v2462 = vunpack.c.h.b16 %v211
    %v2463 = vunpack.c.l.b16 %v212
    %v2464 = vunpack.c.h.b16 %v212
    %v2465 = vunpack.c.l.b16 %v213
    %v2466 = vunpack.c.h.b16 %v213
    %v2467 = vunpack.c.l.b16 %v214
    %v2468 = vunpack.c.h.b16 %v214
    %v2469 = vunpack.c.l.b16 %v215
    %v2470 = vunpack.c.h.b16 %v215
    %v2471 = vunpack.c.l.b16 %v216
    %v2472 = vunpack.c.h.b16 %v216
    %v2473 = vunpack.c.l.b16 %v217
    %v2474 = vunpack.c.h.b16 %v217
    %v2475 = vunpack.c.l.b16 %v218
    %v2476 = vunpack.c.h.b16 %v218
    %v2477 = vunpack.c.l.b16 %v219
    %v2478 = vunpack.c.h.b16 %v219
    %v2479 = vunpack.c.l.b16 %v220
    %v2480 = vunpack.c.h.b16 %v220
    %v2481 = vunpack.c.l.b16 %v221
    %v2482 = vunpack.c.h.b16 %v221
    %v2483 = vunpack.c.l.b16 %v222
    %v2484 = vunpack.c.h.b16 %v222
    %v2485 = vunpack.c.l.b16 %v223
    %v2486 = vunpack.c.h.b16 %v223
    %v2487 = vunpack.c.l.b16 %v224
    %v2488 = vunpack.c.h.b16 %v224
    %v2489 = vunpack.c.l.b16 %v225
    %v2490 = vunpack.c.h.b16 %v225
    %v2491 = vunpack.c.l.b16 %v226
    %v2492 = vunpack.c.h.b16 %v226
    %v2493 = vunpack.c.l.b16 %v227
    %v2494 = vunpack.c.h.b16 %v227
    %v2495 = vunpack.c.l.b16 %v228
    %v2496 = vunpack.c.h.b16 %v228
    %v2497 = vunpack.c.l.b16 %v229
    %v2498 = vunpack.c.h.b16 %v229
    %v2499 = vunpack.c.l.b16 %v230
    %v2500 = vunpack.c.h.b16 %v230
    %v2501 = vunpack.c.l.b16 %v231
    %v2502 = vunpack.c.h.b16 %v231
    %v2503 = vunpack.c.l.b16 %v232
    %v2504 = vunpack.c.h.b16 %v232
    %v2505 = vunpack.c.l.b16 %v233
    %v2506 = vunpack.c.h.b16 %v233
    %v2507 = vunpack.c.l.b16 %v234
    %v2508 = vunpack.c.h.b16 %v234
    %v2509 = vunpack.c.l.b16 %v235
    %v2510 = vunpack.c.h.b16 %v235
    %v2511 = vunpack.c.l.b16 %v236
    %v2512 = vunpack.c.h.b16 %v236
    %v2513 = vunpack.c.l.b16 %v237
    %v2514 = vunpack.c.h.b16 %v237
    %v2515 = vunpack.c.l.b16 %v238
    %v2516 = vunpack.c.h.b16 %v238
    %v2517 = vunpack.c.l.b16 %v239
    %v2518 = vunpack.c.h.b16 %v239
    %v2519 = vunpack.c.l.b16 %v240
    %v2520 = vunpack.c.h.b16 %v240
    %v2521 = vunpack.c.l.b16 %v241
    %v2522 = vunpack.c.h.b16 %v241
    %v2523 = vunpack.c.l.b16 %v242
    %v2524 = vunpack.c.h.b16 %v242
    %v2525 = vunpack.c.l.b16 %v243
    %v2526 = vunpack.c.h.b16 %v243
    %v2527 = vunpack.c.l.b16 %v244
    %v2528 = vunpack.c.h.b16 %v244
    %v2529 = vunpack.c.l.b16 %v245
    %v2530 = vunpack.c.h.b16 %v245
    %v2531 = vunpack.c.l.b16 %v246
    %v2532 = vunpack.c.h.b16 %v246
    %v2533 = vunpack.c.l.b16 %v247
    %v2534 = vunpack.c.h.b16 %v247
    %v2535 = vunpack.c.l.b16 %v248
    %v2536 = vunpack.c.h.b16 %v248
    %v2537 = vunpack.c.l.b16 %v249
    %v2538 = vunpack.c.h.b16 %v249
    %v2539 = vunpack.c.l.b16 %v250
    %v2540 = vunpack.c.h.b16 %v250
    %v2541 = vunpack.c.l.b16 %v251
    %v2542 = vunpack.c.h.b16 %v251
    %v2543 = vunpack.c.l.b16 %v252
    %v2544 = vunpack.c.h.b16 %v252
    %v2545 = vunpack.c.l.b16 %v253
    %v2546 = vunpack.c.h.b16 %v253
    %v2547 = vunpack.c.l.b16 %v254
    %v2548 = vunpack.c.h.b16 %v254
    %v2549 = vunpack.c.l.b16 %v255
    %v2550 = vunpack.c.h.b16 %v255
    %v2551 = vunpack.c.l.b16 %v256
    %v2552 = vunpack.c.h.b16 %v256
    %v2553 = vunpack.c.l.b16 %v257
    %v2554 = vunpack.c.h.b16 %v257
    %v2555 = vunpack.c.l.b16 %v258
    %v2556 = vunpack.c.h.b16 %v258
    %v2557 = vunpack.c.l.b16 %v259
    %v2558 = vunpack.c.h.b16 %v259
    %v2559 = vunpack.c.l.b16 %v260
    %v2560 = vunpack.c.h.b16 %v260
    %v2561 = vunpack.c.l.b16 %v261
    %v2562 = vunpack.c.h.b16 %v261
    %v2563 = vunpack.c.l.b16 %v262
    %v2564 = vunpack.c.h.b16 %v262
    %v2565 = vunpack.c.l.b16 %v263
    %v2566 = vunpack.c.h.b16 %v263
    %v2567 = vunpack.c.l.b16 %v264
    %v2568 = vunpack.c.h.b16 %v264
    %v2569 = vunpack.c.l.b16 %v265
    %v2570 = vunpack.c.h.b16 %v265
    %v2571 = vunpack.c.l.b16 %v266
    %v2572 = vunpack.c.h.b16 %v266
    %v2573 = vunpack.c.l.b16 %v267
    %v2574 = vunpack.c.h.b16 %v267
    %v2575 = vunpack.c.l.b16 %v268
    %v2576 = vunpack.c.h.b16 %v268
    %v2577 = vunpack.c.l.b16 %v269
    %v2578 = vunpack.c.h.b16 %v269
    %v2579 = vunpack.c.l.b16 %v270
    %v2580 = vunpack.c.h.b16 %v270
    %v2581 = vunpack.c.l.b16 %v271
    %v2582 = vunpack.c.h.b16 %v271
    %v2583 = vunpack.c.l.b16 %v272
    %v2584 = vunpack.c.h.b16 %v272
    %v2585 = vunpack.c.l.b16 %v273
    %v2586 = vunpack.c.h.b16 %v273
    %v2587 = vunpack.c.l.b16 %v274
    %v2588 = vunpack.c.h.b16 %v274
    %v2589 = vunpack.c.l.b16 %v275
    %v2590 = vunpack.c.h.b16 %v275
    %v2591 = vunpack.c.l.b16 %v276
    %v2592 = vunpack.c.h.b16 %v276
    %v2593 = vunpack.c.l.b16 %v277
    %v2594 = vunpack.c.h.b16 %v277
    %v2595 = vunpack.c.l.b16 %v278
    %v2596 = vunpack.c.h.b16 %v278
    %v2597 = vunpack.c.l.b16 %v279
    %v2598 = vunpack.c.h.b16 %v279
    %v2599 = vunpack.c.l.b16 %v280
    %v2600 = vunpack.c.h.b16 %v280
    %v2601 = vunpack.c.l.b16 %v281
    %v2602 = vunpack.c.h.b16 %v281
    %v2603 = vunpack.c.l.b16 %v282
    %v2604 = vunpack.c.h.b16 %v282
    %v2605 = vunpack.c.l.b16 %v283
    %v2606 = vunpack.c.h.b16 %v283
    %v2607 = vunpack.c.l.b16 %v284
    %v2608 = vunpack.c.h.b16 %v284
    %v2609 = vunpack.c.l.b16 %v285
    %v2610 = vunpack.c.h.b16 %v285
    %v2611 = vunpack.c.l.b16 %v286
    %v2612 = vunpack.c.h.b16 %v286
    %v2613 = vunpack.c.l.b16 %v287
    %v2614 = vunpack.c.h.b16 %v287
    %v2615 = vunpack.c.l.b16 %v288
    %v2616 = vunpack.c.h.b16 %v288
    %v2617 = vunpack.c.l.b16 %v289
    %v2618 = vunpack.c.h.b16 %v289
    %v2619 = vunpack.c.l.b16 %v290
    %v2620 = vunpack.c.h.b16 %v290
    %v2621 = vunpack.c.l.b16 %v291
    %v2622 = vunpack.c.h.b16 %v291
    %v2623 = vunpack.c.l.b16 %v292
    %v2624 = vunpack.c.h.b16 %v292
    %v2625 = vunpack.c.l.b16 %v293
    %v2626 = vunpack.c.h.b16 %v293
    %v2627 = vunpack.c.l.b16 %v294
    %v2628 = vunpack.c.h.b16 %v294
    %v2629 = vunpack.c.l.b16 %v295
    %v2630 = vunpack.c.h.b16 %v295
    %v2631 = vunpack.c.l.b16 %v296
    %v2632 = vunpack.c.h.b16 %v296
    %v2633 = vunpack.c.l.b16 %v297
    %v2634 = vunpack.c.h.b16 %v297
    %v2635 = vunpack.c.l.b16 %v298
    %v2636 = vunpack.c.h.b16 %v298
    %v2637 = vunpack.c.l.b16 %v299
    %v2638 = vunpack.c.h.b16 %v299
    %v2639 = vunpack.c.l.b16 %v300
    %v2640 = vunpack.c.h.b16 %v300
    %v2641 = vunpack.c.l.b16 %v301
    %v2642 = vunpack.c.h.b16 %v301
    %v2643 = vunpack.c.l.b16 %v302
    %v2644 = vunpack.c.h.b16 %v302
    %v2645 = vunpack.c.l.b16 %v303
    %v2646 = vunpack.c.h.b16 %v303
    %v2647 = vunpack.c.l.b16 %v304
    %v2648 = vunpack.c.h.b16 %v304
    %v2649 = vunpack.c.l.b16 %v305
    %v2650 = vunpack.c.h.b16 %v305
    %v2651 = vunpack.c.l.b16 %v306
    %v2652 = vunpack.c.h.b16 %v306
    %v2653 = vunpack.c.l.b16 %v307
    %v2654 = vunpack.c.h.b16 %v307
    %v2655 = vunpack.c.l.b16 %v308
    %v2656 = vunpack.c.h.b16 %v308
    %v2657 = vunpack.c.l.b16 %v309
    %v2658 = vunpack.c.h.b16 %v309
    %v2659 = vunpack.c.l.b16 %v310
    %v2660 = vunpack.c.h.b16 %v310
    %v2661 = vunpack.c.l.b16 %v311
    %v2662 = vunpack.c.h.b16 %v311
    %v2663 = vunpack.c.l.b16 %v312
    %v2664 = vunpack.c.h.b16 %v312
    %v2665 = vunpack.c.l.b16 %v313
    %v2666 = vunpack.c.h.b16 %v313
    %v2667 = vunpack.c.l.b16 %v314
    %v2668 = vunpack.c.h.b16 %v314
    %v2669 = vunpack.c.l.b16 %v315
    %v2670 = vunpack.c.h.b16 %v315
    %v2671 = vunpack.c.l.b16 %v316
    %v2672 = vunpack.c.h.b16 %v316
    %v2673 = vunpack.c.l.b16 %v317
    %v2674 = vunpack.c.h.b16 %v317
    %v2675 = vunpack.c.l.b16 %v318
    %v2676 = vunpack.c.h.b16 %v318
    %v2677 = vunpack.c.l.b16 %v319
    %v2678 = vunpack.c.h.b16 %v319
    %v2679 = vunpack.c.l.b16 %v320
    %v2680 = vunpack.c.h.b16 %v320
    %v2681 = vunpack.c.l.b16 %v321
    %v2682 = vunpack.c.h.b16 %v321
    %v2683 = vunpack.c.l.b16 %v322
    %v2684 = vunpack.c.h.b16 %v322
    %v2685 = vunpack.c.l.b16 %v323
    %v2686 = vunpack.c.h.b16 %v323
    %v2687 = vunpack.c.l.b16 %v324
    %v2688 = vunpack.c.h.b16 %v324
    %v2689 = vunpack.c.l.b16 %v325
    %v2690 = vunpack.c.h.b16 %v325
    %v2691 = vunpack.c.l.b16 %v326
    %v2692 = vunpack.c.h.b16 %v326
    %v2693 = vunpack.c.l.b16 %v327
    %v2694 = vunpack.c.h.b16 %v327
    %v2695 = vunpack.c.l.b16 %v328
    %v2696 = vunpack.c.h.b16 %v328
    %v2697 = vunpack.c.l.b16 %v329
    %v2698 = vunpack.c.h.b16 %v329
    %v2699 = vunpack.c.l.b16 %v330
    %v2700 = vunpack.c.h.b16 %v330
    %v2701 = vunpack.c.l.b16 %v331
    %v2702 = vunpack.c.h.b16 %v331
    %v2703 = vunpack.c.l.b16 %v332
    %v2704 = vunpack.c.h.b16 %v332
    %v2705 = vunpack.c.l.b16 %v333
    %v2706 = vunpack.c.h.b16 %v333
    %v2707 = vunpack.c.l.b16 %v334
    %v2708 = vunpack.c.h.b16 %v334
    %v2709 = vunpack.c.l.b16 %v335
    %v2710 = vunpack.c.h.b16 %v335
    %v2711 = vunpack.c.l.b16 %v336
    %v2712 = vunpack.c.h.b16 %v336
    %v2713 = vunpack.c.l.b16 %v337
    %v2714 = vunpack.c.h.b16 %v337
    %v2715 = vunpack.c.l.b16 %v338
    %v2716 = vunpack.c.h.b16 %v338
    %v2717 = vunpack.c.l.b16 %v339
    %v2718 = vunpack.c.h.b16 %v339
    %v2719 = vunpack.c.l.b16 %v340
    %v2720 = vunpack.c.h.b16 %v340
    %v2721 = vunpack.c.l.b16 %v341
    %v2722 = vunpack.c.h.b16 %v341
    %v2723 = vunpack.c.l.b16 %v342
    %v2724 = vunpack.c.h.b16 %v342
    %v2725 = vunpack.c.l.b16 %v343
    %v2726 = vunpack.c.h.b16 %v343
    %v2727 = vunpack.c.l.b16 %v344
    %v2728 = vunpack.c.h.b16 %v344
    %v2729 = vunpack.c.l.b16 %v345
    %v2730 = vunpack.c.h.b16 %v345
    %v2731 = vunpack.c.l.b16 %v346
    %v2732 = vunpack.c.h.b16 %v346
    %v2733 = vunpack.c.l.b16 %v347
    %v2734 = vunpack.c.h.b16 %v347
    %v2735 = vunpack.c.l.b16 %v348
    %v2736 = vunpack.c.h.b16 %v348
    %v2737 = vunpack.c.l.b16 %v349
    %v2738 = vunpack.c.h.b16 %v349
    %v2739 = vunpack.c.l.b16 %v350
    %v2740 = vunpack.c.h.b16 %v350
    %v2741 = vunpack.c.l.b16 %v351
    %v2742 = vunpack.c.h.b16 %v351
    %v2743 = vunpack.c.l.b16 %v352
    %v2744 = vunpack.c.h.b16 %v352
    %v2745 = vunpack.c.l.b16 %v353
    %v2746 = vunpack.c.h.b16 %v353
    %v2747 = vunpack.c.l.b16 %v354
    %v2748 = vunpack.c.h.b16 %v354
    %v2749 = vunpack.c.l.b16 %v355
    %v2750 = vunpack.c.h.b16 %v355
    %v2751 = vunpack.c.l.b16 %v356
    %v2752 = vunpack.c.h.b16 %v356
    %v2753 = vunpack.c.l.b16 %v357
    %v2754 = vunpack.c.h.b16 %v357
    %v2755 = vunpack.c.l.b16 %v358
    %v2756 = vunpack.c.h.b16 %v358
    %v2757 = vunpack.c.l.b16 %v359
    %v2758 = vunpack.c.h.b16 %v359
    %v2759 = vunpack.c.l.b16 %v360
    %v2760 = vunpack.c.h.b16 %v360
    %v2761 = vunpack.c.l.b16 %v361
    %v2762 = vunpack.c.h.b16 %v361
    %v2763 = vunpack.c.l.b16 %v362
    %v2764 = vunpack.c.h.b16 %v362
    %v2765 = vunpack.c.l.b16 %v363
    %v2766 = vunpack.c.h.b16 %v363
    %v2767 = vunpack.c.l.b16 %v364
    %v2768 = vunpack.c.h.b16 %v364
    %v2769 = vunpack.c.l.b16 %v365
    %v2770 = vunpack.c.h.b16 %v365
    %v2771 = vunpack.c.l.b16 %v366
    %v2772 = vunpack.c.h.b16 %v366
    %v2773 = vunpack.c.l.b16 %v367
    %v2774 = vunpack.c.h.b16 %v367
    %v2775 = vunpack.c.l.b16 %v368
    %v2776 = vunpack.c.h.b16 %v368
    %v2777 = vunpack.c.l.b16 %v369
    %v2778 = vunpack.c.h.b16 %v369
    %v2779 = vunpack.c.l.b16 %v370
    %v2780 = vunpack.c.h.b16 %v370
    %v2781 = vunpack.c.l.b16 %v371
    %v2782 = vunpack.c.h.b16 %v371
    %v2783 = vunpack.c.l.b16 %v372
    %v2784 = vunpack.c.h.b16 %v372
    %v2785 = vunpack.c.l.b16 %v373
    %v2786 = vunpack.c.h.b16 %v373
    %v2787 = vunpack.c.l.b16 %v374
    %v2788 = vunpack.c.h.b16 %v374
    %v2789 = vunpack.c.l.b16 %v375
    %v2790 = vunpack.c.h.b16 %v375
    %v2791 = vunpack.c.l.b16 %v376
    %v2792 = vunpack.c.h.b16 %v376
    %v2793 = vunpack.c.l.b16 %v377
    %v2794 = vunpack.c.h.b16 %v377
    %v2795 = vunpack.c.l.b16 %v378
    %v2796 = vunpack.c.h.b16 %v378
    %v2797 = vunpack.c.l.b16 %v379
    %v2798 = vunpack.c.h.b16 %v379
    %v2799 = vunpack.c.l.b16 %v380
    %v2800 = vunpack.c.h.b16 %v380
    %v2801 = vunpack.c.l.b16 %v381
    %v2802 = vunpack.c.h.b16 %v381
    %v2803 = vunpack.c.l.b16 %v382
    %v2804 = vunpack.c.h.b16 %v382
    %v2805 = vunpack.c.l.b16 %v383
    %v2806 = vunpack.c.h.b16 %v383
    %v2807 = vunpack.c.l.b16 %v384
    %v2808 = vunpack.c.h.b16 %v384
    %v2809 = vunpack.c.l.b16 %v385
    %v2810 = vunpack.c.h.b16 %v385
    %v2811 = vunpack.c.l.b16 %v386
    %v2812 = vunpack.c.h.b16 %v386
    %v2813 = vunpack.c.l.b16 %v387
    %v2814 = vunpack.c.h.b16 %v387
    %v2815 = vunpack.c.l.b16 %v388
    %v2816 = vunpack.c.h.b16 %v388
    %v2817 = vunpack.c.l.b16 %v389
    %v2818 = vunpack.c.h.b16 %v389
    %v2819 = vunpack.c.l.b16 %v390
    %v2820 = vunpack.c.h.b16 %v390
    %v2821 = vunpack.c.l.b16 %v391
    %v2822 = vunpack.c.h.b16 %v391
    %v2823 = vunpack.c.l.b16 %v392
    %v2824 = vunpack.c.h.b16 %v392
    %v2825 = vunpack.c.l.b16 %v393
    %v2826 = vunpack.c.h.b16 %v393
    %v2827 = vunpack.c.l.b16 %v394
    %v2828 = vunpack.c.h.b16 %v394
    %v2829 = vunpack.c.l.b16 %v395
    %v2830 = vunpack.c.h.b16 %v395
    %v2831 = vunpack.c.l.b16 %v396
    %v2832 = vunpack.c.h.b16 %v396
    %v2833 = vunpack.c.l.b16 %v397
    %v2834 = vunpack.c.h.b16 %v397
    %v2835 = vunpack.c.l.b16 %v398
    %v2836 = vunpack.c.h.b16 %v398
    %v2837 = vunpack.c.l.b16 %v399
    %v2838 = vunpack.c.h.b16 %v399
    %v2839 = vunpack.c.l.b16 %v400
    %v2840 = vunpack.c.h.b16 %v400
    %v2841 = vunpack.c.l.b16 %v401
    %v2842 = vunpack.c.h.b16 %v401
    %v2843 = vunpack.c.l.b16 %v402
    %v2844 = vunpack.c.h.b16 %v402
    %v2845 = vunpack.c.l.b16 %v403
    %v2846 = vunpack.c.h.b16 %v403
    %v2847 = vunpack.c.l.b16 %v404
    %v2848 = vunpack.c.h.b16 %v404
    %v2849 = vunpack.c.l.b16 %v405
    %v2850 = vunpack.c.h.b16 %v405
    %v2851 = vunpack.c.l.b16 %v406
    %v2852 = vunpack.c.h.b16 %v406
    %v2853 = vunpack.c.l.b16 %v407
    %v2854 = vunpack.c.h.b16 %v407
    %v2855 = vunpack.c.l.b16 %v408
    %v2856 = vunpack.c.h.b16 %v408
    %v2857 = vunpack.c.l.b16 %v409
    %v2858 = vunpack.c.h.b16 %v409
    %v2859 = vunpack.c.l.b16 %v410
    %v2860 = vunpack.c.h.b16 %v410
    %v2861 = vunpack.c.l.b16 %v411
    %v2862 = vunpack.c.h.b16 %v411
    %v2863 = vunpack.c.l.b16 %v412
    %v2864 = vunpack.c.h.b16 %v412
    %v2865 = vunpack.c.l.b16 %v413
    %v2866 = vunpack.c.h.b16 %v413
    %v2867 = vunpack.c.l.b16 %v414
    %v2868 = vunpack.c.h.b16 %v414
    %v2869 = vunpack.c.l.b16 %v415
    %v2870 = vunpack.c.h.b16 %v415
    %v2871 = vunpack.c.l.b16 %v416
    %v2872 = vunpack.c.h.b16 %v416
    %v2873 = vunpack.c.l.b16 %v417
    %v2874 = vunpack.c.h.b16 %v417
    %v2875 = vunpack.c.l.b16 %v418
    %v2876 = vunpack.c.h.b16 %v418
    %v2877 = vunpack.c.l.b16 %v419
    %v2878 = vunpack.c.h.b16 %v419
    %v2879 = vunpack.c.l.b16 %v420
    %v2880 = vunpack.c.h.b16 %v420
    %v2881 = vunpack.c.l.b16 %v421
    %v2882 = vunpack.c.h.b16 %v421
    %v2883 = vunpack.c.l.b16 %v422
    %v2884 = vunpack.c.h.b16 %v422
    %v2885 = vunpack.c.l.b16 %v423
    %v2886 = vunpack.c.h.b16 %v423
    %v2887 = vunpack.c.l.b16 %v424
    %v2888 = vunpack.c.h.b16 %v424
    %v2889 = vunpack.c.l.b16 %v425
    %v2890 = vunpack.c.h.b16 %v425
    %v2891 = vunpack.c.l.b16 %v426
    %v2892 = vunpack.c.h.b16 %v426
    %v2893 = vunpack.c.l.b16 %v427
    %v2894 = vunpack.c.h.b16 %v427
    %v2895 = vunpack.c.l.b16 %v428
    %v2896 = vunpack.c.h.b16 %v428
    %v2897 = vunpack.c.l.b16 %v429
    %v2898 = vunpack.c.h.b16 %v429
    %v2899 = vunpack.c.l.b16 %v430
    %v2900 = vunpack.c.h.b16 %v430
    %v2901 = vunpack.c.l.b16 %v431
    %v2902 = vunpack.c.h.b16 %v431
    %v2903 = vunpack.c.l.b16 %v432
    %v2904 = vunpack.c.h.b16 %v432
    %v2905 = vunpack.c.l.b16 %v433
    %v2906 = vunpack.c.h.b16 %v433
    %v2907 = vunpack.c.l.b16 %v434
    %v2908 = vunpack.c.h.b16 %v434
    %v2909 = vunpack.c.l.b16 %v435
    %v2910 = vunpack.c.h.b16 %v435
    %v2911 = vunpack.c.l.b16 %v436
    %v2912 = vunpack.c.h.b16 %v436
    %v2913 = vunpack.c.l.b16 %v437
    %v2914 = vunpack.c.h.b16 %v437
    %v2915 = vunpack.c.l.b16 %v438
    %v2916 = vunpack.c.h.b16 %v438
    %v2917 = vunpack.c.l.b16 %v439
    %v2918 = vunpack.c.h.b16 %v439
    %v2919 = vunpack.c.l.b16 %v440
    %v2920 = vunpack.c.h.b16 %v440
    %v2921 = vunpack.c.l.b16 %v441
    %v2922 = vunpack.c.h.b16 %v441
    %v2923 = vunpack.c.l.b16 %v442
    %v2924 = vunpack.c.h.b16 %v442
    %v2925 = vunpack.c.l.b16 %v443
    %v2926 = vunpack.c.h.b16 %v443
    %v2927 = vunpack.c.l.b16 %v444
    %v2928 = vunpack.c.h.b16 %v444
    %v2929 = vunpack.c.l.b16 %v445
    %v2930 = vunpack.c.h.b16 %v445
    %v2931 = vunpack.c.l.b16 %v446
    %v2932 = vunpack.c.h.b16 %v446
    %v2933 = vunpack.c.l.b16 %v447
    %v2934 = vunpack.c.h.b16 %v447
    %v2935 = vunpack.c.l.b16 %v448
    %v2936 = vunpack.c.h.b16 %v448
    %v2937 = vunpack.c.l.b16 %v449
    %v2938 = vunpack.c.h.b16 %v449
    %v2939 = vunpack.c.l.b16 %v450
    %v2940 = vunpack.c.h.b16 %v450
    %v2941 = vunpack.c.l.b16 %v451
    %v2942 = vunpack.c.h.b16 %v451
    %v2943 = vunpack.c.l.b16 %v452
    %v2944 = vunpack.c.h.b16 %v452
    %v2945 = vunpack.c.l.b16 %v453
    %v2946 = vunpack.c.h.b16 %v453
    %v2947 = vunpack.c.l.b16 %v454
    %v2948 = vunpack.c.h.b16 %v454
    %v2949 = vunpack.c.l.b16 %v455
    %v2950 = vunpack.c.h.b16 %v455
    %v2951 = vunpack.c.l.b16 %v456
    %v2952 = vunpack.c.h.b16 %v456
    %v2953 = vunpack.c.l.b16 %v457
    %v2954 = vunpack.c.h.b16 %v457
    %v2955 = vunpack.c.l.b16 %v458
    %v2956 = vunpack.c.h.b16 %v458
    %v2957 = vunpack.c.l.b16 %v459
    %v2958 = vunpack.c.h.b16 %v459
    %v2959 = vunpack.c.l.b16 %v460
    %v2960 = vunpack.c.h.b16 %v460
    %v2961 = vunpack.c.l.b16 %v461
    %v2962 = vunpack.c.h.b16 %v461
    %v2963 = vunpack.c.l.b16 %v462
    %v2964 = vunpack.c.h.b16 %v462
    %v2965 = vunpack.c.l.b16 %v463
    %v2966 = vunpack.c.h.b16 %v463
    %v2967 = vunpack.c.l.b16 %v464
    %v2968 = vunpack.c.h.b16 %v464
    %v2969 = vunpack.c.l.b16 %v465
    %v2970 = vunpack.c.h.b16 %v465
    %v2971 = vunpack.c.l.b16 %v466
    %v2972 = vunpack.c.h.b16 %v466
    %v2973 = vunpack.c.l.b16 %v467
    %v2974 = vunpack.c.h.b16 %v467
    %v2975 = vunpack.c.l.b16 %v468
    %v2976 = vunpack.c.h.b16 %v468
    %v2977 = vunpack.c.l.b16 %v469
    %v2978 = vunpack.c.h.b16 %v469
    %v2979 = vunpack.c.l.b16 %v470
    %v2980 = vunpack.c.h.b16 %v470
    %v2981 = vunpack.c.l.b16 %v471
    %v2982 = vunpack.c.h.b16 %v471
    %v2983 = vunpack.c.l.b16 %v472
    %v2984 = vunpack.c.h.b16 %v472
    %v2985 = vunpack.c.l.b16 %v473
    %v2986 = vunpack.c.h.b16 %v473
    %v2987 = vunpack.c.l.b16 %v474
    %v2988 = vunpack.c.h.b16 %v474
    %v2989 = vunpack.c.l.b16 %v475
    %v2990 = vunpack.c.h.b16 %v475
    %v2991 = vunpack.c.l.b16 %v476
    %v2992 = vunpack.c.h.b16 %v476
    %v2993 = vunpack.c.l.b16 %v477
    %v2994 = vunpack.c.h.b16 %v477
    %v2995 = vunpack.c.l.b16 %v478
    %v2996 = vunpack.c.h.b16 %v478
    %v2997 = vunpack.c.l.b16 %v479
    %v2998 = vunpack.c.h.b16 %v479
    %v2999 = vunpack.c.l.b16 %v480
    %v3000 = vunpack.c.h.b16 %v480
    %v3001 = vunpack.c.l.b16 %v481
    %v3002 = vunpack.c.h.b16 %v481
    %v3003 = vunpack.c.l.b16 %v482
    %v3004 = vunpack.c.h.b16 %v482
    %v3005 = vunpack.c.l.b16 %v483
    %v3006 = vunpack.c.h.b16 %v483
    %v3007 = vunpack.c.l.b16 %v484
    %v3008 = vunpack.c.h.b16 %v484
    %v3009 = vunpack.c.l.b16 %v485
    %v3010 = vunpack.c.h.b16 %v485
    %v3011 = vunpack.c.l.b16 %v486
    %v3012 = vunpack.c.h.b16 %v486
    %v3013 = vunpack.c.l.b16 %v487
    %v3014 = vunpack.c.h.b16 %v487
    %v3015 = vunpack.c.l.b16 %v488
    %v3016 = vunpack.c.h.b16 %v488
    %v3017 = vunpack.c.l.b16 %v489
    %v3018 = vunpack.c.h.b16 %v489
    %v3019 = vunpack.c.l.b16 %v490
    %v3020 = vunpack.c.h.b16 %v490
    %v3021 = vunpack.c.l.b16 %v491
    %v3022 = vunpack.c.h.b16 %v491
    %v3023 = vunpack.c.l.b16 %v492
    %v3024 = vunpack.c.h.b16 %v492
    %v3025 = vunpack.c.l.b16 %v493
    %v3026 = vunpack.c.h.b16 %v493
    %v3027 = vunpack.c.l.b16 %v494
    %v3028 = vunpack.c.h.b16 %v494
    %v3029 = vunpack.c.l.b16 %v495
    %v3030 = vunpack.c.h.b16 %v495
    %v3031 = vunpack.c.l.b16 %v496
    %v3032 = vunpack.c.h.b16 %v496
    %v3033 = vunpack.c.l.b16 %v497
    %v3034 = vunpack.c.h.b16 %v497
    %v3035 = vunpack.c.l.b16 %v498
    %v3036 = vunpack.c.h.b16 %v498
    %v3037 = vunpack.c.l.b16 %v499
    %v3038 = vunpack.c.h.b16 %v499
    %v3039 = vunpack.c.l.b16 %v500
    %v3040 = vunpack.c.h.b16 %v500
    %v3041 = vunpack.c.l.b16 %v501
    %v3042 = vunpack.c.h.b16 %v501
    %v3043 = vunpack.c.l.b16 %v502
    %v3044 = vunpack.c.h.b16 %v502
    %v3045 = vunpack.c.l.b16 %v503
    %v3046 = vunpack.c.h.b16 %v503
    %v3047 = vunpack.c.l.b16 %v504
    %v3048 = vunpack.c.h.b16 %v504
    %v3049 = vunpack.c.l.b16 %v505
    %v3050 = vunpack.c.h.b16 %v505
    %v3051 = vunpack.c.l.b16 %v506
    %v3052 = vunpack.c.h.b16 %v506
    %v3053 = vunpack.c.l.b16 %v507
    %v3054 = vunpack.c.h.b16 %v507
    %v3055 = vunpack.c.l.b16 %v508
    %v3056 = vunpack.c.h.b16 %v508
    %v3057 = vunpack.c.l.b16 %v509
    %v3058 = vunpack.c.h.b16 %v509
    %v3059 = vunpack.c.l.b16 %v510
    %v3060 = vunpack.c.h.b16 %v510
    %v3061 = vunpack.c.l.b16 %v511
    %v3062 = vunpack.c.h.b16 %v511
    %v3063 = vunpack.c.l.b16 %v512
    %v3064 = vunpack.c.h.b16 %v512
    %v3065 = vunpack.c.l.b16 %v513
    %v3066 = vunpack.c.h.b16 %v513
    %v3067 = vunpack.c.l.b16 %v514
    %v3068 = vunpack.c.h.b16 %v514
    %v3069 = vunpack.c.l.b16 %v515
    %v3070 = vunpack.c.h.b16 %v515
    %v3071 = vunpack.c.l.b16 %v516
    %v3072 = vunpack.c.h.b16 %v516
    %v3073 = vunpack.c.l.b16 %v517
    %v3074 = vunpack.c.h.b16 %v517
    %v3075 = vunpack.c.l.b16 %v518
    %v3076 = vunpack.c.h.b16 %v518
    %v3077 = vunpack.c.l.b16 %v519
    %v3078 = vunpack.c.h.b16 %v519
    %v3079 = vunpack.c.l.b16 %v520
    %v3080 = vunpack.c.h.b16 %v520
    %v3081 = vunpack.c.l.b16 %v521
    %v3082 = vunpack.c.h.b16 %v521
    %v3083 = vunpack.c.l.b16 %v522
    %v3084 = vunpack.c.h.b16 %v522
    %v3085 = vunpack.c.l.b16 %v523
    %v3086 = vunpack.c.h.b16 %v523
    %v3087 = vunpack.c.l.b16 %v524
    %v3088 = vunpack.c.h.b16 %v524
    %v3089 = vunpack.c.l.b16 %v525
    %v3090 = vunpack.c.h.b16 %v525
    %v3091 = vunpack.c.l.b16 %v526
    %v3092 = vunpack.c.h.b16 %v526
    %v3093 = vunpack.c.l.b16 %v527
    %v3094 = vunpack.c.h.b16 %v527
    %v3095 = vunpack.c.l.b16 %v528
    %v3096 = vunpack.c.h.b16 %v528
    %v3097 = vunpack.c.l.b16 %v529
    %v3098 = vunpack.c.h.b16 %v529
    %v3099 = vunpack.c.l.b16 %v530
    %v3100 = vunpack.c.h.b16 %v530
    %v3101 = vunpack.c.l.b16 %v531
    %v3102 = vunpack.c.h.b16 %v531
    %v3103 = vunpack.c.l.b16 %v532
    %v3104 = vunpack.c.h.b16 %v532
    %v3105 = vunpack.c.l.b16 %v533
    %v3106 = vunpack.c.h.b16 %v533
    %v3107 = vunpack.c.l.b16 %v534
    %v3108 = vunpack.c.h.b16 %v534
    %v3109 = vunpack.c.l.b16 %v535
    %v3110 = vunpack.c.h.b16 %v535
    %v3111 = vunpack.c.l.b16 %v536
    %v3112 = vunpack.c.h.b16 %v536
    %v3113 = vunpack.c.l.b16 %v537
    %v3114 = vunpack.c.h.b16 %v537
    %v3115 = vunpack.c.l.b16 %v538
    %v3116 = vunpack.c.h.b16 %v538
    %v3117 = vunpack.c.l.b16 %v539
    %v3118 = vunpack.c.h.b16 %v539
    %v3119 = vunpack.c.l.b16 %v540
    %v3120 = vunpack.c.h.b16 %v540
    %v3121 = vunpack.c.l.b16 %v541
    %v3122 = vunpack.c.h.b16 %v541
    %v3123 = vunpack.c.l.b16 %v542
    %v3124 = vunpack.c.h.b16 %v542
    %v3125 = vunpack.c.l.b16 %v543
    %v3126 = vunpack.c.h.b16 %v543
    %v3127 = vunpack.c.l.b16 %v544
    %v3128 = vunpack.c.h.b16 %v544
    %v3129 = vunpack.c.l.b16 %v545
    %v3130 = vunpack.c.h.b16 %v545
    %v3131 = vunpack.c.l.b16 %v546
    %v3132 = vunpack.c.h.b16 %v546
    %v3133 = vunpack.c.l.b16 %v547
    %v3134 = vunpack.c.h.b16 %v547
    %v3135 = vunpack.c.l.b16 %v548
    %v3136 = vunpack.c.h.b16 %v548
    %v3137 = vunpack.c.l.b16 %v549
    %v3138 = vunpack.c.h.b16 %v549
    %v3139 = vunpack.c.l.b16 %v550
    %v3140 = vunpack.c.h.b16 %v550
    %v3141 = vunpack.c.l.b16 %v551
    %v3142 = vunpack.c.h.b16 %v551
    %v3143 = vunpack.c.l.b16 %v552
    %v3144 = vunpack.c.h.b16 %v552
    %v3145 = vunpack.c.l.b16 %v553
    %v3146 = vunpack.c.h.b16 %v553
    %v3147 = vunpack.c.l.b16 %v554
    %v3148 = vunpack.c.h.b16 %v554
    %v3149 = vunpack.c.l.b16 %v555
    %v3150 = vunpack.c.h.b16 %v555
    %v3151 = vunpack.c.l.b16 %v556
    %v3152 = vunpack.c.h.b16 %v556
    %v3153 = vunpack.c.l.b16 %v557
    %v3154 = vunpack.c.h.b16 %v557
    %v3155 = vunpack.c.l.b16 %v558
    %v3156 = vunpack.c.h.b16 %v558
    %v3157 = vunpack.c.l.b16 %v559
    %v3158 = vunpack.c.h.b16 %v559
    %v3159 = vunpack.c.l.b16 %v560
    %v3160 = vunpack.c.h.b16 %v560
    %v3161 = vunpack.c.l.b16 %v561
    %v3162 = vunpack.c.h.b16 %v561
    %v3163 = vunpack.c.l.b16 %v562
    %v3164 = vunpack.c.h.b16 %v562
    %v3165 = vunpack.c.l.b16 %v563
    %v3166 = vunpack.c.h.b16 %v563
    %v3167 = vunpack.c.l.b16 %v564
    %v3168 = vunpack.c.h.b16 %v564
    %v3169 = vunpack.c.l.b16 %v565
    %v3170 = vunpack.c.h.b16 %v565
    %v3171 = vunpack.c.l.b16 %v566
    %v3172 = vunpack.c.h.b16 %v566
    %v3173 = vunpack.c.l.b16 %v567
    %v3174 = vunpack.c.h.b16 %v567
    %v3175 = vunpack.c.l.b16 %v568
    %v3176 = vunpack.c.h.b16 %v568
    %v3177 = vunpack.c.l.b16 %v569
    %v3178 = vunpack.c.h.b16 %v569
    %v3179 = vunpack.c.l.b16 %v570
    %v3180 = vunpack.c.h.b16 %v570
    %v3181 = vunpack.c.l.b16 %v571
    %v3182 = vunpack.c.h.b16 %v571
    %v3183 = vunpack.c.l.b16 %v572
    %v3184 = vunpack.c.h.b16 %v572
    %v3185 = vunpack.c.l.b16 %v573
    %v3186 = vunpack.c.h.b16 %v573
    %v3187 = vunpack.c.l.b16 %v574
    %v3188 = vunpack.c.h.b16 %v574
    %v3189 = vunpack.c.l.b16 %v575
    %v3190 = vunpack.c.h.b16 %v575
    %v3191 = vunpack.c.l.b16 %v576
    %v3192 = vunpack.c.h.b16 %v576
    %v3193 = vunpack.c.l.b16 %v577
    %v3194 = vunpack.c.h.b16 %v577
    %v3195 = vunpack.c.l.b16 %v578
    %v3196 = vunpack.c.h.b16 %v578
    %v3197 = vunpack.c.l.b16 %v579
    %v3198 = vunpack.c.h.b16 %v579
    %v3199 = vunpack.c.l.b16 %v580
    %v3200 = vunpack.c.h.b16 %v580
    %v3201 = vunpack.c.l.b16 %v581
    %v3202 = vunpack.c.h.b16 %v581
    %v3203 = vunpack.c.l.b16 %v582
    %v3204 = vunpack.c.h.b16 %v582
    %v3205 = vunpack.c.l.b16 %v583
    %v3206 = vunpack.c.h.b16 %v583
    %v3207 = vunpack.c.l.b16 %v584
    %v3208 = vunpack.c.h.b16 %v584
    %v3209 = vunpack.c.l.b16 %v585
    %v3210 = vunpack.c.h.b16 %v585
    %v3211 = vunpack.c.l.b16 %v586
    %v3212 = vunpack.c.h.b16 %v586
    %v3213 = vunpack.c.l.b16 %v587
    %v3214 = vunpack.c.h.b16 %v587
    %v3215 = vunpack.c.l.b16 %v588
    %v3216 = vunpack.c.h.b16 %v588
    %v3217 = vunpack.c.l.b16 %v589
    %v3218 = vunpack.c.h.b16 %v589
    %v3219 = vunpack.c.l.b16 %v590
    %v3220 = vunpack.c.h.b16 %v590
    %v3221 = vunpack.c.l.b16 %v591
    %v3222 = vunpack.c.h.b16 %v591
    %v3223 = vunpack.c.l.b16 %v592
    %v3224 = vunpack.c.h.b16 %v592
    %v3225 = vunpack.c.l.b16 %v593
    %v3226 = vunpack.c.h.b16 %v593
    %v3227 = vunpack.c.l.b16 %v594
    %v3228 = vunpack.c.h.b16 %v594
    %v3229 = vunpack.c.l.b16 %v595
    %v3230 = vunpack.c.h.b16 %v595
    %v3231 = vunpack.c.l.b16 %v596
    %v3232 = vunpack.c.h.b16 %v596
    %v3233 = vunpack.c.l.b16 %v597
    %v3234 = vunpack.c.h.b16 %v597
    %v3235 = vunpack.c.l.b16 %v598
    %v3236 = vunpack.c.h.b16 %v598
    %v3237 = vunpack.c.l.b16 %v599
    %v3238 = vunpack.c.h.b16 %v599
    %v3239 = vunpack.c.l.b16 %v600
    %v3240 = vunpack.c.h.b16 %v600
    %v3241 = vunpack.c.l.b16 %v601
    %v3242 = vunpack.c.h.b16 %v601
    %v3243 = vunpack.c.l.b16 %v602
    %v3244 = vunpack.c.h.b16 %v602
    %v3245 = vunpack.c.l.b16 %v603
    %v3246 = vunpack.c.h.b16 %v603
    %v3247 = vunpack.c.l.b16 %v604
    %v3248 = vunpack.c.h.b16 %v604
    %v3249 = vunpack.c.l.b16 %v605
    %v3250 = vunpack.c.h.b16 %v605
    %v3251 = vunpack.c.l.b16 %v606
    %v3252 = vunpack.c.h.b16 %v606
    %v3253 = vunpack.c.l.b16 %v607
    %v3254 = vunpack.c.h.b16 %v607
    %v3255 = vunpack.c.l.b16 %v608
    %v3256 = vunpack.c.h.b16 %v608
    %v3257 = vunpack.c.l.b16 %v609
    %v3258 = vunpack.c.h.b16 %v609
    %v3259 = vunpack.c.l.b16 %v610
    %v3260 = vunpack.c.h.b16 %v610
    %v3261 = vunpack.c.l.b16 %v611
    %v3262 = vunpack.c.h.b16 %v611
    %v3263 = vunpack.c.l.b16 %v612
    %v3264 = vunpack.c.h.b16 %v612
    %v3265 = vunpack.c.l.b16 %v613
    %v3266 = vunpack.c.h.b16 %v613
    %v3267 = vunpack.c.l.b16 %v614
    %v3268 = vunpack.c.h.b16 %v614
    %v3269 = vunpack.c.l.b16 %v615
    %v3270 = vunpack.c.h.b16 %v615
    %v3271 = vunpack.c.l.b16 %v616
    %v3272 = vunpack.c.h.b16 %v616
    %v3273 = vunpack.c.l.b16 %v617
    %v3274 = vunpack.c.h.b16 %v617
    %v3275 = vunpack.c.l.b16 %v618
    %v3276 = vunpack.c.h.b16 %v618
    %v3277 = vunpack.c.l.b16 %v619
    %v3278 = vunpack.c.h.b16 %v619
    %v3279 = vunpack.c.l.b16 %v620
    %v3280 = vunpack.c.h.b16 %v620
    %v3281 = vunpack.c.l.b16 %v621
    %v3282 = vunpack.c.h.b16 %v621
    %v3283 = vunpack.c.l.b16 %v622
    %v3284 = vunpack.c.h.b16 %v622
    %v3285 = vunpack.c.l.b16 %v623
    %v3286 = vunpack.c.h.b16 %v623
    %v3287 = vunpack.c.l.b16 %v624
    %v3288 = vunpack.c.h.b16 %v624
    %v3289 = vunpack.c.l.b16 %v625
    %v3290 = vunpack.c.h.b16 %v625
    %v3291 = vunpack.c.l.b16 %v626
    %v3292 = vunpack.c.h.b16 %v626
    %v3293 = vunpack.c.l.b16 %v627
    %v3294 = vunpack.c.h.b16 %v627
    %v3295 = vunpack.c.l.b16 %v628
    %v3296 = vunpack.c.h.b16 %v628
    %v3297 = vunpack.c.l.b16 %v629
    %v3298 = vunpack.c.h.b16 %v629
    %v3299 = vunpack.c.l.b16 %v630
    %v3300 = vunpack.c.h.b16 %v630
    %v3301 = vunpack.c.l.b16 %v631
    %v3302 = vunpack.c.h.b16 %v631
    %v3303 = vunpack.c.l.b16 %v632
    %v3304 = vunpack.c.h.b16 %v632
    %v3305 = vunpack.c.l.b16 %v633
    %v3306 = vunpack.c.h.b16 %v633
    %v3307 = vunpack.c.l.b16 %v634
    %v3308 = vunpack.c.h.b16 %v634
    %v3309 = vunpack.c.l.b16 %v635
    %v3310 = vunpack.c.h.b16 %v635
    %v3311 = vunpack.c.l.b16 %v636
    %v3312 = vunpack.c.h.b16 %v636
    %v3313 = vunpack.c.l.b16 %v637
    %v3314 = vunpack.c.h.b16 %v637
    %v3315 = vunpack.c.l.b16 %v638
    %v3316 = vunpack.c.h.b16 %v638
    %v3317 = vunpack.c.l.b16 %v639
    %v3318 = vunpack.c.h.b16 %v639
    %v3319 = vunpack.c.l.b16 %v640
    %v3320 = vunpack.c.h.b16 %v640
    %v3321 = vunpack.c.l.b16 %v641
    %v3322 = vunpack.c.h.b16 %v641
    %v3323 = vunpack.c.l.b16 %v642
    %v3324 = vunpack.c.h.b16 %v642
    %v3325 = vunpack.c.l.b16 %v643
    %v3326 = vunpack.c.h.b16 %v643
    %v3327 = vunpack.c.l.b16 %v644
    %v3328 = vunpack.c.h.b16 %v644
    %v3329 = vunpack.c.l.b16 %v645
    %v3330 = vunpack.c.h.b16 %v645
    %v3331 = vunpack.c.l.b16 %v646
    %v3332 = vunpack.c.h.b16 %v646
    %v3333 = vunpack.c.l.b16 %v647
    %v3334 = vunpack.c.h.b16 %v647
    %v3335 = vunpack.c.l.b16 %v648
    %v3336 = vunpack.c.h.b16 %v648
    %v3337 = vunpack.c.l.b16 %v649
    %v3338 = vunpack.c.h.b16 %v649
    %v3339 = vunpack.c.l.b16 %v650
    %v3340 = vunpack.c.h.b16 %v650
    %v3341 = vunpack.c.l.b16 %v651
    %v3342 = vunpack.c.h.b16 %v651
    %v3343 = vunpack.c.l.b16 %v652
    %v3344 = vunpack.c.h.b16 %v652
    %v3345 = vunpack.c.l.b16 %v653
    %v3346 = vunpack.c.h.b16 %v653
    %v3347 = vunpack.c.l.b16 %v654
    %v3348 = vunpack.c.h.b16 %v654
    %v3349 = vunpack.c.l.b16 %v655
    %v3350 = vunpack.c.h.b16 %v655
    %v3351 = vunpack.c.l.b16 %v656
    %v3352 = vunpack.c.h.b16 %v656
    %v3353 = vunpack.c.l.b16 %v657
    %v3354 = vunpack.c.h.b16 %v657
    %v3355 = vunpack.c.l.b16 %v658
    %v3356 = vunpack.c.h.b16 %v658
    %v3357 = vunpack.c.l.b16 %v659
    %v3358 = vunpack.c.h.b16 %v659
    %v3359 = vunpack.c.l.b16 %v660
    %v3360 = vunpack.c.h.b16 %v660
    %v3361 = vunpack.c.l.b16 %v661
    %v3362 = vunpack.c.h.b16 %v661
    %v3363 = vunpack.c.l.b16 %v662
    %v3364 = vunpack.c.h.b16 %v662
    %v3365 = vunpack.c.l.b16 %v663
    %v3366 = vunpack.c.h.b16 %v663
    %v3367 = vunpack.c.l.b16 %v664
    %v3368 = vunpack.c.h.b16 %v664
    %v3369 = vunpack.c.l.b16 %v665
    %v3370 = vunpack.c.h.b16 %v665
    %v3371 = vunpack.c.l.b16 %v666
    %v3372 = vunpack.c.h.b16 %v666
    %v3373 = vunpack.c.l.b16 %v667
    %v3374 = vunpack.c.h.b16 %v667
    %v3375 = vunpack.c.l.b16 %v668
    %v3376 = vunpack.c.h.b16 %v668
    %v3377 = vunpack.c.l.b16 %v669
    %v3378 = vunpack.c.h.b16 %v669
    %v3379 = vunpack.c.l.b16 %v670
    %v3380 = vunpack.c.h.b16 %v670
    %v3381 = vunpack.c.l.b16 %v671
    %v3382 = vunpack.c.h.b16 %v671
    %v3383 = vunpack.c.l.b16 %v672
    %v3384 = vunpack.c.h.b16 %v672
    %v3385 = vunpack.c.l.b16 %v673
    %v3386 = vunpack.c.h.b16 %v673
    %v3387 = vunpack.c.l.b16 %v674
    %v3388 = vunpack.c.h.b16 %v674
    %v3389 = vunpack.c.l.b16 %v675
    %v3390 = vunpack.c.h.b16 %v675
    %v3391 = vunpack.c.l.b16 %v676
    %v3392 = vunpack.c.h.b16 %v676
    %v3393 = vunpack.c.l.b16 %v677
    %v3394 = vunpack.c.h.b16 %v677
    %v3395 = vunpack.c.l.b16 %v678
    %v3396 = vunpack.c.h.b16 %v678
    %v3397 = vunpack.c.l.b16 %v679
    %v3398 = vunpack.c.h.b16 %v679
    %v3399 = vunpack.c.l.b16 %v680
    %v3400 = vunpack.c.h.b16 %v680
    %v3401 = vunpack.c.l.b16 %v681
    %v3402 = vunpack.c.h.b16 %v681
    %v3403 = vunpack.c.l.b16 %v682
    %v3404 = vunpack.c.h.b16 %v682
    %v3405 = vunpack.c.l.b16 %v683
    %v3406 = vunpack.c.h.b16 %v683
    %v3407 = vunpack.c.l.b16 %v684
    %v3408 = vunpack.c.h.b16 %v684
    %v3409 = vunpack.c.l.b16 %v685
    %v3410 = vunpack.c.h.b16 %v685
    %v3411 = vunpack.c.l.b16 %v686
    %v3412 = vunpack.c.h.b16 %v686
    %v3413 = vunpack.c.l.b16 %v687
    %v3414 = vunpack.c.h.b16 %v687
    %v3415 = vunpack.c.l.b16 %v688
    %v3416 = vunpack.c.h.b16 %v688
    %v3417 = vunpack.c.l.b16 %v689
    %v3418 = vunpack.c.h.b16 %v689
    %v3419 = vunpack.c.l.b16 %v690
    %v3420 = vunpack.c.h.b16 %v690
    %v3421 = vunpack.c.l.b16 %v691
    %v3422 = vunpack.c.h.b16 %v691
    %v3423 = vunpack.c.l.b16 %v692
    %v3424 = vunpack.c.h.b16 %v692
    %v3425 = vunpack.c.l.b16 %v693
    %v3426 = vunpack.c.h.b16 %v693
    %v3427 = vunpack.c.l.b16 %v694
    %v3428 = vunpack.c.h.b16 %v694
    %v3429 = vunpack.c.l.b16 %v695
    %v3430 = vunpack.c.h.b16 %v695
    %v3431 = vunpack.c.l.b16 %v696
    %v3432 = vunpack.c.h.b16 %v696
    %v3433 = vunpack.c.l.b16 %v697
    %v3434 = vunpack.c.h.b16 %v697
    %v3435 = vunpack.c.l.b16 %v698
    %v3436 = vunpack.c.h.b16 %v698
    %v3437 = vunpack.c.l.b16 %v699
    %v3438 = vunpack.c.h.b16 %v699
    %v3439 = vunpack.c.l.b16 %v700
    %v3440 = vunpack.c.h.b16 %v700
    %v3441 = vunpack.c.l.b16 %v701
    %v3442 = vunpack.c.h.b16 %v701
    %v3443 = vunpack.c.l.b16 %v702
    %v3444 = vunpack.c.h.b16 %v702
    %v3445 = vunpack.c.l.b16 %v703
    %v3446 = vunpack.c.h.b16 %v703
    %v3447 = vunpack.c.l.b16 %v704
    %v3448 = vunpack.c.h.b16 %v704
    %v3449 = vunpack.c.l.b16 %v705
    %v3450 = vunpack.c.h.b16 %v705
    %v3451 = vunpack.c.l.b16 %v706
    %v3452 = vunpack.c.h.b16 %v706
    %v3453 = vunpack.c.l.b16 %v707
    %v3454 = vunpack.c.h.b16 %v707
    %v3455 = vunpack.c.l.b16 %v708
    %v3456 = vunpack.c.h.b16 %v708
    %v3457 = vunpack.c.l.b16 %v709
    %v3458 = vunpack.c.h.b16 %v709
    %v3459 = vunpack.c.l.b16 %v710
    %v3460 = vunpack.c.h.b16 %v710
    %v3461 = vunpack.c.l.b16 %v711
    %v3462 = vunpack.c.h.b16 %v711
    %v3463 = vunpack.c.l.b16 %v712
    %v3464 = vunpack.c.h.b16 %v712
    %v3465 = vunpack.c.l.b16 %v713
    %v3466 = vunpack.c.h.b16 %v713
    %v3467 = vunpack.c.l.b16 %v714
    %v3468 = vunpack.c.h.b16 %v714
    %v3469 = vunpack.c.l.b16 %v715
    %v3470 = vunpack.c.h.b16 %v715
    %v3471 = vunpack.c.l.b16 %v716
    %v3472 = vunpack.c.h.b16 %v716
    %v3473 = vunpack.c.l.b16 %v717
    %v3474 = vunpack.c.h.b16 %v717
    %v3475 = vunpack.c.l.b16 %v718
    %v3476 = vunpack.c.h.b16 %v718
    %v3477 = vunpack.c.l.b16 %v719
    %v3478 = vunpack.c.h.b16 %v719
    %v3479 = vunpack.c.l.b16 %v720
    %v3480 = vunpack.c.h.b16 %v720
    %v3481 = vunpack.c.l.b16 %v721
    %v3482 = vunpack.c.h.b16 %v721
    %v3483 = vunpack.c.l.b16 %v722
    %v3484 = vunpack.c.h.b16 %v722
    %v3485 = vunpack.c.l.b16 %v723
    %v3486 = vunpack.c.h.b16 %v723
    %v3487 = vunpack.c.l.b16 %v724
    %v3488 = vunpack.c.h.b16 %v724
    %v3489 = vunpack.c.l.b16 %v725
    %v3490 = vunpack.c.h.b16 %v725
    %v3491 = vunpack.c.l.b16 %v726
    %v3492 = vunpack.c.h.b16 %v726
    %v3493 = vunpack.c.l.b16 %v727
    %v3494 = vunpack.c.h.b16 %v727
    %v3495 = vunpack.c.l.b16 %v728
    %v3496 = vunpack.c.h.b16 %v728
    %v3497 = vunpack.c.l.b16 %v729
    %v3498 = vunpack.c.h.b16 %v729
    %v3499 = vunpack.c.l.b16 %v730
    %v3500 = vunpack.c.h.b16 %v730
    %v3501 = vunpack.c.l.b16 %v731
    %v3502 = vunpack.c.h.b16 %v731
    %v3503 = vunpack.c.l.b16 %v732
    %v3504 = vunpack.c.h.b16 %v732
    %v3505 = vunpack.c.l.b16 %v733
    %v3506 = vunpack.c.h.b16 %v733
    %v3507 = vunpack.c.l.b16 %v734
    %v3508 = vunpack.c.h.b16 %v734
    %v3509 = vunpack.c.l.b16 %v735
    %v3510 = vunpack.c.h.b16 %v735
    %v3511 = vunpack.c.l.b16 %v736
    %v3512 = vunpack.c.h.b16 %v736
    %v3513 = vunpack.c.l.b16 %v737
    %v3514 = vunpack.c.h.b16 %v737
    %v3515 = vunpack.c.l.b16 %v738
    %v3516 = vunpack.c.h.b16 %v738
    %v3517 = vunpack.c.l.b16 %v739
    %v3518 = vunpack.c.h.b16 %v739
    %v3519 = vunpack.c.l.b16 %v740
    %v3520 = vunpack.c.h.b16 %v740
    %v3521 = vunpack.c.l.b16 %v741
    %v3522 = vunpack.c.h.b16 %v741
    %v3523 = vunpack.c.l.b16 %v742
    %v3524 = vunpack.c.h.b16 %v742
    %v3525 = vunpack.c.l.b16 %v743
    %v3526 = vunpack.c.h.b16 %v743
    %v3527 = vunpack.c.l.b16 %v744
    %v3528 = vunpack.c.h.b16 %v744
    %v3529 = vunpack.c.l.b16 %v745
    %v3530 = vunpack.c.h.b16 %v745
    %v3531 = vunpack.c.l.b16 %v746
    %v3532 = vunpack.c.h.b16 %v746
    %v3533 = vunpack.c.l.b16 %v747
    %v3534 = vunpack.c.h.b16 %v747
    %v3535 = vunpack.c.l.b16 %v748
    %v3536 = vunpack.c.h.b16 %v748
    %v3537 = vunpack.c.l.b16 %v749
    %v3538 = vunpack.c.h.b16 %v749
    %v3539 = vunpack.c.l.b16 %v750
    %v3540 = vunpack.c.h.b16 %v750
    %v3541 = vunpack.c.l.b16 %v751
    %v3542 = vunpack.c.h.b16 %v751
    %v3543 = vunpack.c.l.b16 %v752
    %v3544 = vunpack.c.h.b16 %v752
    %v3545 = vunpack.c.l.b16 %v753
    %v3546 = vunpack.c.h.b16 %v753
    %v3547 = vunpack.c.l.b16 %v754
    %v3548 = vunpack.c.h.b16 %v754
    %v3549 = vunpack.c.l.b16 %v755
    %v3550 = vunpack.c.h.b16 %v755
    %v3551 = vunpack.c.l.b16 %v756
    %v3552 = vunpack.c.h.b16 %v756
    %v3553 = vunpack.c.l.b16 %v757
    %v3554 = vunpack.c.h.b16 %v757
    %v3555 = vunpack.c.l.b16 %v758
    %v3556 = vunpack.c.h.b16 %v758
    %v3557 = vunpack.c.l.b16 %v759
    %v3558 = vunpack.c.h.b16 %v759
    %v3559 = vunpack.c.l.b16 %v760
    %v3560 = vunpack.c.h.b16 %v760
    %v3561 = vunpack.c.l.b16 %v761
    %v3562 = vunpack.c.h.b16 %v761
    %v3563 = vunpack.c.l.b16 %v762
    %v3564 = vunpack.c.h.b16 %v762
    %v3565 = vunpack.c.l.b16 %v763
    %v3566 = vunpack.c.h.b16 %v763
    %v3567 = vunpack.c.l.b16 %v764
    %v3568 = vunpack.c.h.b16 %v764
    %v3569 = vunpack.c.l.b16 %v765
    %v3570 = vunpack.c.h.b16 %v765
    %v3571 = vunpack.c.l.b16 %v766
    %v3572 = vunpack.c.h.b16 %v766
    %v3573 = vunpack.c.l.b16 %v767
    %v3574 = vunpack.c.h.b16 %v767
    %v3575 = vunpack.c.l.b16 %v768
    %v3576 = vunpack.c.h.b16 %v768
    %v3577 = vunpack.c.l.b16 %v769
    %v3578 = vunpack.c.h.b16 %v769
    %v3579 = vunpack.c.l.b16 %v770
    %v3580 = vunpack.c.h.b16 %v770
    %v3581 = vunpack.c.l.b16 %v771
    %v3582 = vunpack.c.h.b16 %v771
    %v3583 = vunpack.c.l.b16 %v772
    %v3584 = vunpack.c.h.b16 %v772
    %v3585 = vunpack.c.l.b16 %v773
    %v3586 = vunpack.c.h.b16 %v773
    %v3587 = vunpack.c.l.b16 %v774
    %v3588 = vunpack.c.h.b16 %v774
    %v3589 = vunpack.c.l.b16 %v775
    %v3590 = vunpack.c.h.b16 %v775
    %v3591 = vunpack.c.l.b16 %v776
    %v3592 = vunpack.c.h.b16 %v776
    %v3593 = vunpack.c.l.b16 %v777
    %v3594 = vunpack.c.h.b16 %v777
    %v3595 = vunpack.c.l.b16 %v778
    %v3596 = vunpack.c.h.b16 %v778
    %v3597 = vunpack.c.l.b16 %v779
    %v3598 = vunpack.c.h.b16 %v779
    %v3599 = vunpack.c.l.b16 %v780
    %v3600 = vunpack.c.h.b16 %v780
    %v3601 = vunpack.c.l.b16 %v781
    %v3602 = vunpack.c.h.b16 %v781
    %v3603 = vunpack.c.l.b16 %v782
    %v3604 = vunpack.c.h.b16 %v782
    %v3605 = vunpack.c.l.b16 %v783
    %v3606 = vunpack.c.h.b16 %v783
    %v3607 = vunpack.c.l.b16 %v784
    %v3608 = vunpack.c.h.b16 %v784
    %v3609 = vunpack.c.l.b16 %v785
    %v3610 = vunpack.c.h.b16 %v785
    %v3611 = vunpack.c.l.b16 %v786
    %v3612 = vunpack.c.h.b16 %v786
    %v3613 = vunpack.c.l.b16 %v787
    %v3614 = vunpack.c.h.b16 %v787
    %v3615 = vunpack.c.l.b16 %v788
    %v3616 = vunpack.c.h.b16 %v788
    %v3617 = vunpack.c.l.b16 %v789
    %v3618 = vunpack.c.h.b16 %v789
    %v3619 = vunpack.c.l.b16 %v790
    %v3620 = vunpack.c.h.b16 %v790
    %v3621 = vunpack.c.l.b16 %v791
    %v3622 = vunpack.c.h.b16 %v791
    %v3623 = vunpack.c.l.b16 %v792
    %v3624 = vunpack.c.h.b16 %v792
    %v3625 = vunpack.c.l.b16 %v793
    %v3626 = vunpack.c.h.b16 %v793
    %v3627 = vunpack.c.l.b16 %v794
    %v3628 = vunpack.c.h.b16 %v794
    %v3629 = vunpack.c.l.b16 %v795
    %v3630 = vunpack.c.h.b16 %v795
    %v3631 = vunpack.c.l.b16 %v796
    %v3632 = vunpack.c.h.b16 %v796
    %v3633 = vunpack.c.l.b16 %v797
    %v3634 = vunpack.c.h.b16 %v797
    %v3635 = vunpack.c.l.b16 %v798
    %v3636 = vunpack.c.h.b16 %v798
    %v3637 = vunpack.c.l.b16 %v799
    %v3638 = vunpack.c.h.b16 %v799
    %v3639 = vunpack.c.l.b16 %v800
    %v3640 = vunpack.c.h.b16 %v800
    %v3641 = vunpack.c.l.b16 %v801
    %v3642 = vunpack.c.h.b16 %v801
    %v3643 = vunpack.c.l.b16 %v802
    %v3644 = vunpack.c.h.b16 %v802
    %v3645 = vunpack.c.l.b16 %v803
    %v3646 = vunpack.c.h.b16 %v803
    %v3647 = vunpack.c.l.b16 %v804
    %v3648 = vunpack.c.h.b16 %v804
    %v3649 = vunpack.c.l.b16 %v805
    %v3650 = vunpack.c.h.b16 %v805
    %v3651 = vunpack.c.l.b16 %v806
    %v3652 = vunpack.c.h.b16 %v806
    %v3653 = vunpack.c.l.b16 %v807
    %v3654 = vunpack.c.h.b16 %v807
    %v3655 = vunpack.c.l.b16 %v808
    %v3656 = vunpack.c.h.b16 %v808
    %v3657 = vunpack.c.l.b16 %v809
    %v3658 = vunpack.c.h.b16 %v809
    %v3659 = vunpack.c.l.b16 %v810
    %v3660 = vunpack.c.h.b16 %v810
    %v3661 = vunpack.c.l.b16 %v811
    %v3662 = vunpack.c.h.b16 %v811
    %v3663 = vunpack.c.l.b16 %v812
    %v3664 = vunpack.c.h.b16 %v812
    %v3665 = vunpack.c.l.b16 %v813
    %v3666 = vunpack.c.h.b16 %v813
    %v3667 = vunpack.c.l.b16 %v814
    %v3668 = vunpack.c.h.b16 %v814
    %v3669 = vunpack.c.l.b16 %v815
    %v3670 = vunpack.c.h.b16 %v815
    %v3671 = vunpack.c.l.b16 %v816
    %v3672 = vunpack.c.h.b16 %v816
    %v3673 = vunpack.c.l.b16 %v817
    %v3674 = vunpack.c.h.b16 %v817
    %v3675 = vunpack.c.l.b16 %v818
    %v3676 = vunpack.c.h.b16 %v818
    %v3677 = vunpack.c.l.b16 %v819
    %v3678 = vunpack.c.h.b16 %v819
    %v3679 = vunpack.c.l.b16 %v820
    %v3680 = vunpack.c.h.b16 %v820
    %v3681 = vunpack.c.l.b16 %v821
    %v3682 = vunpack.c.h.b16 %v821
    %v3683 = vunpack.c.l.b16 %v822
    %v3684 = vunpack.c.h.b16 %v822
    %v3685 = vunpack.c.l.b16 %v823
    %v3686 = vunpack.c.h.b16 %v823
    %v3687 = vunpack.c.l.b16 %v824
    %v3688 = vunpack.c.h.b16 %v824
    %v3689 = vunpack.c.l.b16 %v825
    %v3690 = vunpack.c.h.b16 %v825
    %v3691 = vunpack.c.l.b16 %v826
    %v3692 = vunpack.c.h.b16 %v826
    %v3693 = vunpack.c.l.b16 %v827
    %v3694 = vunpack.c.h.b16 %v827
    %v3695 = vunpack.c.l.b16 %v828
    %v3696 = vunpack.c.h.b16 %v828
    %v3697 = vunpack.c.l.b16 %v829
    %v3698 = vunpack.c.h.b16 %v829
    %v3699 = vunpack.c.l.b16 %v830
    %v3700 = vunpack.c.h.b16 %v830
    %v3701 = vunpack.c.l.b16 %v831
    %v3702 = vunpack.c.h.b16 %v831
    %v3703 = vunpack.c.l.b16 %v832
    %v3704 = vunpack.c.h.b16 %v832
    %v3705 = vunpack.c.l.b16 %v833
    %v3706 = vunpack.c.h.b16 %v833
    %v3707 = vunpack.c.l.b16 %v834
    %v3708 = vunpack.c.h.b16 %v834
    %v3709 = vunpack.c.l.b16 %v835
    %v3710 = vunpack.c.h.b16 %v835
    %v3711 = vunpack.c.l.b16 %v836
    %v3712 = vunpack.c.h.b16 %v836
    %v3713 = vunpack.c.l.b16 %v837
    %v3714 = vunpack.c.h.b16 %v837
    %v3715 = vunpack.c.l.b16 %v838
    %v3716 = vunpack.c.h.b16 %v838
    %v3717 = vunpack.c.l.b16 %v839
    %v3718 = vunpack.c.h.b16 %v839
    %v3719 = vunpack.c.l.b16 %v840
    %v3720 = vunpack.c.h.b16 %v840
    %v3721 = vunpack.c.l.b16 %v841
    %v3722 = vunpack.c.h.b16 %v841
    %v3723 = vunpack.c.l.b16 %v842
    %v3724 = vunpack.c.h.b16 %v842
    %v3725 = vunpack.c.l.b16 %v843
    %v3726 = vunpack.c.h.b16 %v843
    %v3727 = vunpack.c.l.b16 %v844
    %v3728 = vunpack.c.h.b16 %v844
    %v3729 = vunpack.c.l.b16 %v845
    %v3730 = vunpack.c.h.b16 %v845
    %v3731 = vunpack.c.l.b16 %v846
    %v3732 = vunpack.c.h.b16 %v846
    %v3733 = vunpack.c.l.b16 %v847
    %v3734 = vunpack.c.h.b16 %v847
    %v3735 = vunpack.c.l.b16 %v848
    %v3736 = vunpack.c.h.b16 %v848
    %v3737 = vunpack.c.l.b16 %v849
    %v3738 = vunpack.c.h.b16 %v849
    %v3739 = vunpack.c.l.b16 %v850
    %v3740 = vunpack.c.h.b16 %v850
    %v3741 = vunpack.c.l.b16 %v851
    %v3742 = vunpack.c.h.b16 %v851
    %v3743 = vunpack.c.l.b16 %v852
    %v3744 = vunpack.c.h.b16 %v852
    %v3745 = vunpack.c.l.b16 %v853
    %v3746 = vunpack.c.h.b16 %v853
    %v3747 = vunpack.c.l.b16 %v854
    %v3748 = vunpack.c.h.b16 %v854
    %v3749 = vunpack.c.l.b16 %v855
    %v3750 = vunpack.c.h.b16 %v855
    %v3751 = vunpack.c.l.b16 %v856
    %v3752 = vunpack.c.h.b16 %v856
    %v3753 = vunpack.c.l.b16 %v857
    %v3754 = vunpack.c.h.b16 %v857
    %v3755 = vunpack.c.l.b16 %v858
    %v3756 = vunpack.c.h.b16 %v858
    %v3757 = vunpack.c.l.b16 %v859
    %v3758 = vunpack.c.h.b16 %v859
    %v3759 = vunpack.c.l.b16 %v860
    %v3760 = vunpack.c.h.b16 %v860
    %v3761 = vunpack.c.l.b16 %v861
    %v3762 = vunpack.c.h.b16 %v861
    %v3763 = vunpack.c.l.b16 %v862
    %v3764 = vunpack.c.h.b16 %v862
    %v3765 = vunpack.c.l.b16 %v863
    %v3766 = vunpack.c.h.b16 %v863
    %v3767 = vunpack.c.l.b16 %v864
    %v3768 = vunpack.c.h.b16 %v864
    %v3769 = vunpack.c.l.b16 %v865
    %v3770 = vunpack.c.h.b16 %v865
    %v3771 = vunpack.c.l.b16 %v866
    %v3772 = vunpack.c.h.b16 %v866
    %v3773 = vunpack.c.l.b16 %v867
    %v3774 = vunpack.c.h.b16 %v867
    %v3775 = vunpack.c.l.b16 %v868
    %v3776 = vunpack.c.h.b16 %v868
    %v3777 = vunpack.c.l.b16 %v869
    %v3778 = vunpack.c.h.b16 %v869
    %v3779 = vunpack.c.l.b16 %v870
    %v3780 = vunpack.c.h.b16 %v870
    %v3781 = vunpack.c.l.b16 %v871
    %v3782 = vunpack.c.h.b16 %v871
    %v3783 = vunpack.c.l.b16 %v872
    %v3784 = vunpack.c.h.b16 %v872
    %v3785 = vunpack.c.l.b16 %v873
    %v3786 = vunpack.c.h.b16 %v873
    %v3787 = vunpack.c.l.b16 %v874
    %v3788 = vunpack.c.h.b16 %v874
    %v3789 = vunpack.c.l.b16 %v875
    %v3790 = vunpack.c.h.b16 %v875
    %v3791 = vunpack.c.l.b16 %v876
    %v3792 = vunpack.c.h.b16 %v876
    %v3793 = vunpack.c.l.b16 %v877
    %v3794 = vunpack.c.h.b16 %v877
    %v3795 = vunpack.c.l.b16 %v878
    %v3796 = vunpack.c.h.b16 %v878
    %v3797 = vunpack.c.l.b16 %v879
    %v3798 = vunpack.c.h.b16 %v879
    %v3799 = vunpack.c.l.b16 %v880
    %v3800 = vunpack.c.h.b16 %v880
    %v3801 = vunpack.c.l.b16 %v881
    %v3802 = vunpack.c.h.b16 %v881
    %v3803 = vunpack.c.l.b16 %v882
    %v3804 = vunpack.c.h.b16 %v882
    %v3805 = vunpack.c.l.b16 %v883
    %v3806 = vunpack.c.h.b16 %v883
    %v3807 = vunpack.c.l.b16 %v884
    %v3808 = vunpack.c.h.b16 %v884
    %v3809 = vunpack.c.l.b16 %v885
    %v3810 = vunpack.c.h.b16 %v885
    %v3811 = vunpack.c.l.b16 %v886
    %v3812 = vunpack.c.h.b16 %v886
    %v3813 = vunpack.c.l.b16 %v887
    %v3814 = vunpack.c.h.b16 %v887
    %v3815 = vunpack.c.l.b16 %v888
    %v3816 = vunpack.c.h.b16 %v888
    %v3817 = vunpack.c.l.b16 %v889
    %v3818 = vunpack.c.h.b16 %v889
    %v3819 = vunpack.c.l.b16 %v890
    %v3820 = vunpack.c.h.b16 %v890
    %v3821 = vunpack.c.l.b16 %v891
    %v3822 = vunpack.c.h.b16 %v891
    %v3823 = vunpack.c.l.b16 %v892
    %v3824 = vunpack.c.h.b16 %v892
    %v3825 = vunpack.c.l.b16 %v893
    %v3826 = vunpack.c.h.b16 %v893
    %v3827 = vunpack.c.l.b16 %v894
    %v3828 = vunpack.c.h.b16 %v894
    %v3829 = vunpack.c.l.b16 %v895
    %v3830 = vunpack.c.h.b16 %v895
    %v3831 = vunpack.c.l.b16 %v896
    %v3832 = vunpack.c.h.b16 %v896
    %v3833 = vunpack.c.l.b16 %v897
    %v3834 = vunpack.c.h.b16 %v897
    %v3835 = vunpack.c.l.b16 %v898
    %v3836 = vunpack.c.h.b16 %v898
    %v3837 = vunpack.c.l.b16 %v899
    %v3838 = vunpack.c.h.b16 %v899
    %v3839 = vunpack.c.l.b16 %v900
    %v3840 = vunpack.c.h.b16 %v900
    %v3841 = vunpack.c.l.b16 %v901
    %v3842 = vunpack.c.h.b16 %v901
    %v3843 = vunpack.c.l.b16 %v902
    %v3844 = vunpack.c.h.b16 %v902
    %v3845 = vunpack.c.l.b16 %v903
    %v3846 = vunpack.c.h.b16 %v903
    %v3847 = vunpack.c.l.b16 %v904
    %v3848 = vunpack.c.h.b16 %v904
    %v3849 = vunpack.c.l.b16 %v905
    %v3850 = vunpack.c.h.b16 %v905
    %v3851 = vunpack.c.l.b16 %v906
    %v3852 = vunpack.c.h.b16 %v906
    %v3853 = vunpack.c.l.b16 %v907
    %v3854 = vunpack.c.h.b16 %v907
    %v3855 = vunpack.c.l.b16 %v908
    %v3856 = vunpack.c.h.b16 %v908
    %v3857 = vunpack.c.l.b16 %v909
    %v3858 = vunpack.c.h.b16 %v909
    %v3859 = vunpack.c.l.b16 %v910
    %v3860 = vunpack.c.h.b16 %v910
    %v3861 = vunpack.c.l.b16 %v911
    %v3862 = vunpack.c.h.b16 %v911
    %v3863 = vunpack.c.l.b16 %v912
    %v3864 = vunpack.c.h.b16 %v912
    %v3865 = vunpack.c.l.b16 %v913
    %v3866 = vunpack.c.h.b16 %v913
    %v3867 = vunpack.c.l.b16 %v914
    %v3868 = vunpack.c.h.b16 %v914
    %v3869 = vunpack.c.l.b16 %v915
    %v3870 = vunpack.c.h.b16 %v915
    %v3871 = vunpack.c.l.b16 %v916
    %v3872 = vunpack.c.h.b16 %v916
    %v3873 = vunpack.c.l.b16 %v917
    %v3874 = vunpack.c.h.b16 %v917
    %v3875 = vunpack.c.l.b16 %v918
    %v3876 = vunpack.c.h.b16 %v918
    %v3877 = vunpack.c.l.b16 %v919
    %v3878 = vunpack.c.h.b16 %v919
    %v3879 = vunpack.c.l.b16 %v920
    %v3880 = vunpack.c.h.b16 %v920
    %v3881 = vunpack.c.l.b16 %v921
    %v3882 = vunpack.c.h.b16 %v921
    %v3883 = vunpack.c.l.b16 %v922
    %v3884 = vunpack.c.h.b16 %v922
    %v3885 = vunpack.c.l.b16 %v923
    %v3886 = vunpack.c.h.b16 %v923
    %v3887 = vunpack.c.l.b16 %v924
    %v3888 = vunpack.c.h.b16 %v924
    %v3889 = vunpack.c.l.b16 %v925
    %v3890 = vunpack.c.h.b16 %v925
    %v3891 = vunpack.c.l.b16 %v926
    %v3892 = vunpack.c.h.b16 %v926
    %v3893 = vunpack.c.l.b16 %v927
    %v3894 = vunpack.c.h.b16 %v927
    %v3895 = vunpack.c.l.b16 %v928
    %v3896 = vunpack.c.h.b16 %v928
    %v3897 = vunpack.c.l.b16 %v929
    %v3898 = vunpack.c.h.b16 %v929
    %v3899 = vunpack.c.l.b16 %v930
    %v3900 = vunpack.c.h.b16 %v930
    %v3901 = vunpack.c.l.b16 %v931
    %v3902 = vunpack.c.h.b16 %v931
    %v3903 = vunpack.c.l.b16 %v932
    %v3904 = vunpack.c.h.b16 %v932
    %v3905 = vunpack.c.l.b16 %v933
    %v3906 = vunpack.c.h.b16 %v933
    %v3907 = vunpack.c.l.b16 %v934
    %v3908 = vunpack.c.h.b16 %v934
    %v3909 = vunpack.c.l.b16 %v935
    %v3910 = vunpack.c.h.b16 %v935
    %v3911 = vunpack.c.l.b16 %v936
    %v3912 = vunpack.c.h.b16 %v936
    %v3913 = vunpack.c.l.b16 %v937
    %v3914 = vunpack.c.h.b16 %v937
    %v3915 = vunpack.c.l.b16 %v938
    %v3916 = vunpack.c.h.b16 %v938
    %v3917 = vunpack.c.l.b16 %v939
    %v3918 = vunpack.c.h.b16 %v939
    %v3919 = vunpack.c.l.b16 %v940
    %v3920 = vunpack.c.h.b16 %v940
    %v3921 = vunpack.c.l.b16 %v941
    %v3922 = vunpack.c.h.b16 %v941
    %v3923 = vunpack.c.l.b16 %v942
    %v3924 = vunpack.c.h.b16 %v942
    %v3925 = vunpack.c.l.b16 %v943
    %v3926 = vunpack.c.h.b16 %v943
    %v3927 = vunpack.c.l.b16 %v944
    %v3928 = vunpack.c.h.b16 %v944
    %v3929 = vunpack.c.l.b16 %v945
    %v3930 = vunpack.c.h.b16 %v945
    %v3931 = vunpack.c.l.b16 %v946
    %v3932 = vunpack.c.h.b16 %v946
    %v3933 = vunpack.c.l.b16 %v947
    %v3934 = vunpack.c.h.b16 %v947
    %v3935 = vunpack.c.l.b16 %v948
    %v3936 = vunpack.c.h.b16 %v948
    %v3937 = vunpack.c.l.b16 %v949
    %v3938 = vunpack.c.h.b16 %v949
    %v3939 = vunpack.c.l.b16 %v950
    %v3940 = vunpack.c.h.b16 %v950
    %v3941 = vunpack.c.l.b16 %v951
    %v3942 = vunpack.c.h.b16 %v951
    %v3943 = vunpack.c.l.b16 %v952
    %v3944 = vunpack.c.h.b16 %v952
    %v3945 = vunpack.c.l.b16 %v953
    %v3946 = vunpack.c.h.b16 %v953
    %v3947 = vunpack.c.l.b16 %v954
    %v3948 = vunpack.c.h.b16 %v954
    %v3949 = vunpack.c.l.b16 %v955
    %v3950 = vunpack.c.h.b16 %v955
    %v3951 = vunpack.c.l.b16 %v956
    %v3952 = vunpack.c.h.b16 %v956
    %v3953 = vunpack.c.l.b16 %v957
    %v3954 = vunpack.c.h.b16 %v957
    %v3955 = vunpack.c.l.b16 %v958
    %v3956 = vunpack.c.h.b16 %v958
    %v3957 = vunpack.c.l.b16 %v959
    %v3958 = vunpack.c.h.b16 %v959
    %v3959 = vunpack.c.l.b16 %v960
    %v3960 = vunpack.c.h.b16 %v960
    %v3961 = vunpack.c.l.b16 %v961
    %v3962 = vunpack.c.h.b16 %v961
    %v3963 = vunpack.c.l.b16 %v962
    %v3964 = vunpack.c.h.b16 %v962
    %v3965 = vunpack.c.l.b16 %v963
    %v3966 = vunpack.c.h.b16 %v963
    %v3967 = vunpack.c.l.b16 %v964
    %v3968 = vunpack.c.h.b16 %v964
    %v3969 = vunpack.c.l.b16 %v965
    %v3970 = vunpack.c.h.b16 %v965
    %v3971 = vunpack.c.l.b16 %v966
    %v3972 = vunpack.c.h.b16 %v966
    %v3973 = vunpack.c.l.b16 %v967
    %v3974 = vunpack.c.h.b16 %v967
    %v3975 = vunpack.c.l.b16 %v968
    %v3976 = vunpack.c.h.b16 %v968
    %v3977 = vunpack.c.l.b16 %v969
    %v3978 = vunpack.c.h.b16 %v969
    %v3979 = vunpack.c.l.b16 %v970
    %v3980 = vunpack.c.h.b16 %v970
    %v3981 = vunpack.c.l.b16 %v971
    %v3982 = vunpack.c.h.b16 %v971
    %v3983 = vunpack.c.l.b16 %v972
    %v3984 = vunpack.c.h.b16 %v972
    %v3985 = vunpack.c.l.b16 %v973
    %v3986 = vunpack.c.h.b16 %v973
    %v3987 = vunpack.c.l.b16 %v974
    %v3988 = vunpack.c.h.b16 %v974
    %v3989 = vunpack.c.l.b16 %v975
    %v3990 = vunpack.c.h.b16 %v975
    %v3991 = vunpack.c.l.b16 %v976
    %v3992 = vunpack.c.h.b16 %v976
    %v3993 = vunpack.c.l.b16 %v977
    %v3994 = vunpack.c.h.b16 %v977
    %v3995 = vunpack.c.l.b16 %v978
    %v3996 = vunpack.c.h.b16 %v978
    %v3997 = vunpack.c.l.b16 %v979
    %v3998 = vunpack.c.h.b16 %v979
    %v3999 = vunpack.c.l.b16 %v980
    %v4000 = vunpack.c.h.b16 %v980
    %v4001 = vunpack.c.l.b16 %v981
    %v4002 = vunpack.c.h.b16 %v981
    %v4003 = vunpack.c.l.b16 %v982
    %v4004 = vunpack.c.h.b16 %v982
    %v4005 = vunpack.c.l.b16 %v983
    %v4006 = vunpack.c.h.b16 %v983
    %v4007 = vunpack.c.l.b16 %v984
    %v4008 = vunpack.c.h.b16 %v984
    %v4009 = vunpack.c.l.b16 %v985
    %v4010 = vunpack.c.h.b16 %v985
    %v4011 = vunpack.c.l.b16 %v986
    %v4012 = vunpack.c.h.b16 %v986
    %v4013 = vunpack.c.l.b16 %v987
    %v4014 = vunpack.c.h.b16 %v987
    %v4015 = vunpack.c.l.b16 %v988
    %v4016 = vunpack.c.h.b16 %v988
    %v4017 = vunpack.c.l.b16 %v989
    %v4018 = vunpack.c.h.b16 %v989
    %v4019 = vunpack.c.l.b16 %v990
    %v4020 = vunpack.c.h.b16 %v990
    %v4021 = vunpack.c.l.b16 %v991
    %v4022 = vunpack.c.h.b16 %v991
    %v4023 = vunpack.c.l.b16 %v992
    %v4024 = vunpack.c.h.b16 %v992
    %v4025 = vunpack.c.l.b16 %v993
    %v4026 = vunpack.c.h.b16 %v993
    %v4027 = vunpack.c.l.b16 %v994
    %v4028 = vunpack.c.h.b16 %v994
    %v4029 = vunpack.c.l.b16 %v995
    %v4030 = vunpack.c.h.b16 %v995
    %v4031 = vunpack.c.l.b16 %v996
    %v4032 = vunpack.c.h.b16 %v996
    %v4033 = vunpack.c.l.b16 %v997
    %v4034 = vunpack.c.h.b16 %v997
    %v4035 = vunpack.c.l.b16 %v998
    %v4036 = vunpack.c.h.b16 %v998
    %v4037 = vunpack.c.l.b16 %v999
    %v4038 = vunpack.c.h.b16 %v999
    %v4039 = vunpack.c.l.b16 %v1000
    %v4040 = vunpack.c.h.b16 %v1000
    %v4041 = vunpack.c.l.b16 %v1001
    %v4042 = vunpack.c.h.b16 %v1001
    %v4043 = vunpack.c.l.b16 %v1002
    %v4044 = vunpack.c.h.b16 %v1002
    %v4045 = vunpack.c.l.b16 %v1003
    %v4046 = vunpack.c.h.b16 %v1003
    %v4047 = vunpack.c.l.b16 %v1004
    %v4048 = vunpack.c.h.b16 %v1004
    %v4049 = vunpack.c.l.b16 %v1005
    %v4050 = vunpack.c.h.b16 %v1005
    %v4051 = vunpack.c.l.b16 %v1006
    %v4052 = vunpack.c.h.b16 %v1006
    %v4053 = vunpack.c.l.b16 %v1007
    %v4054 = vunpack.c.h.b16 %v1007
    %v4055 = vunpack.c.l.b16 %v1008
    %v4056 = vunpack.c.h.b16 %v1008
    %v4057 = vunpack.c.l.b16 %v1009
    %v4058 = vunpack.c.h.b16 %v1009
    %v4059 = vunpack.c.l.b16 %v1010
    %v4060 = vunpack.c.h.b16 %v1010
    %v4061 = vunpack.c.l.b16 %v1011
    %v4062 = vunpack.c.h.b16 %v1011
    %v4063 = vunpack.c.l.b16 %v1012
    %v4064 = vunpack.c.h.b16 %v1012
    %v4065 = vunpack.c.l.b16 %v1013
    %v4066 = vunpack.c.h.b16 %v1013
    %v4067 = vunpack.c.l.b16 %v1014
    %v4068 = vunpack.c.h.b16 %v1014
    %v4069 = vunpack.c.l.b16 %v1015
    %v4070 = vunpack.c.h.b16 %v1015
    %v4071 = vunpack.c.l.b16 %v1016
    %v4072 = vunpack.c.h.b16 %v1016
    %v4073 = vunpack.c.l.b16 %v1017
    %v4074 = vunpack.c.h.b16 %v1017
    %v4075 = vunpack.c.l.b16 %v1018
    %v4076 = vunpack.c.h.b16 %v1018
    %v4077 = vunpack.c.l.b16 %v1019
    %v4078 = vunpack.c.h.b16 %v1019
    %v4079 = vunpack.c.l.b16 %v1020
    %v4080 = vunpack.c.h.b16 %v1020
    %v4081 = vunpack.c.l.b16 %v1021
    %v4082 = vunpack.c.h.b16 %v1021
    %v4083 = vunpack.c.l.b16 %v1022
    %v4084 = vunpack.c.h.b16 %v1022
    %v4085 = vunpack.c.l.b16 %v1023
    %v4086 = vunpack.c.h.b16 %v1023
    %v4087 = vunpack.c.l.b16 %v1024
    %v4088 = vunpack.c.h.b16 %v1024
    %v4089 = vunpack.c.l.b16 %v1025
    %v4090 = vunpack.c.h.b16 %v1025
    %v4091 = vunpack.c.l.b16 %v1026
    %v4092 = vunpack.c.h.b16 %v1026
    %v4093 = vunpack.c.l.b16 %v1027
    %v4094 = vunpack.c.h.b16 %v1027
    %v4095 = vunpack.c.l.b16 %v1028
    %v4096 = vunpack.c.h.b16 %v1028
    %v4097 = vunpack.c.l.b16 %v1029
    %v4098 = vunpack.c.h.b16 %v1029
    %v4099 = vunpack.c.l.b16 %v1030
    %v4100 = vunpack.c.h.b16 %v1030
    %v4101 = vunpack.c.l.b16 %v1031
    %v4102 = vunpack.c.h.b16 %v1031
    %v4103 = vunpack.c.l.b16 %v1032
    %v4104 = vunpack.c.h.b16 %v1032
    %v4105 = vunpack.c.l.b16 %v1033
    %v4106 = vunpack.c.h.b16 %v1033
    %v4107 = vunpack.c.l.b16 %v1034
    %v4108 = vunpack.c.h.b16 %v1034
    %v4109 = vunpack.c.l.b16 %v1035
    %v4110 = vunpack.c.h.b16 %v1035
    %v4111 = vunpack.c.l.b16 %v1036
    %v4112 = vunpack.c.h.b16 %v1036
    %v4113 = vunpack.c.l.b16 %v1037
    %v4114 = vunpack.c.h.b16 %v1037
    %v4115 = vunpack.c.l.b16 %v1038
    %v4116 = vunpack.c.h.b16 %v1038
    %v4117 = vunpack.c.l.b16 %v1039
    %v4118 = vunpack.c.h.b16 %v1039
    %v4119 = vunpack.c.l.b16 %v1040
    %v4120 = vunpack.c.h.b16 %v1040
    %v4121 = vunpack.c.l.b16 %v1041
    %v4122 = vunpack.c.h.b16 %v1041
    %v4123 = vunpack.c.l.b16 %v1042
    %v4124 = vunpack.c.h.b16 %v1042
    %v4125 = vunpack.c.l.b16 %v1043
    %v4126 = vunpack.c.h.b16 %v1043
    %v4127 = vunpack.c.l.b16 %v1044
    %v4128 = vunpack.c.h.b16 %v1044
    %v4129 = vunpack.c.l.b16 %v1045
    %v4130 = vunpack.c.h.b16 %v1045
    %v4131 = vunpack.c.l.b16 %v1046
    %v4132 = vunpack.c.h.b16 %v1046
    %v4133 = vunpack.c.l.b16 %v1047
    %v4134 = vunpack.c.h.b16 %v1047
    %v4135 = vunpack.c.l.b16 %v1048
    %v4136 = vunpack.c.h.b16 %v1048
    %v4137 = vunpack.c.l.b16 %v1049
    %v4138 = vunpack.c.h.b16 %v1049
    %v4139 = vunpack.c.l.b16 %v1050
    %v4140 = vunpack.c.h.b16 %v1050
    %v4141 = vunpack.c.l.b16 %v1051
    %v4142 = vunpack.c.h.b16 %v1051
    %v4143 = vunpack.c.l.b16 %v1052
    %v4144 = vunpack.c.h.b16 %v1052
    %v4145 = vunpack.c.l.b16 %v1053
    %v4146 = vunpack.c.h.b16 %v1053
    %v4147 = vunpack.c.l.b16 %v1054
    %v4148 = vunpack.c.h.b16 %v1054
    %v4149 = vunpack.c.l.b16 %v1055
    %v4150 = vunpack.c.h.b16 %v1055
    %v4151 = vunpack.c.l.b16 %v1056
    %v4152 = vunpack.c.h.b16 %v1056
    %v4153 = vunpack.c.l.b16 %v1057
    %v4154 = vunpack.c.h.b16 %v1057
    %v4155 = vunpack.c.l.b16 %v1058
    %v4156 = vunpack.c.h.b16 %v1058
    %v4157 = vunpack.c.l.b16 %v1059
    %v4158 = vunpack.c.h.b16 %v1059
    %v4159 = vunpack.c.l.b16 %v1060
    %v4160 = vunpack.c.h.b16 %v1060
    %v4161 = vunpack.c.l.b16 %v1061
    %v4162 = vunpack.c.h.b16 %v1061
    %v4163 = vunpack.c.l.b16 %v1062
    %v4164 = vunpack.c.h.b16 %v1062
    %v4165 = vunpack.c.l.b16 %v1063
    %v4166 = vunpack.c.h.b16 %v1063
    %v4167 = vunpack.c.l.b16 %v1064
    %v4168 = vunpack.c.h.b16 %v1064
    %v4169 = vunpack.c.l.b16 %v1065
    %v4170 = vunpack.c.h.b16 %v1065
    %v4171 = vunpack.c.l.b16 %v1066
    %v4172 = vunpack.c.h.b16 %v1066
    %v4173 = vunpack.c.l.b16 %v1067
    %v4174 = vunpack.c.h.b16 %v1067
    %v4175 = vunpack.c.l.b16 %v1068
    %v4176 = vunpack.c.h.b16 %v1068
    %v4177 = vunpack.c.l.b16 %v1069
    %v4178 = vunpack.c.h.b16 %v1069
    %v4179 = vunpack.c.l.b16 %v1070
    %v4180 = vunpack.c.h.b16 %v1070
    %v4181 = vunpack.c.l.b16 %v1071
    %v4182 = vunpack.c.h.b16 %v1071
    %v4183 = vunpack.c.l.b16 %v1072
    %v4184 = vunpack.c.h.b16 %v1072
    %v4185 = vunpack.c.l.b16 %v1073
    %v4186 = vunpack.c.h.b16 %v1073
    %v4187 = vunpack.c.l.b16 %v1074
    %v4188 = vunpack.c.h.b16 %v1074
    %v4189 = vunpack.c.l.b16 %v1075
    %v4190 = vunpack.c.h.b16 %v1075
    %v4191 = vunpack.c.l.b16 %v1076
    %v4192 = vunpack.c.h.b16 %v1076
    %v4193 = vunpack.c.l.b16 %v1077
    %v4194 = vunpack.c.h.b16 %v1077
    %v4195 = vunpack.c.l.b16 %v1078
    %v4196 = vunpack.c.h.b16 %v1078
    %v4197 = vunpack.c.l.b16 %v1079
    %v4198 = vunpack.c.h.b16 %v1079
    %v4199 = vunpack.c.l.b16 %v1080
    %v4200 = vunpack.c.h.b16 %v1080
    %v4201 = vunpack.c.l.b16 %v1081
    %v4202 = vunpack.c.h.b16 %v1081
    %v4203 = vunpack.c.l.b16 %v1082
    %v4204 = vunpack.c.h.b16 %v1082
    %v4205 = vunpack.c.l.b16 %v1083
    %v4206 = vunpack.c.h.b16 %v1083
    %v4207 = vunpack.c.l.b16 %v1084
    %v4208 = vunpack.c.h.b16 %v1084
    %v4209 = vunpack.c.l.b16 %v1085
    %v4210 = vunpack.c.h.b16 %v1085
    %v4211 = vunpack.c.l.b16 %v1086
    %v4212 = vunpack.c.h.b16 %v1086
    %v4213 = vunpack.c.l.b16 %v1087
    %v4214 = vunpack.c.h.b16 %v1087
    %v4215 = vunpack.c.l.b16 %v1088
    %v4216 = vunpack.c.h.b16 %v1088
    %v4217 = vunpack.c.l.b16 %v1089
    %v4218 = vunpack.c.h.b16 %v1089
    %v4219 = vunpack.c.l.b16 %v1090
    %v4220 = vunpack.c.h.b16 %v1090
    %v4221 = vunpack.c.l.b16 %v1091
    %v4222 = vunpack.c.h.b16 %v1091
    %v4223 = vunpack.c.l.b16 %v1092
    %v4224 = vunpack.c.h.b16 %v1092
    %v4225 = vunpack.c.l.b16 %v1093
    %v4226 = vunpack.c.h.b16 %v1093
    %v4227 = vunpack.c.l.b16 %v1094
    %v4228 = vunpack.c.h.b16 %v1094
    %v4229 = vunpack.c.l.b16 %v1095
    %v4230 = vunpack.c.h.b16 %v1095
    %v4231 = vunpack.c.l.b16 %v1096
    %v4232 = vunpack.c.h.b16 %v1096
    %v4233 = vunpack.c.l.b16 %v1097
    %v4234 = vunpack.c.h.b16 %v1097
    %v4235 = vunpack.c.l.b16 %v1098
    %v4236 = vunpack.c.h.b16 %v1098
    %v4237 = vunpack.c.l.b16 %v1099
    %v4238 = vunpack.c.h.b16 %v1099
    %v4239 = vunpack.c.l.b16 %v1100
    %v4240 = vunpack.c.h.b16 %v1100
    %v4241 = vunpack.c.l.b16 %v1101
    %v4242 = vunpack.c.h.b16 %v1101
    %v4243 = vunpack.c.l.b16 %v1102
    %v4244 = vunpack.c.h.b16 %v1102
    %v4245 = vunpack.c.l.b16 %v1103
    %v4246 = vunpack.c.h.b16 %v1103
    %v4247 = vunpack.c.l.b16 %v1104
    %v4248 = vunpack.c.h.b16 %v1104
    %v4249 = vunpack.c.l.b16 %v1105
    %v4250 = vunpack.c.h.b16 %v1105
    %v4251 = vunpack.c.l.b16 %v1106
    %v4252 = vunpack.c.h.b16 %v1106
    %v4253 = vunpack.c.l.b16 %v1107
    %v4254 = vunpack.c.h.b16 %v1107
    %v4255 = vunpack.c.l.b16 %v1108
    %v4256 = vunpack.c.h.b16 %v1108
    %v4257 = vunpack.c.l.b16 %v1109
    %v4258 = vunpack.c.h.b16 %v1109
    %v4259 = vunpack.c.l.b16 %v1110
    %v4260 = vunpack.c.h.b16 %v1110
    %v4261 = vunpack.c.l.b16 %v1111
    %v4262 = vunpack.c.h.b16 %v1111
    %v4263 = vunpack.c.l.b16 %v1112
    %v4264 = vunpack.c.h.b16 %v1112
    %v4265 = vunpack.c.l.b16 %v1113
    %v4266 = vunpack.c.h.b16 %v1113
    %v4267 = vunpack.c.l.b16 %v1114
    %v4268 = vunpack.c.h.b16 %v1114
    %v4269 = vunpack.c.l.b16 %v1115
    %v4270 = vunpack.c.h.b16 %v1115
    %v4271 = vunpack.c.l.b16 %v1116
    %v4272 = vunpack.c.h.b16 %v1116
    %v4273 = vunpack.c.l.b16 %v1117
    %v4274 = vunpack.c.h.b16 %v1117
    %v4275 = vunpack.c.l.b16 %v1118
    %v4276 = vunpack.c.h.b16 %v1118
    %v4277 = vunpack.c.l.b16 %v1119
    %v4278 = vunpack.c.h.b16 %v1119
    %v4279 = vunpack.c.l.b16 %v1120
    %v4280 = vunpack.c.h.b16 %v1120
    %v4281 = vunpack.c.l.b16 %v1121
    %v4282 = vunpack.c.h.b16 %v1121
    %v4283 = vunpack.c.l.b16 %v1122
    %v4284 = vunpack.c.h.b16 %v1122
    %v4285 = vunpack.c.l.b16 %v1123
    %v4286 = vunpack.c.h.b16 %v1123
    %v4287 = vunpack.c.l.b16 %v1124
    %v4288 = vunpack.c.h.b16 %v1124
    %v4289 = vunpack.c.l.b16 %v1125
    %v4290 = vunpack.c.h.b16 %v1125
    %v4291 = vunpack.c.l.b16 %v1126
    %v4292 = vunpack.c.h.b16 %v1126
    %v4293 = vunpack.c.l.b16 %v1127
    %v4294 = vunpack.c.h.b16 %v1127
    %v4295 = vunpack.c.l.b16 %v1128
    %v4296 = vunpack.c.h.b16 %v1128
    %v4297 = vunpack.c.l.b16 %v1129
    %v4298 = vunpack.c.h.b16 %v1129
    %v4299 = vunpack.c.l.b16 %v1130
    %v4300 = vunpack.c.h.b16 %v1130
    %v4301 = vunpack.c.l.b16 %v1131
    %v4302 = vunpack.c.h.b16 %v1131
    %v4303 = vunpack.c.l.b16 %v1132
    %v4304 = vunpack.c.h.b16 %v1132
    %v4305 = vunpack.c.l.b16 %v1133
    %v4306 = vunpack.c.h.b16 %v1133
    %v4307 = vunpack.c.l.b16 %v1134
    %v4308 = vunpack.c.h.b16 %v1134
    %v4309 = vunpack.c.l.b16 %v1135
    %v4310 = vunpack.c.h.b16 %v1135
    %v4311 = vunpack.c.l.b16 %v1136
    %v4312 = vunpack.c.h.b16 %v1136
    %v4313 = vunpack.c.l.b16 %v1137
    %v4314 = vunpack.c.h.b16 %v1137
    %v4315 = vunpack.c.l.b16 %v1138
    %v4316 = vunpack.c.h.b16 %v1138
    %v4317 = vunpack.c.l.b16 %v1139
    %v4318 = vunpack.c.h.b16 %v1139
    %v4319 = vunpack.c.l.b16 %v1140
    %v4320 = vunpack.c.h.b16 %v1140
    %v4321 = vunpack.c.l.b16 %v1141
    %v4322 = vunpack.c.h.b16 %v1141
    %v4323 = vunpack.c.l.b16 %v1142
    %v4324 = vunpack.c.h.b16 %v1142
    %v4325 = vunpack.c.l.b16 %v1143
    %v4326 = vunpack.c.h.b16 %v1143
    %v4327 = vunpack.c.l.b16 %v1144
    %v4328 = vunpack.c.h.b16 %v1144
    %v4329 = vunpack.c.l.b16 %v1145
    %v4330 = vunpack.c.h.b16 %v1145
    %v4331 = vunpack.c.l.b16 %v1146
    %v4332 = vunpack.c.h.b16 %v1146
    %v4333 = vunpack.c.l.b16 %v1147
    %v4334 = vunpack.c.h.b16 %v1147
    %v4335 = vunpack.c.l.b16 %v1148
    %v4336 = vunpack.c.h.b16 %v1148
    %v4337 = vunpack.c.l.b16 %v1149
    %v4338 = vunpack.c.h.b16 %v1149
    %v4339 = vunpack.c.l.b16 %v1150
    %v4340 = vunpack.c.h.b16 %v1150
    %v4341 = vunpack.c.l.b16 %v1151
    %v4342 = vunpack.c.h.b16 %v1151
    %v4343 = vunpack.c.l.b16 %v1152
    %v4344 = vunpack.c.h.b16 %v1152
    %v4345 = vunpack.c.l.b16 %v1153
    %v4346 = vunpack.c.h.b16 %v1153
    %v4347 = vunpack.c.l.b16 %v1154
    %v4348 = vunpack.c.h.b16 %v1154
    %v4349 = vunpack.c.l.b16 %v1155
    %v4350 = vunpack.c.h.b16 %v1155
    %v4351 = vunpack.c.l.b16 %v1156
    %v4352 = vunpack.c.h.b16 %v1156
    %v4353 = vunpack.c.l.b16 %v1157
    %v4354 = vunpack.c.h.b16 %v1157
    %v4355 = vunpack.c.l.b16 %v1158
    %v4356 = vunpack.c.h.b16 %v1158
    %v4357 = vunpack.c.l.b16 %v1159
    %v4358 = vunpack.c.h.b16 %v1159
    %v4359 = vunpack.c.l.b16 %v1160
    %v4360 = vunpack.c.h.b16 %v1160
    %v4361 = vunpack.c.l.b16 %v1161
    %v4362 = vunpack.c.h.b16 %v1161
    %v4363 = vunpack.c.l.b16 %v1162
    %v4364 = vunpack.c.h.b16 %v1162
    %v4365 = vunpack.c.l.b16 %v1163
    %v4366 = vunpack.c.h.b16 %v1163
    %v4367 = vunpack.c.l.b16 %v1164
    %v4368 = vunpack.c.h.b16 %v1164
    %v4369 = vunpack.c.l.b16 %v1165
    %v4370 = vunpack.c.h.b16 %v1165
    %v4371 = vunpack.c.l.b16 %v1166
    %v4372 = vunpack.c.h.b16 %v1166
    %v4373 = vunpack.c.l.b16 %v1167
    %v4374 = vunpack.c.h.b16 %v1167
    %v4375 = vunpack.c.l.b16 %v1168
    %v4376 = vunpack.c.h.b16 %v1168
    %v4377 = vunpack.c.l.b16 %v1169
    %v4378 = vunpack.c.h.b16 %v1169
    %v4379 = vunpack.c.l.b16 %v1170
    %v4380 = vunpack.c.h.b16 %v1170
    %v4381 = vunpack.c.l.b16 %v1171
    %v4382 = vunpack.c.h.b16 %v1171
    %v4383 = vunpack.c.l.b16 %v1172
    %v4384 = vunpack.c.h.b16 %v1172
    %v4385 = vunpack.c.l.b16 %v1173
    %v4386 = vunpack.c.h.b16 %v1173
    %v4387 = vunpack.c.l.b16 %v1174
    %v4388 = vunpack.c.h.b16 %v1174
    %v4389 = vunpack.c.l.b16 %v1175
    %v4390 = vunpack.c.h.b16 %v1175
    %v4391 = vunpack.c.l.b16 %v1176
    %v4392 = vunpack.c.h.b16 %v1176
    %v4393 = vunpack.c.l.b16 %v1177
    %v4394 = vunpack.c.h.b16 %v1177
    %v4395 = vunpack.c.l.b16 %v1178
    %v4396 = vunpack.c.h.b16 %v1178
    %v4397 = vunpack.c.l.b16 %v1179
    %v4398 = vunpack.c.h.b16 %v1179
    %v4399 = vunpack.c.l.b16 %v1180
    %v4400 = vunpack.c.h.b16 %v1180
    %v4401 = vunpack.c.l.b16 %v1181
    %v4402 = vunpack.c.h.b16 %v1181
    %v4403 = vunpack.c.l.b16 %v1182
    %v4404 = vunpack.c.h.b16 %v1182
    %v4405 = vunpack.c.l.b16 %v1183
    %v4406 = vunpack.c.h.b16 %v1183
    %v4407 = vunpack.c.l.b16 %v1184
    %v4408 = vunpack.c.h.b16 %v1184
    %v4409 = vunpack.c.l.b16 %v1185
    %v4410 = vunpack.c.h.b16 %v1185
    %v4411 = vunpack.c.l.b16 %v1186
    %v4412 = vunpack.c.h.b16 %v1186
    %v4413 = vunpack.c.l.b16 %v1187
    %v4414 = vunpack.c.h.b16 %v1187
    %v4415 = vunpack.c.l.b16 %v1188
    %v4416 = vunpack.c.h.b16 %v1188
    %v4417 = vunpack.c.l.b16 %v1189
    %v4418 = vunpack.c.h.b16 %v1189
    %v4419 = vunpack.c.l.b16 %v1190
    %v4420 = vunpack.c.h.b16 %v1190
    %v4421 = vunpack.c.l.b16 %v1191
    %v4422 = vunpack.c.h.b16 %v1191
    %v4423 = vunpack.c.l.b16 %v1192
    %v4424 = vunpack.c.h.b16 %v1192
    %v4425 = vunpack.c.l.b16 %v1193
    %v4426 = vunpack.c.h.b16 %v1193
    %v4427 = vunpack.c.l.b16 %v1194
    %v4428 = vunpack.c.h.b16 %v1194
    %v4429 = vunpack.c.l.b16 %v1195
    %v4430 = vunpack.c.h.b16 %v1195
    %v4431 = vunpack.c.l.b16 %v1196
    %v4432 = vunpack.c.h.b16 %v1196
    %v4433 = vunpack.c.l.b16 %v1197
    %v4434 = vunpack.c.h.b16 %v1197
    %v4435 = vunpack.c.l.b16 %v1198
    %v4436 = vunpack.c.h.b16 %v1198
    %v4437 = vunpack.c.l.b16 %v1199
    %v4438 = vunpack.c.h.b16 %v1199
    %v4439 = vunpack.c.l.b16 %v1200
    %v4440 = vunpack.c.h.b16 %v1200
    %v4441 = vunpack.c.l.b16 %v1201
    %v4442 = vunpack.c.h.b16 %v1201
    %v4443 = vunpack.c.l.b16 %v1202
    %v4444 = vunpack.c.h.b16 %v1202
    %v4445 = vunpack.c.l.b16 %v1203
    %v4446 = vunpack.c.h.b16 %v1203
    %v4447 = vunpack.c.l.b16 %v1204
    %v4448 = vunpack.c.h.b16 %v1204
    %v4449 = vunpack.c.l.b16 %v1205
    %v4450 = vunpack.c.h.b16 %v1205
    %v4451 = vunpack.c.l.b16 %v1206
    %v4452 = vunpack.c.h.b16 %v1206
    %v4453 = vunpack.c.l.b16 %v1207
    %v4454 = vunpack.c.h.b16 %v1207
    %v4455 = vunpack.c.l.b16 %v1208
    %v4456 = vunpack.c.h.b16 %v1208
    %v4457 = vunpack.c.l.b16 %v1209
    %v4458 = vunpack.c.h.b16 %v1209
    %v4459 = vunpack.c.l.b16 %v1210
    %v4460 = vunpack.c.h.b16 %v1210
    %v4461 = vunpack.c.l.b16 %v1211
    %v4462 = vunpack.c.h.b16 %v1211
    %v4463 = vunpack.c.l.b16 %v1212
    %v4464 = vunpack.c.h.b16 %v1212
    %v4465 = vunpack.c.l.b16 %v1213
    %v4466 = vunpack.c.h.b16 %v1213
    %v4467 = vunpack.c.l.b16 %v1214
    %v4468 = vunpack.c.h.b16 %v1214
    %v4469 = vunpack.c.l.b16 %v1215
    %v4470 = vunpack.c.h.b16 %v1215
    %v4471 = vunpack.c.l.b16 %v1216
    %v4472 = vunpack.c.h.b16 %v1216
    %v4473 = vunpack.c.l.b16 %v1217
    %v4474 = vunpack.c.h.b16 %v1217
    %v4475 = vunpack.c.l.b16 %v1218
    %v4476 = vunpack.c.h.b16 %v1218
    %v4477 = vunpack.c.l.b16 %v1219
    %v4478 = vunpack.c.h.b16 %v1219
    %v4479 = vunpack.c.l.b16 %v1220
    %v4480 = vunpack.c.h.b16 %v1220
    %v4481 = vunpack.c.l.b16 %v1221
    %v4482 = vunpack.c.h.b16 %v1221
    %v4483 = vunpack.c.l.b16 %v1222
    %v4484 = vunpack.c.h.b16 %v1222
    %v4485 = vunpack.c.l.b16 %v1223
    %v4486 = vunpack.c.h.b16 %v1223
    %v4487 = vunpack.c.l.b16 %v1224
    %v4488 = vunpack.c.h.b16 %v1224
    %v4489 = vunpack.c.l.b16 %v1225
    %v4490 = vunpack.c.h.b16 %v1225
    %v4491 = vunpack.c.l.b16 %v1226
    %v4492 = vunpack.c.h.b16 %v1226
    %v4493 = vunpack.c.l.b16 %v1227
    %v4494 = vunpack.c.h.b16 %v1227
    %v4495 = vunpack.c.l.b16 %v1228
    %v4496 = vunpack.c.h.b16 %v1228
    %v4497 = vunpack.c.l.b16 %v1229
    %v4498 = vunpack.c.h.b16 %v1229
    %v4499 = vunpack.c.l.b16 %v1230
    %v4500 = vunpack.c.h.b16 %v1230
    %v4501 = vunpack.c.l.b16 %v1231
    %v4502 = vunpack.c.h.b16 %v1231
    %v4503 = vunpack.c.l.b16 %v1232
    %v4504 = vunpack.c.h.b16 %v1232
    %v4505 = vunpack.c.l.b16 %v1233
    %v4506 = vunpack.c.h.b16 %v1233
    %v4507 = vunpack.c.l.b16 %v1234
    %v4508 = vunpack.c.h.b16 %v1234
    %v4509 = vunpack.c.l.b16 %v1235
    %v4510 = vunpack.c.h.b16 %v1235
    %v4511 = vunpack.c.l.b16 %v1236
    %v4512 = vunpack.c.h.b16 %v1236
    %v4513 = vunpack.c.l.b16 %v1237
    %v4514 = vunpack.c.h.b16 %v1237
    %v4515 = vunpack.c.l.b16 %v1238
    %v4516 = vunpack.c.h.b16 %v1238
    %v4517 = vunpack.c.l.b16 %v1239
    %v4518 = vunpack.c.h.b16 %v1239
    %v4519 = vunpack.c.l.b16 %v1240
    %v4520 = vunpack.c.h.b16 %v1240
    %v4521 = vunpack.c.l.b16 %v1241
    %v4522 = vunpack.c.h.b16 %v1241
    %v4523 = vunpack.c.l.b16 %v1242
    %v4524 = vunpack.c.h.b16 %v1242
    %v4525 = vunpack.c.l.b16 %v1243
    %v4526 = vunpack.c.h.b16 %v1243
    %v4527 = vunpack.c.l.b16 %v1244
    %v4528 = vunpack.c.h.b16 %v1244
    %v4529 = vunpack.c.l.b16 %v1245
    %v4530 = vunpack.c.h.b16 %v1245
    %v4531 = vunpack.c.l.b16 %v1246
    %v4532 = vunpack.c.h.b16 %v1246
    %v4533 = vunpack.c.l.b16 %v1247
    %v4534 = vunpack.c.h.b16 %v1247
    %v4535 = vunpack.c.l.b16 %v1248
    %v4536 = vunpack.c.h.b16 %v1248
    %v4537 = vunpack.c.l.b16 %v1249
    %v4538 = vunpack.c.h.b16 %v1249
    %v4539 = vunpack.c.l.b16 %v1250
    %v4540 = vunpack.c.h.b16 %v1250
    %v4541 = vunpack.c.l.b16 %v1251
    %v4542 = vunpack.c.h.b16 %v1251
    %v4543 = vunpack.c.l.b16 %v1252
    %v4544 = vunpack.c.h.b16 %v1252
    %v4545 = vunpack.c.l.b16 %v1253
    %v4546 = vunpack.c.h.b16 %v1253
    %v4547 = vunpack.c.l.b16 %v1254
    %v4548 = vunpack.c.h.b16 %v1254
    %v4549 = vunpack.c.l.b16 %v1255
    %v4550 = vunpack.c.h.b16 %v1255
    %v4551 = vunpack.c.l.b16 %v1256
    %v4552 = vunpack.c.h.b16 %v1256
    %v4553 = vunpack.c.l.b16 %v1257
    %v4554 = vunpack.c.h.b16 %v1257
    %v4555 = vunpack.c.l.b16 %v1258
    %v4556 = vunpack.c.h.b16 %v1258
    %v4557 = vunpack.c.l.b16 %v1259
    %v4558 = vunpack.c.h.b16 %v1259
    %v4559 = vunpack.c.l.b16 %v1260
    %v4560 = vunpack.c.h.b16 %v1260
    %v4561 = vunpack.c.l.b16 %v1261
    %v4562 = vunpack.c.h.b16 %v1261
    %v4563 = vunpack.c.l.b16 %v1262
    %v4564 = vunpack.c.h.b16 %v1262
    %v4565 = vunpack.c.l.b16 %v1263
    %v4566 = vunpack.c.h.b16 %v1263
    %v4567 = vunpack.c.l.b16 %v1264
    %v4568 = vunpack.c.h.b16 %v1264
    %v4569 = vunpack.c.l.b16 %v1265
    %v4570 = vunpack.c.h.b16 %v1265
    %v4571 = vunpack.c.l.b16 %v1266
    %v4572 = vunpack.c.h.b16 %v1266
    %v4573 = vunpack.c.l.b16 %v1267
    %v4574 = vunpack.c.h.b16 %v1267
    %v4575 = vunpack.c.l.b16 %v1268
    %v4576 = vunpack.c.h.b16 %v1268
    %v4577 = vunpack.c.l.b16 %v1269
    %v4578 = vunpack.c.h.b16 %v1269
    %v4579 = vunpack.c.l.b16 %v1270
    %v4580 = vunpack.c.h.b16 %v1270
    %v4581 = vunpack.c.l.b16 %v1271
    %v4582 = vunpack.c.h.b16 %v1271
    %v4583 = vunpack.c.l.b16 %v1272
    %v4584 = vunpack.c.h.b16 %v1272
    %v4585 = vunpack.c.l.b16 %v1273
    %v4586 = vunpack.c.h.b16 %v1273
    %v4587 = vunpack.c.l.b16 %v1274
    %v4588 = vunpack.c.h.b16 %v1274
    %v4589 = vunpack.c.l.b16 %v1275
    %v4590 = vunpack.c.h.b16 %v1275
    %v4591 = vunpack.c.l.b16 %v1276
    %v4592 = vunpack.c.h.b16 %v1276
    %v4593 = vunpack.c.l.b16 %v1277
    %v4594 = vunpack.c.h.b16 %v1277
    %v4595 = vunpack.c.l.b16 %v1278
    %v4596 = vunpack.c.h.b16 %v1278
    %v4597 = vunpack.c.l.b16 %v1279
    %v4598 = vunpack.c.h.b16 %v1279
    %v4599 = vunpack.c.l.b16 %v1280
    %v4600 = vunpack.c.h.b16 %v1280
    %v4601 = vunpack.c.l.b16 %v1281
    %v4602 = vunpack.c.h.b16 %v1281
    %v4603 = vunpack.c.l.b16 %v1282
    %v4604 = vunpack.c.h.b16 %v1282
    %v4605 = vunpack.c.l.b16 %v1283
    %v4606 = vunpack.c.h.b16 %v1283
    %v4607 = vunpack.c.l.b16 %v1284
    %v4608 = vunpack.c.h.b16 %v1284
    %v4609 = vunpack.c.l.b16 %v1285
    %v4610 = vunpack.c.h.b16 %v1285
    %v4611 = vunpack.c.l.b16 %v1286
    %v4612 = vunpack.c.h.b16 %v1286
    %v4613 = vunpack.c.l.b16 %v1287
    %v4614 = vunpack.c.h.b16 %v1287
    %v4615 = vunpack.c.l.b16 %v1288
    %v4616 = vunpack.c.h.b16 %v1288
    %v4617 = vunpack.c.l.b16 %v1289
    %v4618 = vunpack.c.h.b16 %v1289
    %v4619 = vunpack.c.l.b16 %v1290
    %v4620 = vunpack.c.h.b16 %v1290
    %v4621 = vunpack.c.l.b16 %v1291
    %v4622 = vunpack.c.h.b16 %v1291
    %v4623 = vunpack.c.l.b16 %v1292
    %v4624 = vunpack.c.h.b16 %v1292
    %v4625 = vunpack.c.l.b16 %v1293
    %v4626 = vunpack.c.h.b16 %v1293
    %v4627 = vunpack.c.l.b16 %v1294
    %v4628 = vunpack.c.h.b16 %v1294
    %v4629 = vpack.c.b16 %v2425, %v2421
    %v4630 = vpack.c.b16 %v2426, %v2422
    %v4631 = vpack.c.b16 %v2427, %v2423
    %v4632 = vpack.c.b16 %v2428, %v2424
    %v4633 = vpack.c.b16 %v2433, %v2429
    %v4634 = vpack.c.b16 %v2434, %v2430
    %v4635 = vpack.c.b16 %v2435, %v2431
    %v4636 = vpack.c.b16 %v2436, %v2432
    %v4637 = vpack.c.b16 %v2441, %v2437
    %v4638 = vpack.c.b16 %v2442, %v2438
    %v4639 = vpack.c.b16 %v2443, %v2439
    %v4640 = vpack.c.b16 %v2444, %v2440
    %v4641 = vpack.c.b16 %v2449, %v2445
    %v4642 = vpack.c.b16 %v2450, %v2446
    %v4643 = vpack.c.b16 %v2451, %v2447
    %v4644 = vpack.c.b16 %v2452, %v2448
    %v4645 = vpack.c.b16 %v2457, %v2453
    %v4646 = vpack.c.b16 %v2458, %v2454
    %v4647 = vpack.c.b16 %v2459, %v2455
    %v4648 = vpack.c.b16 %v2460, %v2456
    %v4649 = vpack.c.b16 %v2465, %v2461
    %v4650 = vpack.c.b16 %v2466, %v2462
    %v4651 = vpack.c.b16 %v2467, %v2463
    %v4652 = vpack.c.b16 %v2468, %v2464
    %v4653 = vpack.c.b16 %v2473, %v2469
    %v4654 = vpack.c.b16 %v2474, %v2470
    %v4655 = vpack.c.b16 %v2475, %v2471
    %v4656 = vpack.c.b16 %v2476, %v2472
    %v4657 = vpack.c.b16 %v2481, %v2477
    %v4658 = vpack.c.b16 %v2482, %v2478
    %v4659 = vpack.c.b16 %v2483, %v2479
    %v4660 = vpack.c.b16 %v2484, %v2480
    %v4661 = vpack.c.b16 %v2489, %v2485
    %v4662 = vpack.c.b16 %v2490, %v2486
    %v4663 = vpack.c.b16 %v2491, %v2487
    %v4664 = vpack.c.b16 %v2492, %v2488
    %v4665 = vpack.c.b16 %v2497, %v2493
    %v4666 = vpack.c.b16 %v2498, %v2494
    %v4667 = vpack.c.b16 %v2499, %v2495
    %v4668 = vpack.c.b16 %v2500, %v2496
    %v4669 = vpack.c.b16 %v2505, %v2501
    %v4670 = vpack.c.b16 %v2506, %v2502
    %v4671 = vpack.c.b16 %v2507, %v2503
    %v4672 = vpack.c.b16 %v2508, %v2504
    %v4673 = vpack.c.b16 %v2513, %v2509
    %v4674 = vpack.c.b16 %v2514, %v2510
    %v4675 = vpack.c.b16 %v2515, %v2511
    %v4676 = vpack.c.b16 %v2516, %v2512
    %v4677 = vpack.c.b16 %v2521, %v2517
    %v4678 = vpack.c.b16 %v2522, %v2518
    %v4679 = vpack.c.b16 %v2523, %v2519
    %v4680 = vpack.c.b16 %v2524, %v2520
    %v4681 = vpack.c.b16 %v2529, %v2525
    %v4682 = vpack.c.b16 %v2530, %v2526
    %v4683 = vpack.c.b16 %v2531, %v2527
    %v4684 = vpack.c.b16 %v2532, %v2528
    %v4685 = vpack.c.b16 %v2537, %v2533
    %v4686 = vpack.c.b16 %v2538, %v2534
    %v4687 = vpack.c.b16 %v2539, %v2535
    %v4688 = vpack.c.b16 %v2540, %v2536
    %v4689 = vpack.c.b16 %v2545, %v2541
    %v4690 = vpack.c.b16 %v2546, %v2542
    %v4691 = vpack.c.b16 %v2547, %v2543
    %v4692 = vpack.c.b16 %v2548, %v2544
    %v4693 = vpack.c.b16 %v2553, %v2549
    %v4694 = vpack.c.b16 %v2554, %v2550
    %v4695 = vpack.c.b16 %v2555, %v2551
    %v4696 = vpack.c.b16 %v2556, %v2552
    %v4697 = vpack.c.b16 %v2561, %v2557
    %v4698 = vpack.c.b16 %v2562, %v2558
    %v4699 = vpack.c.b16 %v2563, %v2559
    %v4700 = vpack.c.b16 %v2564, %v2560
    %v4701 = vpack.c.b16 %v2569, %v2565
    %v4702 = vpack.c.b16 %v2570, %v2566
    %v4703 = vpack.c.b16 %v2571, %v2567
    %v4704 = vpack.c.b16 %v2572, %v2568
    %v4705 = vpack.c.b16 %v2577, %v2573
    %v4706 = vpack.c.b16 %v2578, %v2574
    %v4707 = vpack.c.b16 %v2579, %v2575
    %v4708 = vpack.c.b16 %v2580, %v2576
    %v4709 = vpack.c.b16 %v2585, %v2581
    %v4710 = vpack.c.b16 %v2586, %v2582
    %v4711 = vpack.c.b16 %v2587, %v2583
    %v4712 = vpack.c.b16 %v2588, %v2584
    %v4713 = vpack.c.b16 %v2593, %v2589
    %v4714 = vpack.c.b16 %v2594, %v2590
    %v4715 = vpack.c.b16 %v2595, %v2591
    %v4716 = vpack.c.b16 %v2596, %v2592
    %v4717 = vpack.c.b16 %v2601, %v2597
    %v4718 = vpack.c.b16 %v2602, %v2598
    %v4719 = vpack.c.b16 %v2603, %v2599
    %v4720 = vpack.c.b16 %v2604, %v2600
    %v4721 = vpack.c.b16 %v2609, %v2605
    %v4722 = vpack.c.b16 %v2610, %v2606
    %v4723 = vpack.c.b16 %v2611, %v2607
    %v4724 = vpack.c.b16 %v2612, %v2608
    %v4725 = vpack.c.b16 %v2617, %v2613
    %v4726 = vpack.c.b16 %v2618, %v2614
    %v4727 = vpack.c.b16 %v2619, %v2615
    %v4728 = vpack.c.b16 %v2620, %v2616
    %v4729 = vpack.c.b16 %v2625, %v2621
    %v4730 = vpack.c.b16 %v2626, %v2622
    %v4731 = vpack.c.b16 %v2627, %v2623
    %v4732 = vpack.c.b16 %v2628, %v2624
    %v4733 = vpack.c.b16 %v2633, %v2629
    %v4734 = vpack.c.b16 %v2634, %v2630
    %v4735 = vpack.c.b16 %v2635, %v2631
    %v4736 = vpack.c.b16 %v2636, %v2632
    %v4737 = vpack.c.b16 %v2641, %v2637
    %v4738 = vpack.c.b16 %v2642, %v2638
    %v4739 = vpack.c.b16 %v2643, %v2639
    %v4740 = vpack.c.b16 %v2644, %v2640
    %v4741 = vpack.c.b16 %v2649, %v2645
    %v4742 = vpack.c.b16 %v2650, %v2646
    %v4743 = vpack.c.b16 %v2651, %v2647
    %v4744 = vpack.c.b16 %v2652, %v2648
    %v4745 = vpack.c.b16 %v2657, %v2653
    %v4746 = vpack.c.b16 %v2658, %v2654
    %v4747 = vpack.c.b16 %v2659, %v2655
    %v4748 = vpack.c.b16 %v2660, %v2656
    %v4749 = vpack.c.b16 %v2665, %v2661
    %v4750 = vpack.c.b16 %v2666, %v2662
    %v4751 = vpack.c.b16 %v2667, %v2663
    %v4752 = vpack.c.b16 %v2668, %v2664
    %v4753 = vpack.c.b16 %v2673, %v2669
    %v4754 = vpack.c.b16 %v2674, %v2670
    %v4755 = vpack.c.b16 %v2675, %v2671
    %v4756 = vpack.c.b16 %v2676, %v2672
    %v4757 = vpack.c.b16 %v2681, %v2677
    %v4758 = vpack.c.b16 %v2682, %v2678
    %v4759 = vpack.c.b16 %v2683, %v2679
    %v4760 = vpack.c.b16 %v2684, %v2680
    %v4761 = vpack.c.b16 %v2689, %v2685
    %v4762 = vpack.c.b16 %v2690, %v2686
    %v4763 = vpack.c.b16 %v2691, %v2687
    %v4764 = vpack.c.b16 %v2692, %v2688
    %v4765 = vpack.c.b16 %v2697, %v2693
    %v4766 = vpack.c.b16 %v2698, %v2694
    %v4767 = vpack.c.b16 %v2699, %v2695
    %v4768 = vpack.c.b16 %v2700, %v2696
    %v4769 = vpack.c.b16 %v2705, %v2701
    %v4770 = vpack.c.b16 %v2706, %v2702
    %v4771 = vpack.c.b16 %v2707, %v2703
    %v4772 = vpack.c.b16 %v2708, %v2704
    %v4773 = vpack.c.b16 %v2713, %v2709
    %v4774 = vpack.c.b16 %v2714, %v2710
    %v4775 = vpack.c.b16 %v2715, %v2711
    %v4776 = vpack.c.b16 %v2716, %v2712
    %v4777 = vpack.c.b16 %v2721, %v2717
    %v4778 = vpack.c.b16 %v2722, %v2718
    %v4779 = vpack.c.b16 %v2723, %v2719
    %v4780 = vpack.c.b16 %v2724, %v2720
    %v4781 = vpack.c.b16 %v2729, %v2725
    %v4782 = vpack.c.b16 %v2730, %v2726
    %v4783 = vpack.c.b16 %v2731, %v2727
    %v4784 = vpack.c.b16 %v2732, %v2728
    %v4785 = vpack.c.b16 %v2737, %v2733
    %v4786 = vpack.c.b16 %v2738, %v2734
    %v4787 = vpack.c.b16 %v2739, %v2735
    %v4788 = vpack.c.b16 %v2740, %v2736
    %v4789 = vpack.c.b16 %v2745, %v2741
    %v4790 = vpack.c.b16 %v2746, %v2742
    %v4791 = vpack.c.b16 %v2747, %v2743
    %v4792 = vpack.c.b16 %v2748, %v2744
    %v4793 = vpack.c.b16 %v2753, %v2749
    %v4794 = vpack.c.b16 %v2754, %v2750
    %v4795 = vpack.c.b16 %v2755, %v2751
    %v4796 = vpack.c.b16 %v2756, %v2752
    %v4797 = vpack.c.b16 %v2761, %v2757
    %v4798 = vpack.c.b16 %v2762, %v2758
    %v4799 = vpack.c.b16 %v2763, %v2759
    %v4800 = vpack.c.b16 %v2764, %v2760
    %v4801 = vpack.c.b16 %v2769, %v2765
    %v4802 = vpack.c.b16 %v2770, %v2766
    %v4803 = vpack.c.b16 %v2771, %v2767
    %v4804 = vpack.c.b16 %v2772, %v2768
    %v4805 = vpack.c.b16 %v2777, %v2773
    %v4806 = vpack.c.b16 %v2778, %v2774
    %v4807 = vpack.c.b16 %v2779, %v2775
    %v4808 = vpack.c.b16 %v2780, %v2776
    %v4809 = vpack.c.b16 %v2785, %v2781
    %v4810 = vpack.c.b16 %v2786, %v2782
    %v4811 = vpack.c.b16 %v2787, %v2783
    %v4812 = vpack.c.b16 %v2788, %v2784
    %v4813 = vpack.c.b16 %v2793, %v2789
    %v4814 = vpack.c.b16 %v2794, %v2790
    %v4815 = vpack.c.b16 %v2795, %v2791
    %v4816 = vpack.c.b16 %v2796, %v2792
    %v4817 = vpack.c.b16 %v2801, %v2797
    %v4818 = vpack.c.b16 %v2802, %v2798
    %v4819 = vpack.c.b16 %v2803, %v2799
    %v4820 = vpack.c.b16 %v2804, %v2800
    %v4821 = vpack.c.b16 %v2809, %v2805
    %v4822 = vpack.c.b16 %v2810, %v2806
    %v4823 = vpack.c.b16 %v2811, %v2807
    %v4824 = vpack.c.b16 %v2812, %v2808
    %v4825 = vpack.c.b16 %v2817, %v2813
    %v4826 = vpack.c.b16 %v2818, %v2814
    %v4827 = vpack.c.b16 %v2819, %v2815
    %v4828 = vpack.c.b16 %v2820, %v2816
    %v4829 = vpack.c.b16 %v2825, %v2821
    %v4830 = vpack.c.b16 %v2826, %v2822
    %v4831 = vpack.c.b16 %v2827, %v2823
    %v4832 = vpack.c.b16 %v2828, %v2824
    %v4833 = vpack.c.b16 %v2833, %v2829
    %v4834 = vpack.c.b16 %v2834, %v2830
    %v4835 = vpack.c.b16 %v2835, %v2831
    %v4836 = vpack.c.b16 %v2836, %v2832
    %v4837 = vpack.c.b16 %v2841, %v2837
    %v4838 = vpack.c.b16 %v2842, %v2838
    %v4839 = vpack.c.b16 %v2843, %v2839
    %v4840 = vpack.c.b16 %v2844, %v2840
    %v4841 = vpack.c.b16 %v2849, %v2845
    %v4842 = vpack.c.b16 %v2850, %v2846
    %v4843 = vpack.c.b16 %v2851, %v2847
    %v4844 = vpack.c.b16 %v2852, %v2848
    %v4845 = vpack.c.b16 %v2857, %v2853
    %v4846 = vpack.c.b16 %v2858, %v2854
    %v4847 = vpack.c.b16 %v2859, %v2855
    %v4848 = vpack.c.b16 %v2860, %v2856
    %v4849 = vpack.c.b16 %v2865, %v2861
    %v4850 = vpack.c.b16 %v2866, %v2862
    %v4851 = vpack.c.b16 %v2867, %v2863
    %v4852 = vpack.c.b16 %v2868, %v2864
    %v4853 = vpack.c.b16 %v2873, %v2869
    %v4854 = vpack.c.b16 %v2874, %v2870
    %v4855 = vpack.c.b16 %v2875, %v2871
    %v4856 = vpack.c.b16 %v2876, %v2872
    %v4857 = vpack.c.b16 %v2881, %v2877
    %v4858 = vpack.c.b16 %v2882, %v2878
    %v4859 = vpack.c.b16 %v2883, %v2879
    %v4860 = vpack.c.b16 %v2884, %v2880
    %v4861 = vpack.c.b16 %v2889, %v2885
    %v4862 = vpack.c.b16 %v2890, %v2886
    %v4863 = vpack.c.b16 %v2891, %v2887
    %v4864 = vpack.c.b16 %v2892, %v2888
    %v4865 = vpack.c.b16 %v2897, %v2893
    %v4866 = vpack.c.b16 %v2898, %v2894
    %v4867 = vpack.c.b16 %v2899, %v2895
    %v4868 = vpack.c.b16 %v2900, %v2896
    %v4869 = vpack.c.b16 %v2905, %v2901
    %v4870 = vpack.c.b16 %v2906, %v2902
    %v4871 = vpack.c.b16 %v2907, %v2903
    %v4872 = vpack.c.b16 %v2908, %v2904
    %v4873 = vpack.c.b16 %v2913, %v2909
    %v4874 = vpack.c.b16 %v2914, %v2910
    %v4875 = vpack.c.b16 %v2915, %v2911
    %v4876 = vpack.c.b16 %v2916, %v2912
    %v4877 = vpack.c.b16 %v2921, %v2917
    %v4878 = vpack.c.b16 %v2922, %v2918
    %v4879 = vpack.c.b16 %v2923, %v2919
    %v4880 = vpack.c.b16 %v2924, %v2920
    %v4881 = vpack.c.b16 %v2929, %v2925
    %v4882 = vpack.c.b16 %v2930, %v2926
    %v4883 = vpack.c.b16 %v2931, %v2927
    %v4884 = vpack.c.b16 %v2932, %v2928
    %v4885 = vpack.c.b16 %v2937, %v2933
    %v4886 = vpack.c.b16 %v2938, %v2934
    %v4887 = vpack.c.b16 %v2939, %v2935
    %v4888 = vpack.c.b16 %v2940, %v2936
    %v4889 = vpack.c.b16 %v2945, %v2941
    %v4890 = vpack.c.b16 %v2946, %v2942
    %v4891 = vpack.c.b16 %v2947, %v2943
    %v4892 = vpack.c.b16 %v2948, %v2944
    %v4893 = vpack.c.b16 %v2953, %v2949
    %v4894 = vpack.c.b16 %v2954, %v2950
    %v4895 = vpack.c.b16 %v2955, %v2951
    %v4896 = vpack.c.b16 %v2956, %v2952
    %v4897 = vpack.c.b16 %v2961, %v2957
    %v4898 = vpack.c.b16 %v2962, %v2958
    %v4899 = vpack.c.b16 %v2963, %v2959
    %v4900 = vpack.c.b16 %v2964, %v2960
    %v4901 = vpack.c.b16 %v2969, %v2965
    %v4902 = vpack.c.b16 %v2970, %v2966
    %v4903 = vpack.c.b16 %v2971, %v2967
    %v4904 = vpack.c.b16 %v2972, %v2968
    %v4905 = vpack.c.b16 %v2977, %v2973
    %v4906 = vpack.c.b16 %v2978, %v2974
    %v4907 = vpack.c.b16 %v2979, %v2975
    %v4908 = vpack.c.b16 %v2980, %v2976
    %v4909 = vpack.c.b16 %v2985, %v2981
    %v4910 = vpack.c.b16 %v2986, %v2982
    %v4911 = vpack.c.b16 %v2987, %v2983
    %v4912 = vpack.c.b16 %v2988, %v2984
    %v4913 = vpack.c.b16 %v2993, %v2989
    %v4914 = vpack.c.b16 %v2994, %v2990
    %v4915 = vpack.c.b16 %v2995, %v2991
    %v4916 = vpack.c.b16 %v2996, %v2992
    %v4917 = vpack.c.b16 %v3001, %v2997
    %v4918 = vpack.c.b16 %v3002, %v2998
    %v4919 = vpack.c.b16 %v3003, %v2999
    %v4920 = vpack.c.b16 %v3004, %v3000
    %v4921 = vpack.c.b16 %v3009, %v3005
    %v4922 = vpack.c.b16 %v3010, %v3006
    %v4923 = vpack.c.b16 %v3011, %v3007
    %v4924 = vpack.c.b16 %v3012, %v3008
    %v4925 = vpack.c.b16 %v3017, %v3013
    %v4926 = vpack.c.b16 %v3018, %v3014
    %v4927 = vpack.c.b16 %v3019, %v3015
    %v4928 = vpack.c.b16 %v3020, %v3016
    %v4929 = vpack.c.b16 %v3025, %v3021
    %v4930 = vpack.c.b16 %v3026, %v3022
    %v4931 = vpack.c.b16 %v3027, %v3023
    %v4932 = vpack.c.b16 %v3028, %v3024
    %v4933 = vpack.c.b16 %v3033, %v3029
    %v4934 = vpack.c.b16 %v3034, %v3030
    %v4935 = vpack.c.b16 %v3035, %v3031
    %v4936 = vpack.c.b16 %v3036, %v3032
    %v4937 = vpack.c.b16 %v3041, %v3037
    %v4938 = vpack.c.b16 %v3042, %v3038
    %v4939 = vpack.c.b16 %v3043, %v3039
    %v4940 = vpack.c.b16 %v3044, %v3040
    %v4941 = vpack.c.b16 %v3049, %v3045
    %v4942 = vpack.c.b16 %v3050, %v3046
    %v4943 = vpack.c.b16 %v3051, %v3047
    %v4944 = vpack.c.b16 %v3052, %v3048
    %v4945 = vpack.c.b16 %v3057, %v3053
    %v4946 = vpack.c.b16 %v3058, %v3054
    %v4947 = vpack.c.b16 %v3059, %v3055
    %v4948 = vpack.c.b16 %v3060, %v3056
    %v4949 = vpack.c.b16 %v3065, %v3061
    %v4950 = vpack.c.b16 %v3066, %v3062
    %v4951 = vpack.c.b16 %v3067, %v3063
    %v4952 = vpack.c.b16 %v3068, %v3064
    %v4953 = vpack.c.b16 %v3073, %v3069
    %v4954 = vpack.c.b16 %v3074, %v3070
    %v4955 = vpack.c.b16 %v3075, %v3071
    %v4956 = vpack.c.b16 %v3076, %v3072
    %v4957 = vpack.c.b16 %v3081, %v3077
    %v4958 = vpack.c.b16 %v3082, %v3078
    %v4959 = vpack.c.b16 %v3083, %v3079
    %v4960 = vpack.c.b16 %v3084, %v3080
    %v4961 = vpack.c.b16 %v3089, %v3085
    %v4962 = vpack.c.b16 %v3090, %v3086
    %v4963 = vpack.c.b16 %v3091, %v3087
    %v4964 = vpack.c.b16 %v3092, %v3088
    %v4965 = vpack.c.b16 %v3097, %v3093
    %v4966 = vpack.c.b16 %v3098, %v3094
    %v4967 = vpack.c.b16 %v3099, %v3095
    %v4968 = vpack.c.b16 %v3100, %v3096
    %v4969 = vpack.c.b16 %v3105, %v3101
    %v4970 = vpack.c.b16 %v3106, %v3102
    %v4971 = vpack.c.b16 %v3107, %v3103
    %v4972 = vpack.c.b16 %v3108, %v3104
    %v4973 = vpack.c.b16 %v3113, %v3109
    %v4974 = vpack.c.b16 %v3114, %v3110
    %v4975 = vpack.c.b16 %v3115, %v3111
    %v4976 = vpack.c.b16 %v3116, %v3112
    %v4977 = vpack.c.b16 %v3121, %v3117
    %v4978 = vpack.c.b16 %v3122, %v3118
    %v4979 = vpack.c.b16 %v3123, %v3119
    %v4980 = vpack.c.b16 %v3124, %v3120
    %v4981 = vpack.c.b16 %v3129, %v3125
    %v4982 = vpack.c.b16 %v3130, %v3126
    %v4983 = vpack.c.b16 %v3131, %v3127
    %v4984 = vpack.c.b16 %v3132, %v3128
    %v4985 = vpack.c.b16 %v3137, %v3133
    %v4986 = vpack.c.b16 %v3138, %v3134
    %v4987 = vpack.c.b16 %v3139, %v3135
    %v4988 = vpack.c.b16 %v3140, %v3136
    %v4989 = vpack.c.b16 %v3145, %v3141
    %v4990 = vpack.c.b16 %v3146, %v3142
    %v4991 = vpack.c.b16 %v3147, %v3143
    %v4992 = vpack.c.b16 %v3148, %v3144
    %v4993 = vpack.c.b16 %v3153, %v3149
    %v4994 = vpack.c.b16 %v3154, %v3150
    %v4995 = vpack.c.b16 %v3155, %v3151
    %v4996 = vpack.c.b16 %v3156, %v3152
    %v4997 = vpack.c.b16 %v3161, %v3157
    %v4998 = vpack.c.b16 %v3162, %v3158
    %v4999 = vpack.c.b16 %v3163, %v3159
    %v5000 = vpack.c.b16 %v3164, %v3160
    %v5001 = vpack.c.b16 %v3169, %v3165
    %v5002 = vpack.c.b16 %v3170, %v3166
    %v5003 = vpack.c.b16 %v3171, %v3167
    %v5004 = vpack.c.b16 %v3172, %v3168
    %v5005 = vpack.c.b16 %v3177, %v3173
    %v5006 = vpack.c.b16 %v3178, %v3174
    %v5007 = vpack.c.b16 %v3179, %v3175
    %v5008 = vpack.c.b16 %v3180, %v3176
    %v5009 = vpack.c.b16 %v3185, %v3181
    %v5010 = vpack.c.b16 %v3186, %v3182
    %v5011 = vpack.c.b16 %v3187, %v3183
    %v5012 = vpack.c.b16 %v3188, %v3184
    %v5013 = vpack.c.b16 %v3193, %v3189
    %v5014 = vpack.c.b16 %v3194, %v3190
    %v5015 = vpack.c.b16 %v3195, %v3191
    %v5016 = vpack.c.b16 %v3196, %v3192
    %v5017 = vpack.c.b16 %v3201, %v3197
    %v5018 = vpack.c.b16 %v3202, %v3198
    %v5019 = vpack.c.b16 %v3203, %v3199
    %v5020 = vpack.c.b16 %v3204, %v3200
    %v5021 = vpack.c.b16 %v3209, %v3205
    %v5022 = vpack.c.b16 %v3210, %v3206
    %v5023 = vpack.c.b16 %v3211, %v3207
    %v5024 = vpack.c.b16 %v3212, %v3208
    %v5025 = vpack.c.b16 %v3217, %v3213
    %v5026 = vpack.c.b16 %v3218, %v3214
    %v5027 = vpack.c.b16 %v3219, %v3215
    %v5028 = vpack.c.b16 %v3220, %v3216
    %v5029 = vpack.c.b16 %v3225, %v3221
    %v5030 = vpack.c.b16 %v3226, %v3222
    %v5031 = vpack.c.b16 %v3227, %v3223
    %v5032 = vpack.c.b16 %v3228, %v3224
    %v5033 = vpack.c.b16 %v3233, %v3229
    %v5034 = vpack.c.b16 %v3234, %v3230
    %v5035 = vpack.c.b16 %v3235, %v3231
    %v5036 = vpack.c.b16 %v3236, %v3232
    %v5037 = vpack.c.b16 %v3241, %v3237
    %v5038 = vpack.c.b16 %v3242, %v3238
    %v5039 = vpack.c.b16 %v3243, %v3239
    %v5040 = vpack.c.b16 %v3244, %v3240
    %v5041 = vpack.c.b16 %v3249, %v3245
    %v5042 = vpack.c.b16 %v3250, %v3246
    %v5043 = vpack.c.b16 %v3251, %v3247
    %v5044 = vpack.c.b16 %v3252, %v3248
    %v5045 = vpack.c.b16 %v3257, %v3253
    %v5046 = vpack.c.b16 %v3258, %v3254
    %v5047 = vpack.c.b16 %v3259, %v3255
    %v5048 = vpack.c.b16 %v3260, %v3256
    %v5049 = vpack.c.b16 %v3265, %v3261
    %v5050 = vpack.c.b16 %v3266, %v3262
    %v5051 = vpack.c.b16 %v3267, %v3263
    %v5052 = vpack.c.b16 %v3268, %v3264
    %v5053 = vpack.c.b16 %v3273, %v3269
    %v5054 = vpack.c.b16 %v3274, %v3270
    %v5055 = vpack.c.b16 %v3275, %v3271
    %v5056 = vpack.c.b16 %v3276, %v3272
    %v5057 = vpack.c.b16 %v3281, %v3277
    %v5058 = vpack.c.b16 %v3282, %v3278
    %v5059 = vpack.c.b16 %v3283, %v3279
    %v5060 = vpack.c.b16 %v3284, %v3280
    %v5061 = vpack.c.b16 %v3289, %v3285
    %v5062 = vpack.c.b16 %v3290, %v3286
    %v5063 = vpack.c.b16 %v3291, %v3287
    %v5064 = vpack.c.b16 %v3292, %v3288
    %v5065 = vpack.c.b16 %v3297, %v3293
    %v5066 = vpack.c.b16 %v3298, %v3294
    %v5067 = vpack.c.b16 %v3299, %v3295
    %v5068 = vpack.c.b16 %v3300, %v3296
    %v5069 = vpack.c.b16 %v3305, %v3301
    %v5070 = vpack.c.b16 %v3306, %v3302
    %v5071 = vpack.c.b16 %v3307, %v3303
    %v5072 = vpack.c.b16 %v3308, %v3304
    %v5073 = vpack.c.b16 %v3313, %v3309
    %v5074 = vpack.c.b16 %v3314, %v3310
    %v5075 = vpack.c.b16 %v3315, %v3311
    %v5076 = vpack.c.b16 %v3316, %v3312
    %v5077 = vpack.c.b16 %v3321, %v3317
    %v5078 = vpack.c.b16 %v3322, %v3318
    %v5079 = vpack.c.b16 %v3323, %v3319
    %v5080 = vpack.c.b16 %v3324, %v3320
    %v5081 = vpack.c.b16 %v3329, %v3325
    %v5082 = vpack.c.b16 %v3330, %v3326
    %v5083 = vpack.c.b16 %v3331, %v3327
    %v5084 = vpack.c.b16 %v3332, %v3328
    %v5085 = vpack.c.b16 %v3337, %v3333
    %v5086 = vpack.c.b16 %v3338, %v3334
    %v5087 = vpack.c.b16 %v3339, %v3335
    %v5088 = vpack.c.b16 %v3340, %v3336
    %v5089 = vpack.c.b16 %v3345, %v3341
    %v5090 = vpack.c.b16 %v3346, %v3342
    %v5091 = vpack.c.b16 %v3347, %v3343
    %v5092 = vpack.c.b16 %v3348, %v3344
    %v5093 = vpack.c.b16 %v3353, %v3349
    %v5094 = vpack.c.b16 %v3354, %v3350
    %v5095 = vpack.c.b16 %v3355, %v3351
    %v5096 = vpack.c.b16 %v3356, %v3352
    %v5097 = vpack.c.b16 %v3361, %v3357
    %v5098 = vpack.c.b16 %v3362, %v3358
    %v5099 = vpack.c.b16 %v3363, %v3359
    %v5100 = vpack.c.b16 %v3364, %v3360
    %v5101 = vpack.c.b16 %v3369, %v3365
    %v5102 = vpack.c.b16 %v3370, %v3366
    %v5103 = vpack.c.b16 %v3371, %v3367
    %v5104 = vpack.c.b16 %v3372, %v3368
    %v5105 = vpack.c.b16 %v3377, %v3373
    %v5106 = vpack.c.b16 %v3378, %v3374
    %v5107 = vpack.c.b16 %v3379, %v3375
    %v5108 = vpack.c.b16 %v3380, %v3376
    %v5109 = vpack.c.b16 %v3385, %v3381
    %v5110 = vpack.c.b16 %v3386, %v3382
    %v5111 = vpack.c.b16 %v3387, %v3383
    %v5112 = vpack.c.b16 %v3388, %v3384
    %v5113 = vpack.c.b16 %v3393, %v3389
    %v5114 = vpack.c.b16 %v3394, %v3390
    %v5115 = vpack.c.b16 %v3395, %v3391
    %v5116 = vpack.c.b16 %v3396, %v3392
    %v5117 = vpack.c.b16 %v3401, %v3397
    %v5118 = vpack.c.b16 %v3402, %v3398
    %v5119 = vpack.c.b16 %v3403, %v3399
    %v5120 = vpack.c.b16 %v3404, %v3400
    %v5121 = vpack.c.b16 %v3409, %v3405
    %v5122 = vpack.c.b16 %v3410, %v3406
    %v5123 = vpack.c.b16 %v3411, %v3407
    %v5124 = vpack.c.b16 %v3412, %v3408
    %v5125 = vpack.c.b16 %v3417, %v3413
    %v5126 = vpack.c.b16 %v3418, %v3414
    %v5127 = vpack.c.b16 %v3419, %v3415
    %v5128 = vpack.c.b16 %v3420, %v3416
    %v5129 = vpack.c.b16 %v3425, %v3421
    %v5130 = vpack.c.b16 %v3426, %v3422
    %v5131 = vpack.c.b16 %v3427, %v3423
    %v5132 = vpack.c.b16 %v3428, %v3424
    %v5133 = vpack.c.b16 %v3433, %v3429
    %v5134 = vpack.c.b16 %v3434, %v3430
    %v5135 = vpack.c.b16 %v3435, %v3431
    %v5136 = vpack.c.b16 %v3436, %v3432
    %v5137 = vpack.c.b16 %v3441, %v3437
    %v5138 = vpack.c.b16 %v3442, %v3438
    %v5139 = vpack.c.b16 %v3443, %v3439
    %v5140 = vpack.c.b16 %v3444, %v3440
    %v5141 = vpack.c.b16 %v3449, %v3445
    %v5142 = vpack.c.b16 %v3450, %v3446
    %v5143 = vpack.c.b16 %v3451, %v3447
    %v5144 = vpack.c.b16 %v3452, %v3448
    %v5145 = vpack.c.b16 %v3457, %v3453
    %v5146 = vpack.c.b16 %v3458, %v3454
    %v5147 = vpack.c.b16 %v3459, %v3455
    %v5148 = vpack.c.b16 %v3460, %v3456
    %v5149 = vpack.c.b16 %v3465, %v3461
    %v5150 = vpack.c.b16 %v3466, %v3462
    %v5151 = vpack.c.b16 %v3467, %v3463
    %v5152 = vpack.c.b16 %v3468, %v3464
    %v5153 = vpack.c.b16 %v3473, %v3469
    %v5154 = vpack.c.b16 %v3474, %v3470
    %v5155 = vpack.c.b16 %v3475, %v3471
    %v5156 = vpack.c.b16 %v3476, %v3472
    %v5157 = vpack.c.b16 %v3481, %v3477
    %v5158 = vpack.c.b16 %v3482, %v3478
    %v5159 = vpack.c.b16 %v3483, %v3479
    %v5160 = vpack.c.b16 %v3484, %v3480
    %v5161 = vpack.c.b16 %v3489, %v3485
    %v5162 = vpack.c.b16 %v3490, %v3486
    %v5163 = vpack.c.b16 %v3491, %v3487
    %v5164 = vpack.c.b16 %v3492, %v3488
    %v5165 = vpack.c.b16 %v3497, %v3493
    %v5166 = vpack.c.b16 %v3498, %v3494
    %v5167 = vpack.c.b16 %v3499, %v3495
    %v5168 = vpack.c.b16 %v3500, %v3496
    %v5169 = vpack.c.b16 %v3505, %v3501
    %v5170 = vpack.c.b16 %v3506, %v3502
    %v5171 = vpack.c.b16 %v3507, %v3503
    %v5172 = vpack.c.b16 %v3508, %v3504
    %v5173 = vpack.c.b16 %v3513, %v3509
    %v5174 = vpack.c.b16 %v3514, %v3510
    %v5175 = vpack.c.b16 %v3515, %v3511
    %v5176 = vpack.c.b16 %v3516, %v3512
    %v5177 = vpack.c.b16 %v3521, %v3517
    %v5178 = vpack.c.b16 %v3522, %v3518
    %v5179 = vpack.c.b16 %v3523, %v3519
    %v5180 = vpack.c.b16 %v3524, %v3520
    %v5181 = vpack.c.b16 %v3529, %v3525
    %v5182 = vpack.c.b16 %v3530, %v3526
    %v5183 = vpack.c.b16 %v3531, %v3527
    %v5184 = vpack.c.b16 %v3532, %v3528
    %v5185 = vpack.c.b16 %v3537, %v3533
    %v5186 = vpack.c.b16 %v3538, %v3534
    %v5187 = vpack.c.b16 %v3539, %v3535
    %v5188 = vpack.c.b16 %v3540, %v3536
    %v5189 = vpack.c.b16 %v3545, %v3541
    %v5190 = vpack.c.b16 %v3546, %v3542
    %v5191 = vpack.c.b16 %v3547, %v3543
    %v5192 = vpack.c.b16 %v3548, %v3544
    %v5193 = vpack.c.b16 %v3553, %v3549
    %v5194 = vpack.c.b16 %v3554, %v3550
    %v5195 = vpack.c.b16 %v3555, %v3551
    %v5196 = vpack.c.b16 %v3556, %v3552
    %v5197 = vpack.c.b16 %v3561, %v3557
    %v5198 = vpack.c.b16 %v3562, %v3558
    %v5199 = vpack.c.b16 %v3563, %v3559
    %v5200 = vpack.c.b16 %v3564, %v3560
    %v5201 = vpack.c.b16 %v3569, %v3565
    %v5202 = vpack.c.b16 %v3570, %v3566
    %v5203 = vpack.c.b16 %v3571, %v3567
    %v5204 = vpack.c.b16 %v3572, %v3568
    %v5205 = vpack.c.b16 %v3577, %v3573
    %v5206 = vpack.c.b16 %v3578, %v3574
    %v5207 = vpack.c.b16 %v3579, %v3575
    %v5208 = vpack.c.b16 %v3580, %v3576
    %v5209 = vpack.c.b16 %v3585, %v3581
    %v5210 = vpack.c.b16 %v3586, %v3582
    %v5211 = vpack.c.b16 %v3587, %v3583
    %v5212 = vpack.c.b16 %v3588, %v3584
    %v5213 = vpack.c.b16 %v3593, %v3589
    %v5214 = vpack.c.b16 %v3594, %v3590
    %v5215 = vpack.c.b16 %v3595, %v3591
    %v5216 = vpack.c.b16 %v3596, %v3592
    %v5217 = vpack.c.b16 %v3601, %v3597
    %v5218 = vpack.c.b16 %v3602, %v3598
    %v5219 = vpack.c.b16 %v3603, %v3599
    %v5220 = vpack.c.b16 %v3604, %v3600
    %v5221 = vpack.c.b16 %v3609, %v3605
    %v5222 = vpack.c.b16 %v3610, %v3606
    %v5223 = vpack.c.b16 %v3611, %v3607
    %v5224 = vpack.c.b16 %v3612, %v3608
    %v5225 = vpack.c.b16 %v3617, %v3613
    %v5226 = vpack.c.b16 %v3618, %v3614
    %v5227 = vpack.c.b16 %v3619, %v3615
    %v5228 = vpack.c.b16 %v3620, %v3616
    %v5229 = vpack.c.b16 %v3625, %v3621
    %v5230 = vpack.c.b16 %v3626, %v3622
    %v5231 = vpack.c.b16 %v3627, %v3623
    %v5232 = vpack.c.b16 %v3628, %v3624
    %v5233 = vpack.c.b16 %v3633, %v3629
    %v5234 = vpack.c.b16 %v3634, %v3630
    %v5235 = vpack.c.b16 %v3635, %v3631
    %v5236 = vpack.c.b16 %v3636, %v3632
    %v5237 = vpack.c.b16 %v3641, %v3637
    %v5238 = vpack.c.b16 %v3642, %v3638
    %v5239 = vpack.c.b16 %v3643, %v3639
    %v5240 = vpack.c.b16 %v3644, %v3640
    %v5241 = vpack.c.b16 %v3649, %v3645
    %v5242 = vpack.c.b16 %v3650, %v3646
    %v5243 = vpack.c.b16 %v3651, %v3647
    %v5244 = vpack.c.b16 %v3652, %v3648
    %v5245 = vpack.c.b16 %v3657, %v3653
    %v5246 = vpack.c.b16 %v3658, %v3654
    %v5247 = vpack.c.b16 %v3659, %v3655
    %v5248 = vpack.c.b16 %v3660, %v3656
    %v5249 = vpack.c.b16 %v3665, %v3661
    %v5250 = vpack.c.b16 %v3666, %v3662
    %v5251 = vpack.c.b16 %v3667, %v3663
    %v5252 = vpack.c.b16 %v3668, %v3664
    %v5253 = vpack.c.b16 %v3673, %v3669
    %v5254 = vpack.c.b16 %v3674, %v3670
    %v5255 = vpack.c.b16 %v3675, %v3671
    %v5256 = vpack.c.b16 %v3676, %v3672
    %v5257 = vpack.c.b16 %v3681, %v3677
    %v5258 = vpack.c.b16 %v3682, %v3678
    %v5259 = vpack.c.b16 %v3683, %v3679
    %v5260 = vpack.c.b16 %v3684, %v3680
    %v5261 = vpack.c.b16 %v3689, %v3685
    %v5262 = vpack.c.b16 %v3690, %v3686
    %v5263 = vpack.c.b16 %v3691, %v3687
    %v5264 = vpack.c.b16 %v3692, %v3688
    %v5265 = vpack.c.b16 %v3697, %v3693
    %v5266 = vpack.c.b16 %v3698, %v3694
    %v5267 = vpack.c.b16 %v3699, %v3695
    %v5268 = vpack.c.b16 %v3700, %v3696
    %v5269 = vpack.c.b16 %v3705, %v3701
    %v5270 = vpack.c.b16 %v3706, %v3702
    %v5271 = vpack.c.b16 %v3707, %v3703
    %v5272 = vpack.c.b16 %v3708, %v3704
    %v5273 = vpack.c.b16 %v3713, %v3709
    %v5274 = vpack.c.b16 %v3714, %v3710
    %v5275 = vpack.c.b16 %v3715, %v3711
    %v5276 = vpack.c.b16 %v3716, %v3712
    %v5277 = vpack.c.b16 %v3721, %v3717
    %v5278 = vpack.c.b16 %v3722, %v3718
    %v5279 = vpack.c.b16 %v3723, %v3719
    %v5280 = vpack.c.b16 %v3724, %v3720
    %v5281 = vpack.c.b16 %v3729, %v3725
    %v5282 = vpack.c.b16 %v3730, %v3726
    %v5283 = vpack.c.b16 %v3731, %v3727
    %v5284 = vpack.c.b16 %v3732, %v3728
    %v5285 = vpack.c.b16 %v3737, %v3733
    %v5286 = vpack.c.b16 %v3738, %v3734
    %v5287 = vpack.c.b16 %v3739, %v3735
    %v5288 = vpack.c.b16 %v3740, %v3736
    %v5289 = vpack.c.b16 %v3745, %v3741
    %v5290 = vpack.c.b16 %v3746, %v3742
    %v5291 = vpack.c.b16 %v3747, %v3743
    %v5292 = vpack.c.b16 %v3748, %v3744
    %v5293 = vpack.c.b16 %v3753, %v3749
    %v5294 = vpack.c.b16 %v3754, %v3750
    %v5295 = vpack.c.b16 %v3755, %v3751
    %v5296 = vpack.c.b16 %v3756, %v3752
    %v5297 = vpack.c.b16 %v3761, %v3757
    %v5298 = vpack.c.b16 %v3762, %v3758
    %v5299 = vpack.c.b16 %v3763, %v3759
    %v5300 = vpack.c.b16 %v3764, %v3760
    %v5301 = vpack.c.b16 %v3769, %v3765
    %v5302 = vpack.c.b16 %v3770, %v3766
    %v5303 = vpack.c.b16 %v3771, %v3767
    %v5304 = vpack.c.b16 %v3772, %v3768
    %v5305 = vpack.c.b16 %v3777, %v3773
    %v5306 = vpack.c.b16 %v3778, %v3774
    %v5307 = vpack.c.b16 %v3779, %v3775
    %v5308 = vpack.c.b16 %v3780, %v3776
    %v5309 = vpack.c.b16 %v3785, %v3781
    %v5310 = vpack.c.b16 %v3786, %v3782
    %v5311 = vpack.c.b16 %v3787, %v3783
    %v5312 = vpack.c.b16 %v3788, %v3784
    %v5313 = vpack.c.b16 %v3793, %v3789
    %v5314 = vpack.c.b16 %v3794, %v3790
    %v5315 = vpack.c.b16 %v3795, %v3791
    %v5316 = vpack.c.b16 %v3796, %v3792
    %v5317 = vpack.c.b16 %v3801, %v3797
    %v5318 = vpack.c.b16 %v3802, %v3798
    %v5319 = vpack.c.b16 %v3803, %v3799
    %v5320 = vpack.c.b16 %v3804, %v3800
    %v5321 = vpack.c.b16 %v3809, %v3805
    %v5322 = vpack.c.b16 %v3810, %v3806
    %v5323 = vpack.c.b16 %v3811, %v3807
    %v5324 = vpack.c.b16 %v3812, %v3808
    %v5325 = vpack.c.b16 %v3817, %v3813
    %v5326 = vpack.c.b16 %v3818, %v3814
    %v5327 = vpack.c.b16 %v3819, %v3815
    %v5328 = vpack.c.b16 %v3820, %v3816
    %v5329 = vpack.c.b16 %v3825, %v3821
    %v5330 = vpack.c.b16 %v3826, %v3822
    %v5331 = vpack.c.b16 %v3827, %v3823
    %v5332 = vpack.c.b16 %v3828, %v3824
    %v5333 = vpack.c.b16 %v3833, %v3829
    %v5334 = vpack.c.b16 %v3834, %v3830
    %v5335 = vpack.c.b16 %v3835, %v3831
    %v5336 = vpack.c.b16 %v3836, %v3832
    %v5337 = vpack.c.b16 %v3841, %v3837
    %v5338 = vpack.c.b16 %v3842, %v3838
    %v5339 = vpack.c.b16 %v3843, %v3839
    %v5340 = vpack.c.b16 %v3844, %v3840
    %v5341 = vpack.c.b16 %v3849, %v3845
    %v5342 = vpack.c.b16 %v3850, %v3846
    %v5343 = vpack.c.b16 %v3851, %v3847
    %v5344 = vpack.c.b16 %v3852, %v3848
    %v5345 = vpack.c.b16 %v3857, %v3853
    %v5346 = vpack.c.b16 %v3858, %v3854
    %v5347 = vpack.c.b16 %v3859, %v3855
    %v5348 = vpack.c.b16 %v3860, %v3856
    %v5349 = vpack.c.b16 %v3865, %v3861
    %v5350 = vpack.c.b16 %v3866, %v3862
    %v5351 = vpack.c.b16 %v3867, %v3863
    %v5352 = vpack.c.b16 %v3868, %v3864
    %v5353 = vpack.c.b16 %v3873, %v3869
    %v5354 = vpack.c.b16 %v3874, %v3870
    %v5355 = vpack.c.b16 %v3875, %v3871
    %v5356 = vpack.c.b16 %v3876, %v3872
    %v5357 = vpack.c.b16 %v3881, %v3877
    %v5358 = vpack.c.b16 %v3882, %v3878
    %v5359 = vpack.c.b16 %v3883, %v3879
    %v5360 = vpack.c.b16 %v3884, %v3880
    %v5361 = vpack.c.b16 %v3889, %v3885
    %v5362 = vpack.c.b16 %v3890, %v3886
    %v5363 = vpack.c.b16 %v3891, %v3887
    %v5364 = vpack.c.b16 %v3892, %v3888
    %v5365 = vpack.c.b16 %v3897, %v3893
    %v5366 = vpack.c.b16 %v3898, %v3894
    %v5367 = vpack.c.b16 %v3899, %v3895
    %v5368 = vpack.c.b16 %v3900, %v3896
    %v5369 = vpack.c.b16 %v3905, %v3901
    %v5370 = vpack.c.b16 %v3906, %v3902
    %v5371 = vpack.c.b16 %v3907, %v3903
    %v5372 = vpack.c.b16 %v3908, %v3904
    %v5373 = vpack.c.b16 %v3913, %v3909
    %v5374 = vpack.c.b16 %v3914, %v3910
    %v5375 = vpack.c.b16 %v3915, %v3911
    %v5376 = vpack.c.b16 %v3916, %v3912
    %v5377 = vpack.c.b16 %v3921, %v3917
    %v5378 = vpack.c.b16 %v3922, %v3918
    %v5379 = vpack.c.b16 %v3923, %v3919
    %v5380 = vpack.c.b16 %v3924, %v3920
    %v5381 = vpack.c.b16 %v3929, %v3925
    %v5382 = vpack.c.b16 %v3930, %v3926
    %v5383 = vpack.c.b16 %v3931, %v3927
    %v5384 = vpack.c.b16 %v3932, %v3928
    %v5385 = vpack.c.b16 %v3937, %v3933
    %v5386 = vpack.c.b16 %v3938, %v3934
    %v5387 = vpack.c.b16 %v3939, %v3935
    %v5388 = vpack.c.b16 %v3940, %v3936
    %v5389 = vpack.c.b16 %v3945, %v3941
    %v5390 = vpack.c.b16 %v3946, %v3942
    %v5391 = vpack.c.b16 %v3947, %v3943
    %v5392 = vpack.c.b16 %v3948, %v3944
    %v5393 = vpack.c.b16 %v3953, %v3949
    %v5394 = vpack.c.b16 %v3954, %v3950
    %v5395 = vpack.c.b16 %v3955, %v3951
    %v5396 = vpack.c.b16 %v3956, %v3952
    %v5397 = vpack.c.b16 %v3961, %v3957
    %v5398 = vpack.c.b16 %v3962, %v3958
    %v5399 = vpack.c.b16 %v3963, %v3959
    %v5400 = vpack.c.b16 %v3964, %v3960
    %v5401 = vpack.c.b16 %v3969, %v3965
    %v5402 = vpack.c.b16 %v3970, %v3966
    %v5403 = vpack.c.b16 %v3971, %v3967
    %v5404 = vpack.c.b16 %v3972, %v3968
    %v5405 = vpack.c.b16 %v3977, %v3973
    %v5406 = vpack.c.b16 %v3978, %v3974
    %v5407 = vpack.c.b16 %v3979, %v3975
    %v5408 = vpack.c.b16 %v3980, %v3976
    %v5409 = vpack.c.b16 %v3985, %v3981
    %v5410 = vpack.c.b16 %v3986, %v3982
    %v5411 = vpack.c.b16 %v3987, %v3983
    %v5412 = vpack.c.b16 %v3988, %v3984
    %v5413 = vpack.c.b16 %v3993, %v3989
    %v5414 = vpack.c.b16 %v3994, %v3990
    %v5415 = vpack.c.b16 %v3995, %v3991
    %v5416 = vpack.c.b16 %v3996, %v3992
    %v5417 = vpack.c.b16 %v4001, %v3997
    %v5418 = vpack.c.b16 %v4002, %v3998
    %v5419 = vpack.c.b16 %v4003, %v3999
    %v5420 = vpack.c.b16 %v4004, %v4000
    %v5421 = vpack.c.b16 %v4009, %v4005
    %v5422 = vpack.c.b16 %v4010, %v4006
    %v5423 = vpack.c.b16 %v4011, %v4007
    %v5424 = vpack.c.b16 %v4012, %v4008
    %v5425 = vpack.c.b16 %v4017, %v4013
    %v5426 = vpack.c.b16 %v4018, %v4014
    %v5427 = vpack.c.b16 %v4019, %v4015
    %v5428 = vpack.c.b16 %v4020, %v4016
    %v5429 = vpack.c.b16 %v4025, %v4021
    %v5430 = vpack.c.b16 %v4026, %v4022
    %v5431 = vpack.c.b16 %v4027, %v4023
    %v5432 = vpack.c.b16 %v4028, %v4024
    %v5433 = vpack.c.b16 %v4033, %v4029
    %v5434 = vpack.c.b16 %v4034, %v4030
    %v5435 = vpack.c.b16 %v4035, %v4031
    %v5436 = vpack.c.b16 %v4036, %v4032
    %v5437 = vpack.c.b16 %v4041, %v4037
    %v5438 = vpack.c.b16 %v4042, %v4038
    %v5439 = vpack.c.b16 %v4043, %v4039
    %v5440 = vpack.c.b16 %v4044, %v4040
    %v5441 = vpack.c.b16 %v4049, %v4045
    %v5442 = vpack.c.b16 %v4050, %v4046
    %v5443 = vpack.c.b16 %v4051, %v4047
    %v5444 = vpack.c.b16 %v4052, %v4048
    %v5445 = vpack.c.b16 %v4057, %v4053
    %v5446 = vpack.c.b16 %v4058, %v4054
    %v5447 = vpack.c.b16 %v4059, %v4055
    %v5448 = vpack.c.b16 %v4060, %v4056
    %v5449 = vpack.c.b16 %v4065, %v4061
    %v5450 = vpack.c.b16 %v4066, %v4062
    %v5451 = vpack.c.b16 %v4067, %v4063
    %v5452 = vpack.c.b16 %v4068, %v4064
    %v5453 = vpack.c.b16 %v4073, %v4069
    %v5454 = vpack.c.b16 %v4074, %v4070
    %v5455 = vpack.c.b16 %v4075, %v4071
    %v5456 = vpack.c.b16 %v4076, %v4072
    %v5457 = vpack.c.b16 %v4081, %v4077
    %v5458 = vpack.c.b16 %v4082, %v4078
    %v5459 = vpack.c.b16 %v4083, %v4079
    %v5460 = vpack.c.b16 %v4084, %v4080
    %v5461 = vpack.c.b16 %v4089, %v4085
    %v5462 = vpack.c.b16 %v4090, %v4086
    %v5463 = vpack.c.b16 %v4091, %v4087
    %v5464 = vpack.c.b16 %v4092, %v4088
    %v5465 = vpack.c.b16 %v4097, %v4093
    %v5466 = vpack.c.b16 %v4098, %v4094
    %v5467 = vpack.c.b16 %v4099, %v4095
    %v5468 = vpack.c.b16 %v4100, %v4096
    %v5469 = vpack.c.b16 %v4105, %v4101
    %v5470 = vpack.c.b16 %v4106, %v4102
    %v5471 = vpack.c.b16 %v4107, %v4103
    %v5472 = vpack.c.b16 %v4108, %v4104
    %v5473 = vpack.c.b16 %v4113, %v4109
    %v5474 = vpack.c.b16 %v4114, %v4110
    %v5475 = vpack.c.b16 %v4115, %v4111
    %v5476 = vpack.c.b16 %v4116, %v4112
    %v5477 = vpack.c.b16 %v4121, %v4117
    %v5478 = vpack.c.b16 %v4122, %v4118
    %v5479 = vpack.c.b16 %v4123, %v4119
    %v5480 = vpack.c.b16 %v4124, %v4120
    %v5481 = vpack.c.b16 %v4129, %v4125
    %v5482 = vpack.c.b16 %v4130, %v4126
    %v5483 = vpack.c.b16 %v4131, %v4127
    %v5484 = vpack.c.b16 %v4132, %v4128
    %v5485 = vpack.c.b16 %v4137, %v4133
    %v5486 = vpack.c.b16 %v4138, %v4134
    %v5487 = vpack.c.b16 %v4139, %v4135
    %v5488 = vpack.c.b16 %v4140, %v4136
    %v5489 = vpack.c.b16 %v4145, %v4141
    %v5490 = vpack.c.b16 %v4146, %v4142
    %v5491 = vpack.c.b16 %v4147, %v4143
    %v5492 = vpack.c.b16 %v4148, %v4144
    %v5493 = vpack.c.b16 %v4153, %v4149
    %v5494 = vpack.c.b16 %v4154, %v4150
    %v5495 = vpack.c.b16 %v4155, %v4151
    %v5496 = vpack.c.b16 %v4156, %v4152
    %v5497 = vpack.c.b16 %v4161, %v4157
    %v5498 = vpack.c.b16 %v4162, %v4158
    %v5499 = vpack.c.b16 %v4163, %v4159
    %v5500 = vpack.c.b16 %v4164, %v4160
    %v5501 = vpack.c.b16 %v4169, %v4165
    %v5502 = vpack.c.b16 %v4170, %v4166
    %v5503 = vpack.c.b16 %v4171, %v4167
    %v5504 = vpack.c.b16 %v4172, %v4168
    %v5505 = vpack.c.b16 %v4177, %v4173
    %v5506 = vpack.c.b16 %v4178, %v4174
    %v5507 = vpack.c.b16 %v4179, %v4175
    %v5508 = vpack.c.b16 %v4180, %v4176
    %v5509 = vpack.c.b16 %v4185, %v4181
    %v5510 = vpack.c.b16 %v4186, %v4182
    %v5511 = vpack.c.b16 %v4187, %v4183
    %v5512 = vpack.c.b16 %v4188, %v4184
    %v5513 = vpack.c.b16 %v4193, %v4189
    %v5514 = vpack.c.b16 %v4194, %v4190
    %v5515 = vpack.c.b16 %v4195, %v4191
    %v5516 = vpack.c.b16 %v4196, %v4192
    %v5517 = vpack.c.b16 %v4201, %v4197
    %v5518 = vpack.c.b16 %v4202, %v4198
    %v5519 = vpack.c.b16 %v4203, %v4199
    %v5520 = vpack.c.b16 %v4204, %v4200
    %v5521 = vpack.c.b16 %v4209, %v4205
    %v5522 = vpack.c.b16 %v4210, %v4206
    %v5523 = vpack.c.b16 %v4211, %v4207
    %v5524 = vpack.c.b16 %v4212, %v4208
    %v5525 = vpack.c.b16 %v4217, %v4213
    %v5526 = vpack.c.b16 %v4218, %v4214
    %v5527 = vpack.c.b16 %v4219, %v4215
    %v5528 = vpack.c.b16 %v4220, %v4216
    %v5529 = vpack.c.b16 %v4225, %v4221
    %v5530 = vpack.c.b16 %v4226, %v4222
    %v5531 = vpack.c.b16 %v4227, %v4223
    %v5532 = vpack.c.b16 %v4228, %v4224
    %v5533 = vpack.c.b16 %v4233, %v4229
    %v5534 = vpack.c.b16 %v4234, %v4230
    %v5535 = vpack.c.b16 %v4235, %v4231
    %v5536 = vpack.c.b16 %v4236, %v4232
    %v5537 = vpack.c.b16 %v4241, %v4237
    %v5538 = vpack.c.b16 %v4242, %v4238
    %v5539 = vpack.c.b16 %v4243, %v4239
    %v5540 = vpack.c.b16 %v4244, %v4240
    %v5541 = vpack.c.b16 %v4249, %v4245
    %v5542 = vpack.c.b16 %v4250, %v4246
    %v5543 = vpack.c.b16 %v4251, %v4247
    %v5544 = vpack.c.b16 %v4252, %v4248
    %v5545 = vpack.c.b16 %v4257, %v4253
    %v5546 = vpack.c.b16 %v4258, %v4254
    %v5547 = vpack.c.b16 %v4259, %v4255
    %v5548 = vpack.c.b16 %v4260, %v4256
    %v5549 = vpack.c.b16 %v4265, %v4261
    %v5550 = vpack.c.b16 %v4266, %v4262
    %v5551 = vpack.c.b16 %v4267, %v4263
    %v5552 = vpack.c.b16 %v4268, %v4264
    %v5553 = vpack.c.b16 %v4273, %v4269
    %v5554 = vpack.c.b16 %v4274, %v4270
    %v5555 = vpack.c.b16 %v4275, %v4271
    %v5556 = vpack.c.b16 %v4276, %v4272
    %v5557 = vpack.c.b16 %v4281, %v4277
    %v5558 = vpack.c.b16 %v4282, %v4278
    %v5559 = vpack.c.b16 %v4283, %v4279
    %v5560 = vpack.c.b16 %v4284, %v4280
    %v5561 = vpack.c.b16 %v4289, %v4285
    %v5562 = vpack.c.b16 %v4290, %v4286
    %v5563 = vpack.c.b16 %v4291, %v4287
    %v5564 = vpack.c.b16 %v4292, %v4288
    %v5565 = vpack.c.b16 %v4297, %v4293
    %v5566 = vpack.c.b16 %v4298, %v4294
    %v5567 = vpack.c.b16 %v4299, %v4295
    %v5568 = vpack.c.b16 %v4300, %v4296
    %v5569 = vpack.c.b16 %v4305, %v4301
    %v5570 = vpack.c.b16 %v4306, %v4302
    %v5571 = vpack.c.b16 %v4307, %v4303
    %v5572 = vpack.c.b16 %v4308, %v4304
    %v5573 = vpack.c.b16 %v4313, %v4309
    %v5574 = vpack.c.b16 %v4314, %v4310
    %v5575 = vpack.c.b16 %v4315, %v4311
    %v5576 = vpack.c.b16 %v4316, %v4312
    %v5577 = vpack.c.b16 %v4321, %v4317
    %v5578 = vpack.c.b16 %v4322, %v4318
    %v5579 = vpack.c.b16 %v4323, %v4319
    %v5580 = vpack.c.b16 %v4324, %v4320
    %v5581 = vpack.c.b16 %v4329, %v4325
    %v5582 = vpack.c.b16 %v4330, %v4326
    %v5583 = vpack.c.b16 %v4331, %v4327
    %v5584 = vpack.c.b16 %v4332, %v4328
    %v5585 = vpack.c.b16 %v4337, %v4333
    %v5586 = vpack.c.b16 %v4338, %v4334
    %v5587 = vpack.c.b16 %v4339, %v4335
    %v5588 = vpack.c.b16 %v4340, %v4336
    %v5589 = vpack.c.b16 %v4345, %v4341
    %v5590 = vpack.c.b16 %v4346, %v4342
    %v5591 = vpack.c.b16 %v4347, %v4343
    %v5592 = vpack.c.b16 %v4348, %v4344
    %v5593 = vpack.c.b16 %v4353, %v4349
    %v5594 = vpack.c.b16 %v4354, %v4350
    %v5595 = vpack.c.b16 %v4355, %v4351
    %v5596 = vpack.c.b16 %v4356, %v4352
    %v5597 = vpack.c.b16 %v4361, %v4357
    %v5598 = vpack.c.b16 %v4362, %v4358
    %v5599 = vpack.c.b16 %v4363, %v4359
    %v5600 = vpack.c.b16 %v4364, %v4360
    %v5601 = vpack.c.b16 %v4369, %v4365
    %v5602 = vpack.c.b16 %v4370, %v4366
    %v5603 = vpack.c.b16 %v4371, %v4367
    %v5604 = vpack.c.b16 %v4372, %v4368
    %v5605 = vpack.c.b16 %v4377, %v4373
    %v5606 = vpack.c.b16 %v4378, %v4374
    %v5607 = vpack.c.b16 %v4379, %v4375
    %v5608 = vpack.c.b16 %v4380, %v4376
    %v5609 = vpack.c.b16 %v4385, %v4381
    %v5610 = vpack.c.b16 %v4386, %v4382
    %v5611 = vpack.c.b16 %v4387, %v4383
    %v5612 = vpack.c.b16 %v4388, %v4384
    %v5613 = vpack.c.b16 %v4393, %v4389
    %v5614 = vpack.c.b16 %v4394, %v4390
    %v5615 = vpack.c.b16 %v4395, %v4391
    %v5616 = vpack.c.b16 %v4396, %v4392
    %v5617 = vpack.c.b16 %v4401, %v4397
    %v5618 = vpack.c.b16 %v4402, %v4398
    %v5619 = vpack.c.b16 %v4403, %v4399
    %v5620 = vpack.c.b16 %v4404, %v4400
    %v5621 = vpack.c.b16 %v4409, %v4405
    %v5622 = vpack.c.b16 %v4410, %v4406
    %v5623 = vpack.c.b16 %v4411, %v4407
    %v5624 = vpack.c.b16 %v4412, %v4408
    %v5625 = vpack.c.b16 %v4417, %v4413
    %v5626 = vpack.c.b16 %v4418, %v4414
    %v5627 = vpack.c.b16 %v4419, %v4415
    %v5628 = vpack.c.b16 %v4420, %v4416
    %v5629 = vpack.c.b16 %v4425, %v4421
    %v5630 = vpack.c.b16 %v4426, %v4422
    %v5631 = vpack.c.b16 %v4427, %v4423
    %v5632 = vpack.c.b16 %v4428, %v4424
    %v5633 = vpack.c.b16 %v4433, %v4429
    %v5634 = vpack.c.b16 %v4434, %v4430
    %v5635 = vpack.c.b16 %v4435, %v4431
    %v5636 = vpack.c.b16 %v4436, %v4432
    %v5637 = vpack.c.b16 %v4441, %v4437
    %v5638 = vpack.c.b16 %v4442, %v4438
    %v5639 = vpack.c.b16 %v4443, %v4439
    %v5640 = vpack.c.b16 %v4444, %v4440
    %v5641 = vpack.c.b16 %v4449, %v4445
    %v5642 = vpack.c.b16 %v4450, %v4446
    %v5643 = vpack.c.b16 %v4451, %v4447
    %v5644 = vpack.c.b16 %v4452, %v4448
    %v5645 = vpack.c.b16 %v4457, %v4453
    %v5646 = vpack.c.b16 %v4458, %v4454
    %v5647 = vpack.c.b16 %v4459, %v4455
    %v5648 = vpack.c.b16 %v4460, %v4456
    %v5649 = vpack.c.b16 %v4465, %v4461
    %v5650 = vpack.c.b16 %v4466, %v4462
    %v5651 = vpack.c.b16 %v4467, %v4463
    %v5652 = vpack.c.b16 %v4468, %v4464
    %v5653 = vpack.c.b16 %v4473, %v4469
    %v5654 = vpack.c.b16 %v4474, %v4470
    %v5655 = vpack.c.b16 %v4475, %v4471
    %v5656 = vpack.c.b16 %v4476, %v4472
    %v5657 = vpack.c.b16 %v4481, %v4477
    %v5658 = vpack.c.b16 %v4482, %v4478
    %v5659 = vpack.c.b16 %v4483, %v4479
    %v5660 = vpack.c.b16 %v4484, %v4480
    %v5661 = vpack.c.b16 %v4489, %v4485
    %v5662 = vpack.c.b16 %v4490, %v4486
    %v5663 = vpack.c.b16 %v4491, %v4487
    %v5664 = vpack.c.b16 %v4492, %v4488
    %v5665 = vpack.c.b16 %v4497, %v4493
    %v5666 = vpack.c.b16 %v4498, %v4494
    %v5667 = vpack.c.b16 %v4499, %v4495
    %v5668 = vpack.c.b16 %v4500, %v4496
    %v5669 = vpack.c.b16 %v4505, %v4501
    %v5670 = vpack.c.b16 %v4506, %v4502
    %v5671 = vpack.c.b16 %v4507, %v4503
    %v5672 = vpack.c.b16 %v4508, %v4504
    %v5673 = vpack.c.b16 %v4513, %v4509
    %v5674 = vpack.c.b16 %v4514, %v4510
    %v5675 = vpack.c.b16 %v4515, %v4511
    %v5676 = vpack.c.b16 %v4516, %v4512
    %v5677 = vpack.c.b16 %v4521, %v4517
    %v5678 = vpack.c.b16 %v4522, %v4518
    %v5679 = vpack.c.b16 %v4523, %v4519
    %v5680 = vpack.c.b16 %v4524, %v4520
    %v5681 = vpack.c.b16 %v4529, %v4525
    %v5682 = vpack.c.b16 %v4530, %v4526
    %v5683 = vpack.c.b16 %v4531, %v4527
    %v5684 = vpack.c.b16 %v4532, %v4528
    %v5685 = vpack.c.b16 %v4537, %v4533
    %v5686 = vpack.c.b16 %v4538, %v4534
    %v5687 = vpack.c.b16 %v4539, %v4535
    %v5688 = vpack.c.b16 %v4540, %v4536
    %v5689 = vpack.c.b16 %v4545, %v4541
    %v5690 = vpack.c.b16 %v4546, %v4542
    %v5691 = vpack.c.b16 %v4547, %v4543
    %v5692 = vpack.c.b16 %v4548, %v4544
    %v5693 = vpack.c.b16 %v4553, %v4549
    %v5694 = vpack.c.b16 %v4554, %v4550
    %v5695 = vpack.c.b16 %v4555, %v4551
    %v5696 = vpack.c.b16 %v4556, %v4552
    %v5697 = vpack.c.b16 %v4561, %v4557
    %v5698 = vpack.c.b16 %v4562, %v4558
    %v5699 = vpack.c.b16 %v4563, %v4559
    %v5700 = vpack.c.b16 %v4564, %v4560
    %v5701 = vpack.c.b16 %v4569, %v4565
    %v5702 = vpack.c.b16 %v4570, %v4566
    %v5703 = vpack.c.b16 %v4571, %v4567
    %v5704 = vpack.c.b16 %v4572, %v4568
    %v5705 = vpack.c.b16 %v4577, %v4573
    %v5706 = vpack.c.b16 %v4578, %v4574
    %v5707 = vpack.c.b16 %v4579, %v4575
    %v5708 = vpack.c.b16 %v4580, %v4576
    %v5709 = vpack.c.b16 %v4585, %v4581
    %v5710 = vpack.c.b16 %v4586, %v4582
    %v5711 = vpack.c.b16 %v4587, %v4583
    %v5712 = vpack.c.b16 %v4588, %v4584
    %v5713 = vpack.c.b16 %v4593, %v4589
    %v5714 = vpack.c.b16 %v4594, %v4590
    %v5715 = vpack.c.b16 %v4595, %v4591
    %v5716 = vpack.c.b16 %v4596, %v4592
    %v5717 = vpack.c.b16 %v4601, %v4597
    %v5718 = vpack.c.b16 %v4602, %v4598
    %v5719 = vpack.c.b16 %v4603, %v4599
    %v5720 = vpack.c.b16 %v4604, %v4600
    %v5721 = vpack.c.b16 %v4609, %v4605
    %v5722 = vpack.c.b16 %v4610, %v4606
    %v5723 = vpack.c.b16 %v4611, %v4607
    %v5724 = vpack.c.b16 %v4612, %v4608
    %v5725 = vpack.c.b16 %v4617, %v4613
    %v5726 = vpack.c.b16 %v4618, %v4614
    %v5727 = vpack.c.b16 %v4619, %v4615
    %v5728 = vpack.c.b16 %v4620, %v4616
    %v5729 = vpack.c.b16 %v4625, %v4621
    %v5730 = vpack.c.b16 %v4626, %v4622
    %v5731 = vpack.c.b16 %v4627, %v4623
    %v5732 = vpack.c.b16 %v4628, %v4624
    %vm6833 = vcmask 474112
    %v6835 = vsel %vm6833, %v190, 0
    %vm6837 = vcmask 1044480
    %v6839 = vsel %vm6837, %v5729, 0
    %v6842 = vsel %vm6837, %v5730, 0
    %v6845 = vsel %vm6837, %v5731, 0
    %v6848 = vsel %vm6837, %v5732, 0
    %6850 = vmatprep.subr.bf16.mxu0 %v4630
    %6851 = vmatpush1.bf16.msra.mxu0 %v4629
    %6852 = vmatprep.subr.bf16.mxu0 %v4634
    %6853 = vmatpush1.bf16.msra.mxu0 %v4633
    %6854 = vmatprep.subr.bf16.mxu0 %v4638
    %6855 = vmatpush1.bf16.msra.mxu0 %v4637
    %6856 = vmatprep.subr.bf16.mxu0 %v4642
    %6857 = vmatpush1.bf16.msra.mxu0 %v4641
    %6858 = vmatprep.subr.bf16.mxu0 %v4646
    %6859 = vmatpush1.bf16.msra.mxu0 %v4645
    %6860 = vmatprep.subr.bf16.mxu0 %v4650
    %6861 = vmatpush1.bf16.msra.mxu0 %v4649
    %6862 = vmatprep.subr.bf16.mxu0 %v4654
    %6863 = vmatpush1.bf16.msra.mxu0 %v4653
    %6864 = vmatprep.subr.bf16.mxu0 %v4658
    %6865 = vmatpush1.bf16.msra.mxu0 %v4657
    %6866 = vmatprep.subr.bf16.mxu0 %v4662
    %6867 = vmatpush1.bf16.msra.mxu0 %v4661
    %6868 = vmatprep.subr.bf16.mxu0 %v4666
    %6869 = vmatpush1.bf16.msra.mxu0 %v4665
    %6870 = vmatprep.subr.bf16.mxu0 %v4670
    %6871 = vmatpush1.bf16.msra.mxu0 %v4669
    %6872 = vmatprep.subr.bf16.mxu0 %v4674
    %6873 = vmatpush1.bf16.msra.mxu0 %v4673
    %6874 = vmatprep.subr.bf16.mxu0 %v4678
    %6875 = vmatpush1.bf16.msra.mxu0 %v4677
    %6876 = vmatprep.subr.bf16.mxu0 %v4682
    %6877 = vmatpush1.bf16.msra.mxu0 %v4681
    %6878 = vmatprep.subr.bf16.mxu0 %v4686
    %6879 = vmatpush1.bf16.msra.mxu0 %v4685
    %6880 = vmatprep.subr.bf16.mxu0 %v4690
    %6881 = vmatpush1.bf16.msra.mxu0 %v4689
    %6882 = vmatprep.mubr.bf16.mxu0 %v157
    %6883 = vmatmul.mubr.bf16.gmra.mrb[0].mxu0 %v156
    %v6884 = vpop.f32.mrb[0].mxu0
    %v6885 = vadd.f32 %v1300, %v6884
    %v6886 = vpop.f32.mrb[0].mxu0
    %v6887 = vadd.f32 %v1304, %v6886
    %v6888 = vpop.f32.mrb[0].mxu0
    %v6889 = vadd.f32 %v1300, %v6888
    %v6890 = vpop.f32.mrb[0].mxu0
    %v6891 = vadd.f32 %v1304, %v6890
    %6892 = vdwg.mxu0
    %6893 = vmatprep.subr.bf16.mxu0 %v4694
    %6894 = vmatpush1.bf16.msra.mxu0 %v4693
    %6895 = vmatprep.subr.bf16.mxu0 %v4698
    %6896 = vmatpush1.bf16.msra.mxu0 %v4697
    %6897 = vmatprep.subr.bf16.mxu0 %v4702
    %6898 = vmatpush1.bf16.msra.mxu0 %v4701
    %6899 = vmatprep.subr.bf16.mxu0 %v4706
    %6900 = vmatpush1.bf16.msra.mxu0 %v4705
    %6901 = vmatprep.subr.bf16.mxu0 %v4710
    %6902 = vmatpush1.bf16.msra.mxu0 %v4709
    %6903 = vmatprep.subr.bf16.mxu0 %v4714
    %6904 = vmatpush1.bf16.msra.mxu0 %v4713
    %6905 = vmatprep.subr.bf16.mxu0 %v4718
    %6906 = vmatpush1.bf16.msra.mxu0 %v4717
    %6907 = vmatprep.subr.bf16.mxu0 %v4722
    %6908 = vmatpush1.bf16.msra.mxu0 %v4721
    %6909 = vmatprep.subr.bf16.mxu0 %v4726
    %6910 = vmatpush1.bf16.msra.mxu0 %v4725
    %6911 = vmatprep.subr.bf16.mxu0 %v4730
    %6912 = vmatpush1.bf16.msra.mxu0 %v4729
    %6913 = vmatprep.subr.bf16.mxu0 %v4734
    %6914 = vmatpush1.bf16.msra.mxu0 %v4733
    %6915 = vmatprep.subr.bf16.mxu0 %v4738
    %6916 = vmatpush1.bf16.msra.mxu0 %v4737
    %6917 = vmatprep.subr.bf16.mxu0 %v4742
    %6918 = vmatpush1.bf16.msra.mxu0 %v4741
    %6919 = vmatprep.subr.bf16.mxu0 %v4746
    %6920 = vmatpush1.bf16.msra.mxu0 %v4745
    %6921 = vmatprep.subr.bf16.mxu0 %v4750
    %6922 = vmatpush1.bf16.msra.mxu0 %v4749
    %6923 = vmatprep.subr.bf16.mxu0 %v4754
    %6924 = vmatpush1.bf16.msra.mxu0 %v4753
    %6925 = vmatprep.mubr.bf16.mxu0 %v159
    %6926 = vmatmul.mubr.bf16.gmra.mrb[0].mxu0 %v158
    %v6927 = vpop.f32.mrb[0].mxu0
    %v6928 = vadd.f32 %v6885, %v6927
    %v6929 = vpop.f32.mrb[0].mxu0
    %v6930 = vadd.f32 %v6887, %v6929
    %v6931 = vpop.f32.mrb[0].mxu0
    %v6932 = vadd.f32 %v6889, %v6931
    %v6933 = vpop.f32.mrb[0].mxu0
    %v6934 = vadd.f32 %v6891, %v6933
    %6935 = vdwg.mxu0
    %6936 = vmatprep.subr.bf16.mxu0 %v4758
    %6937 = vmatpush1.bf16.msra.mxu0 %v4757
    %6938 = vmatprep.subr.bf16.mxu0 %v4762
    %6939 = vmatpush1.bf16.msra.mxu0 %v4761
    %6940 = vmatprep.subr.bf16.mxu0 %v4766
    %6941 = vmatpush1.bf16.msra.mxu0 %v4765
    %6942 = vmatprep.subr.bf16.mxu0 %v4770
    %6943 = vmatpush1.bf16.msra.mxu0 %v4769
    %6944 = vmatprep.subr.bf16.mxu0 %v4774
    %6945 = vmatpush1.bf16.msra.mxu0 %v4773
    %6946 = vmatprep.subr.bf16.mxu0 %v4778
    %6947 = vmatpush1.bf16.msra.mxu0 %v4777
    %6948 = vmatprep.subr.bf16.mxu0 %v4782
    %6949 = vmatpush1.bf16.msra.mxu0 %v4781
    %6950 = vmatprep.subr.bf16.mxu0 %v4786
    %6951 = vmatpush1.bf16.msra.mxu0 %v4785
    %6952 = vmatprep.subr.bf16.mxu0 %v4790
    %6953 = vmatpush1.bf16.msra.mxu0 %v4789
    %6954 = vmatprep.subr.bf16.mxu0 %v4794
    %6955 = vmatpush1.bf16.msra.mxu0 %v4793
    %6956 = vmatprep.subr.bf16.mxu0 %v4798
    %6957 = vmatpush1.bf16.msra.mxu0 %v4797
    %6958 = vmatprep.subr.bf16.mxu0 %v4802
    %6959 = vmatpush1.bf16.msra.mxu0 %v4801
    %6960 = vmatprep.subr.bf16.mxu0 %v4806
    %6961 = vmatpush1.bf16.msra.mxu0 %v4805
    %6962 = vmatprep.subr.bf16.mxu0 %v4810
    %6963 = vmatpush1.bf16.msra.mxu0 %v4809
    %6964 = vmatprep.subr.bf16.mxu0 %v4814
    %6965 = vmatpush1.bf16.msra.mxu0 %v4813
    %6966 = vmatprep.subr.bf16.mxu0 %v4818
    %6967 = vmatpush1.bf16.msra.mxu0 %v4817
    %6968 = vmatprep.mubr.bf16.mxu0 %v161
    %6969 = vmatmul.mubr.bf16.gmra.mrb[0].mxu0 %v160
    %v6970 = vpop.f32.mrb[0].mxu0
    %v6971 = vadd.f32 %v6928, %v6970
    %v6972 = vpop.f32.mrb[0].mxu0
    %v6973 = vadd.f32 %v6930, %v6972
    %v6974 = vpop.f32.mrb[0].mxu0
    %v6975 = vadd.f32 %v6932, %v6974
    %v6976 = vpop.f32.mrb[0].mxu0
    %v6977 = vadd.f32 %v6934, %v6976
    %6978 = vdwg.mxu0
    %6979 = vmatprep.subr.bf16.mxu0 %v4822
    %6980 = vmatpush1.bf16.msra.mxu0 %v4821
    %6981 = vmatprep.subr.bf16.mxu0 %v4826
    %6982 = vmatpush1.bf16.msra.mxu0 %v4825
    %6983 = vmatprep.subr.bf16.mxu0 %v4830
    %6984 = vmatpush1.bf16.msra.mxu0 %v4829
    %6985 = vmatprep.subr.bf16.mxu0 %v4834
    %6986 = vmatpush1.bf16.msra.mxu0 %v4833
    %6987 = vmatprep.subr.bf16.mxu0 %v4838
    %6988 = vmatpush1.bf16.msra.mxu0 %v4837
    %6989 = vmatprep.subr.bf16.mxu0 %v4842
    %6990 = vmatpush1.bf16.msra.mxu0 %v4841
    %6991 = vmatprep.subr.bf16.mxu0 %v4846
    %6992 = vmatpush1.bf16.msra.mxu0 %v4845
    %6993 = vmatprep.subr.bf16.mxu0 %v4850
    %6994 = vmatpush1.bf16.msra.mxu0 %v4849
    %6995 = vmatprep.subr.bf16.mxu0 %v4854
    %6996 = vmatpush1.bf16.msra.mxu0 %v4853
    %6997 = vmatprep.subr.bf16.mxu0 %v4858
    %6998 = vmatpush1.bf16.msra.mxu0 %v4857
    %6999 = vmatprep.subr.bf16.mxu0 %v4862
    %7000 = vmatpush1.bf16.msra.mxu0 %v4861
    %7001 = vmatprep.subr.bf16.mxu0 %v4866
    %7002 = vmatpush1.bf16.msra.mxu0 %v4865
    %7003 = vmatprep.subr.bf16.mxu0 %v4870
    %7004 = vmatpush1.bf16.msra.mxu0 %v4869
    %7005 = vmatprep.subr.bf16.mxu0 %v4874
    %7006 = vmatpush1.bf16.msra.mxu0 %v4873
    %7007 = vmatprep.subr.bf16.mxu0 %v4878
    %7008 = vmatpush1.bf16.msra.mxu0 %v4877
    %7009 = vmatprep.subr.bf16.mxu0 %v4882
    %7010 = vmatpush1.bf16.msra.mxu0 %v4881
    %7011 = vmatprep.mubr.bf16.mxu0 %v163
    %7012 = vmatmul.mubr.bf16.gmra.mrb[0].mxu0 %v162
    %v7013 = vpop.f32.mrb[0].mxu0
    %v7014 = vadd.f32 %v6971, %v7013
    %v7015 = vpop.f32.mrb[0].mxu0
    %v7016 = vadd.f32 %v6973, %v7015
    %v7017 = vpop.f32.mrb[0].mxu0
    %v7018 = vadd.f32 %v6975, %v7017
    %v7019 = vpop.f32.mrb[0].mxu0
    %v7020 = vadd.f32 %v6977, %v7019
    %7021 = vdwg.mxu0
    %7022 = vmatprep.subr.bf16.mxu0 %v4886
    %7023 = vmatpush1.bf16.msra.mxu0 %v4885
    %7024 = vmatprep.subr.bf16.mxu0 %v4890
    %7025 = vmatpush1.bf16.msra.mxu0 %v4889
    %7026 = vmatprep.subr.bf16.mxu0 %v4894
    %7027 = vmatpush1.bf16.msra.mxu0 %v4893
    %7028 = vmatprep.subr.bf16.mxu0 %v4898
    %7029 = vmatpush1.bf16.msra.mxu0 %v4897
    %7030 = vmatprep.subr.bf16.mxu0 %v4902
    %7031 = vmatpush1.bf16.msra.mxu0 %v4901
    %7032 = vmatprep.subr.bf16.mxu0 %v4906
    %7033 = vmatpush1.bf16.msra.mxu0 %v4905
    %7034 = vmatprep.subr.bf16.mxu0 %v4910
    %7035 = vmatpush1.bf16.msra.mxu0 %v4909
    %7036 = vmatprep.subr.bf16.mxu0 %v4914
    %7037 = vmatpush1.bf16.msra.mxu0 %v4913
    %7038 = vmatprep.subr.bf16.mxu0 %v4918
    %7039 = vmatpush1.bf16.msra.mxu0 %v4917
    %7040 = vmatprep.subr.bf16.mxu0 %v4922
    %7041 = vmatpush1.bf16.msra.mxu0 %v4921
    %7042 = vmatprep.subr.bf16.mxu0 %v4926
    %7043 = vmatpush1.bf16.msra.mxu0 %v4925
    %7044 = vmatprep.subr.bf16.mxu0 %v4930
    %7045 = vmatpush1.bf16.msra.mxu0 %v4929
    %7046 = vmatprep.subr.bf16.mxu0 %v4934
    %7047 = vmatpush1.bf16.msra.mxu0 %v4933
    %7048 = vmatprep.subr.bf16.mxu0 %v4938
    %7049 = vmatpush1.bf16.msra.mxu0 %v4937
    %7050 = vmatprep.subr.bf16.mxu0 %v4942
    %7051 = vmatpush1.bf16.msra.mxu0 %v4941
    %7052 = vmatprep.subr.bf16.mxu0 %v4946
    %7053 = vmatpush1.bf16.msra.mxu0 %v4945
    %7054 = vmatprep.mubr.bf16.mxu0 %v165
    %7055 = vmatmul.mubr.bf16.gmra.mrb[0].mxu0 %v164
    %v7056 = vpop.f32.mrb[0].mxu0
    %v7057 = vadd.f32 %v7014, %v7056
    %v7058 = vpop.f32.mrb[0].mxu0
    %v7059 = vadd.f32 %v7016, %v7058
    %v7060 = vpop.f32.mrb[0].mxu0
    %v7061 = vadd.f32 %v7018, %v7060
    %v7062 = vpop.f32.mrb[0].mxu0
    %v7063 = vadd.f32 %v7020, %v7062
    %7064 = vdwg.mxu0
    %7065 = vmatprep.subr.bf16.mxu0 %v4950
    %7066 = vmatpush1.bf16.msra.mxu0 %v4949
    %7067 = vmatprep.subr.bf16.mxu0 %v4954
    %7068 = vmatpush1.bf16.msra.mxu0 %v4953
    %7069 = vmatprep.subr.bf16.mxu0 %v4958
    %7070 = vmatpush1.bf16.msra.mxu0 %v4957
    %7071 = vmatprep.subr.bf16.mxu0 %v4962
    %7072 = vmatpush1.bf16.msra.mxu0 %v4961
    %7073 = vmatprep.subr.bf16.mxu0 %v4966
    %7074 = vmatpush1.bf16.msra.mxu0 %v4965
    %7075 = vmatprep.subr.bf16.mxu0 %v4970
    %7076 = vmatpush1.bf16.msra.mxu0 %v4969
    %7077 = vmatprep.subr.bf16.mxu0 %v4974
    %7078 = vmatpush1.bf16.msra.mxu0 %v4973
    %7079 = vmatprep.subr.bf16.mxu0 %v4978
    %7080 = vmatpush1.bf16.msra.mxu0 %v4977
    %7081 = vmatprep.subr.bf16.mxu0 %v4982
    %7082 = vmatpush1.bf16.msra.mxu0 %v4981
    %7083 = vmatprep.subr.bf16.mxu0 %v4986
    %7084 = vmatpush1.bf16.msra.mxu0 %v4985
    %7085 = vmatprep.subr.bf16.mxu0 %v4990
    %7086 = vmatpush1.bf16.msra.mxu0 %v4989
    %7087 = vmatprep.subr.bf16.mxu0 %v4994
    %7088 = vmatpush1.bf16.msra.mxu0 %v4993
    %7089 = vmatprep.subr.bf16.mxu0 %v4998
    %7090 = vmatpush1.bf16.msra.mxu0 %v4997
    %7091 = vmatprep.subr.bf16.mxu0 %v5002
    %7092 = vmatpush1.bf16.msra.mxu0 %v5001
    %7093 = vmatprep.subr.bf16.mxu0 %v5006
    %7094 = vmatpush1.bf16.msra.mxu0 %v5005
    %7095 = vmatprep.subr.bf16.mxu0 %v5010
    %7096 = vmatpush1.bf16.msra.mxu0 %v5009
    %7097 = vmatprep.mubr.bf16.mxu0 %v167
    %7098 = vmatmul.mubr.bf16.gmra.mrb[0].mxu0 %v166
    %v7099 = vpop.f32.mrb[0].mxu0
    %v7100 = vadd.f32 %v7057, %v7099
    %v7101 = vpop.f32.mrb[0].mxu0
    %v7102 = vadd.f32 %v7059, %v7101
    %v7103 = vpop.f32.mrb[0].mxu0
    %v7104 = vadd.f32 %v7061, %v7103
    %v7105 = vpop.f32.mrb[0].mxu0
    %v7106 = vadd.f32 %v7063, %v7105
    %7107 = vdwg.mxu0
    %7108 = vmatprep.subr.bf16.mxu0 %v5014
    %7109 = vmatpush1.bf16.msra.mxu0 %v5013
    %7110 = vmatprep.subr.bf16.mxu0 %v5018
    %7111 = vmatpush1.bf16.msra.mxu0 %v5017
    %7112 = vmatprep.subr.bf16.mxu0 %v5022
    %7113 = vmatpush1.bf16.msra.mxu0 %v5021
    %7114 = vmatprep.subr.bf16.mxu0 %v5026
    %7115 = vmatpush1.bf16.msra.mxu0 %v5025
    %7116 = vmatprep.subr.bf16.mxu0 %v5030
    %7117 = vmatpush1.bf16.msra.mxu0 %v5029
    %7118 = vmatprep.subr.bf16.mxu0 %v5034
    %7119 = vmatpush1.bf16.msra.mxu0 %v5033
    %7120 = vmatprep.subr.bf16.mxu0 %v5038
    %7121 = vmatpush1.bf16.msra.mxu0 %v5037
    %7122 = vmatprep.subr.bf16.mxu0 %v5042
    %7123 = vmatpush1.bf16.msra.mxu0 %v5041
    %7124 = vmatprep.subr.bf16.mxu0 %v5046
    %7125 = vmatpush1.bf16.msra.mxu0 %v5045
    %7126 = vmatprep.subr.bf16.mxu0 %v5050
    %7127 = vmatpush1.bf16.msra.mxu0 %v5049
    %7128 = vmatprep.subr.bf16.mxu0 %v5054
    %7129 = vmatpush1.bf16.msra.mxu0 %v5053
    %7130 = vmatprep.subr.bf16.mxu0 %v5058
    %7131 = vmatpush1.bf16.msra.mxu0 %v5057
    %7132 = vmatprep.subr.bf16.mxu0 %v5062
    %7133 = vmatpush1.bf16.msra.mxu0 %v5061
    %7134 = vmatprep.subr.bf16.mxu0 %v5066
    %7135 = vmatpush1.bf16.msra.mxu0 %v5065
    %7136 = vmatprep.subr.bf16.mxu0 %v5070
    %7137 = vmatpush1.bf16.msra.mxu0 %v5069
    %7138 = vmatprep.subr.bf16.mxu0 %v5074
    %7139 = vmatpush1.bf16.msra.mxu0 %v5073
    %7140 = vmatprep.mubr.bf16.mxu0 %v169
    %7141 = vmatmul.mubr.bf16.gmra.mrb[0].mxu0 %v168
    %v7142 = vpop.f32.mrb[0].mxu0
    %v7143 = vadd.f32 %v7100, %v7142
    %v7144 = vpop.f32.mrb[0].mxu0
    %v7145 = vadd.f32 %v7102, %v7144
    %v7146 = vpop.f32.mrb[0].mxu0
    %v7147 = vadd.f32 %v7104, %v7146
    %v7148 = vpop.f32.mrb[0].mxu0
    %v7149 = vadd.f32 %v7106, %v7148
    %7150 = vdwg.mxu0
    %7151 = vmatprep.subr.bf16.mxu0 %v5078
    %7152 = vmatpush1.bf16.msra.mxu0 %v5077
    %7153 = vmatprep.subr.bf16.mxu0 %v5082
    %7154 = vmatpush1.bf16.msra.mxu0 %v5081
    %7155 = vmatprep.subr.bf16.mxu0 %v5086
    %7156 = vmatpush1.bf16.msra.mxu0 %v5085
    %7157 = vmatprep.subr.bf16.mxu0 %v5090
    %7158 = vmatpush1.bf16.msra.mxu0 %v5089
    %7159 = vmatprep.subr.bf16.mxu0 %v5094
    %7160 = vmatpush1.bf16.msra.mxu0 %v5093
    %7161 = vmatprep.subr.bf16.mxu0 %v5098
    %7162 = vmatpush1.bf16.msra.mxu0 %v5097
    %7163 = vmatprep.subr.bf16.mxu0 %v5102
    %7164 = vmatpush1.bf16.msra.mxu0 %v5101
    %7165 = vmatprep.subr.bf16.mxu0 %v5106
    %7166 = vmatpush1.bf16.msra.mxu0 %v5105
    %7167 = vmatprep.subr.bf16.mxu0 %v5110
    %7168 = vmatpush1.bf16.msra.mxu0 %v5109
    %7169 = vmatprep.subr.bf16.mxu0 %v5114
    %7170 = vmatpush1.bf16.msra.mxu0 %v5113
    %7171 = vmatprep.subr.bf16.mxu0 %v5118
    %7172 = vmatpush1.bf16.msra.mxu0 %v5117
    %7173 = vmatprep.subr.bf16.mxu0 %v5122
    %7174 = vmatpush1.bf16.msra.mxu0 %v5121
    %7175 = vmatprep.subr.bf16.mxu0 %v5126
    %7176 = vmatpush1.bf16.msra.mxu0 %v5125
    %7177 = vmatprep.subr.bf16.mxu0 %v5130
    %7178 = vmatpush1.bf16.msra.mxu0 %v5129
    %7179 = vmatprep.subr.bf16.mxu0 %v5134
    %7180 = vmatpush1.bf16.msra.mxu0 %v5133
    %7181 = vmatprep.subr.bf16.mxu0 %v5138
    %7182 = vmatpush1.bf16.msra.mxu0 %v5137
    %7183 = vmatprep.mubr.bf16.mxu0 %v171
    %7184 = vmatmul.mubr.bf16.gmra.mrb[0].mxu0 %v170
    %v7185 = vpop.f32.mrb[0].mxu0
    %v7186 = vadd.f32 %v7143, %v7185
    %v7187 = vpop.f32.mrb[0].mxu0
    %v7188 = vadd.f32 %v7145, %v7187
    %v7189 = vpop.f32.mrb[0].mxu0
    %v7190 = vadd.f32 %v7147, %v7189
    %v7191 = vpop.f32.mrb[0].mxu0
    %v7192 = vadd.f32 %v7149, %v7191
    %7193 = vdwg.mxu0
    %7194 = vmatprep.subr.bf16.mxu0 %v5142
    %7195 = vmatpush1.bf16.msra.mxu0 %v5141
    %7196 = vmatprep.subr.bf16.mxu0 %v5146
    %7197 = vmatpush1.bf16.msra.mxu0 %v5145
    %7198 = vmatprep.subr.bf16.mxu0 %v5150
    %7199 = vmatpush1.bf16.msra.mxu0 %v5149
    %7200 = vmatprep.subr.bf16.mxu0 %v5154
    %7201 = vmatpush1.bf16.msra.mxu0 %v5153
    %7202 = vmatprep.subr.bf16.mxu0 %v5158
    %7203 = vmatpush1.bf16.msra.mxu0 %v5157
    %7204 = vmatprep.subr.bf16.mxu0 %v5162
    %7205 = vmatpush1.bf16.msra.mxu0 %v5161
    %7206 = vmatprep.subr.bf16.mxu0 %v5166
    %7207 = vmatpush1.bf16.msra.mxu0 %v5165
    %7208 = vmatprep.subr.bf16.mxu0 %v5170
    %7209 = vmatpush1.bf16.msra.mxu0 %v5169
    %7210 = vmatprep.subr.bf16.mxu0 %v5174
    %7211 = vmatpush1.bf16.msra.mxu0 %v5173
    %7212 = vmatprep.subr.bf16.mxu0 %v5178
    %7213 = vmatpush1.bf16.msra.mxu0 %v5177
    %7214 = vmatprep.subr.bf16.mxu0 %v5182
    %7215 = vmatpush1.bf16.msra.mxu0 %v5181
    %7216 = vmatprep.subr.bf16.mxu0 %v5186
    %7217 = vmatpush1.bf16.msra.mxu0 %v5185
    %7218 = vmatprep.subr.bf16.mxu0 %v5190
    %7219 = vmatpush1.bf16.msra.mxu0 %v5189
    %7220 = vmatprep.subr.bf16.mxu0 %v5194
    %7221 = vmatpush1.bf16.msra.mxu0 %v5193
    %7222 = vmatprep.subr.bf16.mxu0 %v5198
    %7223 = vmatpush1.bf16.msra.mxu0 %v5197
    %7224 = vmatprep.subr.bf16.mxu0 %v5202
    %7225 = vmatpush1.bf16.msra.mxu0 %v5201
    %7226 = vmatprep.mubr.bf16.mxu0 %v173
    %7227 = vmatmul.mubr.bf16.gmra.mrb[0].mxu0 %v172
    %v7228 = vpop.f32.mrb[0].mxu0
    %v7229 = vadd.f32 %v7186, %v7228
    %v7230 = vpop.f32.mrb[0].mxu0
    %v7231 = vadd.f32 %v7188, %v7230
    %v7232 = vpop.f32.mrb[0].mxu0
    %v7233 = vadd.f32 %v7190, %v7232
    %v7234 = vpop.f32.mrb[0].mxu0
    %v7235 = vadd.f32 %v7192, %v7234
    %7236 = vdwg.mxu0
    %7237 = vmatprep.subr.bf16.mxu0 %v5206
    %7238 = vmatpush1.bf16.msra.mxu0 %v5205
    %7239 = vmatprep.subr.bf16.mxu0 %v5210
    %7240 = vmatpush1.bf16.msra.mxu0 %v5209
    %7241 = vmatprep.subr.bf16.mxu0 %v5214
    %7242 = vmatpush1.bf16.msra.mxu0 %v5213
    %7243 = vmatprep.subr.bf16.mxu0 %v5218
    %7244 = vmatpush1.bf16.msra.mxu0 %v5217
    %7245 = vmatprep.subr.bf16.mxu0 %v5222
    %7246 = vmatpush1.bf16.msra.mxu0 %v5221
    %7247 = vmatprep.subr.bf16.mxu0 %v5226
    %7248 = vmatpush1.bf16.msra.mxu0 %v5225
    %7249 = vmatprep.subr.bf16.mxu0 %v5230
    %7250 = vmatpush1.bf16.msra.mxu0 %v5229
    %7251 = vmatprep.subr.bf16.mxu0 %v5234
    %7252 = vmatpush1.bf16.msra.mxu0 %v5233
    %7253 = vmatprep.subr.bf16.mxu0 %v5238
    %7254 = vmatpush1.bf16.msra.mxu0 %v5237
    %7255 = vmatprep.subr.bf16.mxu0 %v5242
    %7256 = vmatpush1.bf16.msra.mxu0 %v5241
    %7257 = vmatprep.subr.bf16.mxu0 %v5246
    %7258 = vmatpush1.bf16.msra.mxu0 %v5245
    %7259 = vmatprep.subr.bf16.mxu0 %v5250
    %7260 = vmatpush1.bf16.msra.mxu0 %v5249
    %7261 = vmatprep.subr.bf16.mxu0 %v5254
    %7262 = vmatpush1.bf16.msra.mxu0 %v5253
    %7263 = vmatprep.subr.bf16.mxu0 %v5258
    %7264 = vmatpush1.bf16.msra.mxu0 %v5257
    %7265 = vmatprep.subr.bf16.mxu0 %v5262
    %7266 = vmatpush1.bf16.msra.mxu0 %v5261
    %7267 = vmatprep.subr.bf16.mxu0 %v5266
    %7268 = vmatpush1.bf16.msra.mxu0 %v5265
    %7269 = vmatprep.mubr.bf16.mxu0 %v175
    %7270 = vmatmul.mubr.bf16.gmra.mrb[0].mxu0 %v174
    %v7271 = vpop.f32.mrb[0].mxu0
    %v7272 = vadd.f32 %v7229, %v7271
    %v7273 = vpop.f32.mrb[0].mxu0
    %v7274 = vadd.f32 %v7231, %v7273
    %v7275 = vpop.f32.mrb[0].mxu0
    %v7276 = vadd.f32 %v7233, %v7275
    %v7277 = vpop.f32.mrb[0].mxu0
    %v7278 = vadd.f32 %v7235, %v7277
    %7279 = vdwg.mxu0
    %7280 = vmatprep.subr.bf16.mxu0 %v5270
    %7281 = vmatpush1.bf16.msra.mxu0 %v5269
    %7282 = vmatprep.subr.bf16.mxu0 %v5274
    %7283 = vmatpush1.bf16.msra.mxu0 %v5273
    %7284 = vmatprep.subr.bf16.mxu0 %v5278
    %7285 = vmatpush1.bf16.msra.mxu0 %v5277
    %7286 = vmatprep.subr.bf16.mxu0 %v5282
    %7287 = vmatpush1.bf16.msra.mxu0 %v5281
    %7288 = vmatprep.subr.bf16.mxu0 %v5286
    %7289 = vmatpush1.bf16.msra.mxu0 %v5285
    %7290 = vmatprep.subr.bf16.mxu0 %v5290
    %7291 = vmatpush1.bf16.msra.mxu0 %v5289
    %7292 = vmatprep.subr.bf16.mxu0 %v5294
    %7293 = vmatpush1.bf16.msra.mxu0 %v5293
    %7294 = vmatprep.subr.bf16.mxu0 %v5298
    %7295 = vmatpush1.bf16.msra.mxu0 %v5297
    %7296 = vmatprep.subr.bf16.mxu0 %v5302
    %7297 = vmatpush1.bf16.msra.mxu0 %v5301
    %7298 = vmatprep.subr.bf16.mxu0 %v5306
    %7299 = vmatpush1.bf16.msra.mxu0 %v5305
    %7300 = vmatprep.subr.bf16.mxu0 %v5310
    %7301 = vmatpush1.bf16.msra.mxu0 %v5309
    %7302 = vmatprep.subr.bf16.mxu0 %v5314
    %7303 = vmatpush1.bf16.msra.mxu0 %v5313
    %7304 = vmatprep.subr.bf16.mxu0 %v5318
    %7305 = vmatpush1.bf16.msra.mxu0 %v5317
    %7306 = vmatprep.subr.bf16.mxu0 %v5322
    %7307 = vmatpush1.bf16.msra.mxu0 %v5321
    %7308 = vmatprep.subr.bf16.mxu0 %v5326
    %7309 = vmatpush1.bf16.msra.mxu0 %v5325
    %7310 = vmatprep.subr.bf16.mxu0 %v5330
    %7311 = vmatpush1.bf16.msra.mxu0 %v5329
    %7312 = vmatprep.mubr.bf16.mxu0 %v177
    %7313 = vmatmul.mubr.bf16.gmra.mrb[0].mxu0 %v176
    %v7314 = vpop.f32.mrb[0].mxu0
    %v7315 = vadd.f32 %v7272, %v7314
    %v7316 = vpop.f32.mrb[0].mxu0
    %v7317 = vadd.f32 %v7274, %v7316
    %v7318 = vpop.f32.mrb[0].mxu0
    %v7319 = vadd.f32 %v7276, %v7318
    %v7320 = vpop.f32.mrb[0].mxu0
    %v7321 = vadd.f32 %v7278, %v7320
    %7322 = vdwg.mxu0
    %7323 = vmatprep.subr.bf16.mxu0 %v5334
    %7324 = vmatpush1.bf16.msra.mxu0 %v5333
    %7325 = vmatprep.subr.bf16.mxu0 %v5338
    %7326 = vmatpush1.bf16.msra.mxu0 %v5337
    %7327 = vmatprep.subr.bf16.mxu0 %v5342
    %7328 = vmatpush1.bf16.msra.mxu0 %v5341
    %7329 = vmatprep.subr.bf16.mxu0 %v5346
    %7330 = vmatpush1.bf16.msra.mxu0 %v5345
    %7331 = vmatprep.subr.bf16.mxu0 %v5350
    %7332 = vmatpush1.bf16.msra.mxu0 %v5349
    %7333 = vmatprep.subr.bf16.mxu0 %v5354
    %7334 = vmatpush1.bf16.msra.mxu0 %v5353
    %7335 = vmatprep.subr.bf16.mxu0 %v5358
    %7336 = vmatpush1.bf16.msra.mxu0 %v5357
    %7337 = vmatprep.subr.bf16.mxu0 %v5362
    %7338 = vmatpush1.bf16.msra.mxu0 %v5361
    %7339 = vmatprep.subr.bf16.mxu0 %v5366
    %7340 = vmatpush1.bf16.msra.mxu0 %v5365
    %7341 = vmatprep.subr.bf16.mxu0 %v5370
    %7342 = vmatpush1.bf16.msra.mxu0 %v5369
    %7343 = vmatprep.subr.bf16.mxu0 %v5374
    %7344 = vmatpush1.bf16.msra.mxu0 %v5373
    %7345 = vmatprep.subr.bf16.mxu0 %v5378
    %7346 = vmatpush1.bf16.msra.mxu0 %v5377
    %7347 = vmatprep.subr.bf16.mxu0 %v5382
    %7348 = vmatpush1.bf16.msra.mxu0 %v5381
    %7349 = vmatprep.subr.bf16.mxu0 %v5386
    %7350 = vmatpush1.bf16.msra.mxu0 %v5385
    %7351 = vmatprep.subr.bf16.mxu0 %v5390
    %7352 = vmatpush1.bf16.msra.mxu0 %v5389
    %7353 = vmatprep.subr.bf16.mxu0 %v5394
    %7354 = vmatpush1.bf16.msra.mxu0 %v5393
    %7355 = vmatprep.mubr.bf16.mxu0 %v179
    %7356 = vmatmul.mubr.bf16.gmra.mrb[0].mxu0 %v178
    %v7357 = vpop.f32.mrb[0].mxu0
    %v7358 = vadd.f32 %v7315, %v7357
    %v7359 = vpop.f32.mrb[0].mxu0
    %v7360 = vadd.f32 %v7317, %v7359
    %v7361 = vpop.f32.mrb[0].mxu0
    %v7362 = vadd.f32 %v7319, %v7361
    %v7363 = vpop.f32.mrb[0].mxu0
    %v7364 = vadd.f32 %v7321, %v7363
    %7365 = vdwg.mxu0
    %7366 = vmatprep.subr.bf16.mxu0 %v5398
    %7367 = vmatpush1.bf16.msra.mxu0 %v5397
    %7368 = vmatprep.subr.bf16.mxu0 %v5402
    %7369 = vmatpush1.bf16.msra.mxu0 %v5401
    %7370 = vmatprep.subr.bf16.mxu0 %v5406
    %7371 = vmatpush1.bf16.msra.mxu0 %v5405
    %7372 = vmatprep.subr.bf16.mxu0 %v5410
    %7373 = vmatpush1.bf16.msra.mxu0 %v5409
    %7374 = vmatprep.subr.bf16.mxu0 %v5414
    %7375 = vmatpush1.bf16.msra.mxu0 %v5413
    %7376 = vmatprep.subr.bf16.mxu0 %v5418
    %7377 = vmatpush1.bf16.msra.mxu0 %v5417
    %7378 = vmatprep.subr.bf16.mxu0 %v5422
    %7379 = vmatpush1.bf16.msra.mxu0 %v5421
    %7380 = vmatprep.subr.bf16.mxu0 %v5426
    %7381 = vmatpush1.bf16.msra.mxu0 %v5425
    %7382 = vmatprep.subr.bf16.mxu0 %v5430
    %7383 = vmatpush1.bf16.msra.mxu0 %v5429
    %7384 = vmatprep.subr.bf16.mxu0 %v5434
    %7385 = vmatpush1.bf16.msra.mxu0 %v5433
    %7386 = vmatprep.subr.bf16.mxu0 %v5438
    %7387 = vmatpush1.bf16.msra.mxu0 %v5437
    %7388 = vmatprep.subr.bf16.mxu0 %v5442
    %7389 = vmatpush1.bf16.msra.mxu0 %v5441
    %7390 = vmatprep.subr.bf16.mxu0 %v5446
    %7391 = vmatpush1.bf16.msra.mxu0 %v5445
    %7392 = vmatprep.subr.bf16.mxu0 %v5450
    %7393 = vmatpush1.bf16.msra.mxu0 %v5449
    %7394 = vmatprep.subr.bf16.mxu0 %v5454
    %7395 = vmatpush1.bf16.msra.mxu0 %v5453
    %7396 = vmatprep.subr.bf16.mxu0 %v5458
    %7397 = vmatpush1.bf16.msra.mxu0 %v5457
    %7398 = vmatprep.mubr.bf16.mxu0 %v181
    %7399 = vmatmul.mubr.bf16.gmra.mrb[0].mxu0 %v180
    %v7400 = vpop.f32.mrb[0].mxu0
    %v7401 = vadd.f32 %v7358, %v7400
    %v7402 = vpop.f32.mrb[0].mxu0
    %v7403 = vadd.f32 %v7360, %v7402
    %v7404 = vpop.f32.mrb[0].mxu0
    %v7405 = vadd.f32 %v7362, %v7404
    %v7406 = vpop.f32.mrb[0].mxu0
    %v7407 = vadd.f32 %v7364, %v7406
    %7408 = vdwg.mxu0
    %7409 = vmatprep.subr.bf16.mxu0 %v5462
    %7410 = vmatpush1.bf16.msra.mxu0 %v5461
    %7411 = vmatprep.subr.bf16.mxu0 %v5466
    %7412 = vmatpush1.bf16.msra.mxu0 %v5465
    %7413 = vmatprep.subr.bf16.mxu0 %v5470
    %7414 = vmatpush1.bf16.msra.mxu0 %v5469
    %7415 = vmatprep.subr.bf16.mxu0 %v5474
    %7416 = vmatpush1.bf16.msra.mxu0 %v5473
    %7417 = vmatprep.subr.bf16.mxu0 %v5478
    %7418 = vmatpush1.bf16.msra.mxu0 %v5477
    %7419 = vmatprep.subr.bf16.mxu0 %v5482
    %7420 = vmatpush1.bf16.msra.mxu0 %v5481
    %7421 = vmatprep.subr.bf16.mxu0 %v5486
    %7422 = vmatpush1.bf16.msra.mxu0 %v5485
    %7423 = vmatprep.subr.bf16.mxu0 %v5490
    %7424 = vmatpush1.bf16.msra.mxu0 %v5489
    %7425 = vmatprep.subr.bf16.mxu0 %v5494
    %7426 = vmatpush1.bf16.msra.mxu0 %v5493
    %7427 = vmatprep.subr.bf16.mxu0 %v5498
    %7428 = vmatpush1.bf16.msra.mxu0 %v5497
    %7429 = vmatprep.subr.bf16.mxu0 %v5502
    %7430 = vmatpush1.bf16.msra.mxu0 %v5501
    %7431 = vmatprep.subr.bf16.mxu0 %v5506
    %7432 = vmatpush1.bf16.msra.mxu0 %v5505
    %7433 = vmatprep.subr.bf16.mxu0 %v5510
    %7434 = vmatpush1.bf16.msra.mxu0 %v5509
    %7435 = vmatprep.subr.bf16.mxu0 %v5514
    %7436 = vmatpush1.bf16.msra.mxu0 %v5513
    %7437 = vmatprep.subr.bf16.mxu0 %v5518
    %7438 = vmatpush1.bf16.msra.mxu0 %v5517
    %7439 = vmatprep.subr.bf16.mxu0 %v5522
    %7440 = vmatpush1.bf16.msra.mxu0 %v5521
    %7441 = vmatprep.mubr.bf16.mxu0 %v183
    %7442 = vmatmul.mubr.bf16.gmra.mrb[0].mxu0 %v182
    %v7443 = vpop.f32.mrb[0].mxu0
    %v7444 = vadd.f32 %v7401, %v7443
    %v7445 = vpop.f32.mrb[0].mxu0
    %v7446 = vadd.f32 %v7403, %v7445
    %v7447 = vpop.f32.mrb[0].mxu0
    %v7448 = vadd.f32 %v7405, %v7447
    %v7449 = vpop.f32.mrb[0].mxu0
    %v7450 = vadd.f32 %v7407, %v7449
    %7451 = vdwg.mxu0
    %7452 = vmatprep.subr.bf16.mxu0 %v5526
    %7453 = vmatpush1.bf16.msra.mxu0 %v5525
    %7454 = vmatprep.subr.bf16.mxu0 %v5530
    %7455 = vmatpush1.bf16.msra.mxu0 %v5529
    %7456 = vmatprep.subr.bf16.mxu0 %v5534
    %7457 = vmatpush1.bf16.msra.mxu0 %v5533
    %7458 = vmatprep.subr.bf16.mxu0 %v5538
    %7459 = vmatpush1.bf16.msra.mxu0 %v5537
    %7460 = vmatprep.subr.bf16.mxu0 %v5542
    %7461 = vmatpush1.bf16.msra.mxu0 %v5541
    %7462 = vmatprep.subr.bf16.mxu0 %v5546
    %7463 = vmatpush1.bf16.msra.mxu0 %v5545
    %7464 = vmatprep.subr.bf16.mxu0 %v5550
    %7465 = vmatpush1.bf16.msra.mxu0 %v5549
    %7466 = vmatprep.subr.bf16.mxu0 %v5554
    %7467 = vmatpush1.bf16.msra.mxu0 %v5553
    %7468 = vmatprep.subr.bf16.mxu0 %v5558
    %7469 = vmatpush1.bf16.msra.mxu0 %v5557
    %7470 = vmatprep.subr.bf16.mxu0 %v5562
    %7471 = vmatpush1.bf16.msra.mxu0 %v5561
    %7472 = vmatprep.subr.bf16.mxu0 %v5566
    %7473 = vmatpush1.bf16.msra.mxu0 %v5565
    %7474 = vmatprep.subr.bf16.mxu0 %v5570
    %7475 = vmatpush1.bf16.msra.mxu0 %v5569
    %7476 = vmatprep.subr.bf16.mxu0 %v5574
    %7477 = vmatpush1.bf16.msra.mxu0 %v5573
    %7478 = vmatprep.subr.bf16.mxu0 %v5578
    %7479 = vmatpush1.bf16.msra.mxu0 %v5577
    %7480 = vmatprep.subr.bf16.mxu0 %v5582
    %7481 = vmatpush1.bf16.msra.mxu0 %v5581
    %7482 = vmatprep.subr.bf16.mxu0 %v5586
    %7483 = vmatpush1.bf16.msra.mxu0 %v5585
    %7484 = vmatprep.mubr.bf16.mxu0 %v185
    %7485 = vmatmul.mubr.bf16.gmra.mrb[0].mxu0 %v184
    %v7486 = vpop.f32.mrb[0].mxu0
    %v7487 = vadd.f32 %v7444, %v7486
    %v7488 = vpop.f32.mrb[0].mxu0
    %v7489 = vadd.f32 %v7446, %v7488
    %v7490 = vpop.f32.mrb[0].mxu0
    %v7491 = vadd.f32 %v7448, %v7490
    %v7492 = vpop.f32.mrb[0].mxu0
    %v7493 = vadd.f32 %v7450, %v7492
    %7494 = vdwg.mxu0
    %7495 = vmatprep.subr.bf16.mxu0 %v5590
    %7496 = vmatpush1.bf16.msra.mxu0 %v5589
    %7497 = vmatprep.subr.bf16.mxu0 %v5594
    %7498 = vmatpush1.bf16.msra.mxu0 %v5593
    %7499 = vmatprep.subr.bf16.mxu0 %v5598
    %7500 = vmatpush1.bf16.msra.mxu0 %v5597
    %7501 = vmatprep.subr.bf16.mxu0 %v5602
    %7502 = vmatpush1.bf16.msra.mxu0 %v5601
    %7503 = vmatprep.subr.bf16.mxu0 %v5606
    %7504 = vmatpush1.bf16.msra.mxu0 %v5605
    %7505 = vmatprep.subr.bf16.mxu0 %v5610
    %7506 = vmatpush1.bf16.msra.mxu0 %v5609
    %7507 = vmatprep.subr.bf16.mxu0 %v5614
    %7508 = vmatpush1.bf16.msra.mxu0 %v5613
    %7509 = vmatprep.subr.bf16.mxu0 %v5618
    %7510 = vmatpush1.bf16.msra.mxu0 %v5617
    %7511 = vmatprep.subr.bf16.mxu0 %v5622
    %7512 = vmatpush1.bf16.msra.mxu0 %v5621
    %7513 = vmatprep.subr.bf16.mxu0 %v5626
    %7514 = vmatpush1.bf16.msra.mxu0 %v5625
    %7515 = vmatprep.subr.bf16.mxu0 %v5630
    %7516 = vmatpush1.bf16.msra.mxu0 %v5629
    %7517 = vmatprep.subr.bf16.mxu0 %v5634
    %7518 = vmatpush1.bf16.msra.mxu0 %v5633
    %7519 = vmatprep.subr.bf16.mxu0 %v5638
    %7520 = vmatpush1.bf16.msra.mxu0 %v5637
    %7521 = vmatprep.subr.bf16.mxu0 %v5642
    %7522 = vmatpush1.bf16.msra.mxu0 %v5641
    %7523 = vmatprep.subr.bf16.mxu0 %v5646
    %7524 = vmatpush1.bf16.msra.mxu0 %v5645
    %7525 = vmatprep.subr.bf16.mxu0 %v5650
    %7526 = vmatpush1.bf16.msra.mxu0 %v5649
    %7527 = vmatprep.mubr.bf16.mxu0 %v187
    %7528 = vmatmul.mubr.bf16.gmra.mrb[0].mxu0 %v186
    %v7529 = vpop.f32.mrb[0].mxu0
    %v7530 = vadd.f32 %v7487, %v7529
    %v7531 = vpop.f32.mrb[0].mxu0
    %v7532 = vadd.f32 %v7489, %v7531
    %v7533 = vpop.f32.mrb[0].mxu0
    %v7534 = vadd.f32 %v7491, %v7533
    %v7535 = vpop.f32.mrb[0].mxu0
    %v7536 = vadd.f32 %v7493, %v7535
    %7537 = vdwg.mxu0
    %7538 = vmatprep.subr.bf16.mxu0 %v5654
    %7539 = vmatpush1.bf16.msra.mxu0 %v5653
    %7540 = vmatprep.subr.bf16.mxu0 %v5658
    %7541 = vmatpush1.bf16.msra.mxu0 %v5657
    %7542 = vmatprep.subr.bf16.mxu0 %v5662
    %7543 = vmatpush1.bf16.msra.mxu0 %v5661
    %7544 = vmatprep.subr.bf16.mxu0 %v5666
    %7545 = vmatpush1.bf16.msra.mxu0 %v5665
    %7546 = vmatprep.subr.bf16.mxu0 %v5670
    %7547 = vmatpush1.bf16.msra.mxu0 %v5669
    %7548 = vmatprep.subr.bf16.mxu0 %v5674
    %7549 = vmatpush1.bf16.msra.mxu0 %v5673
    %7550 = vmatprep.subr.bf16.mxu0 %v5678
    %7551 = vmatpush1.bf16.msra.mxu0 %v5677
    %7552 = vmatprep.subr.bf16.mxu0 %v5682
    %7553 = vmatpush1.bf16.msra.mxu0 %v5681
    %7554 = vmatprep.subr.bf16.mxu0 %v5686
    %7555 = vmatpush1.bf16.msra.mxu0 %v5685
    %7556 = vmatprep.subr.bf16.mxu0 %v5690
    %7557 = vmatpush1.bf16.msra.mxu0 %v5689
    %7558 = vmatprep.subr.bf16.mxu0 %v5694
    %7559 = vmatpush1.bf16.msra.mxu0 %v5693
    %7560 = vmatprep.subr.bf16.mxu0 %v5698
    %7561 = vmatpush1.bf16.msra.mxu0 %v5697
    %7562 = vmatprep.subr.bf16.mxu0 %v5702
    %7563 = vmatpush1.bf16.msra.mxu0 %v5701
    %7564 = vmatprep.subr.bf16.mxu0 %v5706
    %7565 = vmatpush1.bf16.msra.mxu0 %v5705
    %7566 = vmatprep.subr.bf16.mxu0 %v5710
    %7567 = vmatpush1.bf16.msra.mxu0 %v5709
    %7568 = vmatprep.subr.bf16.mxu0 %v5714
    %7569 = vmatpush1.bf16.msra.mxu0 %v5713
    %7570 = vmatprep.mubr.bf16.mxu0 %v189
    %7571 = vmatmul.mubr.bf16.gmra.mrb[0].mxu0 %v188
    %v7572 = vpop.f32.mrb[0].mxu0
    %v7573 = vadd.f32 %v7530, %v7572
    %v7574 = vpop.f32.mrb[0].mxu0
    %v7575 = vadd.f32 %v7532, %v7574
    %v7576 = vpop.f32.mrb[0].mxu0
    %v7577 = vadd.f32 %v7534, %v7576
    %v7578 = vpop.f32.mrb[0].mxu0
    %v7579 = vadd.f32 %v7536, %v7578
    %7580 = vdwg.mxu0
    %7581 = vmatprep.subr.bf16.mxu0 %v5718
    %7582 = vmatpush1.bf16.msra.mxu0 %v5717
    %7583 = vmatprep.subr.bf16.mxu0 %v5722
    %7584 = vmatpush1.bf16.msra.mxu0 %v5721
    %7585 = vmatprep.subr.bf16.mxu0 %v5726
    %7586 = vmatpush1.bf16.msra.mxu0 %v5725
    %7587 = vmatprep.subr.bf16.mxu0 %v6842
    %7588 = vmatpush1.bf16.msra.mxu0 %v6839
    %7589 = vmatprep.subr.bf16.mxu0 0
    %7590 = vmatpush1.bf16.msra.mxu0 0
    %7591 = vmatprep.subr.bf16.mxu0 0
    %7592 = vmatpush1.bf16.msra.mxu0 0
    %7593 = vmatprep.subr.bf16.mxu0 0
    %7594 = vmatpush1.bf16.msra.mxu0 0
    %7595 = vmatprep.subr.bf16.mxu0 0
    %7596 = vmatpush1.bf16.msra.mxu0 0
    %7597 = vmatprep.subr.bf16.mxu0 0
    %7598 = vmatpush1.bf16.msra.mxu0 0
    %7599 = vmatprep.subr.bf16.mxu0 0
    %7600 = vmatpush1.bf16.msra.mxu0 0
    %7601 = vmatprep.subr.bf16.mxu0 0
    %7602 = vmatpush1.bf16.msra.mxu0 0
    %7603 = vmatprep.subr.bf16.mxu0 0
    %7604 = vmatpush1.bf16.msra.mxu0 0
    %7605 = vmatprep.subr.bf16.mxu0 0
    %7606 = vmatpush1.bf16.msra.mxu0 0
    %7607 = vmatprep.subr.bf16.mxu0 0
    %7608 = vmatpush1.bf16.msra.mxu0 0
    %7609 = vmatprep.subr.bf16.mxu0 0
    %7610 = vmatpush1.bf16.msra.mxu0 0
    %7611 = vmatprep.subr.bf16.mxu0 0
    %7612 = vmatpush1.bf16.msra.mxu0 0
    %7613 = vmatprep.mubr.bf16.mxu0 0
    %7614 = vmatmul.mubr.bf16.gmra.mrb[0].mxu0 %v6835
    %v7615 = vpop.f32.mrb[0].mxu0
    %v7616 = vadd.f32 %v7573, %v7615
    %v7617 = vpop.f32.mrb[0].mxu0
    %v7618 = vadd.f32 %v7575, %v7617
    %v7619 = vpop.f32.mrb[0].mxu0
    %v7620 = vadd.f32 %v7577, %v7619
    %v7621 = vpop.f32.mrb[0].mxu0
    %v7622 = vadd.f32 %v7579, %v7621
    %7623 = vdwg.mxu0
    %7624 = vmatprep.subr.bf16.mxu0 %v4632
    %7625 = vmatpush1.bf16.msra.mxu0 %v4631
    %7626 = vmatprep.subr.bf16.mxu0 %v4636
    %7627 = vmatpush1.bf16.msra.mxu0 %v4635
    %7628 = vmatprep.subr.bf16.mxu0 %v4640
    %7629 = vmatpush1.bf16.msra.mxu0 %v4639
    %7630 = vmatprep.subr.bf16.mxu0 %v4644
    %7631 = vmatpush1.bf16.msra.mxu0 %v4643
    %7632 = vmatprep.subr.bf16.mxu0 %v4648
    %7633 = vmatpush1.bf16.msra.mxu0 %v4647
    %7634 = vmatprep.subr.bf16.mxu0 %v4652
    %7635 = vmatpush1.bf16.msra.mxu0 %v4651
    %7636 = vmatprep.subr.bf16.mxu0 %v4656
    %7637 = vmatpush1.bf16.msra.mxu0 %v4655
    %7638 = vmatprep.subr.bf16.mxu0 %v4660
    %7639 = vmatpush1.bf16.msra.mxu0 %v4659
    %7640 = vmatprep.subr.bf16.mxu0 %v4664
    %7641 = vmatpush1.bf16.msra.mxu0 %v4663
    %7642 = vmatprep.subr.bf16.mxu0 %v4668
    %7643 = vmatpush1.bf16.msra.mxu0 %v4667
    %7644 = vmatprep.subr.bf16.mxu0 %v4672
    %7645 = vmatpush1.bf16.msra.mxu0 %v4671
    %7646 = vmatprep.subr.bf16.mxu0 %v4676
    %7647 = vmatpush1.bf16.msra.mxu0 %v4675
    %7648 = vmatprep.subr.bf16.mxu0 %v4680
    %7649 = vmatpush1.bf16.msra.mxu0 %v4679
    %7650 = vmatprep.subr.bf16.mxu0 %v4684
    %7651 = vmatpush1.bf16.msra.mxu0 %v4683
    %7652 = vmatprep.subr.bf16.mxu0 %v4688
    %7653 = vmatpush1.bf16.msra.mxu0 %v4687
    %7654 = vmatprep.subr.bf16.mxu0 %v4692
    %7655 = vmatpush1.bf16.msra.mxu0 %v4691
    %7656 = vmatprep.mubr.bf16.mxu0 %v157
    %7657 = vmatmul.mubr.bf16.gmra.mrb[0].mxu0 %v156
    %v7658 = vpop.f32.mrb[0].mxu0
    %v7659 = vadd.f32 %v1308, %v7658
    %v7660 = vpop.f32.mrb[0].mxu0
    %v7661 = vadd.f32 %v1312, %v7660
    %v7662 = vpop.f32.mrb[0].mxu0
    %v7663 = vadd.f32 %v1308, %v7662
    %v7664 = vpop.f32.mrb[0].mxu0
    %v7665 = vadd.f32 %v1312, %v7664
    %7666 = vdwg.mxu0
    %7667 = vmatprep.subr.bf16.mxu0 %v4696
    %7668 = vmatpush1.bf16.msra.mxu0 %v4695
    %7669 = vmatprep.subr.bf16.mxu0 %v4700
    %7670 = vmatpush1.bf16.msra.mxu0 %v4699
    %7671 = vmatprep.subr.bf16.mxu0 %v4704
    %7672 = vmatpush1.bf16.msra.mxu0 %v4703
    %7673 = vmatprep.subr.bf16.mxu0 %v4708
    %7674 = vmatpush1.bf16.msra.mxu0 %v4707
    %7675 = vmatprep.subr.bf16.mxu0 %v4712
    %7676 = vmatpush1.bf16.msra.mxu0 %v4711
    %7677 = vmatprep.subr.bf16.mxu0 %v4716
    %7678 = vmatpush1.bf16.msra.mxu0 %v4715
    %7679 = vmatprep.subr.bf16.mxu0 %v4720
    %7680 = vmatpush1.bf16.msra.mxu0 %v4719
    %7681 = vmatprep.subr.bf16.mxu0 %v4724
    %7682 = vmatpush1.bf16.msra.mxu0 %v4723
    %7683 = vmatprep.subr.bf16.mxu0 %v4728
    %7684 = vmatpush1.bf16.msra.mxu0 %v4727
    %7685 = vmatprep.subr.bf16.mxu0 %v4732
    %7686 = vmatpush1.bf16.msra.mxu0 %v4731
    %7687 = vmatprep.subr.bf16.mxu0 %v4736
    %7688 = vmatpush1.bf16.msra.mxu0 %v4735
    %7689 = vmatprep.subr.bf16.mxu0 %v4740
    %7690 = vmatpush1.bf16.msra.mxu0 %v4739
    %7691 = vmatprep.subr.bf16.mxu0 %v4744
    %7692 = vmatpush1.bf16.msra.mxu0 %v4743
    %7693 = vmatprep.subr.bf16.mxu0 %v4748
    %7694 = vmatpush1.bf16.msra.mxu0 %v4747
    %7695 = vmatprep.subr.bf16.mxu0 %v4752
    %7696 = vmatpush1.bf16.msra.mxu0 %v4751
    %7697 = vmatprep.subr.bf16.mxu0 %v4756
    %7698 = vmatpush1.bf16.msra.mxu0 %v4755
    %7699 = vmatprep.mubr.bf16.mxu0 %v159
    %7700 = vmatmul.mubr.bf16.gmra.mrb[0].mxu0 %v158
    %v7701 = vpop.f32.mrb[0].mxu0
    %v7702 = vadd.f32 %v7659, %v7701
    %v7703 = vpop.f32.mrb[0].mxu0
    %v7704 = vadd.f32 %v7661, %v7703
    %v7705 = vpop.f32.mrb[0].mxu0
    %v7706 = vadd.f32 %v7663, %v7705
    %v7707 = vpop.f32.mrb[0].mxu0
    %v7708 = vadd.f32 %v7665, %v7707
    %7709 = vdwg.mxu0
    %7710 = vmatprep.subr.bf16.mxu0 %v4760
    %7711 = vmatpush1.bf16.msra.mxu0 %v4759
    %7712 = vmatprep.subr.bf16.mxu0 %v4764
    %7713 = vmatpush1.bf16.msra.mxu0 %v4763
    %7714 = vmatprep.subr.bf16.mxu0 %v4768
    %7715 = vmatpush1.bf16.msra.mxu0 %v4767
    %7716 = vmatprep.subr.bf16.mxu0 %v4772
    %7717 = vmatpush1.bf16.msra.mxu0 %v4771
    %7718 = vmatprep.subr.bf16.mxu0 %v4776
    %7719 = vmatpush1.bf16.msra.mxu0 %v4775
    %7720 = vmatprep.subr.bf16.mxu0 %v4780
    %7721 = vmatpush1.bf16.msra.mxu0 %v4779
    %7722 = vmatprep.subr.bf16.mxu0 %v4784
    %7723 = vmatpush1.bf16.msra.mxu0 %v4783
    %7724 = vmatprep.subr.bf16.mxu0 %v4788
    %7725 = vmatpush1.bf16.msra.mxu0 %v4787
    %7726 = vmatprep.subr.bf16.mxu0 %v4792
    %7727 = vmatpush1.bf16.msra.mxu0 %v4791
    %7728 = vmatprep.subr.bf16.mxu0 %v4796
    %7729 = vmatpush1.bf16.msra.mxu0 %v4795
    %7730 = vmatprep.subr.bf16.mxu0 %v4800
    %7731 = vmatpush1.bf16.msra.mxu0 %v4799
    %7732 = vmatprep.subr.bf16.mxu0 %v4804
    %7733 = vmatpush1.bf16.msra.mxu0 %v4803
    %7734 = vmatprep.subr.bf16.mxu0 %v4808
    %7735 = vmatpush1.bf16.msra.mxu0 %v4807
    %7736 = vmatprep.subr.bf16.mxu0 %v4812
    %7737 = vmatpush1.bf16.msra.mxu0 %v4811
    %7738 = vmatprep.subr.bf16.mxu0 %v4816
    %7739 = vmatpush1.bf16.msra.mxu0 %v4815
    %7740 = vmatprep.subr.bf16.mxu0 %v4820
    %7741 = vmatpush1.bf16.msra.mxu0 %v4819
    %7742 = vmatprep.mubr.bf16.mxu0 %v161
    %7743 = vmatmul.mubr.bf16.gmra.mrb[0].mxu0 %v160
    %v7744 = vpop.f32.mrb[0].mxu0
    %v7745 = vadd.f32 %v7702, %v7744
    %v7746 = vpop.f32.mrb[0].mxu0
    %v7747 = vadd.f32 %v7704, %v7746
    %v7748 = vpop.f32.mrb[0].mxu0
    %v7749 = vadd.f32 %v7706, %v7748
    %v7750 = vpop.f32.mrb[0].mxu0
    %v7751 = vadd.f32 %v7708, %v7750
    %7752 = vdwg.mxu0
    %7753 = vmatprep.subr.bf16.mxu0 %v4824
    %7754 = vmatpush1.bf16.msra.mxu0 %v4823
    %7755 = vmatprep.subr.bf16.mxu0 %v4828
    %7756 = vmatpush1.bf16.msra.mxu0 %v4827
    %7757 = vmatprep.subr.bf16.mxu0 %v4832
    %7758 = vmatpush1.bf16.msra.mxu0 %v4831
    %7759 = vmatprep.subr.bf16.mxu0 %v4836
    %7760 = vmatpush1.bf16.msra.mxu0 %v4835
    %7761 = vmatprep.subr.bf16.mxu0 %v4840
    %7762 = vmatpush1.bf16.msra.mxu0 %v4839
    %7763 = vmatprep.subr.bf16.mxu0 %v4844
    %7764 = vmatpush1.bf16.msra.mxu0 %v4843
    %7765 = vmatprep.subr.bf16.mxu0 %v4848
    %7766 = vmatpush1.bf16.msra.mxu0 %v4847
    %7767 = vmatprep.subr.bf16.mxu0 %v4852
    %7768 = vmatpush1.bf16.msra.mxu0 %v4851
    %7769 = vmatprep.subr.bf16.mxu0 %v4856
    %7770 = vmatpush1.bf16.msra.mxu0 %v4855
    %7771 = vmatprep.subr.bf16.mxu0 %v4860
    %7772 = vmatpush1.bf16.msra.mxu0 %v4859
    %7773 = vmatprep.subr.bf16.mxu0 %v4864
    %7774 = vmatpush1.bf16.msra.mxu0 %v4863
    %7775 = vmatprep.subr.bf16.mxu0 %v4868
    %7776 = vmatpush1.bf16.msra.mxu0 %v4867
    %7777 = vmatprep.subr.bf16.mxu0 %v4872
    %7778 = vmatpush1.bf16.msra.mxu0 %v4871
    %7779 = vmatprep.subr.bf16.mxu0 %v4876
    %7780 = vmatpush1.bf16.msra.mxu0 %v4875
    %7781 = vmatprep.subr.bf16.mxu0 %v4880
    %7782 = vmatpush1.bf16.msra.mxu0 %v4879
    %7783 = vmatprep.subr.bf16.mxu0 %v4884
    %7784 = vmatpush1.bf16.msra.mxu0 %v4883
    %7785 = vmatprep.mubr.bf16.mxu0 %v163
    %7786 = vmatmul.mubr.bf16.gmra.mrb[0].mxu0 %v162
    %v7787 = vpop.f32.mrb[0].mxu0
    %v7788 = vadd.f32 %v7745, %v7787
    %v7789 = vpop.f32.mrb[0].mxu0
    %v7790 = vadd.f32 %v7747, %v7789
    %v7791 = vpop.f32.mrb[0].mxu0
    %v7792 = vadd.f32 %v7749, %v7791
    %v7793 = vpop.f32.mrb[0].mxu0
    %v7794 = vadd.f32 %v7751, %v7793
    %7795 = vdwg.mxu0
    %7796 = vmatprep.subr.bf16.mxu0 %v4888
    %7797 = vmatpush1.bf16.msra.mxu0 %v4887
    %7798 = vmatprep.subr.bf16.mxu0 %v4892
    %7799 = vmatpush1.bf16.msra.mxu0 %v4891
    %7800 = vmatprep.subr.bf16.mxu0 %v4896
    %7801 = vmatpush1.bf16.msra.mxu0 %v4895
    %7802 = vmatprep.subr.bf16.mxu0 %v4900
    %7803 = vmatpush1.bf16.msra.mxu0 %v4899
    %7804 = vmatprep.subr.bf16.mxu0 %v4904
    %7805 = vmatpush1.bf16.msra.mxu0 %v4903
    %7806 = vmatprep.subr.bf16.mxu0 %v4908
    %7807 = vmatpush1.bf16.msra.mxu0 %v4907
    %7808 = vmatprep.subr.bf16.mxu0 %v4912
    %7809 = vmatpush1.bf16.msra.mxu0 %v4911
    %7810 = vmatprep.subr.bf16.mxu0 %v4916
    %7811 = vmatpush1.bf16.msra.mxu0 %v4915
    %7812 = vmatprep.subr.bf16.mxu0 %v4920
    %7813 = vmatpush1.bf16.msra.mxu0 %v4919
    %7814 = vmatprep.subr.bf16.mxu0 %v4924
    %7815 = vmatpush1.bf16.msra.mxu0 %v4923
    %7816 = vmatprep.subr.bf16.mxu0 %v4928
    %7817 = vmatpush1.bf16.msra.mxu0 %v4927
    %7818 = vmatprep.subr.bf16.mxu0 %v4932
    %7819 = vmatpush1.bf16.msra.mxu0 %v4931
    %7820 = vmatprep.subr.bf16.mxu0 %v4936
    %7821 = vmatpush1.bf16.msra.mxu0 %v4935
    %7822 = vmatprep.subr.bf16.mxu0 %v4940
    %7823 = vmatpush1.bf16.msra.mxu0 %v4939
    %7824 = vmatprep.subr.bf16.mxu0 %v4944
    %7825 = vmatpush1.bf16.msra.mxu0 %v4943
    %7826 = vmatprep.subr.bf16.mxu0 %v4948
    %7827 = vmatpush1.bf16.msra.mxu0 %v4947
    %7828 = vmatprep.mubr.bf16.mxu0 %v165
    %7829 = vmatmul.mubr.bf16.gmra.mrb[0].mxu0 %v164
    %v7830 = vpop.f32.mrb[0].mxu0
    %v7831 = vadd.f32 %v7788, %v7830
    %v7832 = vpop.f32.mrb[0].mxu0
    %v7833 = vadd.f32 %v7790, %v7832
    %v7834 = vpop.f32.mrb[0].mxu0
    %v7835 = vadd.f32 %v7792, %v7834
    %v7836 = vpop.f32.mrb[0].mxu0
    %v7837 = vadd.f32 %v7794, %v7836
    %7838 = vdwg.mxu0
    %7839 = vmatprep.subr.bf16.mxu0 %v4952
    %7840 = vmatpush1.bf16.msra.mxu0 %v4951
    %7841 = vmatprep.subr.bf16.mxu0 %v4956
    %7842 = vmatpush1.bf16.msra.mxu0 %v4955
    %7843 = vmatprep.subr.bf16.mxu0 %v4960
    %7844 = vmatpush1.bf16.msra.mxu0 %v4959
    %7845 = vmatprep.subr.bf16.mxu0 %v4964
    %7846 = vmatpush1.bf16.msra.mxu0 %v4963
    %7847 = vmatprep.subr.bf16.mxu0 %v4968
    %7848 = vmatpush1.bf16.msra.mxu0 %v4967
    %7849 = vmatprep.subr.bf16.mxu0 %v4972
    %7850 = vmatpush1.bf16.msra.mxu0 %v4971
    %7851 = vmatprep.subr.bf16.mxu0 %v4976
    %7852 = vmatpush1.bf16.msra.mxu0 %v4975
    %7853 = vmatprep.subr.bf16.mxu0 %v4980
    %7854 = vmatpush1.bf16.msra.mxu0 %v4979
    %7855 = vmatprep.subr.bf16.mxu0 %v4984
    %7856 = vmatpush1.bf16.msra.mxu0 %v4983
    %7857 = vmatprep.subr.bf16.mxu0 %v4988
    %7858 = vmatpush1.bf16.msra.mxu0 %v4987
    %7859 = vmatprep.subr.bf16.mxu0 %v4992
    %7860 = vmatpush1.bf16.msra.mxu0 %v4991
    %7861 = vmatprep.subr.bf16.mxu0 %v4996
    %7862 = vmatpush1.bf16.msra.mxu0 %v4995
    %7863 = vmatprep.subr.bf16.mxu0 %v5000
    %7864 = vmatpush1.bf16.msra.mxu0 %v4999
    %7865 = vmatprep.subr.bf16.mxu0 %v5004
    %7866 = vmatpush1.bf16.msra.mxu0 %v5003
    %7867 = vmatprep.subr.bf16.mxu0 %v5008
    %7868 = vmatpush1.bf16.msra.mxu0 %v5007
    %7869 = vmatprep.subr.bf16.mxu0 %v5012
    %7870 = vmatpush1.bf16.msra.mxu0 %v5011
    %7871 = vmatprep.mubr.bf16.mxu0 %v167
    %7872 = vmatmul.mubr.bf16.gmra.mrb[0].mxu0 %v166
    %v7873 = vpop.f32.mrb[0].mxu0
    %v7874 = vadd.f32 %v7831, %v7873
    %v7875 = vpop.f32.mrb[0].mxu0
    %v7876 = vadd.f32 %v7833, %v7875
    %v7877 = vpop.f32.mrb[0].mxu0
    %v7878 = vadd.f32 %v7835, %v7877
    %v7879 = vpop.f32.mrb[0].mxu0
    %v7880 = vadd.f32 %v7837, %v7879
    %7881 = vdwg.mxu0
    %7882 = vmatprep.subr.bf16.mxu0 %v5016
    %7883 = vmatpush1.bf16.msra.mxu0 %v5015
    %7884 = vmatprep.subr.bf16.mxu0 %v5020
    %7885 = vmatpush1.bf16.msra.mxu0 %v5019
    %7886 = vmatprep.subr.bf16.mxu0 %v5024
    %7887 = vmatpush1.bf16.msra.mxu0 %v5023
    %7888 = vmatprep.subr.bf16.mxu0 %v5028
    %7889 = vmatpush1.bf16.msra.mxu0 %v5027
    %7890 = vmatprep.subr.bf16.mxu0 %v5032
    %7891 = vmatpush1.bf16.msra.mxu0 %v5031
    %7892 = vmatprep.subr.bf16.mxu0 %v5036
    %7893 = vmatpush1.bf16.msra.mxu0 %v5035
    %7894 = vmatprep.subr.bf16.mxu0 %v5040
    %7895 = vmatpush1.bf16.msra.mxu0 %v5039
    %7896 = vmatprep.subr.bf16.mxu0 %v5044
    %7897 = vmatpush1.bf16.msra.mxu0 %v5043
    %7898 = vmatprep.subr.bf16.mxu0 %v5048
    %7899 = vmatpush1.bf16.msra.mxu0 %v5047
    %7900 = vmatprep.subr.bf16.mxu0 %v5052
    %7901 = vmatpush1.bf16.msra.mxu0 %v5051
    %7902 = vmatprep.subr.bf16.mxu0 %v5056
    %7903 = vmatpush1.bf16.msra.mxu0 %v5055
    %7904 = vmatprep.subr.bf16.mxu0 %v5060
    %7905 = vmatpush1.bf16.msra.mxu0 %v5059
    %7906 = vmatprep.subr.bf16.mxu0 %v5064
    %7907 = vmatpush1.bf16.msra.mxu0 %v5063
    %7908 = vmatprep.subr.bf16.mxu0 %v5068
    %7909 = vmatpush1.bf16.msra.mxu0 %v5067
    %7910 = vmatprep.subr.bf16.mxu0 %v5072
    %7911 = vmatpush1.bf16.msra.mxu0 %v5071
    %7912 = vmatprep.subr.bf16.mxu0 %v5076
    %7913 = vmatpush1.bf16.msra.mxu0 %v5075
    %7914 = vmatprep.mubr.bf16.mxu0 %v169
    %7915 = vmatmul.mubr.bf16.gmra.mrb[0].mxu0 %v168
    %v7916 = vpop.f32.mrb[0].mxu0
    %v7917 = vadd.f32 %v7874, %v7916
    %v7918 = vpop.f32.mrb[0].mxu0
    %v7919 = vadd.f32 %v7876, %v7918
    %v7920 = vpop.f32.mrb[0].mxu0
    %v7921 = vadd.f32 %v7878, %v7920
    %v7922 = vpop.f32.mrb[0].mxu0
    %v7923 = vadd.f32 %v7880, %v7922
    %7924 = vdwg.mxu0
    %7925 = vmatprep.subr.bf16.mxu0 %v5080
    %7926 = vmatpush1.bf16.msra.mxu0 %v5079
    %7927 = vmatprep.subr.bf16.mxu0 %v5084
    %7928 = vmatpush1.bf16.msra.mxu0 %v5083
    %7929 = vmatprep.subr.bf16.mxu0 %v5088
    %7930 = vmatpush1.bf16.msra.mxu0 %v5087
    %7931 = vmatprep.subr.bf16.mxu0 %v5092
    %7932 = vmatpush1.bf16.msra.mxu0 %v5091
    %7933 = vmatprep.subr.bf16.mxu0 %v5096
    %7934 = vmatpush1.bf16.msra.mxu0 %v5095
    %7935 = vmatprep.subr.bf16.mxu0 %v5100
    %7936 = vmatpush1.bf16.msra.mxu0 %v5099
    %7937 = vmatprep.subr.bf16.mxu0 %v5104
    %7938 = vmatpush1.bf16.msra.mxu0 %v5103
    %7939 = vmatprep.subr.bf16.mxu0 %v5108
    %7940 = vmatpush1.bf16.msra.mxu0 %v5107
    %7941 = vmatprep.subr.bf16.mxu0 %v5112
    %7942 = vmatpush1.bf16.msra.mxu0 %v5111
    %7943 = vmatprep.subr.bf16.mxu0 %v5116
    %7944 = vmatpush1.bf16.msra.mxu0 %v5115
    %7945 = vmatprep.subr.bf16.mxu0 %v5120
    %7946 = vmatpush1.bf16.msra.mxu0 %v5119
    %7947 = vmatprep.subr.bf16.mxu0 %v5124
    %7948 = vmatpush1.bf16.msra.mxu0 %v5123
    %7949 = vmatprep.subr.bf16.mxu0 %v5128
    %7950 = vmatpush1.bf16.msra.mxu0 %v5127
    %7951 = vmatprep.subr.bf16.mxu0 %v5132
    %7952 = vmatpush1.bf16.msra.mxu0 %v5131
    %7953 = vmatprep.subr.bf16.mxu0 %v5136
    %7954 = vmatpush1.bf16.msra.mxu0 %v5135
    %7955 = vmatprep.subr.bf16.mxu0 %v5140
    %7956 = vmatpush1.bf16.msra.mxu0 %v5139
    %7957 = vmatprep.mubr.bf16.mxu0 %v171
    %7958 = vmatmul.mubr.bf16.gmra.mrb[0].mxu0 %v170
    %v7959 = vpop.f32.mrb[0].mxu0
    %v7960 = vadd.f32 %v7917, %v7959
    %v7961 = vpop.f32.mrb[0].mxu0
    %v7962 = vadd.f32 %v7919, %v7961
    %v7963 = vpop.f32.mrb[0].mxu0
    %v7964 = vadd.f32 %v7921, %v7963
    %v7965 = vpop.f32.mrb[0].mxu0
    %v7966 = vadd.f32 %v7923, %v7965
    %7967 = vdwg.mxu0
    %7968 = vmatprep.subr.bf16.mxu0 %v5144
    %7969 = vmatpush1.bf16.msra.mxu0 %v5143
    %7970 = vmatprep.subr.bf16.mxu0 %v5148
    %7971 = vmatpush1.bf16.msra.mxu0 %v5147
    %7972 = vmatprep.subr.bf16.mxu0 %v5152
    %7973 = vmatpush1.bf16.msra.mxu0 %v5151
    %7974 = vmatprep.subr.bf16.mxu0 %v5156
    %7975 = vmatpush1.bf16.msra.mxu0 %v5155
    %7976 = vmatprep.subr.bf16.mxu0 %v5160
    %7977 = vmatpush1.bf16.msra.mxu0 %v5159
    %7978 = vmatprep.subr.bf16.mxu0 %v5164
    %7979 = vmatpush1.bf16.msra.mxu0 %v5163
    %7980 = vmatprep.subr.bf16.mxu0 %v5168
    %7981 = vmatpush1.bf16.msra.mxu0 %v5167
    %7982 = vmatprep.subr.bf16.mxu0 %v5172
    %7983 = vmatpush1.bf16.msra.mxu0 %v5171
    %7984 = vmatprep.subr.bf16.mxu0 %v5176
    %7985 = vmatpush1.bf16.msra.mxu0 %v5175
    %7986 = vmatprep.subr.bf16.mxu0 %v5180
    %7987 = vmatpush1.bf16.msra.mxu0 %v5179
    %7988 = vmatprep.subr.bf16.mxu0 %v5184
    %7989 = vmatpush1.bf16.msra.mxu0 %v5183
    %7990 = vmatprep.subr.bf16.mxu0 %v5188
    %7991 = vmatpush1.bf16.msra.mxu0 %v5187
    %7992 = vmatprep.subr.bf16.mxu0 %v5192
    %7993 = vmatpush1.bf16.msra.mxu0 %v5191
    %7994 = vmatprep.subr.bf16.mxu0 %v5196
    %7995 = vmatpush1.bf16.msra.mxu0 %v5195
    %7996 = vmatprep.subr.bf16.mxu0 %v5200
    %7997 = vmatpush1.bf16.msra.mxu0 %v5199
    %7998 = vmatprep.subr.bf16.mxu0 %v5204
    %7999 = vmatpush1.bf16.msra.mxu0 %v5203
    %8000 = vmatprep.mubr.bf16.mxu0 %v173
    %8001 = vmatmul.mubr.bf16.gmra.mrb[0].mxu0 %v172
    %v8002 = vpop.f32.mrb[0].mxu0
    %v8003 = vadd.f32 %v7960, %v8002
    %v8004 = vpop.f32.mrb[0].mxu0
    %v8005 = vadd.f32 %v7962, %v8004
    %v8006 = vpop.f32.mrb[0].mxu0
    %v8007 = vadd.f32 %v7964, %v8006
    %v8008 = vpop.f32.mrb[0].mxu0
    %v8009 = vadd.f32 %v7966, %v8008
    %8010 = vdwg.mxu0
    %8011 = vmatprep.subr.bf16.mxu0 %v5208
    %8012 = vmatpush1.bf16.msra.mxu0 %v5207
    %8013 = vmatprep.subr.bf16.mxu0 %v5212
    %8014 = vmatpush1.bf16.msra.mxu0 %v5211
    %8015 = vmatprep.subr.bf16.mxu0 %v5216
    %8016 = vmatpush1.bf16.msra.mxu0 %v5215
    %8017 = vmatprep.subr.bf16.mxu0 %v5220
    %8018 = vmatpush1.bf16.msra.mxu0 %v5219
    %8019 = vmatprep.subr.bf16.mxu0 %v5224
    %8020 = vmatpush1.bf16.msra.mxu0 %v5223
    %8021 = vmatprep.subr.bf16.mxu0 %v5228
    %8022 = vmatpush1.bf16.msra.mxu0 %v5227
    %8023 = vmatprep.subr.bf16.mxu0 %v5232
    %8024 = vmatpush1.bf16.msra.mxu0 %v5231
    %8025 = vmatprep.subr.bf16.mxu0 %v5236
    %8026 = vmatpush1.bf16.msra.mxu0 %v5235
    %8027 = vmatprep.subr.bf16.mxu0 %v5240
    %8028 = vmatpush1.bf16.msra.mxu0 %v5239
    %8029 = vmatprep.subr.bf16.mxu0 %v5244
    %8030 = vmatpush1.bf16.msra.mxu0 %v5243
    %8031 = vmatprep.subr.bf16.mxu0 %v5248
    %8032 = vmatpush1.bf16.msra.mxu0 %v5247
    %8033 = vmatprep.subr.bf16.mxu0 %v5252
    %8034 = vmatpush1.bf16.msra.mxu0 %v5251
    %8035 = vmatprep.subr.bf16.mxu0 %v5256
    %8036 = vmatpush1.bf16.msra.mxu0 %v5255
    %8037 = vmatprep.subr.bf16.mxu0 %v5260
    %8038 = vmatpush1.bf16.msra.mxu0 %v5259
    %8039 = vmatprep.subr.bf16.mxu0 %v5264
    %8040 = vmatpush1.bf16.msra.mxu0 %v5263
    %8041 = vmatprep.subr.bf16.mxu0 %v5268
    %8042 = vmatpush1.bf16.msra.mxu0 %v5267
    %8043 = vmatprep.mubr.bf16.mxu0 %v175
    %8044 = vmatmul.mubr.bf16.gmra.mrb[0].mxu0 %v174
    %v8045 = vpop.f32.mrb[0].mxu0
    %v8046 = vadd.f32 %v8003, %v8045
    %v8047 = vpop.f32.mrb[0].mxu0
    %v8048 = vadd.f32 %v8005, %v8047
    %v8049 = vpop.f32.mrb[0].mxu0
    %v8050 = vadd.f32 %v8007, %v8049
    %v8051 = vpop.f32.mrb[0].mxu0
    %v8052 = vadd.f32 %v8009, %v8051
    %8053 = vdwg.mxu0
    %8054 = vmatprep.subr.bf16.mxu0 %v5272
    %8055 = vmatpush1.bf16.msra.mxu0 %v5271
    %8056 = vmatprep.subr.bf16.mxu0 %v5276
    %8057 = vmatpush1.bf16.msra.mxu0 %v5275
    %8058 = vmatprep.subr.bf16.mxu0 %v5280
    %8059 = vmatpush1.bf16.msra.mxu0 %v5279
    %8060 = vmatprep.subr.bf16.mxu0 %v5284
    %8061 = vmatpush1.bf16.msra.mxu0 %v5283
    %8062 = vmatprep.subr.bf16.mxu0 %v5288
    %8063 = vmatpush1.bf16.msra.mxu0 %v5287
    %8064 = vmatprep.subr.bf16.mxu0 %v5292
    %8065 = vmatpush1.bf16.msra.mxu0 %v5291
    %8066 = vmatprep.subr.bf16.mxu0 %v5296
    %8067 = vmatpush1.bf16.msra.mxu0 %v5295
    %8068 = vmatprep.subr.bf16.mxu0 %v5300
    %8069 = vmatpush1.bf16.msra.mxu0 %v5299
    %8070 = vmatprep.subr.bf16.mxu0 %v5304
    %8071 = vmatpush1.bf16.msra.mxu0 %v5303
    %8072 = vmatprep.subr.bf16.mxu0 %v5308
    %8073 = vmatpush1.bf16.msra.mxu0 %v5307
    %8074 = vmatprep.subr.bf16.mxu0 %v5312
    %8075 = vmatpush1.bf16.msra.mxu0 %v5311
    %8076 = vmatprep.subr.bf16.mxu0 %v5316
    %8077 = vmatpush1.bf16.msra.mxu0 %v5315
    %8078 = vmatprep.subr.bf16.mxu0 %v5320
    %8079 = vmatpush1.bf16.msra.mxu0 %v5319
    %8080 = vmatprep.subr.bf16.mxu0 %v5324
    %8081 = vmatpush1.bf16.msra.mxu0 %v5323
    %8082 = vmatprep.subr.bf16.mxu0 %v5328
    %8083 = vmatpush1.bf16.msra.mxu0 %v5327
    %8084 = vmatprep.subr.bf16.mxu0 %v5332
    %8085 = vmatpush1.bf16.msra.mxu0 %v5331
    %8086 = vmatprep.mubr.bf16.mxu0 %v177
    %8087 = vmatmul.mubr.bf16.gmra.mrb[0].mxu0 %v176
    %v8088 = vpop.f32.mrb[0].mxu0
    %v8089 = vadd.f32 %v8046, %v8088
    %v8090 = vpop.f32.mrb[0].mxu0
    %v8091 = vadd.f32 %v8048, %v8090
    %v8092 = vpop.f32.mrb[0].mxu0
    %v8093 = vadd.f32 %v8050, %v8092
    %v8094 = vpop.f32.mrb[0].mxu0
    %v8095 = vadd.f32 %v8052, %v8094
    %8096 = vdwg.mxu0
    %8097 = vmatprep.subr.bf16.mxu0 %v5336
    %8098 = vmatpush1.bf16.msra.mxu0 %v5335
    %8099 = vmatprep.subr.bf16.mxu0 %v5340
    %8100 = vmatpush1.bf16.msra.mxu0 %v5339
    %8101 = vmatprep.subr.bf16.mxu0 %v5344
    %8102 = vmatpush1.bf16.msra.mxu0 %v5343
    %8103 = vmatprep.subr.bf16.mxu0 %v5348
    %8104 = vmatpush1.bf16.msra.mxu0 %v5347
    %8105 = vmatprep.subr.bf16.mxu0 %v5352
    %8106 = vmatpush1.bf16.msra.mxu0 %v5351
    %8107 = vmatprep.subr.bf16.mxu0 %v5356
    %8108 = vmatpush1.bf16.msra.mxu0 %v5355
    %8109 = vmatprep.subr.bf16.mxu0 %v5360
    %8110 = vmatpush1.bf16.msra.mxu0 %v5359
    %8111 = vmatprep.subr.bf16.mxu0 %v5364
    %8112 = vmatpush1.bf16.msra.mxu0 %v5363
    %8113 = vmatprep.subr.bf16.mxu0 %v5368
    %8114 = vmatpush1.bf16.msra.mxu0 %v5367
    %8115 = vmatprep.subr.bf16.mxu0 %v5372
    %8116 = vmatpush1.bf16.msra.mxu0 %v5371
    %8117 = vmatprep.subr.bf16.mxu0 %v5376
    %8118 = vmatpush1.bf16.msra.mxu0 %v5375
    %8119 = vmatprep.subr.bf16.mxu0 %v5380
    %8120 = vmatpush1.bf16.msra.mxu0 %v5379
    %8121 = vmatprep.subr.bf16.mxu0 %v5384
    %8122 = vmatpush1.bf16.msra.mxu0 %v5383
    %8123 = vmatprep.subr.bf16.mxu0 %v5388
    %8124 = vmatpush1.bf16.msra.mxu0 %v5387
    %8125 = vmatprep.subr.bf16.mxu0 %v5392
    %8126 = vmatpush1.bf16.msra.mxu0 %v5391
    %8127 = vmatprep.subr.bf16.mxu0 %v5396
    %8128 = vmatpush1.bf16.msra.mxu0 %v5395
    %8129 = vmatprep.mubr.bf16.mxu0 %v179
    %8130 = vmatmul.mubr.bf16.gmra.mrb[0].mxu0 %v178
    %v8131 = vpop.f32.mrb[0].mxu0
    %v8132 = vadd.f32 %v8089, %v8131
    %v8133 = vpop.f32.mrb[0].mxu0
    %v8134 = vadd.f32 %v8091, %v8133
    %v8135 = vpop.f32.mrb[0].mxu0
    %v8136 = vadd.f32 %v8093, %v8135
    %v8137 = vpop.f32.mrb[0].mxu0
    %v8138 = vadd.f32 %v8095, %v8137
    %8139 = vdwg.mxu0
    %8140 = vmatprep.subr.bf16.mxu0 %v5400
    %8141 = vmatpush1.bf16.msra.mxu0 %v5399
    %8142 = vmatprep.subr.bf16.mxu0 %v5404
    %8143 = vmatpush1.bf16.msra.mxu0 %v5403
    %8144 = vmatprep.subr.bf16.mxu0 %v5408
    %8145 = vmatpush1.bf16.msra.mxu0 %v5407
    %8146 = vmatprep.subr.bf16.mxu0 %v5412
    %8147 = vmatpush1.bf16.msra.mxu0 %v5411
    %8148 = vmatprep.subr.bf16.mxu0 %v5416
    %8149 = vmatpush1.bf16.msra.mxu0 %v5415
    %8150 = vmatprep.subr.bf16.mxu0 %v5420
    %8151 = vmatpush1.bf16.msra.mxu0 %v5419
    %8152 = vmatprep.subr.bf16.mxu0 %v5424
    %8153 = vmatpush1.bf16.msra.mxu0 %v5423
    %8154 = vmatprep.subr.bf16.mxu0 %v5428
    %8155 = vmatpush1.bf16.msra.mxu0 %v5427
    %8156 = vmatprep.subr.bf16.mxu0 %v5432
    %8157 = vmatpush1.bf16.msra.mxu0 %v5431
    %8158 = vmatprep.subr.bf16.mxu0 %v5436
    %8159 = vmatpush1.bf16.msra.mxu0 %v5435
    %8160 = vmatprep.subr.bf16.mxu0 %v5440
    %8161 = vmatpush1.bf16.msra.mxu0 %v5439
    %8162 = vmatprep.subr.bf16.mxu0 %v5444
    %8163 = vmatpush1.bf16.msra.mxu0 %v5443
    %8164 = vmatprep.subr.bf16.mxu0 %v5448
    %8165 = vmatpush1.bf16.msra.mxu0 %v5447
    %8166 = vmatprep.subr.bf16.mxu0 %v5452
    %8167 = vmatpush1.bf16.msra.mxu0 %v5451
    %8168 = vmatprep.subr.bf16.mxu0 %v5456
    %8169 = vmatpush1.bf16.msra.mxu0 %v5455
    %8170 = vmatprep.subr.bf16.mxu0 %v5460
    %8171 = vmatpush1.bf16.msra.mxu0 %v5459
    %8172 = vmatprep.mubr.bf16.mxu0 %v181
    %8173 = vmatmul.mubr.bf16.gmra.mrb[0].mxu0 %v180
    %v8174 = vpop.f32.mrb[0].mxu0
    %v8175 = vadd.f32 %v8132, %v8174
    %v8176 = vpop.f32.mrb[0].mxu0
    %v8177 = vadd.f32 %v8134, %v8176
    %v8178 = vpop.f32.mrb[0].mxu0
    %v8179 = vadd.f32 %v8136, %v8178
    %v8180 = vpop.f32.mrb[0].mxu0
    %v8181 = vadd.f32 %v8138, %v8180
    %8182 = vdwg.mxu0
    %8183 = vmatprep.subr.bf16.mxu0 %v5464
    %8184 = vmatpush1.bf16.msra.mxu0 %v5463
    %8185 = vmatprep.subr.bf16.mxu0 %v5468
    %8186 = vmatpush1.bf16.msra.mxu0 %v5467
    %8187 = vmatprep.subr.bf16.mxu0 %v5472
    %8188 = vmatpush1.bf16.msra.mxu0 %v5471
    %8189 = vmatprep.subr.bf16.mxu0 %v5476
    %8190 = vmatpush1.bf16.msra.mxu0 %v5475
    %8191 = vmatprep.subr.bf16.mxu0 %v5480
    %8192 = vmatpush1.bf16.msra.mxu0 %v5479
    %8193 = vmatprep.subr.bf16.mxu0 %v5484
    %8194 = vmatpush1.bf16.msra.mxu0 %v5483
    %8195 = vmatprep.subr.bf16.mxu0 %v5488
    %8196 = vmatpush1.bf16.msra.mxu0 %v5487
    %8197 = vmatprep.subr.bf16.mxu0 %v5492
    %8198 = vmatpush1.bf16.msra.mxu0 %v5491
    %8199 = vmatprep.subr.bf16.mxu0 %v5496
    %8200 = vmatpush1.bf16.msra.mxu0 %v5495
    %8201 = vmatprep.subr.bf16.mxu0 %v5500
    %8202 = vmatpush1.bf16.msra.mxu0 %v5499
    %8203 = vmatprep.subr.bf16.mxu0 %v5504
    %8204 = vmatpush1.bf16.msra.mxu0 %v5503
    %8205 = vmatprep.subr.bf16.mxu0 %v5508
    %8206 = vmatpush1.bf16.msra.mxu0 %v5507
    %8207 = vmatprep.subr.bf16.mxu0 %v5512
    %8208 = vmatpush1.bf16.msra.mxu0 %v5511
    %8209 = vmatprep.subr.bf16.mxu0 %v5516
    %8210 = vmatpush1.bf16.msra.mxu0 %v5515
    %8211 = vmatprep.subr.bf16.mxu0 %v5520
    %8212 = vmatpush1.bf16.msra.mxu0 %v5519
    %8213 = vmatprep.subr.bf16.mxu0 %v5524
    %8214 = vmatpush1.bf16.msra.mxu0 %v5523
    %8215 = vmatprep.mubr.bf16.mxu0 %v183
    %8216 = vmatmul.mubr.bf16.gmra.mrb[0].mxu0 %v182
    %v8217 = vpop.f32.mrb[0].mxu0
    %v8218 = vadd.f32 %v8175, %v8217
    %v8219 = vpop.f32.mrb[0].mxu0
    %v8220 = vadd.f32 %v8177, %v8219
    %v8221 = vpop.f32.mrb[0].mxu0
    %v8222 = vadd.f32 %v8179, %v8221
    %v8223 = vpop.f32.mrb[0].mxu0
    %v8224 = vadd.f32 %v8181, %v8223
    %8225 = vdwg.mxu0
    %8226 = vmatprep.subr.bf16.mxu0 %v5528
    %8227 = vmatpush1.bf16.msra.mxu0 %v5527
    %8228 = vmatprep.subr.bf16.mxu0 %v5532
    %8229 = vmatpush1.bf16.msra.mxu0 %v5531
    %8230 = vmatprep.subr.bf16.mxu0 %v5536
    %8231 = vmatpush1.bf16.msra.mxu0 %v5535
    %8232 = vmatprep.subr.bf16.mxu0 %v5540
    %8233 = vmatpush1.bf16.msra.mxu0 %v5539
    %8234 = vmatprep.subr.bf16.mxu0 %v5544
    %8235 = vmatpush1.bf16.msra.mxu0 %v5543
    %8236 = vmatprep.subr.bf16.mxu0 %v5548
    %8237 = vmatpush1.bf16.msra.mxu0 %v5547
    %8238 = vmatprep.subr.bf16.mxu0 %v5552
    %8239 = vmatpush1.bf16.msra.mxu0 %v5551
    %8240 = vmatprep.subr.bf16.mxu0 %v5556
    %8241 = vmatpush1.bf16.msra.mxu0 %v5555
    %8242 = vmatprep.subr.bf16.mxu0 %v5560
    %8243 = vmatpush1.bf16.msra.mxu0 %v5559
    %8244 = vmatprep.subr.bf16.mxu0 %v5564
    %8245 = vmatpush1.bf16.msra.mxu0 %v5563
    %8246 = vmatprep.subr.bf16.mxu0 %v5568
    %8247 = vmatpush1.bf16.msra.mxu0 %v5567
    %8248 = vmatprep.subr.bf16.mxu0 %v5572
    %8249 = vmatpush1.bf16.msra.mxu0 %v5571
    %8250 = vmatprep.subr.bf16.mxu0 %v5576
    %8251 = vmatpush1.bf16.msra.mxu0 %v5575
    %8252 = vmatprep.subr.bf16.mxu0 %v5580
    %8253 = vmatpush1.bf16.msra.mxu0 %v5579
    %8254 = vmatprep.subr.bf16.mxu0 %v5584
    %8255 = vmatpush1.bf16.msra.mxu0 %v5583
    %8256 = vmatprep.subr.bf16.mxu0 %v5588
    %8257 = vmatpush1.bf16.msra.mxu0 %v5587
    %8258 = vmatprep.mubr.bf16.mxu0 %v185
    %8259 = vmatmul.mubr.bf16.gmra.mrb[0].mxu0 %v184
    %v8260 = vpop.f32.mrb[0].mxu0
    %v8261 = vadd.f32 %v8218, %v8260
    %v8262 = vpop.f32.mrb[0].mxu0
    %v8263 = vadd.f32 %v8220, %v8262
    %v8264 = vpop.f32.mrb[0].mxu0
    %v8265 = vadd.f32 %v8222, %v8264
    %v8266 = vpop.f32.mrb[0].mxu0
    %v8267 = vadd.f32 %v8224, %v8266
    %8268 = vdwg.mxu0
    %8269 = vmatprep.subr.bf16.mxu0 %v5592
    %8270 = vmatpush1.bf16.msra.mxu0 %v5591
    %8271 = vmatprep.subr.bf16.mxu0 %v5596
    %8272 = vmatpush1.bf16.msra.mxu0 %v5595
    %8273 = vmatprep.subr.bf16.mxu0 %v5600
    %8274 = vmatpush1.bf16.msra.mxu0 %v5599
    %8275 = vmatprep.subr.bf16.mxu0 %v5604
    %8276 = vmatpush1.bf16.msra.mxu0 %v5603
    %8277 = vmatprep.subr.bf16.mxu0 %v5608
    %8278 = vmatpush1.bf16.msra.mxu0 %v5607
    %8279 = vmatprep.subr.bf16.mxu0 %v5612
    %8280 = vmatpush1.bf16.msra.mxu0 %v5611
    %8281 = vmatprep.subr.bf16.mxu0 %v5616
    %8282 = vmatpush1.bf16.msra.mxu0 %v5615
    %8283 = vmatprep.subr.bf16.mxu0 %v5620
    %8284 = vmatpush1.bf16.msra.mxu0 %v5619
    %8285 = vmatprep.subr.bf16.mxu0 %v5624
    %8286 = vmatpush1.bf16.msra.mxu0 %v5623
    %8287 = vmatprep.subr.bf16.mxu0 %v5628
    %8288 = vmatpush1.bf16.msra.mxu0 %v5627
    %8289 = vmatprep.subr.bf16.mxu0 %v5632
    %8290 = vmatpush1.bf16.msra.mxu0 %v5631
    %8291 = vmatprep.subr.bf16.mxu0 %v5636
    %8292 = vmatpush1.bf16.msra.mxu0 %v5635
    %8293 = vmatprep.subr.bf16.mxu0 %v5640
    %8294 = vmatpush1.bf16.msra.mxu0 %v5639
    %8295 = vmatprep.subr.bf16.mxu0 %v5644
    %8296 = vmatpush1.bf16.msra.mxu0 %v5643
    %8297 = vmatprep.subr.bf16.mxu0 %v5648
    %8298 = vmatpush1.bf16.msra.mxu0 %v5647
    %8299 = vmatprep.subr.bf16.mxu0 %v5652
    %8300 = vmatpush1.bf16.msra.mxu0 %v5651
    %8301 = vmatprep.mubr.bf16.mxu0 %v187
    %8302 = vmatmul.mubr.bf16.gmra.mrb[0].mxu0 %v186
    %v8303 = vpop.f32.mrb[0].mxu0
    %v8304 = vadd.f32 %v8261, %v8303
    %v8305 = vpop.f32.mrb[0].mxu0
    %v8306 = vadd.f32 %v8263, %v8305
    %v8307 = vpop.f32.mrb[0].mxu0
    %v8308 = vadd.f32 %v8265, %v8307
    %v8309 = vpop.f32.mrb[0].mxu0
    %v8310 = vadd.f32 %v8267, %v8309
    %8311 = vdwg.mxu0
    %8312 = vmatprep.subr.bf16.mxu0 %v5656
    %8313 = vmatpush1.bf16.msra.mxu0 %v5655
    %8314 = vmatprep.subr.bf16.mxu0 %v5660
    %8315 = vmatpush1.bf16.msra.mxu0 %v5659
    %8316 = vmatprep.subr.bf16.mxu0 %v5664
    %8317 = vmatpush1.bf16.msra.mxu0 %v5663
    %8318 = vmatprep.subr.bf16.mxu0 %v5668
    %8319 = vmatpush1.bf16.msra.mxu0 %v5667
    %8320 = vmatprep.subr.bf16.mxu0 %v5672
    %8321 = vmatpush1.bf16.msra.mxu0 %v5671
    %8322 = vmatprep.subr.bf16.mxu0 %v5676
    %8323 = vmatpush1.bf16.msra.mxu0 %v5675
    %8324 = vmatprep.subr.bf16.mxu0 %v5680
    %8325 = vmatpush1.bf16.msra.mxu0 %v5679
    %8326 = vmatprep.subr.bf16.mxu0 %v5684
    %8327 = vmatpush1.bf16.msra.mxu0 %v5683
    %8328 = vmatprep.subr.bf16.mxu0 %v5688
    %8329 = vmatpush1.bf16.msra.mxu0 %v5687
    %8330 = vmatprep.subr.bf16.mxu0 %v5692
    %8331 = vmatpush1.bf16.msra.mxu0 %v5691
    %8332 = vmatprep.subr.bf16.mxu0 %v5696
    %8333 = vmatpush1.bf16.msra.mxu0 %v5695
    %8334 = vmatprep.subr.bf16.mxu0 %v5700
    %8335 = vmatpush1.bf16.msra.mxu0 %v5699
    %8336 = vmatprep.subr.bf16.mxu0 %v5704
    %8337 = vmatpush1.bf16.msra.mxu0 %v5703
    %8338 = vmatprep.subr.bf16.mxu0 %v5708
    %8339 = vmatpush1.bf16.msra.mxu0 %v5707
    %8340 = vmatprep.subr.bf16.mxu0 %v5712
    %8341 = vmatpush1.bf16.msra.mxu0 %v5711
    %8342 = vmatprep.subr.bf16.mxu0 %v5716
    %8343 = vmatpush1.bf16.msra.mxu0 %v5715
    %8344 = vmatprep.mubr.bf16.mxu0 %v189
    %8345 = vmatmul.mubr.bf16.gmra.mrb[0].mxu0 %v188
    %v8346 = vpop.f32.mrb[0].mxu0
    %v8347 = vadd.f32 %v8304, %v8346
    %v8348 = vpop.f32.mrb[0].mxu0
    %v8349 = vadd.f32 %v8306, %v8348
    %v8350 = vpop.f32.mrb[0].mxu0
    %v8351 = vadd.f32 %v8308, %v8350
    %v8352 = vpop.f32.mrb[0].mxu0
    %v8353 = vadd.f32 %v8310, %v8352
    %8354 = vdwg.mxu0
    %8355 = vmatprep.subr.bf16.mxu0 %v5720
    %8356 = vmatpush1.bf16.msra.mxu0 %v5719
    %8357 = vmatprep.subr.bf16.mxu0 %v5724
    %8358 = vmatpush1.bf16.msra.mxu0 %v5723
    %8359 = vmatprep.subr.bf16.mxu0 %v5728
    %8360 = vmatpush1.bf16.msra.mxu0 %v5727
    %8361 = vmatprep.subr.bf16.mxu0 %v6848
    %8362 = vmatpush1.bf16.msra.mxu0 %v6845
    %8363 = vmatprep.subr.bf16.mxu0 0
    %8364 = vmatpush1.bf16.msra.mxu0 0
    %8365 = vmatprep.subr.bf16.mxu0 0
    %8366 = vmatpush1.bf16.msra.mxu0 0
    %8367 = vmatprep.subr.bf16.mxu0 0
    %8368 = vmatpush1.bf16.msra.mxu0 0
    %8369 = vmatprep.subr.bf16.mxu0 0
    %8370 = vmatpush1.bf16.msra.mxu0 0
    %8371 = vmatprep.subr.bf16.mxu0 0
    %8372 = vmatpush1.bf16.msra.mxu0 0
    %8373 = vmatprep.subr.bf16.mxu0 0
    %8374 = vmatpush1.bf16.msra.mxu0 0
    %8375 = vmatprep.subr.bf16.mxu0 0
    %8376 = vmatpush1.bf16.msra.mxu0 0
    %8377 = vmatprep.subr.bf16.mxu0 0
    %8378 = vmatpush1.bf16.msra.mxu0 0
    %8379 = vmatprep.subr.bf16.mxu0 0
    %8380 = vmatpush1.bf16.msra.mxu0 0
    %8381 = vmatprep.subr.bf16.mxu0 0
    %8382 = vmatpush1.bf16.msra.mxu0 0
    %8383 = vmatprep.subr.bf16.mxu0 0
    %8384 = vmatpush1.bf16.msra.mxu0 0
    %8385 = vmatprep.subr.bf16.mxu0 0
    %8386 = vmatpush1.bf16.msra.mxu0 0
    %8387 = vmatprep.mubr.bf16.mxu0 0
    %8388 = vmatmul.mubr.bf16.gmra.mrb[0].mxu0 %v6835
    %v8389 = vpop.f32.mrb[0].mxu0
    %v8390 = vadd.f32 %v8347, %v8389
    %v8391 = vpop.f32.mrb[0].mxu0
    %v8392 = vadd.f32 %v8349, %v8391
    %v8393 = vpop.f32.mrb[0].mxu0
    %v8394 = vadd.f32 %v8351, %v8393
    %v8395 = vpop.f32.mrb[0].mxu0
    %v8396 = vadd.f32 %v8353, %v8395
    %8397 = vdwg.mxu0
    %v8398 = vmax.f32 %v7616, 0.0
    %v8399 = vmax.f32 %v7618, 0.0
    %v8400 = vmax.f32 %v8390, 0.0
    %v8401 = vmax.f32 %v8392, 0.0
    %v8402 = vmax.f32 %v7620, 0.0
    %v8403 = vmax.f32 %v7622, 0.0
    %v8404 = vmax.f32 %v8394, 0.0
    %v8405 = vmax.f32 %v8396, 0.0
    %v8406 = vpack.c.bf16 %v8402, %v8398
    %v8407 = vpack.c.bf16 %v8403, %v8399
    %v8408 = vpack.c.bf16 %v8404, %v8400
    %v8409 = vpack.c.bf16 %v8405, %v8401
    %v8410 = vld [vmem:[#allocation8] sm:$0xff]
    %v8411 = vld [vmem:[#allocation8 + $0x8] sm:$0xff]
    %v8412 = vld [vmem:[#allocation8 + $0x10] sm:$0xff]
    %v8413 = vld [vmem:[#allocation8 + $0x18] sm:$0xff]
    %v8414 = vld [vmem:[#allocation8 + $0x20] sm:$0xff]
    %v8415 = vld [vmem:[#allocation8 + $0x28] sm:$0xff]
    %v8416 = vld [vmem:[#allocation8 + $0x30] sm:$0xff]
    %v8417 = vld [vmem:[#allocation8 + $0x38] sm:$0xff]
    %v8418 = vld [vmem:[#allocation8 + $0x40] sm:$0xff]
    %v8419 = vld [vmem:[#allocation8 + $0x48] sm:$0xff]
    %v8420 = vld [vmem:[#allocation8 + $0x50] sm:$0xff]
    %v8421 = vld [vmem:[#allocation8 + $0x58] sm:$0xff]
    %v8422 = vld [vmem:[#allocation8 + $0x60] sm:$0xff]
    %v8423 = vld [vmem:[#allocation8 + $0x68] sm:$0xff]
    %v8424 = vld [vmem:[#allocation8 + $0x70] sm:$0xff]
    %v8425 = vld [vmem:[#allocation8 + $0x78] sm:$0xff]
    %v8426 = vld [vmem:[#allocation8 + $0x80] sm:$0xff]
    %v8427 = vld [vmem:[#allocation8 + $0x88] sm:$0xff]
    %v8428 = vld [vmem:[#allocation8 + $0x90] sm:$0xff]
    %v8429 = vld [vmem:[#allocation8 + $0x98] sm:$0xff]
    %v8430 = vld [vmem:[#allocation8 + $0xa0] sm:$0xff]
    %v8431 = vld [vmem:[#allocation8 + $0xa8] sm:$0xff]
    %v8432 = vld [vmem:[#allocation8 + $0xb0] sm:$0xff]
    %v8433 = vld [vmem:[#allocation8 + $0xb8] sm:$0xff]
    %v8434 = vld [vmem:[#allocation8 + $0xc0] sm:$0xff]
    %v8435 = vld [vmem:[#allocation8 + $0xc8] sm:$0xff]
    %v8436 = vld [vmem:[#allocation8 + $0xd0] sm:$0xff]
    %v8437 = vld [vmem:[#allocation8 + $0xd8] sm:$0xff]
    %v8438 = vld [vmem:[#allocation8 + $0xe0] sm:$0xff]
    %v8439 = vld [vmem:[#allocation8 + $0xe8] sm:$0xff]
    %v8440 = vld [vmem:[#allocation8 + $0xf0] sm:$0xff]
    %v8441 = vld [vmem:[#allocation8 + $0xf8] sm:$0xff]
    %v8442 = vld [vmem:[#allocation8 + $0x100] sm:$0xff]
    %v8443 = vld [vmem:[#allocation8 + $0x108] sm:$0xff]
    %v8444 = vld [vmem:[#allocation8 + $0x110] sm:$0xff]
    %v8445 = vld [vmem:[#allocation8 + $0x118] sm:$0xff]
    %v8446 = vld [vmem:[#allocation8 + $0x120] sm:$0xff]
    %v8447 = vld [vmem:[#allocation8 + $0x128] sm:$0xff]
    %v8448 = vld [vmem:[#allocation8 + $0x130] sm:$0xff]
    %v8449 = vld [vmem:[#allocation8 + $0x138] sm:$0xff]
    %v8450 = vld [vmem:[#allocation8 + $0x140] sm:$0xff]
    %v8451 = vld [vmem:[#allocation8 + $0x148] sm:$0xff]
    %v8452 = vld [vmem:[#allocation8 + $0x150] sm:$0xff]
    %v8453 = vld [vmem:[#allocation8 + $0x158] sm:$0xff]
    %v8454 = vld [vmem:[#allocation8 + $0x160] sm:$0xff]
    %v8455 = vld [vmem:[#allocation8 + $0x168] sm:$0xff]
    %v8456 = vld [vmem:[#allocation8 + $0x170] sm:$0xff]
    %v8457 = vld [vmem:[#allocation8 + $0x178] sm:$0xff]
    %v8458 = vld [vmem:[#allocation8 + $0x180] sm:$0xff]
    %v8459 = vld [vmem:[#allocation8 + $0x188] sm:$0xff]
    %v8460 = vld [vmem:[#allocation8 + $0x190] sm:$0xff]
    %v8461 = vld [vmem:[#allocation8 + $0x198] sm:$0xff]
    %v8462 = vld [vmem:[#allocation8 + $0x1a0] sm:$0xff]
    %v8463 = vld [vmem:[#allocation8 + $0x1a8] sm:$0xff]
    %v8464 = vld [vmem:[#allocation8 + $0x1b0] sm:$0xff]
    %v8465 = vld [vmem:[#allocation8 + $0x1b8] sm:$0xff]
    %v8466 = vld [vmem:[#allocation8 + $0x1c0] sm:$0xff]
    %v8467 = vld [vmem:[#allocation8 + $0x1c8] sm:$0xff]
    %v8468 = vld [vmem:[#allocation8 + $0x1d0] sm:$0xff]
    %v8469 = vld [vmem:[#allocation8 + $0x1d8] sm:$0xff]
    %v8470 = vld [vmem:[#allocation8 + $0x1e0] sm:$0xff]
    %v8471 = vld [vmem:[#allocation8 + $0x1e8] sm:$0xff]
    %v8472 = vld [vmem:[#allocation8 + $0x1f0] sm:$0xff]
    %v8473 = vld [vmem:[#allocation8 + $0x1f8] sm:$0xff]
    %v8474 = vld [vmem:[#allocation8 + $0x200] sm:$0xff]
    %v8475 = vld [vmem:[#allocation8 + $0x208] sm:$0xff]
    %v8476 = vld [vmem:[#allocation8 + $0x210] sm:$0xff]
    %v8477 = vld [vmem:[#allocation8 + $0x218] sm:$0xff]
    %v8478 = vld [vmem:[#allocation8 + $0x220] sm:$0xff]
    %v8479 = vld [vmem:[#allocation8 + $0x228] sm:$0xff]
    %v8480 = vld [vmem:[#allocation8 + $0x230] sm:$0xff]
    %v8481 = vld [vmem:[#allocation8 + $0x238] sm:$0xff]
    %v8482 = vld [vmem:[#allocation8 + $0x240] sm:$0xff]
    %v8483 = vld [vmem:[#allocation8 + $0x248] sm:$0xff]
    %v8484 = vld [vmem:[#allocation8 + $0x250] sm:$0xff]
    %v8485 = vld [vmem:[#allocation8 + $0x258] sm:$0xff]
    %v8486 = vld [vmem:[#allocation8 + $0x260] sm:$0xff]
    %v8487 = vld [vmem:[#allocation8 + $0x268] sm:$0xff]
    %v8488 = vld [vmem:[#allocation8 + $0x270] sm:$0xff]
    %v8489 = vld [vmem:[#allocation8 + $0x278] sm:$0xff]
    %v8490 = vld [vmem:[#allocation8 + $0x280] sm:$0xff]
    %v8491 = vld [vmem:[#allocation8 + $0x288] sm:$0xff]
    %v8492 = vld [vmem:[#allocation8 + $0x290] sm:$0xff]
    %v8493 = vld [vmem:[#allocation8 + $0x298] sm:$0xff]
    %v8494 = vld [vmem:[#allocation8 + $0x2a0] sm:$0xff]
    %v8495 = vld [vmem:[#allocation8 + $0x2a8] sm:$0xff]
    %v8496 = vld [vmem:[#allocation8 + $0x2b0] sm:$0xff]
    %v8497 = vld [vmem:[#allocation8 + $0x2b8] sm:$0xff]
    %v8498 = vld [vmem:[#allocation8 + $0x2c0] sm:$0xff]
    %v8499 = vld [vmem:[#allocation8 + $0x2c8] sm:$0xff]
    %v8500 = vld [vmem:[#allocation8 + $0x2d0] sm:$0xff]
    %v8501 = vld [vmem:[#allocation8 + $0x2d8] sm:$0xff]
    %v8502 = vld [vmem:[#allocation8 + $0x2e0] sm:$0xff]
    %v8503 = vld [vmem:[#allocation8 + $0x2e8] sm:$0xff]
    %v8504 = vld [vmem:[#allocation8 + $0x2f0] sm:$0xff]
    %v8505 = vld [vmem:[#allocation8 + $0x2f8] sm:$0xff]
    %v8506 = vld [vmem:[#allocation8 + $0x300] sm:$0xff]
    %v8507 = vld [vmem:[#allocation8 + $0x308] sm:$0xff]
    %v8508 = vld [vmem:[#allocation8 + $0x310] sm:$0xff]
    %v8509 = vld [vmem:[#allocation8 + $0x318] sm:$0xff]
    %v8510 = vld [vmem:[#allocation8 + $0x320] sm:$0xff]
    %v8511 = vld [vmem:[#allocation8 + $0x328] sm:$0xff]
    %v8512 = vld [vmem:[#allocation8 + $0x330] sm:$0xff]
    %v8513 = vld [vmem:[#allocation8 + $0x338] sm:$0xff]
    %v8514 = vld [vmem:[#allocation8 + $0x340] sm:$0xff]
    %v8515 = vld [vmem:[#allocation8 + $0x348] sm:$0xff]
    %v8516 = vld [vmem:[#allocation8 + $0x350] sm:$0xff]
    %v8517 = vld [vmem:[#allocation8 + $0x358] sm:$0xff]
    %v8518 = vld [vmem:[#allocation8 + $0x360] sm:$0xff]
    %v8519 = vld [vmem:[#allocation8 + $0x368] sm:$0xff]
    %v8520 = vld [vmem:[#allocation8 + $0x370] sm:$0xff]
    %v8521 = vld [vmem:[#allocation8 + $0x378] sm:$0xff]
    %v8522 = vld [vmem:[#allocation8 + $0x380] sm:$0xff]
    %v8523 = vld [vmem:[#allocation8 + $0x388] sm:$0xff]
    %v8524 = vld [vmem:[#allocation8 + $0x390] sm:$0xff]
    %v8525 = vld [vmem:[#allocation8 + $0x398] sm:$0xff]
    %v8526 = vld [vmem:[#allocation8 + $0x3a0] sm:$0xff]
    %v8527 = vld [vmem:[#allocation8 + $0x3a8] sm:$0xff]
    %v8528 = vld [vmem:[#allocation8 + $0x3b0] sm:$0xff]
    %v8529 = vld [vmem:[#allocation8 + $0x3b8] sm:$0xff]
    %v8530 = vld [vmem:[#allocation8 + $0x3c0] sm:$0xff]
    %v8531 = vld [vmem:[#allocation8 + $0x3c8] sm:$0xff]
    %v8532 = vld [vmem:[#allocation8 + $0x3d0] sm:$0xff]
    %v8533 = vld [vmem:[#allocation8 + $0x3d8] sm:$0xff]
    %v8534 = vld [vmem:[#allocation8 + $0x3e0] sm:$0xff]
    %v8535 = vld [vmem:[#allocation8 + $0x3e8] sm:$0xff]
    %v8536 = vld [vmem:[#allocation8 + $0x3f0] sm:$0xff]
    %v8537 = vld [vmem:[#allocation8 + $0x3f8] sm:$0xff]
    %v8538 = vld [vmem:[#allocation8 + $0x400] sm:$0xff]
    %v8539 = vld [vmem:[#allocation8 + $0x408] sm:$0xff]
    %v8540 = vld [vmem:[#allocation8 + $0x410] sm:$0xff]
    %v8541 = vld [vmem:[#allocation8 + $0x418] sm:$0xff]
    %v8542 = vld [vmem:[#allocation8 + $0x420] sm:$0xff]
    %v8543 = vld [vmem:[#allocation8 + $0x428] sm:$0xff]
    %v8544 = vld [vmem:[#allocation8 + $0x430] sm:$0xff]
    %v8545 = vld [vmem:[#allocation8 + $0x438] sm:$0xff]
    %v8546 = vld [vmem:[#allocation8 + $0x440] sm:$0xff]
    %v8547 = vld [vmem:[#allocation8 + $0x448] sm:$0xff]
    %v8548 = vld [vmem:[#allocation8 + $0x450] sm:$0xff]
    %v8549 = vld [vmem:[#allocation8 + $0x458] sm:$0xff]
    %v8550 = vld [vmem:[#allocation8 + $0x460] sm:$0xff]
    %v8551 = vld [vmem:[#allocation8 + $0x468] sm:$0xff]
    %v8552 = vld [vmem:[#allocation8 + $0x470] sm:$0xff]
    %v8553 = vld [vmem:[#allocation8 + $0x478] sm:$0xff]
    %v8554 = vld [vmem:[#allocation8 + $0x480] sm:$0xff]
    %v8555 = vld [vmem:[#allocation8 + $0x488] sm:$0xff]
    %v8556 = vld [vmem:[#allocation8 + $0x490] sm:$0xff]
    %v8557 = vld [vmem:[#allocation8 + $0x498] sm:$0xff]
    %v8558 = vld [vmem:[#allocation8 + $0x4a0] sm:$0xff]
    %v8559 = vld [vmem:[#allocation8 + $0x4a8] sm:$0xff]
    %v8560 = vld [vmem:[#allocation8 + $0x4b0] sm:$0xff]
    %v8561 = vld [vmem:[#allocation8 + $0x4b8] sm:$0xff]
    %v8562 = vld [vmem:[#allocation8 + $0x4c0] sm:$0xff]
    %v8563 = vld [vmem:[#allocation8 + $0x4c8] sm:$0xff]
    %v8564 = vld [vmem:[#allocation8 + $0x4d0] sm:$0xff]
    %v8565 = vld [vmem:[#allocation8 + $0x4d8] sm:$0xff]
    %v8566 = vld [vmem:[#allocation8 + $0x4e0] sm:$0xff]
    %v8567 = vld [vmem:[#allocation8 + $0x4e8] sm:$0xff]
    %v8568 = vld [vmem:[#allocation8 + $0x4f0] sm:$0xff]
    %v8569 = vld [vmem:[#allocation8 + $0x4f8] sm:$0xff]
    %v8570 = vld [vmem:[#allocation8 + $0x500] sm:$0xff]
    %v8571 = vld [vmem:[#allocation8 + $0x508] sm:$0xff]
    %v8572 = vld [vmem:[#allocation8 + $0x510] sm:$0xff]
    %v8573 = vld [vmem:[#allocation8 + $0x518] sm:$0xff]
    %v8574 = vld [vmem:[#allocation8 + $0x520] sm:$0xff]
    %v8575 = vld [vmem:[#allocation8 + $0x528] sm:$0xff]
    %v8576 = vld [vmem:[#allocation8 + $0x530] sm:$0xff]
    %v8577 = vld [vmem:[#allocation8 + $0x538] sm:$0xff]
    %v8578 = vld [vmem:[#allocation8 + $0x540] sm:$0xff]
    %v8579 = vld [vmem:[#allocation8 + $0x548] sm:$0xff]
    %v8580 = vld [vmem:[#allocation8 + $0x550] sm:$0xff]
    %v8581 = vld [vmem:[#allocation8 + $0x558] sm:$0xff]
    %v8582 = vld [vmem:[#allocation8 + $0x560] sm:$0xff]
    %v8583 = vld [vmem:[#allocation8 + $0x568] sm:$0xff]
    %v8584 = vld [vmem:[#allocation8 + $0x570] sm:$0xff]
    %v8585 = vld [vmem:[#allocation8 + $0x578] sm:$0xff]
    %v8586 = vld [vmem:[#allocation8 + $0x580] sm:$0xff]
    %v8587 = vld [vmem:[#allocation8 + $0x588] sm:$0xff]
    %v8588 = vld [vmem:[#allocation8 + $0x590] sm:$0xff]
    %v8589 = vld [vmem:[#allocation8 + $0x598] sm:$0xff]
    %v8590 = vld [vmem:[#allocation8 + $0x5a0] sm:$0xff]
    %v8591 = vld [vmem:[#allocation8 + $0x5a8] sm:$0xff]
    %v8592 = vld [vmem:[#allocation8 + $0x5b0] sm:$0xff]
    %v8593 = vld [vmem:[#allocation8 + $0x5b8] sm:$0xff]
    %v8594 = vld [vmem:[#allocation8 + $0x5c0] sm:$0xff]
    %v8595 = vld [vmem:[#allocation8 + $0x5c8] sm:$0xff]
    %v8596 = vld [vmem:[#allocation8 + $0x5d0] sm:$0xff]
    %v8597 = vld [vmem:[#allocation8 + $0x5d8] sm:$0xff]
    %v8598 = vld [vmem:[#allocation8 + $0x5e0] sm:$0xff]
    %v8599 = vld [vmem:[#allocation8 + $0x5e8] sm:$0xff]
    %v8600 = vld [vmem:[#allocation8 + $0x5f0] sm:$0xff]
    %v8601 = vld [vmem:[#allocation8 + $0x5f8] sm:$0xff]
    %v8602 = vld [vmem:[#allocation8 + $0x600] sm:$0xff]
    %v8603 = vld [vmem:[#allocation8 + $0x608] sm:$0xff]
    %v8604 = vld [vmem:[#allocation8 + $0x610] sm:$0xff]
    %v8605 = vld [vmem:[#allocation8 + $0x618] sm:$0xff]
    %v8606 = vld [vmem:[#allocation8 + $0x620] sm:$0xff]
    %v8607 = vld [vmem:[#allocation8 + $0x628] sm:$0xff]
    %v8608 = vld [vmem:[#allocation8 + $0x630] sm:$0xff]
    %v8609 = vld [vmem:[#allocation8 + $0x638] sm:$0xff]
    %v8610 = vld [vmem:[#allocation8 + $0x640] sm:$0xff]
    %v8611 = vld [vmem:[#allocation8 + $0x648] sm:$0xff]
    %v8612 = vld [vmem:[#allocation8 + $0x650] sm:$0xff]
    %v8613 = vld [vmem:[#allocation8 + $0x658] sm:$0xff]
    %v8614 = vld [vmem:[#allocation8 + $0x660] sm:$0xff]
    %v8615 = vld [vmem:[#allocation8 + $0x668] sm:$0xff]
    %v8616 = vld [vmem:[#allocation8 + $0x670] sm:$0xff]
    %v8617 = vld [vmem:[#allocation8 + $0x678] sm:$0xff]
    %v8618 = vld [vmem:[#allocation8 + $0x680] sm:$0xff]
    %v8619 = vld [vmem:[#allocation8 + $0x688] sm:$0xff]
    %v8620 = vld [vmem:[#allocation8 + $0x690] sm:$0xff]
    %v8621 = vld [vmem:[#allocation8 + $0x698] sm:$0xff]
    %v8622 = vld [vmem:[#allocation8 + $0x6a0] sm:$0xff]
    %v8623 = vld [vmem:[#allocation8 + $0x6a8] sm:$0xff]
    %v8624 = vld [vmem:[#allocation8 + $0x6b0] sm:$0xff]
    %v8625 = vld [vmem:[#allocation8 + $0x6b8] sm:$0xff]
    %v8626 = vld [vmem:[#allocation8 + $0x6c0] sm:$0xff]
    %v8627 = vld [vmem:[#allocation8 + $0x6c8] sm:$0xff]
    %v8628 = vld [vmem:[#allocation8 + $0x6d0] sm:$0xff]
    %v8629 = vld [vmem:[#allocation8 + $0x6d8] sm:$0xff]
    %v8630 = vld [vmem:[#allocation8 + $0x6e0] sm:$0xff]
    %v8631 = vld [vmem:[#allocation8 + $0x6e8] sm:$0xff]
    %v8632 = vld [vmem:[#allocation8 + $0x6f0] sm:$0xff]
    %v8633 = vld [vmem:[#allocation8 + $0x6f8] sm:$0xff]
    %v8634 = vld [vmem:[#allocation8 + $0x700] sm:$0xff]
    %v8635 = vld [vmem:[#allocation8 + $0x708] sm:$0xff]
    %v8636 = vld [vmem:[#allocation8 + $0x710] sm:$0xff]
    %v8637 = vld [vmem:[#allocation8 + $0x718] sm:$0xff]
    %v8638 = vld [vmem:[#allocation8 + $0x720] sm:$0xff]
    %v8639 = vld [vmem:[#allocation8 + $0x728] sm:$0xff]
    %v8640 = vld [vmem:[#allocation8 + $0x730] sm:$0xff]
    %v8641 = vld [vmem:[#allocation8 + $0x738] sm:$0xff]
    %v8642 = vld [vmem:[#allocation8 + $0x740] sm:$0xff]
    %v8643 = vld [vmem:[#allocation8 + $0x748] sm:$0xff]
    %v8644 = vld [vmem:[#allocation8 + $0x750] sm:$0xff]
    %v8645 = vld [vmem:[#allocation8 + $0x758] sm:$0xff]
    %v8646 = vld [vmem:[#allocation8 + $0x760] sm:$0xff]
    %v8647 = vld [vmem:[#allocation8 + $0x768] sm:$0xff]
    %v8648 = vld [vmem:[#allocation8 + $0x770] sm:$0xff]
    %v8649 = vld [vmem:[#allocation8 + $0x778] sm:$0xff]
    %v8650 = vld [vmem:[#allocation8 + $0x780] sm:$0xff]
    %v8651 = vld [vmem:[#allocation8 + $0x788] sm:$0xff]
    %v8652 = vld [vmem:[#allocation8 + $0x790] sm:$0xff]
    %v8653 = vld [vmem:[#allocation8 + $0x798] sm:$0xff]
    %v8654 = vld [vmem:[#allocation8 + $0x7a0] sm:$0xff]
    %v8655 = vld [vmem:[#allocation8 + $0x7a8] sm:$0xff]
    %v8656 = vld [vmem:[#allocation8 + $0x7b0] sm:$0xff]
    %v8657 = vld [vmem:[#allocation8 + $0x7b8] sm:$0xff]
    %v8658 = vld [vmem:[#allocation8 + $0x7c0] sm:$0xff]
    %v8659 = vld [vmem:[#allocation8 + $0x7c8] sm:$0xff]
    %v8660 = vld [vmem:[#allocation8 + $0x7d0] sm:$0xff]
    %v8661 = vld [vmem:[#allocation8 + $0x7d8] sm:$0xff]
    %v8662 = vld [vmem:[#allocation8 + $0x7e0] sm:$0xff]
    %v8663 = vld [vmem:[#allocation8 + $0x7e8] sm:$0xff]
    %v8664 = vld [vmem:[#allocation8 + $0x7f0] sm:$0xff]
    %v8665 = vld [vmem:[#allocation8 + $0x7f8] sm:$0xff]
    %v8666 = vld [vmem:[#allocation10] sm:$0xff]
    %v8668 = vlaneseq
    %v8669 = vshrl.u32 %v8668, 7
    %v8670 = vsub.s32 0, %v8669
    %v8671 = vrot.slane %v8666, %v8670
    %v8672 = vlaneseq
    %v8673 = vshrl.u32 %v8672, 7
    %v8674 = vsub.s32 1, %v8673
    %v8675 = vrot.slane %v8666, %v8674
    %v8676 = vlaneseq
    %v8677 = vshrl.u32 %v8676, 7
    %v8678 = vsub.s32 2, %v8677
    %v8679 = vrot.slane %v8666, %v8678
    %v8680 = vlaneseq
    %v8681 = vshrl.u32 %v8680, 7
    %v8682 = vsub.s32 3, %v8681
    %v8683 = vrot.slane %v8666, %v8682
    %v8684 = vlaneseq
    %v8685 = vshrl.u32 %v8684, 7
    %v8686 = vsub.s32 4, %v8685
    %v8687 = vrot.slane %v8666, %v8686
    %v8688 = vlaneseq
    %v8689 = vshrl.u32 %v8688, 7
    %v8690 = vsub.s32 5, %v8689
    %v8691 = vrot.slane %v8666, %v8690
    %v8692 = vlaneseq
    %v8693 = vshrl.u32 %v8692, 7
    %v8694 = vsub.s32 6, %v8693
    %v8695 = vrot.slane %v8666, %v8694
    %v8696 = vlaneseq
    %v8697 = vshrl.u32 %v8696, 7
    %v8698 = vsub.s32 7, %v8697
    %v8699 = vrot.slane %v8666, %v8698
    %v8964 = vunpack.c.l.b16 %v8410
    %v8965 = vunpack.c.h.b16 %v8410
    %v8966 = vunpack.c.l.b16 %v8411
    %v8967 = vunpack.c.h.b16 %v8411
    %v8968 = vunpack.c.l.b16 %v8412
    %v8969 = vunpack.c.h.b16 %v8412
    %v8970 = vunpack.c.l.b16 %v8413
    %v8971 = vunpack.c.h.b16 %v8413
    %v8972 = vunpack.c.l.b16 %v8414
    %v8973 = vunpack.c.h.b16 %v8414
    %v8974 = vunpack.c.l.b16 %v8415
    %v8975 = vunpack.c.h.b16 %v8415
    %v8976 = vunpack.c.l.b16 %v8416
    %v8977 = vunpack.c.h.b16 %v8416
    %v8978 = vunpack.c.l.b16 %v8417
    %v8979 = vunpack.c.h.b16 %v8417
    %v8980 = vunpack.c.l.b16 %v8418
    %v8981 = vunpack.c.h.b16 %v8418
    %v8982 = vunpack.c.l.b16 %v8419
    %v8983 = vunpack.c.h.b16 %v8419
    %v8984 = vunpack.c.l.b16 %v8420
    %v8985 = vunpack.c.h.b16 %v8420
    %v8986 = vunpack.c.l.b16 %v8421
    %v8987 = vunpack.c.h.b16 %v8421
    %v8988 = vunpack.c.l.b16 %v8422
    %v8989 = vunpack.c.h.b16 %v8422
    %v8990 = vunpack.c.l.b16 %v8423
    %v8991 = vunpack.c.h.b16 %v8423
    %v8992 = vunpack.c.l.b16 %v8424
    %v8993 = vunpack.c.h.b16 %v8424
    %v8994 = vunpack.c.l.b16 %v8425
    %v8995 = vunpack.c.h.b16 %v8425
    %v8996 = vunpack.c.l.b16 %v8426
    %v8997 = vunpack.c.h.b16 %v8426
    %v8998 = vunpack.c.l.b16 %v8427
    %v8999 = vunpack.c.h.b16 %v8427
    %v9000 = vunpack.c.l.b16 %v8428
    %v9001 = vunpack.c.h.b16 %v8428
    %v9002 = vunpack.c.l.b16 %v8429
    %v9003 = vunpack.c.h.b16 %v8429
    %v9004 = vunpack.c.l.b16 %v8430
    %v9005 = vunpack.c.h.b16 %v8430
    %v9006 = vunpack.c.l.b16 %v8431
    %v9007 = vunpack.c.h.b16 %v8431
    %v9008 = vunpack.c.l.b16 %v8432
    %v9009 = vunpack.c.h.b16 %v8432
    %v9010 = vunpack.c.l.b16 %v8433
    %v9011 = vunpack.c.h.b16 %v8433
    %v9012 = vunpack.c.l.b16 %v8434
    %v9013 = vunpack.c.h.b16 %v8434
    %v9014 = vunpack.c.l.b16 %v8435
    %v9015 = vunpack.c.h.b16 %v8435
    %v9016 = vunpack.c.l.b16 %v8436
    %v9017 = vunpack.c.h.b16 %v8436
    %v9018 = vunpack.c.l.b16 %v8437
    %v9019 = vunpack.c.h.b16 %v8437
    %v9020 = vunpack.c.l.b16 %v8438
    %v9021 = vunpack.c.h.b16 %v8438
    %v9022 = vunpack.c.l.b16 %v8439
    %v9023 = vunpack.c.h.b16 %v8439
    %v9024 = vunpack.c.l.b16 %v8440
    %v9025 = vunpack.c.h.b16 %v8440
    %v9026 = vunpack.c.l.b16 %v8441
    %v9027 = vunpack.c.h.b16 %v8441
    %v9028 = vunpack.c.l.b16 %v8442
    %v9029 = vunpack.c.h.b16 %v8442
    %v9030 = vunpack.c.l.b16 %v8443
    %v9031 = vunpack.c.h.b16 %v8443
    %v9032 = vunpack.c.l.b16 %v8444
    %v9033 = vunpack.c.h.b16 %v8444
    %v9034 = vunpack.c.l.b16 %v8445
    %v9035 = vunpack.c.h.b16 %v8445
    %v9036 = vunpack.c.l.b16 %v8446
    %v9037 = vunpack.c.h.b16 %v8446
    %v9038 = vunpack.c.l.b16 %v8447
    %v9039 = vunpack.c.h.b16 %v8447
    %v9040 = vunpack.c.l.b16 %v8448
    %v9041 = vunpack.c.h.b16 %v8448
    %v9042 = vunpack.c.l.b16 %v8449
    %v9043 = vunpack.c.h.b16 %v8449
    %v9044 = vunpack.c.l.b16 %v8450
    %v9045 = vunpack.c.h.b16 %v8450
    %v9046 = vunpack.c.l.b16 %v8451
    %v9047 = vunpack.c.h.b16 %v8451
    %v9048 = vunpack.c.l.b16 %v8452
    %v9049 = vunpack.c.h.b16 %v8452
    %v9050 = vunpack.c.l.b16 %v8453
    %v9051 = vunpack.c.h.b16 %v8453
    %v9052 = vunpack.c.l.b16 %v8454
    %v9053 = vunpack.c.h.b16 %v8454
    %v9054 = vunpack.c.l.b16 %v8455
    %v9055 = vunpack.c.h.b16 %v8455
    %v9056 = vunpack.c.l.b16 %v8456
    %v9057 = vunpack.c.h.b16 %v8456
    %v9058 = vunpack.c.l.b16 %v8457
    %v9059 = vunpack.c.h.b16 %v8457
    %v9060 = vunpack.c.l.b16 %v8458
    %v9061 = vunpack.c.h.b16 %v8458
    %v9062 = vunpack.c.l.b16 %v8459
    %v9063 = vunpack.c.h.b16 %v8459
    %v9064 = vunpack.c.l.b16 %v8460
    %v9065 = vunpack.c.h.b16 %v8460
    %v9066 = vunpack.c.l.b16 %v8461
    %v9067 = vunpack.c.h.b16 %v8461
    %v9068 = vunpack.c.l.b16 %v8462
    %v9069 = vunpack.c.h.b16 %v8462
    %v9070 = vunpack.c.l.b16 %v8463
    %v9071 = vunpack.c.h.b16 %v8463
    %v9072 = vunpack.c.l.b16 %v8464
    %v9073 = vunpack.c.h.b16 %v8464
    %v9074 = vunpack.c.l.b16 %v8465
    %v9075 = vunpack.c.h.b16 %v8465
    %v9076 = vunpack.c.l.b16 %v8466
    %v9077 = vunpack.c.h.b16 %v8466
    %v9078 = vunpack.c.l.b16 %v8467
    %v9079 = vunpack.c.h.b16 %v8467
    %v9080 = vunpack.c.l.b16 %v8468
    %v9081 = vunpack.c.h.b16 %v8468
    %v9082 = vunpack.c.l.b16 %v8469
    %v9083 = vunpack.c.h.b16 %v8469
    %v9084 = vunpack.c.l.b16 %v8470
    %v9085 = vunpack.c.h.b16 %v8470
    %v9086 = vunpack.c.l.b16 %v8471
    %v9087 = vunpack.c.h.b16 %v8471
    %v9088 = vunpack.c.l.b16 %v8472
    %v9089 = vunpack.c.h.b16 %v8472
    %v9090 = vunpack.c.l.b16 %v8473
    %v9091 = vunpack.c.h.b16 %v8473
    %v9092 = vunpack.c.l.b16 %v8474
    %v9093 = vunpack.c.h.b16 %v8474
    %v9094 = vunpack.c.l.b16 %v8475
    %v9095 = vunpack.c.h.b16 %v8475
    %v9096 = vunpack.c.l.b16 %v8476
    %v9097 = vunpack.c.h.b16 %v8476
    %v9098 = vunpack.c.l.b16 %v8477
    %v9099 = vunpack.c.h.b16 %v8477
    %v9100 = vunpack.c.l.b16 %v8478
    %v9101 = vunpack.c.h.b16 %v8478
    %v9102 = vunpack.c.l.b16 %v8479
    %v9103 = vunpack.c.h.b16 %v8479
    %v9104 = vunpack.c.l.b16 %v8480
    %v9105 = vunpack.c.h.b16 %v8480
    %v9106 = vunpack.c.l.b16 %v8481
    %v9107 = vunpack.c.h.b16 %v8481
    %v9108 = vunpack.c.l.b16 %v8482
    %v9109 = vunpack.c.h.b16 %v8482
    %v9110 = vunpack.c.l.b16 %v8483
    %v9111 = vunpack.c.h.b16 %v8483
    %v9112 = vunpack.c.l.b16 %v8484
    %v9113 = vunpack.c.h.b16 %v8484
    %v9114 = vunpack.c.l.b16 %v8485
    %v9115 = vunpack.c.h.b16 %v8485
    %v9116 = vunpack.c.l.b16 %v8486
    %v9117 = vunpack.c.h.b16 %v8486
    %v9118 = vunpack.c.l.b16 %v8487
    %v9119 = vunpack.c.h.b16 %v8487
    %v9120 = vunpack.c.l.b16 %v8488
    %v9121 = vunpack.c.h.b16 %v8488
    %v9122 = vunpack.c.l.b16 %v8489
    %v9123 = vunpack.c.h.b16 %v8489
    %v9124 = vunpack.c.l.b16 %v8490
    %v9125 = vunpack.c.h.b16 %v8490
    %v9126 = vunpack.c.l.b16 %v8491
    %v9127 = vunpack.c.h.b16 %v8491
    %v9128 = vunpack.c.l.b16 %v8492
    %v9129 = vunpack.c.h.b16 %v8492
    %v9130 = vunpack.c.l.b16 %v8493
    %v9131 = vunpack.c.h.b16 %v8493
    %v9132 = vunpack.c.l.b16 %v8494
    %v9133 = vunpack.c.h.b16 %v8494
    %v9134 = vunpack.c.l.b16 %v8495
    %v9135 = vunpack.c.h.b16 %v8495
    %v9136 = vunpack.c.l.b16 %v8496
    %v9137 = vunpack.c.h.b16 %v8496
    %v9138 = vunpack.c.l.b16 %v8497
    %v9139 = vunpack.c.h.b16 %v8497
    %v9140 = vunpack.c.l.b16 %v8498
    %v9141 = vunpack.c.h.b16 %v8498
    %v9142 = vunpack.c.l.b16 %v8499
    %v9143 = vunpack.c.h.b16 %v8499
    %v9144 = vunpack.c.l.b16 %v8500
    %v9145 = vunpack.c.h.b16 %v8500
    %v9146 = vunpack.c.l.b16 %v8501
    %v9147 = vunpack.c.h.b16 %v8501
    %v9148 = vunpack.c.l.b16 %v8502
    %v9149 = vunpack.c.h.b16 %v8502
    %v9150 = vunpack.c.l.b16 %v8503
    %v9151 = vunpack.c.h.b16 %v8503
    %v9152 = vunpack.c.l.b16 %v8504
    %v9153 = vunpack.c.h.b16 %v8504
    %v9154 = vunpack.c.l.b16 %v8505
    %v9155 = vunpack.c.h.b16 %v8505
    %v9156 = vunpack.c.l.b16 %v8506
    %v9157 = vunpack.c.h.b16 %v8506
    %v9158 = vunpack.c.l.b16 %v8507
    %v9159 = vunpack.c.h.b16 %v8507
    %v9160 = vunpack.c.l.b16 %v8508
    %v9161 = vunpack.c.h.b16 %v8508
    %v9162 = vunpack.c.l.b16 %v8509
    %v9163 = vunpack.c.h.b16 %v8509
    %v9164 = vunpack.c.l.b16 %v8510
    %v9165 = vunpack.c.h.b16 %v8510
    %v9166 = vunpack.c.l.b16 %v8511
    %v9167 = vunpack.c.h.b16 %v8511
    %v9168 = vunpack.c.l.b16 %v8512
    %v9169 = vunpack.c.h.b16 %v8512
    %v9170 = vunpack.c.l.b16 %v8513
    %v9171 = vunpack.c.h.b16 %v8513
    %v9172 = vunpack.c.l.b16 %v8514
    %v9173 = vunpack.c.h.b16 %v8514
    %v9174 = vunpack.c.l.b16 %v8515
    %v9175 = vunpack.c.h.b16 %v8515
    %v9176 = vunpack.c.l.b16 %v8516
    %v9177 = vunpack.c.h.b16 %v8516
    %v9178 = vunpack.c.l.b16 %v8517
    %v9179 = vunpack.c.h.b16 %v8517
    %v9180 = vunpack.c.l.b16 %v8518
    %v9181 = vunpack.c.h.b16 %v8518
    %v9182 = vunpack.c.l.b16 %v8519
    %v9183 = vunpack.c.h.b16 %v8519
    %v9184 = vunpack.c.l.b16 %v8520
    %v9185 = vunpack.c.h.b16 %v8520
    %v9186 = vunpack.c.l.b16 %v8521
    %v9187 = vunpack.c.h.b16 %v8521
    %v9188 = vunpack.c.l.b16 %v8522
    %v9189 = vunpack.c.h.b16 %v8522
    %v9190 = vunpack.c.l.b16 %v8523
    %v9191 = vunpack.c.h.b16 %v8523
    %v9192 = vunpack.c.l.b16 %v8524
    %v9193 = vunpack.c.h.b16 %v8524
    %v9194 = vunpack.c.l.b16 %v8525
    %v9195 = vunpack.c.h.b16 %v8525
    %v9196 = vunpack.c.l.b16 %v8526
    %v9197 = vunpack.c.h.b16 %v8526
    %v9198 = vunpack.c.l.b16 %v8527
    %v9199 = vunpack.c.h.b16 %v8527
    %v9200 = vunpack.c.l.b16 %v8528
    %v9201 = vunpack.c.h.b16 %v8528
    %v9202 = vunpack.c.l.b16 %v8529
    %v9203 = vunpack.c.h.b16 %v8529
    %v9204 = vunpack.c.l.b16 %v8530
    %v9205 = vunpack.c.h.b16 %v8530
    %v9206 = vunpack.c.l.b16 %v8531
    %v9207 = vunpack.c.h.b16 %v8531
    %v9208 = vunpack.c.l.b16 %v8532
    %v9209 = vunpack.c.h.b16 %v8532
    %v9210 = vunpack.c.l.b16 %v8533
    %v9211 = vunpack.c.h.b16 %v8533
    %v9212 = vunpack.c.l.b16 %v8534
    %v9213 = vunpack.c.h.b16 %v8534
    %v9214 = vunpack.c.l.b16 %v8535
    %v9215 = vunpack.c.h.b16 %v8535
    %v9216 = vunpack.c.l.b16 %v8536
    %v9217 = vunpack.c.h.b16 %v8536
    %v9218 = vunpack.c.l.b16 %v8537
    %v9219 = vunpack.c.h.b16 %v8537
    %v9220 = vunpack.c.l.b16 %v8538
    %v9221 = vunpack.c.h.b16 %v8538
    %v9222 = vunpack.c.l.b16 %v8539
    %v9223 = vunpack.c.h.b16 %v8539
    %v9224 = vunpack.c.l.b16 %v8540
    %v9225 = vunpack.c.h.b16 %v8540
    %v9226 = vunpack.c.l.b16 %v8541
    %v9227 = vunpack.c.h.b16 %v8541
    %v9228 = vunpack.c.l.b16 %v8542
    %v9229 = vunpack.c.h.b16 %v8542
    %v9230 = vunpack.c.l.b16 %v8543
    %v9231 = vunpack.c.h.b16 %v8543
    %v9232 = vunpack.c.l.b16 %v8544
    %v9233 = vunpack.c.h.b16 %v8544
    %v9234 = vunpack.c.l.b16 %v8545
    %v9235 = vunpack.c.h.b16 %v8545
    %v9236 = vunpack.c.l.b16 %v8546
    %v9237 = vunpack.c.h.b16 %v8546
    %v9238 = vunpack.c.l.b16 %v8547
    %v9239 = vunpack.c.h.b16 %v8547
    %v9240 = vunpack.c.l.b16 %v8548
    %v9241 = vunpack.c.h.b16 %v8548
    %v9242 = vunpack.c.l.b16 %v8549
    %v9243 = vunpack.c.h.b16 %v8549
    %v9244 = vunpack.c.l.b16 %v8550
    %v9245 = vunpack.c.h.b16 %v8550
    %v9246 = vunpack.c.l.b16 %v8551
    %v9247 = vunpack.c.h.b16 %v8551
    %v9248 = vunpack.c.l.b16 %v8552
    %v9249 = vunpack.c.h.b16 %v8552
    %v9250 = vunpack.c.l.b16 %v8553
    %v9251 = vunpack.c.h.b16 %v8553
    %v9252 = vunpack.c.l.b16 %v8554
    %v9253 = vunpack.c.h.b16 %v8554
    %v9254 = vunpack.c.l.b16 %v8555
    %v9255 = vunpack.c.h.b16 %v8555
    %v9256 = vunpack.c.l.b16 %v8556
    %v9257 = vunpack.c.h.b16 %v8556
    %v9258 = vunpack.c.l.b16 %v8557
    %v9259 = vunpack.c.h.b16 %v8557
    %v9260 = vunpack.c.l.b16 %v8558
    %v9261 = vunpack.c.h.b16 %v8558
    %v9262 = vunpack.c.l.b16 %v8559
    %v9263 = vunpack.c.h.b16 %v8559
    %v9264 = vunpack.c.l.b16 %v8560
    %v9265 = vunpack.c.h.b16 %v8560
    %v9266 = vunpack.c.l.b16 %v8561
    %v9267 = vunpack.c.h.b16 %v8561
    %v9268 = vunpack.c.l.b16 %v8562
    %v9269 = vunpack.c.h.b16 %v8562
    %v9270 = vunpack.c.l.b16 %v8563
    %v9271 = vunpack.c.h.b16 %v8563
    %v9272 = vunpack.c.l.b16 %v8564
    %v9273 = vunpack.c.h.b16 %v8564
    %v9274 = vunpack.c.l.b16 %v8565
    %v9275 = vunpack.c.h.b16 %v8565
    %v9276 = vunpack.c.l.b16 %v8566
    %v9277 = vunpack.c.h.b16 %v8566
    %v9278 = vunpack.c.l.b16 %v8567
    %v9279 = vunpack.c.h.b16 %v8567
    %v9280 = vunpack.c.l.b16 %v8568
    %v9281 = vunpack.c.h.b16 %v8568
    %v9282 = vunpack.c.l.b16 %v8569
    %v9283 = vunpack.c.h.b16 %v8569
    %v9284 = vunpack.c.l.b16 %v8570
    %v9285 = vunpack.c.h.b16 %v8570
    %v9286 = vunpack.c.l.b16 %v8571
    %v9287 = vunpack.c.h.b16 %v8571
    %v9288 = vunpack.c.l.b16 %v8572
    %v9289 = vunpack.c.h.b16 %v8572
    %v9290 = vunpack.c.l.b16 %v8573
    %v9291 = vunpack.c.h.b16 %v8573
    %v9292 = vunpack.c.l.b16 %v8574
    %v9293 = vunpack.c.h.b16 %v8574
    %v9294 = vunpack.c.l.b16 %v8575
    %v9295 = vunpack.c.h.b16 %v8575
    %v9296 = vunpack.c.l.b16 %v8576
    %v9297 = vunpack.c.h.b16 %v8576
    %v9298 = vunpack.c.l.b16 %v8577
    %v9299 = vunpack.c.h.b16 %v8577
    %v9300 = vunpack.c.l.b16 %v8578
    %v9301 = vunpack.c.h.b16 %v8578
    %v9302 = vunpack.c.l.b16 %v8579
    %v9303 = vunpack.c.h.b16 %v8579
    %v9304 = vunpack.c.l.b16 %v8580
    %v9305 = vunpack.c.h.b16 %v8580
    %v9306 = vunpack.c.l.b16 %v8581
    %v9307 = vunpack.c.h.b16 %v8581
    %v9308 = vunpack.c.l.b16 %v8582
    %v9309 = vunpack.c.h.b16 %v8582
    %v9310 = vunpack.c.l.b16 %v8583
    %v9311 = vunpack.c.h.b16 %v8583
    %v9312 = vunpack.c.l.b16 %v8584
    %v9313 = vunpack.c.h.b16 %v8584
    %v9314 = vunpack.c.l.b16 %v8585
    %v9315 = vunpack.c.h.b16 %v8585
    %v9316 = vunpack.c.l.b16 %v8586
    %v9317 = vunpack.c.h.b16 %v8586
    %v9318 = vunpack.c.l.b16 %v8587
    %v9319 = vunpack.c.h.b16 %v8587
    %v9320 = vunpack.c.l.b16 %v8588
    %v9321 = vunpack.c.h.b16 %v8588
    %v9322 = vunpack.c.l.b16 %v8589
    %v9323 = vunpack.c.h.b16 %v8589
    %v9324 = vunpack.c.l.b16 %v8590
    %v9325 = vunpack.c.h.b16 %v8590
    %v9326 = vunpack.c.l.b16 %v8591
    %v9327 = vunpack.c.h.b16 %v8591
    %v9328 = vunpack.c.l.b16 %v8592
    %v9329 = vunpack.c.h.b16 %v8592
    %v9330 = vunpack.c.l.b16 %v8593
    %v9331 = vunpack.c.h.b16 %v8593
    %v9332 = vunpack.c.l.b16 %v8594
    %v9333 = vunpack.c.h.b16 %v8594
    %v9334 = vunpack.c.l.b16 %v8595
    %v9335 = vunpack.c.h.b16 %v8595
    %v9336 = vunpack.c.l.b16 %v8596
    %v9337 = vunpack.c.h.b16 %v8596
    %v9338 = vunpack.c.l.b16 %v8597
    %v9339 = vunpack.c.h.b16 %v8597
    %v9340 = vunpack.c.l.b16 %v8598
    %v9341 = vunpack.c.h.b16 %v8598
    %v9342 = vunpack.c.l.b16 %v8599
    %v9343 = vunpack.c.h.b16 %v8599
    %v9344 = vunpack.c.l.b16 %v8600
    %v9345 = vunpack.c.h.b16 %v8600
    %v9346 = vunpack.c.l.b16 %v8601
    %v9347 = vunpack.c.h.b16 %v8601
    %v9348 = vunpack.c.l.b16 %v8602
    %v9349 = vunpack.c.h.b16 %v8602
    %v9350 = vunpack.c.l.b16 %v8603
    %v9351 = vunpack.c.h.b16 %v8603
    %v9352 = vunpack.c.l.b16 %v8604
    %v9353 = vunpack.c.h.b16 %v8604
    %v9354 = vunpack.c.l.b16 %v8605
    %v9355 = vunpack.c.h.b16 %v8605
    %v9356 = vunpack.c.l.b16 %v8606
    %v9357 = vunpack.c.h.b16 %v8606
    %v9358 = vunpack.c.l.b16 %v8607
    %v9359 = vunpack.c.h.b16 %v8607
    %v9360 = vunpack.c.l.b16 %v8608
    %v9361 = vunpack.c.h.b16 %v8608
    %v9362 = vunpack.c.l.b16 %v8609
    %v9363 = vunpack.c.h.b16 %v8609
    %v9364 = vunpack.c.l.b16 %v8610
    %v9365 = vunpack.c.h.b16 %v8610
    %v9366 = vunpack.c.l.b16 %v8611
    %v9367 = vunpack.c.h.b16 %v8611
    %v9368 = vunpack.c.l.b16 %v8612
    %v9369 = vunpack.c.h.b16 %v8612
    %v9370 = vunpack.c.l.b16 %v8613
    %v9371 = vunpack.c.h.b16 %v8613
    %v9372 = vunpack.c.l.b16 %v8614
    %v9373 = vunpack.c.h.b16 %v8614
    %v9374 = vunpack.c.l.b16 %v8615
    %v9375 = vunpack.c.h.b16 %v8615
    %v9376 = vunpack.c.l.b16 %v8616
    %v9377 = vunpack.c.h.b16 %v8616
    %v9378 = vunpack.c.l.b16 %v8617
    %v9379 = vunpack.c.h.b16 %v8617
    %v9380 = vunpack.c.l.b16 %v8618
    %v9381 = vunpack.c.h.b16 %v8618
    %v9382 = vunpack.c.l.b16 %v8619
    %v9383 = vunpack.c.h.b16 %v8619
    %v9384 = vunpack.c.l.b16 %v8620
    %v9385 = vunpack.c.h.b16 %v8620
    %v9386 = vunpack.c.l.b16 %v8621
    %v9387 = vunpack.c.h.b16 %v8621
    %v9388 = vunpack.c.l.b16 %v8622
    %v9389 = vunpack.c.h.b16 %v8622
    %v9390 = vunpack.c.l.b16 %v8623
    %v9391 = vunpack.c.h.b16 %v8623
    %v9392 = vunpack.c.l.b16 %v8624
    %v9393 = vunpack.c.h.b16 %v8624
    %v9394 = vunpack.c.l.b16 %v8625
    %v9395 = vunpack.c.h.b16 %v8625
    %v9396 = vunpack.c.l.b16 %v8626
    %v9397 = vunpack.c.h.b16 %v8626
    %v9398 = vunpack.c.l.b16 %v8627
    %v9399 = vunpack.c.h.b16 %v8627
    %v9400 = vunpack.c.l.b16 %v8628
    %v9401 = vunpack.c.h.b16 %v8628
    %v9402 = vunpack.c.l.b16 %v8629
    %v9403 = vunpack.c.h.b16 %v8629
    %v9404 = vunpack.c.l.b16 %v8630
    %v9405 = vunpack.c.h.b16 %v8630
    %v9406 = vunpack.c.l.b16 %v8631
    %v9407 = vunpack.c.h.b16 %v8631
    %v9408 = vunpack.c.l.b16 %v8632
    %v9409 = vunpack.c.h.b16 %v8632
    %v9410 = vunpack.c.l.b16 %v8633
    %v9411 = vunpack.c.h.b16 %v8633
    %v9412 = vunpack.c.l.b16 %v8634
    %v9413 = vunpack.c.h.b16 %v8634
    %v9414 = vunpack.c.l.b16 %v8635
    %v9415 = vunpack.c.h.b16 %v8635
    %v9416 = vunpack.c.l.b16 %v8636
    %v9417 = vunpack.c.h.b16 %v8636
    %v9418 = vunpack.c.l.b16 %v8637
    %v9419 = vunpack.c.h.b16 %v8637
    %v9420 = vunpack.c.l.b16 %v8638
    %v9421 = vunpack.c.h.b16 %v8638
    %v9422 = vunpack.c.l.b16 %v8639
    %v9423 = vunpack.c.h.b16 %v8639
    %v9424 = vunpack.c.l.b16 %v8640
    %v9425 = vunpack.c.h.b16 %v8640
    %v9426 = vunpack.c.l.b16 %v8641
    %v9427 = vunpack.c.h.b16 %v8641
    %v9428 = vunpack.c.l.b16 %v8642
    %v9429 = vunpack.c.h.b16 %v8642
    %v9430 = vunpack.c.l.b16 %v8643
    %v9431 = vunpack.c.h.b16 %v8643
    %v9432 = vunpack.c.l.b16 %v8644
    %v9433 = vunpack.c.h.b16 %v8644
    %v9434 = vunpack.c.l.b16 %v8645
    %v9435 = vunpack.c.h.b16 %v8645
    %v9436 = vunpack.c.l.b16 %v8646
    %v9437 = vunpack.c.h.b16 %v8646
    %v9438 = vunpack.c.l.b16 %v8647
    %v9439 = vunpack.c.h.b16 %v8647
    %v9440 = vunpack.c.l.b16 %v8648
    %v9441 = vunpack.c.h.b16 %v8648
    %v9442 = vunpack.c.l.b16 %v8649
    %v9443 = vunpack.c.h.b16 %v8649
    %v9444 = vunpack.c.l.b16 %v8650
    %v9445 = vunpack.c.h.b16 %v8650
    %v9446 = vunpack.c.l.b16 %v8651
    %v9447 = vunpack.c.h.b16 %v8651
    %v9448 = vunpack.c.l.b16 %v8652
    %v9449 = vunpack.c.h.b16 %v8652
    %v9450 = vunpack.c.l.b16 %v8653
    %v9451 = vunpack.c.h.b16 %v8653
    %v9452 = vunpack.c.l.b16 %v8654
    %v9453 = vunpack.c.h.b16 %v8654
    %v9454 = vunpack.c.l.b16 %v8655
    %v9455 = vunpack.c.h.b16 %v8655
    %v9456 = vunpack.c.l.b16 %v8656
    %v9457 = vunpack.c.h.b16 %v8656
    %v9458 = vunpack.c.l.b16 %v8657
    %v9459 = vunpack.c.h.b16 %v8657
    %v9460 = vunpack.c.l.b16 %v8658
    %v9461 = vunpack.c.h.b16 %v8658
    %v9462 = vunpack.c.l.b16 %v8659
    %v9463 = vunpack.c.h.b16 %v8659
    %v9464 = vunpack.c.l.b16 %v8660
    %v9465 = vunpack.c.h.b16 %v8660
    %v9466 = vunpack.c.l.b16 %v8661
    %v9467 = vunpack.c.h.b16 %v8661
    %v9468 = vunpack.c.l.b16 %v8662
    %v9469 = vunpack.c.h.b16 %v8662
    %v9470 = vunpack.c.l.b16 %v8663
    %v9471 = vunpack.c.h.b16 %v8663
    %v9472 = vunpack.c.l.b16 %v8664
    %v9473 = vunpack.c.h.b16 %v8664
    %v9474 = vunpack.c.l.b16 %v8665
    %v9475 = vunpack.c.h.b16 %v8665
    %v9476 = vpack.c.b16 %v8972, %v8964
    %v9477 = vpack.c.b16 %v8973, %v8965
    %v9478 = vpack.c.b16 %v8974, %v8966
    %v9479 = vpack.c.b16 %v8975, %v8967
    %v9480 = vpack.c.b16 %v8976, %v8968
    %v9481 = vpack.c.b16 %v8977, %v8969
    %v9482 = vpack.c.b16 %v8978, %v8970
    %v9483 = vpack.c.b16 %v8979, %v8971
    %v9484 = vpack.c.b16 %v8988, %v8980
    %v9485 = vpack.c.b16 %v8989, %v8981
    %v9486 = vpack.c.b16 %v8990, %v8982
    %v9487 = vpack.c.b16 %v8991, %v8983
    %v9488 = vpack.c.b16 %v8992, %v8984
    %v9489 = vpack.c.b16 %v8993, %v8985
    %v9490 = vpack.c.b16 %v8994, %v8986
    %v9491 = vpack.c.b16 %v8995, %v8987
    %v9492 = vpack.c.b16 %v9004, %v8996
    %v9493 = vpack.c.b16 %v9005, %v8997
    %v9494 = vpack.c.b16 %v9006, %v8998
    %v9495 = vpack.c.b16 %v9007, %v8999
    %v9496 = vpack.c.b16 %v9008, %v9000
    %v9497 = vpack.c.b16 %v9009, %v9001
    %v9498 = vpack.c.b16 %v9010, %v9002
    %v9499 = vpack.c.b16 %v9011, %v9003
    %v9500 = vpack.c.b16 %v9020, %v9012
    %v9501 = vpack.c.b16 %v9021, %v9013
    %v9502 = vpack.c.b16 %v9022, %v9014
    %v9503 = vpack.c.b16 %v9023, %v9015
    %v9504 = vpack.c.b16 %v9024, %v9016
    %v9505 = vpack.c.b16 %v9025, %v9017
    %v9506 = vpack.c.b16 %v9026, %v9018
    %v9507 = vpack.c.b16 %v9027, %v9019
    %v9508 = vpack.c.b16 %v9036, %v9028
    %v9509 = vpack.c.b16 %v9037, %v9029
    %v9510 = vpack.c.b16 %v9038, %v9030
    %v9511 = vpack.c.b16 %v9039, %v9031
    %v9512 = vpack.c.b16 %v9040, %v9032
    %v9513 = vpack.c.b16 %v9041, %v9033
    %v9514 = vpack.c.b16 %v9042, %v9034
    %v9515 = vpack.c.b16 %v9043, %v9035
    %v9516 = vpack.c.b16 %v9052, %v9044
    %v9517 = vpack.c.b16 %v9053, %v9045
    %v9518 = vpack.c.b16 %v9054, %v9046
    %v9519 = vpack.c.b16 %v9055, %v9047
    %v9520 = vpack.c.b16 %v9056, %v9048
    %v9521 = vpack.c.b16 %v9057, %v9049
    %v9522 = vpack.c.b16 %v9058, %v9050
    %v9523 = vpack.c.b16 %v9059, %v9051
    %v9524 = vpack.c.b16 %v9068, %v9060
    %v9525 = vpack.c.b16 %v9069, %v9061
    %v9526 = vpack.c.b16 %v9070, %v9062
    %v9527 = vpack.c.b16 %v9071, %v9063
    %v9528 = vpack.c.b16 %v9072, %v9064
    %v9529 = vpack.c.b16 %v9073, %v9065
    %v9530 = vpack.c.b16 %v9074, %v9066
    %v9531 = vpack.c.b16 %v9075, %v9067
    %v9532 = vpack.c.b16 %v9084, %v9076
    %v9533 = vpack.c.b16 %v9085, %v9077
    %v9534 = vpack.c.b16 %v9086, %v9078
    %v9535 = vpack.c.b16 %v9087, %v9079
    %v9536 = vpack.c.b16 %v9088, %v9080
    %v9537 = vpack.c.b16 %v9089, %v9081
    %v9538 = vpack.c.b16 %v9090, %v9082
    %v9539 = vpack.c.b16 %v9091, %v9083
    %v9540 = vpack.c.b16 %v9100, %v9092
    %v9541 = vpack.c.b16 %v9101, %v9093
    %v9542 = vpack.c.b16 %v9102, %v9094
    %v9543 = vpack.c.b16 %v9103, %v9095
    %v9544 = vpack.c.b16 %v9104, %v9096
    %v9545 = vpack.c.b16 %v9105, %v9097
    %v9546 = vpack.c.b16 %v9106, %v9098
    %v9547 = vpack.c.b16 %v9107, %v9099
    %v9548 = vpack.c.b16 %v9116, %v9108
    %v9549 = vpack.c.b16 %v9117, %v9109
    %v9550 = vpack.c.b16 %v9118, %v9110
    %v9551 = vpack.c.b16 %v9119, %v9111
    %v9552 = vpack.c.b16 %v9120, %v9112
    %v9553 = vpack.c.b16 %v9121, %v9113
    %v9554 = vpack.c.b16 %v9122, %v9114
    %v9555 = vpack.c.b16 %v9123, %v9115
    %v9556 = vpack.c.b16 %v9132, %v9124
    %v9557 = vpack.c.b16 %v9133, %v9125
    %v9558 = vpack.c.b16 %v9134, %v9126
    %v9559 = vpack.c.b16 %v9135, %v9127
    %v9560 = vpack.c.b16 %v9136, %v9128
    %v9561 = vpack.c.b16 %v9137, %v9129
    %v9562 = vpack.c.b16 %v9138, %v9130
    %v9563 = vpack.c.b16 %v9139, %v9131
    %v9564 = vpack.c.b16 %v9148, %v9140
    %v9565 = vpack.c.b16 %v9149, %v9141
    %v9566 = vpack.c.b16 %v9150, %v9142
    %v9567 = vpack.c.b16 %v9151, %v9143
    %v9568 = vpack.c.b16 %v9152, %v9144
    %v9569 = vpack.c.b16 %v9153, %v9145
    %v9570 = vpack.c.b16 %v9154, %v9146
    %v9571 = vpack.c.b16 %v9155, %v9147
    %v9572 = vpack.c.b16 %v9164, %v9156
    %v9573 = vpack.c.b16 %v9165, %v9157
    %v9574 = vpack.c.b16 %v9166, %v9158
    %v9575 = vpack.c.b16 %v9167, %v9159
    %v9576 = vpack.c.b16 %v9168, %v9160
    %v9577 = vpack.c.b16 %v9169, %v9161
    %v9578 = vpack.c.b16 %v9170, %v9162
    %v9579 = vpack.c.b16 %v9171, %v9163
    %v9580 = vpack.c.b16 %v9180, %v9172
    %v9581 = vpack.c.b16 %v9181, %v9173
    %v9582 = vpack.c.b16 %v9182, %v9174
    %v9583 = vpack.c.b16 %v9183, %v9175
    %v9584 = vpack.c.b16 %v9184, %v9176
    %v9585 = vpack.c.b16 %v9185, %v9177
    %v9586 = vpack.c.b16 %v9186, %v9178
    %v9587 = vpack.c.b16 %v9187, %v9179
    %v9588 = vpack.c.b16 %v9196, %v9188
    %v9589 = vpack.c.b16 %v9197, %v9189
    %v9590 = vpack.c.b16 %v9198, %v9190
    %v9591 = vpack.c.b16 %v9199, %v9191
    %v9592 = vpack.c.b16 %v9200, %v9192
    %v9593 = vpack.c.b16 %v9201, %v9193
    %v9594 = vpack.c.b16 %v9202, %v9194
    %v9595 = vpack.c.b16 %v9203, %v9195
    %v9596 = vpack.c.b16 %v9212, %v9204
    %v9597 = vpack.c.b16 %v9213, %v9205
    %v9598 = vpack.c.b16 %v9214, %v9206
    %v9599 = vpack.c.b16 %v9215, %v9207
    %v9600 = vpack.c.b16 %v9216, %v9208
    %v9601 = vpack.c.b16 %v9217, %v9209
    %v9602 = vpack.c.b16 %v9218, %v9210
    %v9603 = vpack.c.b16 %v9219, %v9211
    %v9604 = vpack.c.b16 %v9228, %v9220
    %v9605 = vpack.c.b16 %v9229, %v9221
    %v9606 = vpack.c.b16 %v9230, %v9222
    %v9607 = vpack.c.b16 %v9231, %v9223
    %v9608 = vpack.c.b16 %v9232, %v9224
    %v9609 = vpack.c.b16 %v9233, %v9225
    %v9610 = vpack.c.b16 %v9234, %v9226
    %v9611 = vpack.c.b16 %v9235, %v9227
    %v9612 = vpack.c.b16 %v9244, %v9236
    %v9613 = vpack.c.b16 %v9245, %v9237
    %v9614 = vpack.c.b16 %v9246, %v9238
    %v9615 = vpack.c.b16 %v9247, %v9239
    %v9616 = vpack.c.b16 %v9248, %v9240
    %v9617 = vpack.c.b16 %v9249, %v9241
    %v9618 = vpack.c.b16 %v9250, %v9242
    %v9619 = vpack.c.b16 %v9251, %v9243
    %v9620 = vpack.c.b16 %v9260, %v9252
    %v9621 = vpack.c.b16 %v9261, %v9253
    %v9622 = vpack.c.b16 %v9262, %v9254
    %v9623 = vpack.c.b16 %v9263, %v9255
    %v9624 = vpack.c.b16 %v9264, %v9256
    %v9625 = vpack.c.b16 %v9265, %v9257
    %v9626 = vpack.c.b16 %v9266, %v9258
    %v9627 = vpack.c.b16 %v9267, %v9259
    %v9628 = vpack.c.b16 %v9276, %v9268
    %v9629 = vpack.c.b16 %v9277, %v9269
    %v9630 = vpack.c.b16 %v9278, %v9270
    %v9631 = vpack.c.b16 %v9279, %v9271
    %v9632 = vpack.c.b16 %v9280, %v9272
    %v9633 = vpack.c.b16 %v9281, %v9273
    %v9634 = vpack.c.b16 %v9282, %v9274
    %v9635 = vpack.c.b16 %v9283, %v9275
    %v9636 = vpack.c.b16 %v9292, %v9284
    %v9637 = vpack.c.b16 %v9293, %v9285
    %v9638 = vpack.c.b16 %v9294, %v9286
    %v9639 = vpack.c.b16 %v9295, %v9287
    %v9640 = vpack.c.b16 %v9296, %v9288
    %v9641 = vpack.c.b16 %v9297, %v9289
    %v9642 = vpack.c.b16 %v9298, %v9290
    %v9643 = vpack.c.b16 %v9299, %v9291
    %v9644 = vpack.c.b16 %v9308, %v9300
    %v9645 = vpack.c.b16 %v9309, %v9301
    %v9646 = vpack.c.b16 %v9310, %v9302
    %v9647 = vpack.c.b16 %v9311, %v9303
    %v9648 = vpack.c.b16 %v9312, %v9304
    %v9649 = vpack.c.b16 %v9313, %v9305
    %v9650 = vpack.c.b16 %v9314, %v9306
    %v9651 = vpack.c.b16 %v9315, %v9307
    %v9652 = vpack.c.b16 %v9324, %v9316
    %v9653 = vpack.c.b16 %v9325, %v9317
    %v9654 = vpack.c.b16 %v9326, %v9318
    %v9655 = vpack.c.b16 %v9327, %v9319
    %v9656 = vpack.c.b16 %v9328, %v9320
    %v9657 = vpack.c.b16 %v9329, %v9321
    %v9658 = vpack.c.b16 %v9330, %v9322
    %v9659 = vpack.c.b16 %v9331, %v9323
    %v9660 = vpack.c.b16 %v9340, %v9332
    %v9661 = vpack.c.b16 %v9341, %v9333
    %v9662 = vpack.c.b16 %v9342, %v9334
    %v9663 = vpack.c.b16 %v9343, %v9335
    %v9664 = vpack.c.b16 %v9344, %v9336
    %v9665 = vpack.c.b16 %v9345, %v9337
    %v9666 = vpack.c.b16 %v9346, %v9338
    %v9667 = vpack.c.b16 %v9347, %v9339
    %v9668 = vpack.c.b16 %v9356, %v9348
    %v9669 = vpack.c.b16 %v9357, %v9349
    %v9670 = vpack.c.b16 %v9358, %v9350
    %v9671 = vpack.c.b16 %v9359, %v9351
    %v9672 = vpack.c.b16 %v9360, %v9352
    %v9673 = vpack.c.b16 %v9361, %v9353
    %v9674 = vpack.c.b16 %v9362, %v9354
    %v9675 = vpack.c.b16 %v9363, %v9355
    %v9676 = vpack.c.b16 %v9372, %v9364
    %v9677 = vpack.c.b16 %v9373, %v9365
    %v9678 = vpack.c.b16 %v9374, %v9366
    %v9679 = vpack.c.b16 %v9375, %v9367
    %v9680 = vpack.c.b16 %v9376, %v9368
    %v9681 = vpack.c.b16 %v9377, %v9369
    %v9682 = vpack.c.b16 %v9378, %v9370
    %v9683 = vpack.c.b16 %v9379, %v9371
    %v9684 = vpack.c.b16 %v9388, %v9380
    %v9685 = vpack.c.b16 %v9389, %v9381
    %v9686 = vpack.c.b16 %v9390, %v9382
    %v9687 = vpack.c.b16 %v9391, %v9383
    %v9688 = vpack.c.b16 %v9392, %v9384
    %v9689 = vpack.c.b16 %v9393, %v9385
    %v9690 = vpack.c.b16 %v9394, %v9386
    %v9691 = vpack.c.b16 %v9395, %v9387
    %v9692 = vpack.c.b16 %v9404, %v9396
    %v9693 = vpack.c.b16 %v9405, %v9397
    %v9694 = vpack.c.b16 %v9406, %v9398
    %v9695 = vpack.c.b16 %v9407, %v9399
    %v9696 = vpack.c.b16 %v9408, %v9400
    %v9697 = vpack.c.b16 %v9409, %v9401
    %v9698 = vpack.c.b16 %v9410, %v9402
    %v9699 = vpack.c.b16 %v9411, %v9403
    %v9700 = vpack.c.b16 %v9420, %v9412
    %v9701 = vpack.c.b16 %v9421, %v9413
    %v9702 = vpack.c.b16 %v9422, %v9414
    %v9703 = vpack.c.b16 %v9423, %v9415
    %v9704 = vpack.c.b16 %v9424, %v9416
    %v9705 = vpack.c.b16 %v9425, %v9417
    %v9706 = vpack.c.b16 %v9426, %v9418
    %v9707 = vpack.c.b16 %v9427, %v9419
    %v9708 = vpack.c.b16 %v9436, %v9428
    %v9709 = vpack.c.b16 %v9437, %v9429
    %v9710 = vpack.c.b16 %v9438, %v9430
    %v9711 = vpack.c.b16 %v9439, %v9431
    %v9712 = vpack.c.b16 %v9440, %v9432
    %v9713 = vpack.c.b16 %v9441, %v9433
    %v9714 = vpack.c.b16 %v9442, %v9434
    %v9715 = vpack.c.b16 %v9443, %v9435
    %v9716 = vpack.c.b16 %v9452, %v9444
    %v9717 = vpack.c.b16 %v9453, %v9445
    %v9718 = vpack.c.b16 %v9454, %v9446
    %v9719 = vpack.c.b16 %v9455, %v9447
    %v9720 = vpack.c.b16 %v9456, %v9448
    %v9721 = vpack.c.b16 %v9457, %v9449
    %v9722 = vpack.c.b16 %v9458, %v9450
    %v9723 = vpack.c.b16 %v9459, %v9451
    %v9724 = vpack.c.b16 %v9468, %v9460
    %v9725 = vpack.c.b16 %v9469, %v9461
    %v9726 = vpack.c.b16 %v9470, %v9462
    %v9727 = vpack.c.b16 %v9471, %v9463
    %v9728 = vpack.c.b16 %v9472, %v9464
    %v9729 = vpack.c.b16 %v9473, %v9465
    %v9730 = vpack.c.b16 %v9474, %v9466
    %v9731 = vpack.c.b16 %v9475, %v9467
    %9988 = vmatprep.subr.bf16.mxu0 %v9477
    %9989 = vmatpush1.bf16.msra.mxu0 %v9476
    %9990 = vmatprep.subr.bf16.mxu0 %v9485
    %9991 = vmatpush1.bf16.msra.mxu0 %v9484
    %9992 = vmatprep.subr.bf16.mxu0 %v9493
    %9993 = vmatpush1.bf16.msra.mxu0 %v9492
    %9994 = vmatprep.subr.bf16.mxu0 %v9501
    %9995 = vmatpush1.bf16.msra.mxu0 %v9500
    %9996 = vmatprep.subr.bf16.mxu0 %v9509
    %9997 = vmatpush1.bf16.msra.mxu0 %v9508
    %9998 = vmatprep.subr.bf16.mxu0 %v9517
    %9999 = vmatpush1.bf16.msra.mxu0 %v9516
    %10000 = vmatprep.subr.bf16.mxu0 %v9525
    %10001 = vmatpush1.bf16.msra.mxu0 %v9524
    %10002 = vmatprep.subr.bf16.mxu0 %v9533
    %10003 = vmatpush1.bf16.msra.mxu0 %v9532
    %10004 = vmatprep.subr.bf16.mxu0 %v9541
    %10005 = vmatpush1.bf16.msra.mxu0 %v9540
    %10006 = vmatprep.subr.bf16.mxu0 %v9549
    %10007 = vmatpush1.bf16.msra.mxu0 %v9548
    %10008 = vmatprep.subr.bf16.mxu0 %v9557
    %10009 = vmatpush1.bf16.msra.mxu0 %v9556
    %10010 = vmatprep.subr.bf16.mxu0 %v9565
    %10011 = vmatpush1.bf16.msra.mxu0 %v9564
    %10012 = vmatprep.subr.bf16.mxu0 %v9573
    %10013 = vmatpush1.bf16.msra.mxu0 %v9572
    %10014 = vmatprep.subr.bf16.mxu0 %v9581
    %10015 = vmatpush1.bf16.msra.mxu0 %v9580
    %10016 = vmatprep.subr.bf16.mxu0 %v9589
    %10017 = vmatpush1.bf16.msra.mxu0 %v9588
    %10018 = vmatprep.subr.bf16.mxu0 %v9597
    %10019 = vmatpush1.bf16.msra.mxu0 %v9596
    %10020 = vmatprep.mubr.bf16.mxu0 %v8407
    %10021 = vmatmul.mubr.bf16.gmra.mrb[0].mxu0 %v8406
    %v10022 = vpop.f32.mrb[0].mxu0
    %v10023 = vadd.f32 %v8671, %v10022
    %v10024 = vpop.f32.mrb[0].mxu0
    %v10025 = vadd.f32 %v8675, %v10024
    %v10026 = vpop.f32.mrb[0].mxu0
    %v10027 = vadd.f32 %v8671, %v10026
    %v10028 = vpop.f32.mrb[0].mxu0
    %v10029 = vadd.f32 %v8675, %v10028
    %10030 = vdwg.mxu0
    %10031 = vmatprep.subr.bf16.mxu0 %v9605
    %10032 = vmatpush1.bf16.msra.mxu0 %v9604
    %10033 = vmatprep.subr.bf16.mxu0 %v9613
    %10034 = vmatpush1.bf16.msra.mxu0 %v9612
    %10035 = vmatprep.subr.bf16.mxu0 %v9621
    %10036 = vmatpush1.bf16.msra.mxu0 %v9620
    %10037 = vmatprep.subr.bf16.mxu0 %v9629
    %10038 = vmatpush1.bf16.msra.mxu0 %v9628
    %10039 = vmatprep.subr.bf16.mxu0 %v9637
    %10040 = vmatpush1.bf16.msra.mxu0 %v9636
    %10041 = vmatprep.subr.bf16.mxu0 %v9645
    %10042 = vmatpush1.bf16.msra.mxu0 %v9644
    %10043 = vmatprep.subr.bf16.mxu0 %v9653
    %10044 = vmatpush1.bf16.msra.mxu0 %v9652
    %10045 = vmatprep.subr.bf16.mxu0 %v9661
    %10046 = vmatpush1.bf16.msra.mxu0 %v9660
    %10047 = vmatprep.subr.bf16.mxu0 %v9669
    %10048 = vmatpush1.bf16.msra.mxu0 %v9668
    %10049 = vmatprep.subr.bf16.mxu0 %v9677
    %10050 = vmatpush1.bf16.msra.mxu0 %v9676
    %10051 = vmatprep.subr.bf16.mxu0 %v9685
    %10052 = vmatpush1.bf16.msra.mxu0 %v9684
    %10053 = vmatprep.subr.bf16.mxu0 %v9693
    %10054 = vmatpush1.bf16.msra.mxu0 %v9692
    %10055 = vmatprep.subr.bf16.mxu0 %v9701
    %10056 = vmatpush1.bf16.msra.mxu0 %v9700
    %10057 = vmatprep.subr.bf16.mxu0 %v9709
    %10058 = vmatpush1.bf16.msra.mxu0 %v9708
    %10059 = vmatprep.subr.bf16.mxu0 %v9717
    %10060 = vmatpush1.bf16.msra.mxu0 %v9716
    %10061 = vmatprep.subr.bf16.mxu0 %v9725
    %10062 = vmatpush1.bf16.msra.mxu0 %v9724
    %10063 = vmatprep.mubr.bf16.mxu0 %v8409
    %10064 = vmatmul.mubr.bf16.gmra.mrb[0].mxu0 %v8408
    %v10065 = vpop.f32.mrb[0].mxu0
    %v10066 = vadd.f32 %v10023, %v10065
    %v10067 = vpop.f32.mrb[0].mxu0
    %v10068 = vadd.f32 %v10025, %v10067
    %v10069 = vpop.f32.mrb[0].mxu0
    %v10070 = vadd.f32 %v10027, %v10069
    %v10071 = vpop.f32.mrb[0].mxu0
    %v10072 = vadd.f32 %v10029, %v10071
    %10073 = vdwg.mxu0
    %10074 = vmatprep.subr.bf16.mxu0 %v9479
    %10075 = vmatpush1.bf16.msra.mxu0 %v9478
    %10076 = vmatprep.subr.bf16.mxu0 %v9487
    %10077 = vmatpush1.bf16.msra.mxu0 %v9486
    %10078 = vmatprep.subr.bf16.mxu0 %v9495
    %10079 = vmatpush1.bf16.msra.mxu0 %v9494
    %10080 = vmatprep.subr.bf16.mxu0 %v9503
    %10081 = vmatpush1.bf16.msra.mxu0 %v9502
    %10082 = vmatprep.subr.bf16.mxu0 %v9511
    %10083 = vmatpush1.bf16.msra.mxu0 %v9510
    %10084 = vmatprep.subr.bf16.mxu0 %v9519
    %10085 = vmatpush1.bf16.msra.mxu0 %v9518
    %10086 = vmatprep.subr.bf16.mxu0 %v9527
    %10087 = vmatpush1.bf16.msra.mxu0 %v9526
    %10088 = vmatprep.subr.bf16.mxu0 %v9535
    %10089 = vmatpush1.bf16.msra.mxu0 %v9534
    %10090 = vmatprep.subr.bf16.mxu0 %v9543
    %10091 = vmatpush1.bf16.msra.mxu0 %v9542
    %10092 = vmatprep.subr.bf16.mxu0 %v9551
    %10093 = vmatpush1.bf16.msra.mxu0 %v9550
    %10094 = vmatprep.subr.bf16.mxu0 %v9559
    %10095 = vmatpush1.bf16.msra.mxu0 %v9558
    %10096 = vmatprep.subr.bf16.mxu0 %v9567
    %10097 = vmatpush1.bf16.msra.mxu0 %v9566
    %10098 = vmatprep.subr.bf16.mxu0 %v9575
    %10099 = vmatpush1.bf16.msra.mxu0 %v9574
    %10100 = vmatprep.subr.bf16.mxu0 %v9583
    %10101 = vmatpush1.bf16.msra.mxu0 %v9582
    %10102 = vmatprep.subr.bf16.mxu0 %v9591
    %10103 = vmatpush1.bf16.msra.mxu0 %v9590
    %10104 = vmatprep.subr.bf16.mxu0 %v9599
    %10105 = vmatpush1.bf16.msra.mxu0 %v9598
    %10106 = vmatprep.mubr.bf16.mxu0 %v8407
    %10107 = vmatmul.mubr.bf16.gmra.mrb[0].mxu0 %v8406
    %v10108 = vpop.f32.mrb[0].mxu0
    %v10109 = vadd.f32 %v8679, %v10108
    %v10110 = vpop.f32.mrb[0].mxu0
    %v10111 = vadd.f32 %v8683, %v10110
    %v10112 = vpop.f32.mrb[0].mxu0
    %v10113 = vadd.f32 %v8679, %v10112
    %v10114 = vpop.f32.mrb[0].mxu0
    %v10115 = vadd.f32 %v8683, %v10114
    %10116 = vdwg.mxu0
    %10117 = vmatprep.subr.bf16.mxu0 %v9607
    %10118 = vmatpush1.bf16.msra.mxu0 %v9606
    %10119 = vmatprep.subr.bf16.mxu0 %v9615
    %10120 = vmatpush1.bf16.msra.mxu0 %v9614
    %10121 = vmatprep.subr.bf16.mxu0 %v9623
    %10122 = vmatpush1.bf16.msra.mxu0 %v9622
    %10123 = vmatprep.subr.bf16.mxu0 %v9631
    %10124 = vmatpush1.bf16.msra.mxu0 %v9630
    %10125 = vmatprep.subr.bf16.mxu0 %v9639
    %10126 = vmatpush1.bf16.msra.mxu0 %v9638
    %10127 = vmatprep.subr.bf16.mxu0 %v9647
    %10128 = vmatpush1.bf16.msra.mxu0 %v9646
    %10129 = vmatprep.subr.bf16.mxu0 %v9655
    %10130 = vmatpush1.bf16.msra.mxu0 %v9654
    %10131 = vmatprep.subr.bf16.mxu0 %v9663
    %10132 = vmatpush1.bf16.msra.mxu0 %v9662
    %10133 = vmatprep.subr.bf16.mxu0 %v9671
    %10134 = vmatpush1.bf16.msra.mxu0 %v9670
    %10135 = vmatprep.subr.bf16.mxu0 %v9679
    %10136 = vmatpush1.bf16.msra.mxu0 %v9678
    %10137 = vmatprep.subr.bf16.mxu0 %v9687
    %10138 = vmatpush1.bf16.msra.mxu0 %v9686
    %10139 = vmatprep.subr.bf16.mxu0 %v9695
    %10140 = vmatpush1.bf16.msra.mxu0 %v9694
    %10141 = vmatprep.subr.bf16.mxu0 %v9703
    %10142 = vmatpush1.bf16.msra.mxu0 %v9702
    %10143 = vmatprep.subr.bf16.mxu0 %v9711
    %10144 = vmatpush1.bf16.msra.mxu0 %v9710
    %10145 = vmatprep.subr.bf16.mxu0 %v9719
    %10146 = vmatpush1.bf16.msra.mxu0 %v9718
    %10147 = vmatprep.subr.bf16.mxu0 %v9727
    %10148 = vmatpush1.bf16.msra.mxu0 %v9726
    %10149 = vmatprep.mubr.bf16.mxu0 %v8409
    %10150 = vmatmul.mubr.bf16.gmra.mrb[0].mxu0 %v8408
    %v10151 = vpop.f32.mrb[0].mxu0
    %v10152 = vadd.f32 %v10109, %v10151
    %v10153 = vpop.f32.mrb[0].mxu0
    %v10154 = vadd.f32 %v10111, %v10153
    %v10155 = vpop.f32.mrb[0].mxu0
    %v10156 = vadd.f32 %v10113, %v10155
    %v10157 = vpop.f32.mrb[0].mxu0
    %v10158 = vadd.f32 %v10115, %v10157
    %10159 = vdwg.mxu0
    %10160 = vmatprep.subr.bf16.mxu0 %v9481
    %10161 = vmatpush1.bf16.msra.mxu0 %v9480
    %10162 = vmatprep.subr.bf16.mxu0 %v9489
    %10163 = vmatpush1.bf16.msra.mxu0 %v9488
    %10164 = vmatprep.subr.bf16.mxu0 %v9497
    %10165 = vmatpush1.bf16.msra.mxu0 %v9496
    %10166 = vmatprep.subr.bf16.mxu0 %v9505
    %10167 = vmatpush1.bf16.msra.mxu0 %v9504
    %10168 = vmatprep.subr.bf16.mxu0 %v9513
    %10169 = vmatpush1.bf16.msra.mxu0 %v9512
    %10170 = vmatprep.subr.bf16.mxu0 %v9521
    %10171 = vmatpush1.bf16.msra.mxu0 %v9520
    %10172 = vmatprep.subr.bf16.mxu0 %v9529
    %10173 = vmatpush1.bf16.msra.mxu0 %v9528
    %10174 = vmatprep.subr.bf16.mxu0 %v9537
    %10175 = vmatpush1.bf16.msra.mxu0 %v9536
    %10176 = vmatprep.subr.bf16.mxu0 %v9545
    %10177 = vmatpush1.bf16.msra.mxu0 %v9544
    %10178 = vmatprep.subr.bf16.mxu0 %v9553
    %10179 = vmatpush1.bf16.msra.mxu0 %v9552
    %10180 = vmatprep.subr.bf16.mxu0 %v9561
    %10181 = vmatpush1.bf16.msra.mxu0 %v9560
    %10182 = vmatprep.subr.bf16.mxu0 %v9569
    %10183 = vmatpush1.bf16.msra.mxu0 %v9568
    %10184 = vmatprep.subr.bf16.mxu0 %v9577
    %10185 = vmatpush1.bf16.msra.mxu0 %v9576
    %10186 = vmatprep.subr.bf16.mxu0 %v9585
    %10187 = vmatpush1.bf16.msra.mxu0 %v9584
    %10188 = vmatprep.subr.bf16.mxu0 %v9593
    %10189 = vmatpush1.bf16.msra.mxu0 %v9592
    %10190 = vmatprep.subr.bf16.mxu0 %v9601
    %10191 = vmatpush1.bf16.msra.mxu0 %v9600
    %10192 = vmatprep.mubr.bf16.mxu0 %v8407
    %10193 = vmatmul.mubr.bf16.gmra.mrb[0].mxu0 %v8406
    %v10194 = vpop.f32.mrb[0].mxu0
    %v10195 = vadd.f32 %v8687, %v10194
    %v10196 = vpop.f32.mrb[0].mxu0
    %v10197 = vadd.f32 %v8691, %v10196
    %v10198 = vpop.f32.mrb[0].mxu0
    %v10199 = vadd.f32 %v8687, %v10198
    %v10200 = vpop.f32.mrb[0].mxu0
    %v10201 = vadd.f32 %v8691, %v10200
    %10202 = vdwg.mxu0
    %10203 = vmatprep.subr.bf16.mxu0 %v9609
    %10204 = vmatpush1.bf16.msra.mxu0 %v9608
    %10205 = vmatprep.subr.bf16.mxu0 %v9617
    %10206 = vmatpush1.bf16.msra.mxu0 %v9616
    %10207 = vmatprep.subr.bf16.mxu0 %v9625
    %10208 = vmatpush1.bf16.msra.mxu0 %v9624
    %10209 = vmatprep.subr.bf16.mxu0 %v9633
    %10210 = vmatpush1.bf16.msra.mxu0 %v9632
    %10211 = vmatprep.subr.bf16.mxu0 %v9641
    %10212 = vmatpush1.bf16.msra.mxu0 %v9640
    %10213 = vmatprep.subr.bf16.mxu0 %v9649
    %10214 = vmatpush1.bf16.msra.mxu0 %v9648
    %10215 = vmatprep.subr.bf16.mxu0 %v9657
    %10216 = vmatpush1.bf16.msra.mxu0 %v9656
    %10217 = vmatprep.subr.bf16.mxu0 %v9665
    %10218 = vmatpush1.bf16.msra.mxu0 %v9664
    %10219 = vmatprep.subr.bf16.mxu0 %v9673
    %10220 = vmatpush1.bf16.msra.mxu0 %v9672
    %10221 = vmatprep.subr.bf16.mxu0 %v9681
    %10222 = vmatpush1.bf16.msra.mxu0 %v9680
    %10223 = vmatprep.subr.bf16.mxu0 %v9689
    %10224 = vmatpush1.bf16.msra.mxu0 %v9688
    %10225 = vmatprep.subr.bf16.mxu0 %v9697
    %10226 = vmatpush1.bf16.msra.mxu0 %v9696
    %10227 = vmatprep.subr.bf16.mxu0 %v9705
    %10228 = vmatpush1.bf16.msra.mxu0 %v9704
    %10229 = vmatprep.subr.bf16.mxu0 %v9713
    %10230 = vmatpush1.bf16.msra.mxu0 %v9712
    %10231 = vmatprep.subr.bf16.mxu0 %v9721
    %10232 = vmatpush1.bf16.msra.mxu0 %v9720
    %10233 = vmatprep.subr.bf16.mxu0 %v9729
    %10234 = vmatpush1.bf16.msra.mxu0 %v9728
    %10235 = vmatprep.mubr.bf16.mxu0 %v8409
    %10236 = vmatmul.mubr.bf16.gmra.mrb[0].mxu0 %v8408
    %v10237 = vpop.f32.mrb[0].mxu0
    %v10238 = vadd.f32 %v10195, %v10237
    %v10239 = vpop.f32.mrb[0].mxu0
    %v10240 = vadd.f32 %v10197, %v10239
    %v10241 = vpop.f32.mrb[0].mxu0
    %v10242 = vadd.f32 %v10199, %v10241
    %v10243 = vpop.f32.mrb[0].mxu0
    %v10244 = vadd.f32 %v10201, %v10243
    %10245 = vdwg.mxu0
    %10246 = vmatprep.subr.bf16.mxu0 %v9483
    %10247 = vmatpush1.bf16.msra.mxu0 %v9482
    %10248 = vmatprep.subr.bf16.mxu0 %v9491
    %10249 = vmatpush1.bf16.msra.mxu0 %v9490
    %10250 = vmatprep.subr.bf16.mxu0 %v9499
    %10251 = vmatpush1.bf16.msra.mxu0 %v9498
    %10252 = vmatprep.subr.bf16.mxu0 %v9507
    %10253 = vmatpush1.bf16.msra.mxu0 %v9506
    %10254 = vmatprep.subr.bf16.mxu0 %v9515
    %10255 = vmatpush1.bf16.msra.mxu0 %v9514
    %10256 = vmatprep.subr.bf16.mxu0 %v9523
    %10257 = vmatpush1.bf16.msra.mxu0 %v9522
    %10258 = vmatprep.subr.bf16.mxu0 %v9531
    %10259 = vmatpush1.bf16.msra.mxu0 %v9530
    %10260 = vmatprep.subr.bf16.mxu0 %v9539
    %10261 = vmatpush1.bf16.msra.mxu0 %v9538
    %10262 = vmatprep.subr.bf16.mxu0 %v9547
    %10263 = vmatpush1.bf16.msra.mxu0 %v9546
    %10264 = vmatprep.subr.bf16.mxu0 %v9555
    %10265 = vmatpush1.bf16.msra.mxu0 %v9554
    %10266 = vmatprep.subr.bf16.mxu0 %v9563
    %10267 = vmatpush1.bf16.msra.mxu0 %v9562
    %10268 = vmatprep.subr.bf16.mxu0 %v9571
    %10269 = vmatpush1.bf16.msra.mxu0 %v9570
    %10270 = vmatprep.subr.bf16.mxu0 %v9579
    %10271 = vmatpush1.bf16.msra.mxu0 %v9578
    %10272 = vmatprep.subr.bf16.mxu0 %v9587
    %10273 = vmatpush1.bf16.msra.mxu0 %v9586
    %10274 = vmatprep.subr.bf16.mxu0 %v9595
    %10275 = vmatpush1.bf16.msra.mxu0 %v9594
    %10276 = vmatprep.subr.bf16.mxu0 %v9603
    %10277 = vmatpush1.bf16.msra.mxu0 %v9602
    %10278 = vmatprep.mubr.bf16.mxu0 %v8407
    %10279 = vmatmul.mubr.bf16.gmra.mrb[0].mxu0 %v8406
    %v10280 = vpop.f32.mrb[0].mxu0
    %v10281 = vadd.f32 %v8695, %v10280
    %v10282 = vpop.f32.mrb[0].mxu0
    %v10283 = vadd.f32 %v8699, %v10282
    %v10284 = vpop.f32.mrb[0].mxu0
    %v10285 = vadd.f32 %v8695, %v10284
    %v10286 = vpop.f32.mrb[0].mxu0
    %v10287 = vadd.f32 %v8699, %v10286
    %10288 = vdwg.mxu0
    %10289 = vmatprep.subr.bf16.mxu0 %v9611
    %10290 = vmatpush1.bf16.msra.mxu0 %v9610
    %10291 = vmatprep.subr.bf16.mxu0 %v9619
    %10292 = vmatpush1.bf16.msra.mxu0 %v9618
    %10293 = vmatprep.subr.bf16.mxu0 %v9627
    %10294 = vmatpush1.bf16.msra.mxu0 %v9626
    %10295 = vmatprep.subr.bf16.mxu0 %v9635
    %10296 = vmatpush1.bf16.msra.mxu0 %v9634
    %10297 = vmatprep.subr.bf16.mxu0 %v9643
    %10298 = vmatpush1.bf16.msra.mxu0 %v9642
    %10299 = vmatprep.subr.bf16.mxu0 %v9651
    %10300 = vmatpush1.bf16.msra.mxu0 %v9650
    %10301 = vmatprep.subr.bf16.mxu0 %v9659
    %10302 = vmatpush1.bf16.msra.mxu0 %v9658
    %10303 = vmatprep.subr.bf16.mxu0 %v9667
    %10304 = vmatpush1.bf16.msra.mxu0 %v9666
    %10305 = vmatprep.subr.bf16.mxu0 %v9675
    %10306 = vmatpush1.bf16.msra.mxu0 %v9674
    %10307 = vmatprep.subr.bf16.mxu0 %v9683
    %10308 = vmatpush1.bf16.msra.mxu0 %v9682
    %10309 = vmatprep.subr.bf16.mxu0 %v9691
    %10310 = vmatpush1.bf16.msra.mxu0 %v9690
    %10311 = vmatprep.subr.bf16.mxu0 %v9699
    %10312 = vmatpush1.bf16.msra.mxu0 %v9698
    %10313 = vmatprep.subr.bf16.mxu0 %v9707
    %10314 = vmatpush1.bf16.msra.mxu0 %v9706
    %10315 = vmatprep.subr.bf16.mxu0 %v9715
    %10316 = vmatpush1.bf16.msra.mxu0 %v9714
    %10317 = vmatprep.subr.bf16.mxu0 %v9723
    %10318 = vmatpush1.bf16.msra.mxu0 %v9722
    %10319 = vmatprep.subr.bf16.mxu0 %v9731
    %10320 = vmatpush1.bf16.msra.mxu0 %v9730
    %10321 = vmatprep.mubr.bf16.mxu0 %v8409
    %10322 = vmatmul.mubr.bf16.gmra.mrb[0].mxu0 %v8408
    %v10323 = vpop.f32.mrb[0].mxu0
    %v10324 = vadd.f32 %v10281, %v10323
    %v10325 = vpop.f32.mrb[0].mxu0
    %v10326 = vadd.f32 %v10283, %v10325
    %v10327 = vpop.f32.mrb[0].mxu0
    %v10328 = vadd.f32 %v10285, %v10327
    %v10329 = vpop.f32.mrb[0].mxu0
    %v10330 = vadd.f32 %v10287, %v10329
    %10331 = vdwg.mxu0
    %10332 = vst [vmem:[#allocation11] sm:$0xff] %v10066
    %10333 = vst [vmem:[#allocation11 + $0x8] sm:$0xff] %v10068
    %10334 = vst [vmem:[#allocation11 + $0x10] sm:$0xff] %v10152
    %10335 = vst [vmem:[#allocation11 + $0x18] sm:$0xff] %v10154
    %10336 = vst [vmem:[#allocation11 + $0x20] sm:$0xff] %v10238
    %10337 = vst [vmem:[#allocation11 + $0x28] sm:$0xff] %v10240
    %10338 = vst [vmem:[#allocation11 + $0x30] sm:$0xff] %v10324
    %10339 = vst [vmem:[#allocation11 + $0x38] sm:$0xff] %v10326
    %10340 = vst [vmem:[#allocation11 + $0x40] sm:$0xff] %v10070
    %10341 = vst [vmem:[#allocation11 + $0x48] sm:$0xff] %v10072
    %10342 = vst [vmem:[#allocation11 + $0x50] sm:$0xff] %v10156
    %10343 = vst [vmem:[#allocation11 + $0x58] sm:$0xff] %v10158
    %10344 = vst [vmem:[#allocation11 + $0x60] sm:$0xff] %v10242
    %10345 = vst [vmem:[#allocation11 + $0x68] sm:$0xff] %v10244
    %10346 = vst [vmem:[#allocation11 + $0x70] sm:$0xff] %v10328
    %10347 = vst [vmem:[#allocation11 + $0x78] sm:$0xff] %v10330
    // Predicated region
    $region42: #{tpu_custom_call.1} parent=1 // pred_check
      _
    $region43: #{tpu_custom_call.1} parent=1 // pred_check_branch
      %10349 = sbr.rel (0) target = $region45
    $region44: #{tpu_custom_call.1} parent=1 // pred_region
      %s10351 = ssub.s32 2048, 2048
      %10352 = vsyncadd [#allocation4], %s10351
      %s10353 = sshll.u32 [#allocation11], 4
      %s10354 = int_to_ptr.vmem [resolvable:$true] %s10353
      %10359 = dma.vmem_to_hbm [thread:$0]  %s10354, 2048, %s5, [#allocation4], 1024, 1024, 64
    $region45: #{tpu_custom_call.1} parent=1 // pred_fallthru
      _
    // Predicated region
    $region46: #{tpu_custom_call.1} parent=1 // pred_check
      _
    $region47: #{tpu_custom_call.1} parent=1 // pred_check_branch
      %10361 = sbr.rel (0) target = $region49
    $region48: #{tpu_custom_call.1} parent=1 // pred_region
      %10362 = dma.done [#allocation4], 2048
    $region49: #{tpu_custom_call.1} parent=1 // pred_fallthru
      _
    %10363 = vsyncpa [#allocation3], 1
    %10364 = vsyncpa [#allocation6], 1
    %10365 = vsyncpa [#allocation9], 1
    %10366 = vsyncpa [#allocation4], 1

</llo_original>
